<compile_context>
chip_gen: v5e
topology: v5e:2x2
jax: 0.10.0
libtpu: 0.0.40
codegen_flags: <defaults>
</compile_context>

<pallas_src>
import jax
import jax.numpy as jnp
from jax.experimental import pallas as pl
from jax.experimental.pallas import tpu as pltpu

# --------------------- module-consistent hyperparameters ----------------------
C = 4              # EEG channels
T = 64             # samples per window
K = 8              # temporal conv kernel width
M = 4              # max-pool window / stride
S = 8              # n_spatial_filters
E = 100            # embedding_dim  (SSL_Linear wraps nn.Linear(100, 5))
NUM_CLASSES = 5
N_WIN = 16         # windows in the classification minibatch

TOUT = T - K + 1           # temporal-conv valid output length (57)
NPOOL = TOUT // M          # MaxPool1d output length (14; remainder truncated)
SLOTS = T // M             # pool slots per window in the padded layout (16)
NT = N_WIN * T             # total time rows across the batch (1024)
TPAD = 8                   # zeroed rows after h1 (>= K-1) for shifted reads


# ------------------------------ fused kernel ----------------------------------
def _ssl_linear_kernel(x_ref, ws_ref, bs_ref, wt_ref, bt_ref, wfc_ref, bfc_ref,
                       wcls_ref, bcls_ref, out_ref, h1_s, h2_s, pool_s):
    # x_ref   : (NT, C)            ws_ref : (C, S)        bs_ref : (1, S)
    # wt_ref  : (K, S, S)          bt_ref : (1, S)
    # wfc_ref : (NPOOL, S, E)      bfc_ref: (1, E)
    # wcls_ref: (E, NUM_CLASSES)   bcls_ref: (1, NUM_CLASSES)
    # out_ref : (N_WIN, NUM_CLASSES)
    # h1_s: (NT+TPAD, S)   h2_s: (NT, S)   pool_s: (NT//M, S)

    # ---- spatial conv (all windows in one matmul) + ReLU --------------------
    h1 = jnp.dot(x_ref[...], ws_ref[...],
                 preferred_element_type=jnp.float32) + bs_ref[...]
    h1_s[pl.ds(0, NT), :] = jnp.maximum(h1, 0.0)
    h1_s[pl.ds(NT, TPAD), :] = jnp.zeros((TPAD, S), jnp.float32)

    # ---- temporal conv: K shifted, window-batched matmuls + ReLU ------------
    # Row n*T + t of `acc` is valid for t < TOUT; later rows mix adjacent
    # windows (or the zero pad) but are never consumed by the truncating
    # max-pool below.
    acc = jnp.zeros((NT, S), jnp.float32)
    for j in range(K):
        acc = acc + jnp.dot(h1_s[pl.ds(j, NT), :], wt_ref[j],
                            preferred_element_type=jnp.float32)
    h2_s[...] = jnp.maximum(acc + bt_ref[...], 0.0)

    # ---- MaxPool1d(M) over time via strided loads ---------------------------
    pooled = h2_s[pl.ds(0, NT // M, stride=M), :]
    for r in range(1, M):
        pooled = jnp.maximum(pooled, h2_s[pl.ds(r, NT // M, stride=M), :])
    pool_s[...] = pooled                     # row n*SLOTS + q  == (window, slot)

    # ---- flatten + Linear(NPOOL*S -> 100): NPOOL window-batched matmuls -----
    emb = jnp.zeros((N_WIN, E), jnp.float32)
    for p in range(NPOOL):
        emb = emb + jnp.dot(pool_s[pl.ds(p, N_WIN, stride=SLOTS), :],
                            wfc_ref[p], preferred_element_type=jnp.float32)
    emb = emb + bfc_ref[...]                 # frozen feature-extractor output

    # ---- SSL head: nn.Linear(100, 5) -----------------------------------------
    out_ref[...] = jnp.dot(emb, wcls_ref[...],
                           preferred_element_type=jnp.float32) + bcls_ref[...]


# ------------------------------- wrapper ---------------------------------------
@jax.jit
def ssl_linear_forward(x_nchw, feat_params, head_params):
    """x_nchw: (N_WIN, 1, C, T), exactly the PyTorch Conv2d input layout."""
    # frozen feature extractor (model.requires_grad = False / torch.no_grad()).
    feat_params = jax.tree_util.tree_map(jax.lax.stop_gradient, feat_params)
    ws, bs, wt, bt, wfc, bfc = feat_params
    wcls, bcls = head_params
    # NCHW -> time-major channels-last, flattened across windows (pure layout).
    x2d = jnp.transpose(x_nchw[:, 0], (0, 2, 1)).reshape(N_WIN * T, C)
    return pl.pallas_call(
        _ssl_linear_kernel,
        out_shape=jax.ShapeDtypeStruct((N_WIN, NUM_CLASSES), jnp.float32),
        scratch_shapes=[
            pltpu.VMEM((NT + TPAD, S), jnp.float32),   # h1 (+ zeroed tail)
            pltpu.VMEM((NT, S), jnp.float32),          # h2
            pltpu.VMEM((NT // M, S), jnp.float32),     # pooled
        ],
    )(x2d, ws, bs, wt, bt, wfc, bfc, wcls, bcls)


# --------------------------- pure-JAX reference --------------------------------
def reference_forward(x_nchw, feat_params, head_params):
    ws, bs, wt, bt, wfc, bfc = feat_params
    wcls, bcls = head_params
    hp = jax.lax.Precision.HIGHEST
    xt = jnp.transpose(x_nchw[:, 0], (0, 2, 1))                     # (N, T, C)
    h1 = jnp.maximum(jnp.einsum("ntc,cs->nts", xt, ws, precision=hp) + bs, 0.0)
    h2 = jnp.zeros((N_WIN, TOUT, S), jnp.float32)
    for j in range(K):
        h2 = h2 + jnp.einsum("nts,so->nto", h1[:, j:j + TOUT, :], wt[j],
                             precision=hp)
    h2 = jnp.maximum(h2 + bt, 0.0)
    pooled = h2[:, :NPOOL * M, :].reshape(N_WIN, NPOOL, M, S).max(axis=2)
    feats = jnp.einsum("nps,pse->ne", pooled, wfc, precision=hp) + bfc
    return jnp.dot(feats, wcls, precision=hp) + bcls                # (N, 5)


# --------------------------------- params --------------------------------------
def init_params(key):
    ks = jax.random.split(key, 8)
    ws = jax.random.normal(ks[0], (C, S), jnp.float32) * 0.3          # spatial conv
    bs = jax.random.normal(ks[1], (1, S), jnp.float32) * 0.1
    wt = jax.random.normal(ks[2], (K, S, S), jnp.float32) * 0.1       # temporal conv
    bt = jax.random.normal(ks[3], (1, S), jnp.float32) * 0.1
    wfc = jax.random.normal(ks[4], (NPOOL, S, E), jnp.float32) * 0.1  # feat. linear
    bfc = jax.random.normal(ks[5], (1, E), jnp.float32) * 0.1
    wcls = jax.random.normal(ks[6], (E, NUM_CLASSES), jnp.float32) * 0.1   # Linear(100, 5)
    bcls = jax.random.normal(ks[7], (1, NUM_CLASSES), jnp.float32) * 0.1
    return (ws, bs, wt, bt, wfc, bfc), (wcls, bcls)


if __name__ == "__main__":
    key = jax.random.PRNGKey(0)
    kx, kp = jax.random.split(key)
    # minibatch of EEG windows in the PyTorch NCHW layout fed to the extractor
    x = jax.random.normal(kx, (N_WIN, 1, C, T), jnp.float32)
    feat_params, head_params = init_params(kp)

    out = ssl_linear_forward(x, feat_params, head_params)
    out = jax.block_until_ready(out)

    ref = reference_forward(x, feat_params, head_params)
    assert out.shape == (N_WIN, NUM_CLASSES), out.shape
    assert bool(jnp.all(jnp.isfinite(out))), out
    err = float(jnp.max(jnp.abs(out - ref)))
    scale = float(jnp.maximum(1.0, jnp.max(jnp.abs(ref))))
    assert err <= 5e-3 * scale, (err, scale)
    print("KERNEL_OK")
</pallas_src>

<mosaic_0001>
module attributes {stable_mosaic.version = 11 : i64} {
  func.func @_ssl_linear_kernel(%arg0: memref<1024x4xf32, #tpu.memory_space<vmem>>, %arg1: memref<4x8xf32, #tpu.memory_space<vmem>>, %arg2: memref<1x8xf32, #tpu.memory_space<vmem>>, %arg3: memref<8x8x8xf32, #tpu.memory_space<vmem>>, %arg4: memref<1x8xf32, #tpu.memory_space<vmem>>, %arg5: memref<14x8x100xf32, #tpu.memory_space<vmem>>, %arg6: memref<1x100xf32, #tpu.memory_space<vmem>>, %arg7: memref<100x5xf32, #tpu.memory_space<vmem>>, %arg8: memref<1x5xf32, #tpu.memory_space<vmem>>, %arg9: memref<16x5xf32, #tpu.memory_space<vmem>>, %arg10: memref<1032x8xf32, #tpu.memory_space<vmem>>, %arg11: memref<1024x8xf32, #tpu.memory_space<vmem>>, %arg12: memref<256x8xf32, #tpu.memory_space<vmem>>) attributes {dimension_semantics = [], scalar_prefetch = 0 : i64, scratch_operands = 3 : i64, tpu.core_type = #tpu.core_type<tc>} {
    %c0 = arith.constant 0 : index
    %c0_0 = arith.constant 0 : index
    %0 = vector.load %arg0[%c0, %c0_0] : memref<1024x4xf32, #tpu.memory_space<vmem>>, vector<1024x4xf32>
    %c0_1 = arith.constant 0 : index
    %c0_2 = arith.constant 0 : index
    %1 = vector.load %arg1[%c0_1, %c0_2] : memref<4x8xf32, #tpu.memory_space<vmem>>, vector<4x8xf32>
    %cst = arith.constant dense<0.000000e+00> : vector<1024x8xf32>
    %2 = tpu.matmul %0, %1, %cst {dimension_numbers = #tpu.dot_dimension_numbers<[1], [0], [0], [1], [0, 0, 1, 1], [], []>} : vector<1024x4xf32>, vector<4x8xf32>, vector<1024x8xf32> -> vector<1024x8xf32>
    %c0_3 = arith.constant 0 : index
    %c0_4 = arith.constant 0 : index
    %3 = vector.load %arg2[%c0_3, %c0_4] : memref<1x8xf32, #tpu.memory_space<vmem>>, vector<1x8xf32>
    %4 = vector.broadcast %3 : vector<1x8xf32> to vector<1024x8xf32>
    %5 = arith.addf %2, %4 : vector<1024x8xf32>
    %cst_5 = arith.constant 0.000000e+00 : f32
    %6 = vector.broadcast %cst_5 : f32 to vector<1024x8xf32>
    %7 = arith.maximumf %5, %6 : vector<1024x8xf32>
    %c0_6 = arith.constant 0 : index
    %c0_7 = arith.constant 0 : index
    %8 = vector.load %arg10[%c0_6, %c0_7] : memref<1032x8xf32, #tpu.memory_space<vmem>>, vector<1024x8xf32>
    tpu.vector_store %arg10[%c0_6, %c0_7], %7 {strides = array<i32>} : memref<1032x8xf32, #tpu.memory_space<vmem>>, vector<1024x8xf32>,
    %cst_8 = arith.constant 0.000000e+00 : f32
    %9 = vector.broadcast %cst_8 : f32 to vector<8x8xf32>
    %c1024 = arith.constant 1024 : index
    %c0_9 = arith.constant 0 : index
    %10 = vector.load %arg10[%c1024, %c0_9] : memref<1032x8xf32, #tpu.memory_space<vmem>>, vector<8x8xf32>
    tpu.vector_store %arg10[%c1024, %c0_9], %9 {strides = array<i32>} : memref<1032x8xf32, #tpu.memory_space<vmem>>, vector<8x8xf32>,
    %cst_10 = arith.constant 0.000000e+00 : f32
    %11 = vector.broadcast %cst_10 : f32 to vector<1024x8xf32>
    %c0_11 = arith.constant 0 : index
    %c0_12 = arith.constant 0 : index
    %12 = vector.load %arg10[%c0_11, %c0_12] : memref<1032x8xf32, #tpu.memory_space<vmem>>, vector<1024x8xf32>
    %c0_13 = arith.constant 0 : index
    %c0_14 = arith.constant 0 : index
    %c0_15 = arith.constant 0 : index
    %13 = vector.load %arg3[%c0_13, %c0_14, %c0_15] : memref<8x8x8xf32, #tpu.memory_space<vmem>>, vector<1x8x8xf32>
    %14 = vector.shape_cast %13 : vector<1x8x8xf32> to vector<8x8xf32>
    %cst_16 = arith.constant dense<0.000000e+00> : vector<1024x8xf32>
    %15 = tpu.matmul %12, %14, %cst_16 {dimension_numbers = #tpu.dot_dimension_numbers<[1], [0], [0], [1], [0, 0, 1, 1], [], []>} : vector<1024x8xf32>, vector<8x8xf32>, vector<1024x8xf32> -> vector<1024x8xf32>
    %16 = arith.addf %11, %15 : vector<1024x8xf32>
    %c1 = arith.constant 1 : index
    %c0_17 = arith.constant 0 : index
    %17 = vector.load %arg10[%c1, %c0_17] : memref<1032x8xf32, #tpu.memory_space<vmem>>, vector<1024x8xf32>
    %c1_18 = arith.constant 1 : index
    %c0_19 = arith.constant 0 : index
    %c0_20 = arith.constant 0 : index
    %18 = vector.load %arg3[%c1_18, %c0_19, %c0_20] : memref<8x8x8xf32, #tpu.memory_space<vmem>>, vector<1x8x8xf32>
    %19 = vector.shape_cast %18 : vector<1x8x8xf32> to vector<8x8xf32>
    %cst_21 = arith.constant dense<0.000000e+00> : vector<1024x8xf32>
    %20 = tpu.matmul %17, %19, %cst_21 {dimension_numbers = #tpu.dot_dimension_numbers<[1], [0], [0], [1], [0, 0, 1, 1], [], []>} : vector<1024x8xf32>, vector<8x8xf32>, vector<1024x8xf32> -> vector<1024x8xf32>
    %21 = arith.addf %16, %20 : vector<1024x8xf32>
    %c2 = arith.constant 2 : index
    %c0_22 = arith.constant 0 : index
    %22 = vector.load %arg10[%c2, %c0_22] : memref<1032x8xf32, #tpu.memory_space<vmem>>, vector<1024x8xf32>
    %c2_23 = arith.constant 2 : index
    %c0_24 = arith.constant 0 : index
    %c0_25 = arith.constant 0 : index
    %23 = vector.load %arg3[%c2_23, %c0_24, %c0_25] : memref<8x8x8xf32, #tpu.memory_space<vmem>>, vector<1x8x8xf32>
    %24 = vector.shape_cast %23 : vector<1x8x8xf32> to vector<8x8xf32>
    %cst_26 = arith.constant dense<0.000000e+00> : vector<1024x8xf32>
    %25 = tpu.matmul %22, %24, %cst_26 {dimension_numbers = #tpu.dot_dimension_numbers<[1], [0], [0], [1], [0, 0, 1, 1], [], []>} : vector<1024x8xf32>, vector<8x8xf32>, vector<1024x8xf32> -> vector<1024x8xf32>
    %26 = arith.addf %21, %25 : vector<1024x8xf32>
    %c3 = arith.constant 3 : index
    %c0_27 = arith.constant 0 : index
    %27 = vector.load %arg10[%c3, %c0_27] : memref<1032x8xf32, #tpu.memory_space<vmem>>, vector<1024x8xf32>
    %c3_28 = arith.constant 3 : index
    %c0_29 = arith.constant 0 : index
    %c0_30 = arith.constant 0 : index
    %28 = vector.load %arg3[%c3_28, %c0_29, %c0_30] : memref<8x8x8xf32, #tpu.memory_space<vmem>>, vector<1x8x8xf32>
    %29 = vector.shape_cast %28 : vector<1x8x8xf32> to vector<8x8xf32>
    %cst_31 = arith.constant dense<0.000000e+00> : vector<1024x8xf32>
    %30 = tpu.matmul %27, %29, %cst_31 {dimension_numbers = #tpu.dot_dimension_numbers<[1], [0], [0], [1], [0, 0, 1, 1], [], []>} : vector<1024x8xf32>, vector<8x8xf32>, vector<1024x8xf32> -> vector<1024x8xf32>
    %31 = arith.addf %26, %30 : vector<1024x8xf32>
    %c4 = arith.constant 4 : index
    %c0_32 = arith.constant 0 : index
    %32 = vector.load %arg10[%c4, %c0_32] : memref<1032x8xf32, #tpu.memory_space<vmem>>, vector<1024x8xf32>
    %c4_33 = arith.constant 4 : index
    %c0_34 = arith.constant 0 : index
    %c0_35 = arith.constant 0 : index
    %33 = vector.load %arg3[%c4_33, %c0_34, %c0_35] : memref<8x8x8xf32, #tpu.memory_space<vmem>>, vector<1x8x8xf32>
    %34 = vector.shape_cast %33 : vector<1x8x8xf32> to vector<8x8xf32>
    %cst_36 = arith.constant dense<0.000000e+00> : vector<1024x8xf32>
    %35 = tpu.matmul %32, %34, %cst_36 {dimension_numbers = #tpu.dot_dimension_numbers<[1], [0], [0], [1], [0, 0, 1, 1], [], []>} : vector<1024x8xf32>, vector<8x8xf32>, vector<1024x8xf32> -> vector<1024x8xf32>
    %36 = arith.addf %31, %35 : vector<1024x8xf32>
    %c5 = arith.constant 5 : index
    %c0_37 = arith.constant 0 : index
    %37 = vector.load %arg10[%c5, %c0_37] : memref<1032x8xf32, #tpu.memory_space<vmem>>, vector<1024x8xf32>
    %c5_38 = arith.constant 5 : index
    %c0_39 = arith.constant 0 : index
    %c0_40 = arith.constant 0 : index
    %38 = vector.load %arg3[%c5_38, %c0_39, %c0_40] : memref<8x8x8xf32, #tpu.memory_space<vmem>>, vector<1x8x8xf32>
    %39 = vector.shape_cast %38 : vector<1x8x8xf32> to vector<8x8xf32>
    %cst_41 = arith.constant dense<0.000000e+00> : vector<1024x8xf32>
    %40 = tpu.matmul %37, %39, %cst_41 {dimension_numbers = #tpu.dot_dimension_numbers<[1], [0], [0], [1], [0, 0, 1, 1], [], []>} : vector<1024x8xf32>, vector<8x8xf32>, vector<1024x8xf32> -> vector<1024x8xf32>
    %41 = arith.addf %36, %40 : vector<1024x8xf32>
    %c6 = arith.constant 6 : index
    %c0_42 = arith.constant 0 : index
    %42 = vector.load %arg10[%c6, %c0_42] : memref<1032x8xf32, #tpu.memory_space<vmem>>, vector<1024x8xf32>
    %c6_43 = arith.constant 6 : index
    %c0_44 = arith.constant 0 : index
    %c0_45 = arith.constant 0 : index
    %43 = vector.load %arg3[%c6_43, %c0_44, %c0_45] : memref<8x8x8xf32, #tpu.memory_space<vmem>>, vector<1x8x8xf32>
    %44 = vector.shape_cast %43 : vector<1x8x8xf32> to vector<8x8xf32>
    %cst_46 = arith.constant dense<0.000000e+00> : vector<1024x8xf32>
    %45 = tpu.matmul %42, %44, %cst_46 {dimension_numbers = #tpu.dot_dimension_numbers<[1], [0], [0], [1], [0, 0, 1, 1], [], []>} : vector<1024x8xf32>, vector<8x8xf32>, vector<1024x8xf32> -> vector<1024x8xf32>
    %46 = arith.addf %41, %45 : vector<1024x8xf32>
    %c7 = arith.constant 7 : index
    %c0_47 = arith.constant 0 : index
    %47 = vector.load %arg10[%c7, %c0_47] : memref<1032x8xf32, #tpu.memory_space<vmem>>, vector<1024x8xf32>
    %c7_48 = arith.constant 7 : index
    %c0_49 = arith.constant 0 : index
    %c0_50 = arith.constant 0 : index
    %48 = vector.load %arg3[%c7_48, %c0_49, %c0_50] : memref<8x8x8xf32, #tpu.memory_space<vmem>>, vector<1x8x8xf32>
    %49 = vector.shape_cast %48 : vector<1x8x8xf32> to vector<8x8xf32>
    %cst_51 = arith.constant dense<0.000000e+00> : vector<1024x8xf32>
    %50 = tpu.matmul %47, %49, %cst_51 {dimension_numbers = #tpu.dot_dimension_numbers<[1], [0], [0], [1], [0, 0, 1, 1], [], []>} : vector<1024x8xf32>, vector<8x8xf32>, vector<1024x8xf32> -> vector<1024x8xf32>
    %51 = arith.addf %46, %50 : vector<1024x8xf32>
    %c0_52 = arith.constant 0 : index
    %c0_53 = arith.constant 0 : index
    %52 = vector.load %arg4[%c0_52, %c0_53] : memref<1x8xf32, #tpu.memory_space<vmem>>, vector<1x8xf32>
    %53 = vector.broadcast %52 : vector<1x8xf32> to vector<1024x8xf32>
    %54 = arith.addf %51, %53 : vector<1024x8xf32>
    %cst_54 = arith.constant 0.000000e+00 : f32
    %55 = vector.broadcast %cst_54 : f32 to vector<1024x8xf32>
    %56 = arith.maximumf %54, %55 : vector<1024x8xf32>
    %c0_55 = arith.constant 0 : index
    %c0_56 = arith.constant 0 : index
    %57 = vector.load %arg11[%c0_55, %c0_56] : memref<1024x8xf32, #tpu.memory_space<vmem>>, vector<1024x8xf32>
    tpu.vector_store %arg11[%c0_55, %c0_56], %56 {strides = array<i32>} : memref<1024x8xf32, #tpu.memory_space<vmem>>, vector<1024x8xf32>,
    %c0_57 = arith.constant 0 : index
    %c0_58 = arith.constant 0 : index
    %58 = tpu.strided_load %arg11[%c0_57, %c0_58] {strides = array<i32: 4, 1>} : memref<1024x8xf32, #tpu.memory_space<vmem>>, vector<256x8xf32>
    %c1_59 = arith.constant 1 : index
    %c0_60 = arith.constant 0 : index
    %59 = tpu.strided_load %arg11[%c1_59, %c0_60] {strides = array<i32: 4, 1>} : memref<1024x8xf32, #tpu.memory_space<vmem>>, vector<256x8xf32>
    %60 = arith.maximumf %58, %59 : vector<256x8xf32>
    %c2_61 = arith.constant 2 : index
    %c0_62 = arith.constant 0 : index
    %61 = tpu.strided_load %arg11[%c2_61, %c0_62] {strides = array<i32: 4, 1>} : memref<1024x8xf32, #tpu.memory_space<vmem>>, vector<256x8xf32>
    %62 = arith.maximumf %60, %61 : vector<256x8xf32>
    %c3_63 = arith.constant 3 : index
    %c0_64 = arith.constant 0 : index
    %63 = tpu.strided_load %arg11[%c3_63, %c0_64] {strides = array<i32: 4, 1>} : memref<1024x8xf32, #tpu.memory_space<vmem>>, vector<256x8xf32>
    %64 = arith.maximumf %62, %63 : vector<256x8xf32>
    %c0_65 = arith.constant 0 : index
    %c0_66 = arith.constant 0 : index
    %65 = vector.load %arg12[%c0_65, %c0_66] : memref<256x8xf32, #tpu.memory_space<vmem>>, vector<256x8xf32>
    tpu.vector_store %arg12[%c0_65, %c0_66], %64 {strides = array<i32>} : memref<256x8xf32, #tpu.memory_space<vmem>>, vector<256x8xf32>,
    %cst_67 = arith.constant 0.000000e+00 : f32
    %66 = vector.broadcast %cst_67 : f32 to vector<16x100xf32>
    %c0_68 = arith.constant 0 : index
    %c0_69 = arith.constant 0 : index
    %67 = tpu.strided_load %arg12[%c0_68, %c0_69] {strides = array<i32: 16, 1>} : memref<256x8xf32, #tpu.memory_space<vmem>>, vector<16x8xf32>
    %c0_70 = arith.constant 0 : index
    %c0_71 = arith.constant 0 : index
    %c0_72 = arith.constant 0 : index
    %68 = vector.load %arg5[%c0_70, %c0_71, %c0_72] : memref<14x8x100xf32, #tpu.memory_space<vmem>>, vector<1x8x100xf32>
    %69 = vector.shape_cast %68 : vector<1x8x100xf32> to vector<8x100xf32>
    %cst_73 = arith.constant dense<0.000000e+00> : vector<16x100xf32>
    %70 = tpu.matmul %67, %69, %cst_73 {dimension_numbers = #tpu.dot_dimension_numbers<[1], [0], [0], [1], [0, 0, 1, 1], [], []>} : vector<16x8xf32>, vector<8x100xf32>, vector<16x100xf32> -> vector<16x100xf32>
    %71 = arith.addf %66, %70 : vector<16x100xf32>
    %c1_74 = arith.constant 1 : index
    %c0_75 = arith.constant 0 : index
    %72 = tpu.strided_load %arg12[%c1_74, %c0_75] {strides = array<i32: 16, 1>} : memref<256x8xf32, #tpu.memory_space<vmem>>, vector<16x8xf32>
    %c1_76 = arith.constant 1 : index
    %c0_77 = arith.constant 0 : index
    %c0_78 = arith.constant 0 : index
    %73 = vector.load %arg5[%c1_76, %c0_77, %c0_78] : memref<14x8x100xf32, #tpu.memory_space<vmem>>, vector<1x8x100xf32>
    %74 = vector.shape_cast %73 : vector<1x8x100xf32> to vector<8x100xf32>
    %cst_79 = arith.constant dense<0.000000e+00> : vector<16x100xf32>
    %75 = tpu.matmul %72, %74, %cst_79 {dimension_numbers = #tpu.dot_dimension_numbers<[1], [0], [0], [1], [0, 0, 1, 1], [], []>} : vector<16x8xf32>, vector<8x100xf32>, vector<16x100xf32> -> vector<16x100xf32>
    %76 = arith.addf %71, %75 : vector<16x100xf32>
    %c2_80 = arith.constant 2 : index
    %c0_81 = arith.constant 0 : index
    %77 = tpu.strided_load %arg12[%c2_80, %c0_81] {strides = array<i32: 16, 1>} : memref<256x8xf32, #tpu.memory_space<vmem>>, vector<16x8xf32>
    %c2_82 = arith.constant 2 : index
    %c0_83 = arith.constant 0 : index
    %c0_84 = arith.constant 0 : index
    %78 = vector.load %arg5[%c2_82, %c0_83, %c0_84] : memref<14x8x100xf32, #tpu.memory_space<vmem>>, vector<1x8x100xf32>
    %79 = vector.shape_cast %78 : vector<1x8x100xf32> to vector<8x100xf32>
    %cst_85 = arith.constant dense<0.000000e+00> : vector<16x100xf32>
    %80 = tpu.matmul %77, %79, %cst_85 {dimension_numbers = #tpu.dot_dimension_numbers<[1], [0], [0], [1], [0, 0, 1, 1], [], []>} : vector<16x8xf32>, vector<8x100xf32>, vector<16x100xf32> -> vector<16x100xf32>
    %81 = arith.addf %76, %80 : vector<16x100xf32>
    %c3_86 = arith.constant 3 : index
    %c0_87 = arith.constant 0 : index
    %82 = tpu.strided_load %arg12[%c3_86, %c0_87] {strides = array<i32: 16, 1>} : memref<256x8xf32, #tpu.memory_space<vmem>>, vector<16x8xf32>
    %c3_88 = arith.constant 3 : index
    %c0_89 = arith.constant 0 : index
    %c0_90 = arith.constant 0 : index
    %83 = vector.load %arg5[%c3_88, %c0_89, %c0_90] : memref<14x8x100xf32, #tpu.memory_space<vmem>>, vector<1x8x100xf32>
    %84 = vector.shape_cast %83 : vector<1x8x100xf32> to vector<8x100xf32>
    %cst_91 = arith.constant dense<0.000000e+00> : vector<16x100xf32>
    %85 = tpu.matmul %82, %84, %cst_91 {dimension_numbers = #tpu.dot_dimension_numbers<[1], [0], [0], [1], [0, 0, 1, 1], [], []>} : vector<16x8xf32>, vector<8x100xf32>, vector<16x100xf32> -> vector<16x100xf32>
    %86 = arith.addf %81, %85 : vector<16x100xf32>
    %c4_92 = arith.constant 4 : index
    %c0_93 = arith.constant 0 : index
    %87 = tpu.strided_load %arg12[%c4_92, %c0_93] {strides = array<i32: 16, 1>} : memref<256x8xf32, #tpu.memory_space<vmem>>, vector<16x8xf32>
    %c4_94 = arith.constant 4 : index
    %c0_95 = arith.constant 0 : index
    %c0_96 = arith.constant 0 : index
    %88 = vector.load %arg5[%c4_94, %c0_95, %c0_96] : memref<14x8x100xf32, #tpu.memory_space<vmem>>, vector<1x8x100xf32>
    %89 = vector.shape_cast %88 : vector<1x8x100xf32> to vector<8x100xf32>
    %cst_97 = arith.constant dense<0.000000e+00> : vector<16x100xf32>
    %90 = tpu.matmul %87, %89, %cst_97 {dimension_numbers = #tpu.dot_dimension_numbers<[1], [0], [0], [1], [0, 0, 1, 1], [], []>} : vector<16x8xf32>, vector<8x100xf32>, vector<16x100xf32> -> vector<16x100xf32>
    %91 = arith.addf %86, %90 : vector<16x100xf32>
    %c5_98 = arith.constant 5 : index
    %c0_99 = arith.constant 0 : index
    %92 = tpu.strided_load %arg12[%c5_98, %c0_99] {strides = array<i32: 16, 1>} : memref<256x8xf32, #tpu.memory_space<vmem>>, vector<16x8xf32>
    %c5_100 = arith.constant 5 : index
    %c0_101 = arith.constant 0 : index
    %c0_102 = arith.constant 0 : index
    %93 = vector.load %arg5[%c5_100, %c0_101, %c0_102] : memref<14x8x100xf32, #tpu.memory_space<vmem>>, vector<1x8x100xf32>
    %94 = vector.shape_cast %93 : vector<1x8x100xf32> to vector<8x100xf32>
    %cst_103 = arith.constant dense<0.000000e+00> : vector<16x100xf32>
    %95 = tpu.matmul %92, %94, %cst_103 {dimension_numbers = #tpu.dot_dimension_numbers<[1], [0], [0], [1], [0, 0, 1, 1], [], []>} : vector<16x8xf32>, vector<8x100xf32>, vector<16x100xf32> -> vector<16x100xf32>
    %96 = arith.addf %91, %95 : vector<16x100xf32>
    %c6_104 = arith.constant 6 : index
    %c0_105 = arith.constant 0 : index
    %97 = tpu.strided_load %arg12[%c6_104, %c0_105] {strides = array<i32: 16, 1>} : memref<256x8xf32, #tpu.memory_space<vmem>>, vector<16x8xf32>
    %c6_106 = arith.constant 6 : index
    %c0_107 = arith.constant 0 : index
    %c0_108 = arith.constant 0 : index
    %98 = vector.load %arg5[%c6_106, %c0_107, %c0_108] : memref<14x8x100xf32, #tpu.memory_space<vmem>>, vector<1x8x100xf32>
    %99 = vector.shape_cast %98 : vector<1x8x100xf32> to vector<8x100xf32>
    %cst_109 = arith.constant dense<0.000000e+00> : vector<16x100xf32>
    %100 = tpu.matmul %97, %99, %cst_109 {dimension_numbers = #tpu.dot_dimension_numbers<[1], [0], [0], [1], [0, 0, 1, 1], [], []>} : vector<16x8xf32>, vector<8x100xf32>, vector<16x100xf32> -> vector<16x100xf32>
    %101 = arith.addf %96, %100 : vector<16x100xf32>
    %c7_110 = arith.constant 7 : index
    %c0_111 = arith.constant 0 : index
    %102 = tpu.strided_load %arg12[%c7_110, %c0_111] {strides = array<i32: 16, 1>} : memref<256x8xf32, #tpu.memory_space<vmem>>, vector<16x8xf32>
    %c7_112 = arith.constant 7 : index
    %c0_113 = arith.constant 0 : index
    %c0_114 = arith.constant 0 : index
    %103 = vector.load %arg5[%c7_112, %c0_113, %c0_114] : memref<14x8x100xf32, #tpu.memory_space<vmem>>, vector<1x8x100xf32>
    %104 = vector.shape_cast %103 : vector<1x8x100xf32> to vector<8x100xf32>
    %cst_115 = arith.constant dense<0.000000e+00> : vector<16x100xf32>
    %105 = tpu.matmul %102, %104, %cst_115 {dimension_numbers = #tpu.dot_dimension_numbers<[1], [0], [0], [1], [0, 0, 1, 1], [], []>} : vector<16x8xf32>, vector<8x100xf32>, vector<16x100xf32> -> vector<16x100xf32>
    %106 = arith.addf %101, %105 : vector<16x100xf32>
    %c8 = arith.constant 8 : index
    %c0_116 = arith.constant 0 : index
    %107 = tpu.strided_load %arg12[%c8, %c0_116] {strides = array<i32: 16, 1>} : memref<256x8xf32, #tpu.memory_space<vmem>>, vector<16x8xf32>
    %c8_117 = arith.constant 8 : index
    %c0_118 = arith.constant 0 : index
    %c0_119 = arith.constant 0 : index
    %108 = vector.load %arg5[%c8_117, %c0_118, %c0_119] : memref<14x8x100xf32, #tpu.memory_space<vmem>>, vector<1x8x100xf32>
    %109 = vector.shape_cast %108 : vector<1x8x100xf32> to vector<8x100xf32>
    %cst_120 = arith.constant dense<0.000000e+00> : vector<16x100xf32>
    %110 = tpu.matmul %107, %109, %cst_120 {dimension_numbers = #tpu.dot_dimension_numbers<[1], [0], [0], [1], [0, 0, 1, 1], [], []>} : vector<16x8xf32>, vector<8x100xf32>, vector<16x100xf32> -> vector<16x100xf32>
    %111 = arith.addf %106, %110 : vector<16x100xf32>
    %c9 = arith.constant 9 : index
    %c0_121 = arith.constant 0 : index
    %112 = tpu.strided_load %arg12[%c9, %c0_121] {strides = array<i32: 16, 1>} : memref<256x8xf32, #tpu.memory_space<vmem>>, vector<16x8xf32>
    %c9_122 = arith.constant 9 : index
    %c0_123 = arith.constant 0 : index
    %c0_124 = arith.constant 0 : index
    %113 = vector.load %arg5[%c9_122, %c0_123, %c0_124] : memref<14x8x100xf32, #tpu.memory_space<vmem>>, vector<1x8x100xf32>
    %114 = vector.shape_cast %113 : vector<1x8x100xf32> to vector<8x100xf32>
    %cst_125 = arith.constant dense<0.000000e+00> : vector<16x100xf32>
    %115 = tpu.matmul %112, %114, %cst_125 {dimension_numbers = #tpu.dot_dimension_numbers<[1], [0], [0], [1], [0, 0, 1, 1], [], []>} : vector<16x8xf32>, vector<8x100xf32>, vector<16x100xf32> -> vector<16x100xf32>
    %116 = arith.addf %111, %115 : vector<16x100xf32>
    %c10 = arith.constant 10 : index
    %c0_126 = arith.constant 0 : index
    %117 = tpu.strided_load %arg12[%c10, %c0_126] {strides = array<i32: 16, 1>} : memref<256x8xf32, #tpu.memory_space<vmem>>, vector<16x8xf32>
    %c10_127 = arith.constant 10 : index
    %c0_128 = arith.constant 0 : index
    %c0_129 = arith.constant 0 : index
    %118 = vector.load %arg5[%c10_127, %c0_128, %c0_129] : memref<14x8x100xf32, #tpu.memory_space<vmem>>, vector<1x8x100xf32>
    %119 = vector.shape_cast %118 : vector<1x8x100xf32> to vector<8x100xf32>
    %cst_130 = arith.constant dense<0.000000e+00> : vector<16x100xf32>
    %120 = tpu.matmul %117, %119, %cst_130 {dimension_numbers = #tpu.dot_dimension_numbers<[1], [0], [0], [1], [0, 0, 1, 1], [], []>} : vector<16x8xf32>, vector<8x100xf32>, vector<16x100xf32> -> vector<16x100xf32>
    %121 = arith.addf %116, %120 : vector<16x100xf32>
    %c11 = arith.constant 11 : index
    %c0_131 = arith.constant 0 : index
    %122 = tpu.strided_load %arg12[%c11, %c0_131] {strides = array<i32: 16, 1>} : memref<256x8xf32, #tpu.memory_space<vmem>>, vector<16x8xf32>
    %c11_132 = arith.constant 11 : index
    %c0_133 = arith.constant 0 : index
    %c0_134 = arith.constant 0 : index
    %123 = vector.load %arg5[%c11_132, %c0_133, %c0_134] : memref<14x8x100xf32, #tpu.memory_space<vmem>>, vector<1x8x100xf32>
    %124 = vector.shape_cast %123 : vector<1x8x100xf32> to vector<8x100xf32>
    %cst_135 = arith.constant dense<0.000000e+00> : vector<16x100xf32>
    %125 = tpu.matmul %122, %124, %cst_135 {dimension_numbers = #tpu.dot_dimension_numbers<[1], [0], [0], [1], [0, 0, 1, 1], [], []>} : vector<16x8xf32>, vector<8x100xf32>, vector<16x100xf32> -> vector<16x100xf32>
    %126 = arith.addf %121, %125 : vector<16x100xf32>
    %c12 = arith.constant 12 : index
    %c0_136 = arith.constant 0 : index
    %127 = tpu.strided_load %arg12[%c12, %c0_136] {strides = array<i32: 16, 1>} : memref<256x8xf32, #tpu.memory_space<vmem>>, vector<16x8xf32>
    %c12_137 = arith.constant 12 : index
    %c0_138 = arith.constant 0 : index
    %c0_139 = arith.constant 0 : index
    %128 = vector.load %arg5[%c12_137, %c0_138, %c0_139] : memref<14x8x100xf32, #tpu.memory_space<vmem>>, vector<1x8x100xf32>
    %129 = vector.shape_cast %128 : vector<1x8x100xf32> to vector<8x100xf32>
    %cst_140 = arith.constant dense<0.000000e+00> : vector<16x100xf32>
    %130 = tpu.matmul %127, %129, %cst_140 {dimension_numbers = #tpu.dot_dimension_numbers<[1], [0], [0], [1], [0, 0, 1, 1], [], []>} : vector<16x8xf32>, vector<8x100xf32>, vector<16x100xf32> -> vector<16x100xf32>
    %131 = arith.addf %126, %130 : vector<16x100xf32>
    %c13 = arith.constant 13 : index
    %c0_141 = arith.constant 0 : index
    %132 = tpu.strided_load %arg12[%c13, %c0_141] {strides = array<i32: 16, 1>} : memref<256x8xf32, #tpu.memory_space<vmem>>, vector<16x8xf32>
    %c13_142 = arith.constant 13 : index
    %c0_143 = arith.constant 0 : index
    %c0_144 = arith.constant 0 : index
    %133 = vector.load %arg5[%c13_142, %c0_143, %c0_144] : memref<14x8x100xf32, #tpu.memory_space<vmem>>, vector<1x8x100xf32>
    %134 = vector.shape_cast %133 : vector<1x8x100xf32> to vector<8x100xf32>
    %cst_145 = arith.constant dense<0.000000e+00> : vector<16x100xf32>
    %135 = tpu.matmul %132, %134, %cst_145 {dimension_numbers = #tpu.dot_dimension_numbers<[1], [0], [0], [1], [0, 0, 1, 1], [], []>} : vector<16x8xf32>, vector<8x100xf32>, vector<16x100xf32> -> vector<16x100xf32>
    %136 = arith.addf %131, %135 : vector<16x100xf32>
    %c0_146 = arith.constant 0 : index
    %c0_147 = arith.constant 0 : index
    %137 = vector.load %arg6[%c0_146, %c0_147] : memref<1x100xf32, #tpu.memory_space<vmem>>, vector<1x100xf32>
    %138 = vector.broadcast %137 : vector<1x100xf32> to vector<16x100xf32>
    %139 = arith.addf %136, %138 : vector<16x100xf32>
    %c0_148 = arith.constant 0 : index
    %c0_149 = arith.constant 0 : index
    %140 = vector.load %arg7[%c0_148, %c0_149] : memref<100x5xf32, #tpu.memory_space<vmem>>, vector<100x5xf32>
    %cst_150 = arith.constant dense<0.000000e+00> : vector<16x5xf32>
    %141 = tpu.matmul %139, %140, %cst_150 {dimension_numbers = #tpu.dot_dimension_numbers<[1], [0], [0], [1], [0, 0, 1, 1], [], []>} : vector<16x100xf32>, vector<100x5xf32>, vector<16x5xf32> -> vector<16x5xf32>
    %c0_151 = arith.constant 0 : index
    %c0_152 = arith.constant 0 : index
    %142 = vector.load %arg8[%c0_151, %c0_152] : memref<1x5xf32, #tpu.memory_space<vmem>>, vector<1x5xf32>
    %143 = vector.broadcast %142 : vector<1x5xf32> to vector<16x5xf32>
    %144 = arith.addf %141, %143 : vector<16x5xf32>
    %c0_153 = arith.constant 0 : index
    %c0_154 = arith.constant 0 : index
    %145 = vector.load %arg9[%c0_153, %c0_154] : memref<16x5xf32, #tpu.memory_space<vmem>>, vector<16x5xf32>
    tpu.vector_store %arg9[%c0_153, %c0_154], %144 {strides = array<i32>} : memref<16x5xf32, #tpu.memory_space<vmem>>, vector<16x5xf32>,
    return
  }
}

</mosaic_0001>

<llo_original>
// kernel: ssl_linear_forward.1
$region0: #{ssl_linear_forward.1}
  #allocation0 [shape = 'u32[]', space=smem, size = 0x4, offset = 0x4, fixed_abs, tag = 'smem constant byte address 0x4 - core index']
  #allocation1 [shape = 'u32[72,128]{1,0:T(1,128)}', space=vmem, size = 0x9000, scoped, tag = 'internal scratch']
  #allocation2 [shape = 'f32[1032,8]{1,0:T(8,128)}', space=vmem, size = 0x81000, scoped, tag = 'scratch operand']
  #allocation3 [shape = 'f32[1024,8]{1,0:T(8,128)}', space=vmem, size = 0x80000, scoped, tag = 'scratch operand']
  #allocation4 [shape = 'f32[256,8]{1,0:T(8,128)}', space=vmem, size = 0x20000, scoped, tag = 'scratch operand']
  %s0 = inlined_call_operand.vmem [shape: f32[1024,4], index: 0, kind: input, shape index: {}]
  %s1 = inlined_call_operand.vmem [shape: f32[4,8], index: 1, kind: input, shape index: {}]
  %s2 = inlined_call_operand.vmem [shape: f32[1,8], index: 2, kind: input, shape index: {}]
  %s3 = inlined_call_operand.vmem [shape: f32[8,8,8], index: 3, kind: input, shape index: {}]
  %s4 = inlined_call_operand.vmem [shape: f32[1,8], index: 4, kind: input, shape index: {}]
  %s5 = inlined_call_operand.vmem [shape: f32[14,8,100], index: 5, kind: input, shape index: {}]
  %s6 = inlined_call_operand.vmem [shape: f32[1,100], index: 6, kind: input, shape index: {}]
  %s7 = inlined_call_operand.vmem [shape: f32[100,5], index: 7, kind: input, shape index: {}]
  %s8 = inlined_call_operand.vmem [shape: f32[1,5], index: 8, kind: input, shape index: {}]
  %s9 = inlined_call_operand.vmem [shape: f32[16,5], index: 9, kind: output, shape index: {}]
  %s10 = sld [smem:[#allocation0]]
  $region46: #{ssl_linear_forward.1} parent=0
    _
  %s12 = ssub.s32 1, %s10
  %s13 = scalar_select 0, %s12, %s10
  // Predicated region
  $region2: #{ssl_linear_forward.1} parent=0 // pred_check
    _
  $region3: #{ssl_linear_forward.1} parent=0 // pred_check_branch
    %15 = sbr.rel (0) target = $region5
  $region4: #{ssl_linear_forward.1} parent=0 // pred_region
    _
  $region5: #{ssl_linear_forward.1} parent=0 // pred_fallthru
    _
  // Predicated region
  $region6: #{ssl_linear_forward.1} parent=0 // pred_check
    _
  $region7: #{ssl_linear_forward.1} parent=0 // pred_check_branch
    %17 = sbr.rel (0) target = $region9
  $region8: #{ssl_linear_forward.1} parent=0 // pred_region
    _
  $region9: #{ssl_linear_forward.1} parent=0 // pred_fallthru
    _
  // Predicated region
  $region10: #{ssl_linear_forward.1} parent=0 // pred_check
    _
  $region11: #{ssl_linear_forward.1} parent=0 // pred_check_branch
    %19 = sbr.rel (0) target = $region13
  $region12: #{ssl_linear_forward.1} parent=0 // pred_region
    _
  $region13: #{ssl_linear_forward.1} parent=0 // pred_fallthru
    _
  // Predicated region
  $region14: #{ssl_linear_forward.1} parent=0 // pred_check
    _
  $region15: #{ssl_linear_forward.1} parent=0 // pred_check_branch
    %21 = sbr.rel (0) target = $region17
  $region16: #{ssl_linear_forward.1} parent=0 // pred_region
    _
  $region17: #{ssl_linear_forward.1} parent=0 // pred_fallthru
    _
  // Predicated region
  $region18: #{ssl_linear_forward.1} parent=0 // pred_check
    _
  $region19: #{ssl_linear_forward.1} parent=0 // pred_check_branch
    %23 = sbr.rel (0) target = $region21
  $region20: #{ssl_linear_forward.1} parent=0 // pred_region
    _
  $region21: #{ssl_linear_forward.1} parent=0 // pred_fallthru
    _
  // Predicated region
  $region22: #{ssl_linear_forward.1} parent=0 // pred_check
    _
  $region23: #{ssl_linear_forward.1} parent=0 // pred_check_branch
    %25 = sbr.rel (0) target = $region25
  $region24: #{ssl_linear_forward.1} parent=0 // pred_region
    _
  $region25: #{ssl_linear_forward.1} parent=0 // pred_fallthru
    _
  // Predicated region
  $region26: #{ssl_linear_forward.1} parent=0 // pred_check
    _
  $region27: #{ssl_linear_forward.1} parent=0 // pred_check_branch
    %27 = sbr.rel (0) target = $region29
  $region28: #{ssl_linear_forward.1} parent=0 // pred_region
    _
  $region29: #{ssl_linear_forward.1} parent=0 // pred_fallthru
    _
  // Predicated region
  $region30: #{ssl_linear_forward.1} parent=0 // pred_check
    _
  $region31: #{ssl_linear_forward.1} parent=0 // pred_check_branch
    %29 = sbr.rel (0) target = $region33
  $region32: #{ssl_linear_forward.1} parent=0 // pred_region
    _
  $region33: #{ssl_linear_forward.1} parent=0 // pred_fallthru
    _
  // Predicated region
  $region34: #{ssl_linear_forward.1} parent=0 // pred_check
    _
  $region35: #{ssl_linear_forward.1} parent=0 // pred_check_branch
    %31 = sbr.rel (0) target = $region37
  $region36: #{ssl_linear_forward.1} parent=0 // pred_region
    _
  $region37: #{ssl_linear_forward.1} parent=0 // pred_fallthru
    _
  %v32 = vld [vmem:[%s0] sm:$0xff]
  %v33 = vld [vmem:[%s0 + $0x8] sm:$0xff]
  %v34 = vld [vmem:[%s0 + $0x10] sm:$0xff]
  %v35 = vld [vmem:[%s0 + $0x18] sm:$0xff]
  %v36 = vld [vmem:[%s0 + $0x20] sm:$0xff]
  %v37 = vld [vmem:[%s0 + $0x28] sm:$0xff]
  %v38 = vld [vmem:[%s0 + $0x30] sm:$0xff]
  %v39 = vld [vmem:[%s0 + $0x38] sm:$0xff]
  %v40 = vld [vmem:[%s0 + $0x40] sm:$0xff]
  %v41 = vld [vmem:[%s0 + $0x48] sm:$0xff]
  %v42 = vld [vmem:[%s0 + $0x50] sm:$0xff]
  %v43 = vld [vmem:[%s0 + $0x58] sm:$0xff]
  %v44 = vld [vmem:[%s0 + $0x60] sm:$0xff]
  %v45 = vld [vmem:[%s0 + $0x68] sm:$0xff]
  %v46 = vld [vmem:[%s0 + $0x70] sm:$0xff]
  %v47 = vld [vmem:[%s0 + $0x78] sm:$0xff]
  %v48 = vld [vmem:[%s0 + $0x80] sm:$0xff]
  %v49 = vld [vmem:[%s0 + $0x88] sm:$0xff]
  %v50 = vld [vmem:[%s0 + $0x90] sm:$0xff]
  %v51 = vld [vmem:[%s0 + $0x98] sm:$0xff]
  %v52 = vld [vmem:[%s0 + $0xa0] sm:$0xff]
  %v53 = vld [vmem:[%s0 + $0xa8] sm:$0xff]
  %v54 = vld [vmem:[%s0 + $0xb0] sm:$0xff]
  %v55 = vld [vmem:[%s0 + $0xb8] sm:$0xff]
  %v56 = vld [vmem:[%s0 + $0xc0] sm:$0xff]
  %v57 = vld [vmem:[%s0 + $0xc8] sm:$0xff]
  %v58 = vld [vmem:[%s0 + $0xd0] sm:$0xff]
  %v59 = vld [vmem:[%s0 + $0xd8] sm:$0xff]
  %v60 = vld [vmem:[%s0 + $0xe0] sm:$0xff]
  %v61 = vld [vmem:[%s0 + $0xe8] sm:$0xff]
  %v62 = vld [vmem:[%s0 + $0xf0] sm:$0xff]
  %v63 = vld [vmem:[%s0 + $0xf8] sm:$0xff]
  %v64 = vld [vmem:[%s0 + $0x100] sm:$0xff]
  %v65 = vld [vmem:[%s0 + $0x108] sm:$0xff]
  %v66 = vld [vmem:[%s0 + $0x110] sm:$0xff]
  %v67 = vld [vmem:[%s0 + $0x118] sm:$0xff]
  %v68 = vld [vmem:[%s0 + $0x120] sm:$0xff]
  %v69 = vld [vmem:[%s0 + $0x128] sm:$0xff]
  %v70 = vld [vmem:[%s0 + $0x130] sm:$0xff]
  %v71 = vld [vmem:[%s0 + $0x138] sm:$0xff]
  %v72 = vld [vmem:[%s0 + $0x140] sm:$0xff]
  %v73 = vld [vmem:[%s0 + $0x148] sm:$0xff]
  %v74 = vld [vmem:[%s0 + $0x150] sm:$0xff]
  %v75 = vld [vmem:[%s0 + $0x158] sm:$0xff]
  %v76 = vld [vmem:[%s0 + $0x160] sm:$0xff]
  %v77 = vld [vmem:[%s0 + $0x168] sm:$0xff]
  %v78 = vld [vmem:[%s0 + $0x170] sm:$0xff]
  %v79 = vld [vmem:[%s0 + $0x178] sm:$0xff]
  %v80 = vld [vmem:[%s0 + $0x180] sm:$0xff]
  %v81 = vld [vmem:[%s0 + $0x188] sm:$0xff]
  %v82 = vld [vmem:[%s0 + $0x190] sm:$0xff]
  %v83 = vld [vmem:[%s0 + $0x198] sm:$0xff]
  %v84 = vld [vmem:[%s0 + $0x1a0] sm:$0xff]
  %v85 = vld [vmem:[%s0 + $0x1a8] sm:$0xff]
  %v86 = vld [vmem:[%s0 + $0x1b0] sm:$0xff]
  %v87 = vld [vmem:[%s0 + $0x1b8] sm:$0xff]
  %v88 = vld [vmem:[%s0 + $0x1c0] sm:$0xff]
  %v89 = vld [vmem:[%s0 + $0x1c8] sm:$0xff]
  %v90 = vld [vmem:[%s0 + $0x1d0] sm:$0xff]
  %v91 = vld [vmem:[%s0 + $0x1d8] sm:$0xff]
  %v92 = vld [vmem:[%s0 + $0x1e0] sm:$0xff]
  %v93 = vld [vmem:[%s0 + $0x1e8] sm:$0xff]
  %v94 = vld [vmem:[%s0 + $0x1f0] sm:$0xff]
  %v95 = vld [vmem:[%s0 + $0x1f8] sm:$0xff]
  %v96 = vld [vmem:[%s0 + $0x200] sm:$0xff]
  %v97 = vld [vmem:[%s0 + $0x208] sm:$0xff]
  %v98 = vld [vmem:[%s0 + $0x210] sm:$0xff]
  %v99 = vld [vmem:[%s0 + $0x218] sm:$0xff]
  %v100 = vld [vmem:[%s0 + $0x220] sm:$0xff]
  %v101 = vld [vmem:[%s0 + $0x228] sm:$0xff]
  %v102 = vld [vmem:[%s0 + $0x230] sm:$0xff]
  %v103 = vld [vmem:[%s0 + $0x238] sm:$0xff]
  %v104 = vld [vmem:[%s0 + $0x240] sm:$0xff]
  %v105 = vld [vmem:[%s0 + $0x248] sm:$0xff]
  %v106 = vld [vmem:[%s0 + $0x250] sm:$0xff]
  %v107 = vld [vmem:[%s0 + $0x258] sm:$0xff]
  %v108 = vld [vmem:[%s0 + $0x260] sm:$0xff]
  %v109 = vld [vmem:[%s0 + $0x268] sm:$0xff]
  %v110 = vld [vmem:[%s0 + $0x270] sm:$0xff]
  %v111 = vld [vmem:[%s0 + $0x278] sm:$0xff]
  %v112 = vld [vmem:[%s0 + $0x280] sm:$0xff]
  %v113 = vld [vmem:[%s0 + $0x288] sm:$0xff]
  %v114 = vld [vmem:[%s0 + $0x290] sm:$0xff]
  %v115 = vld [vmem:[%s0 + $0x298] sm:$0xff]
  %v116 = vld [vmem:[%s0 + $0x2a0] sm:$0xff]
  %v117 = vld [vmem:[%s0 + $0x2a8] sm:$0xff]
  %v118 = vld [vmem:[%s0 + $0x2b0] sm:$0xff]
  %v119 = vld [vmem:[%s0 + $0x2b8] sm:$0xff]
  %v120 = vld [vmem:[%s0 + $0x2c0] sm:$0xff]
  %v121 = vld [vmem:[%s0 + $0x2c8] sm:$0xff]
  %v122 = vld [vmem:[%s0 + $0x2d0] sm:$0xff]
  %v123 = vld [vmem:[%s0 + $0x2d8] sm:$0xff]
  %v124 = vld [vmem:[%s0 + $0x2e0] sm:$0xff]
  %v125 = vld [vmem:[%s0 + $0x2e8] sm:$0xff]
  %v126 = vld [vmem:[%s0 + $0x2f0] sm:$0xff]
  %v127 = vld [vmem:[%s0 + $0x2f8] sm:$0xff]
  %v128 = vld [vmem:[%s0 + $0x300] sm:$0xff]
  %v129 = vld [vmem:[%s0 + $0x308] sm:$0xff]
  %v130 = vld [vmem:[%s0 + $0x310] sm:$0xff]
  %v131 = vld [vmem:[%s0 + $0x318] sm:$0xff]
  %v132 = vld [vmem:[%s0 + $0x320] sm:$0xff]
  %v133 = vld [vmem:[%s0 + $0x328] sm:$0xff]
  %v134 = vld [vmem:[%s0 + $0x330] sm:$0xff]
  %v135 = vld [vmem:[%s0 + $0x338] sm:$0xff]
  %v136 = vld [vmem:[%s0 + $0x340] sm:$0xff]
  %v137 = vld [vmem:[%s0 + $0x348] sm:$0xff]
  %v138 = vld [vmem:[%s0 + $0x350] sm:$0xff]
  %v139 = vld [vmem:[%s0 + $0x358] sm:$0xff]
  %v140 = vld [vmem:[%s0 + $0x360] sm:$0xff]
  %v141 = vld [vmem:[%s0 + $0x368] sm:$0xff]
  %v142 = vld [vmem:[%s0 + $0x370] sm:$0xff]
  %v143 = vld [vmem:[%s0 + $0x378] sm:$0xff]
  %v144 = vld [vmem:[%s0 + $0x380] sm:$0xff]
  %v145 = vld [vmem:[%s0 + $0x388] sm:$0xff]
  %v146 = vld [vmem:[%s0 + $0x390] sm:$0xff]
  %v147 = vld [vmem:[%s0 + $0x398] sm:$0xff]
  %v148 = vld [vmem:[%s0 + $0x3a0] sm:$0xff]
  %v149 = vld [vmem:[%s0 + $0x3a8] sm:$0xff]
  %v150 = vld [vmem:[%s0 + $0x3b0] sm:$0xff]
  %v151 = vld [vmem:[%s0 + $0x3b8] sm:$0xff]
  %v152 = vld [vmem:[%s0 + $0x3c0] sm:$0xff]
  %v153 = vld [vmem:[%s0 + $0x3c8] sm:$0xff]
  %v154 = vld [vmem:[%s0 + $0x3d0] sm:$0xff]
  %v155 = vld [vmem:[%s0 + $0x3d8] sm:$0xff]
  %v156 = vld [vmem:[%s0 + $0x3e0] sm:$0xff]
  %v157 = vld [vmem:[%s0 + $0x3e8] sm:$0xff]
  %v158 = vld [vmem:[%s0 + $0x3f0] sm:$0xff]
  %v159 = vld [vmem:[%s0 + $0x3f8] sm:$0xff]
  %v160 = vld [vmem:[%s1] sm:$0xf]
  %v161 = vld [vmem:[%s2] sm:$0x1]
  %v163 = vperm.slane %v161, 0
  %vm165 = vcmask 31744
  %v167 = vsel %vm165, %v32, 0
  %v170 = vsel %vm165, %v33, 0
  %v173 = vsel %vm165, %v34, 0
  %v176 = vsel %vm165, %v35, 0
  %v179 = vsel %vm165, %v36, 0
  %v182 = vsel %vm165, %v37, 0
  %v185 = vsel %vm165, %v38, 0
  %v188 = vsel %vm165, %v39, 0
  %v191 = vsel %vm165, %v40, 0
  %v194 = vsel %vm165, %v41, 0
  %v197 = vsel %vm165, %v42, 0
  %v200 = vsel %vm165, %v43, 0
  %v203 = vsel %vm165, %v44, 0
  %v206 = vsel %vm165, %v45, 0
  %v209 = vsel %vm165, %v46, 0
  %v212 = vsel %vm165, %v47, 0
  %v215 = vsel %vm165, %v48, 0
  %v218 = vsel %vm165, %v49, 0
  %v221 = vsel %vm165, %v50, 0
  %v224 = vsel %vm165, %v51, 0
  %v227 = vsel %vm165, %v52, 0
  %v230 = vsel %vm165, %v53, 0
  %v233 = vsel %vm165, %v54, 0
  %v236 = vsel %vm165, %v55, 0
  %v239 = vsel %vm165, %v56, 0
  %v242 = vsel %vm165, %v57, 0
  %v245 = vsel %vm165, %v58, 0
  %v248 = vsel %vm165, %v59, 0
  %v251 = vsel %vm165, %v60, 0
  %v254 = vsel %vm165, %v61, 0
  %v257 = vsel %vm165, %v62, 0
  %v260 = vsel %vm165, %v63, 0
  %v263 = vsel %vm165, %v64, 0
  %v266 = vsel %vm165, %v65, 0
  %v269 = vsel %vm165, %v66, 0
  %v272 = vsel %vm165, %v67, 0
  %v275 = vsel %vm165, %v68, 0
  %v278 = vsel %vm165, %v69, 0
  %v281 = vsel %vm165, %v70, 0
  %v284 = vsel %vm165, %v71, 0
  %v287 = vsel %vm165, %v72, 0
  %v290 = vsel %vm165, %v73, 0
  %v293 = vsel %vm165, %v74, 0
  %v296 = vsel %vm165, %v75, 0
  %v299 = vsel %vm165, %v76, 0
  %v302 = vsel %vm165, %v77, 0
  %v305 = vsel %vm165, %v78, 0
  %v308 = vsel %vm165, %v79, 0
  %v311 = vsel %vm165, %v80, 0
  %v314 = vsel %vm165, %v81, 0
  %v317 = vsel %vm165, %v82, 0
  %v320 = vsel %vm165, %v83, 0
  %v323 = vsel %vm165, %v84, 0
  %v326 = vsel %vm165, %v85, 0
  %v329 = vsel %vm165, %v86, 0
  %v332 = vsel %vm165, %v87, 0
  %v335 = vsel %vm165, %v88, 0
  %v338 = vsel %vm165, %v89, 0
  %v341 = vsel %vm165, %v90, 0
  %v344 = vsel %vm165, %v91, 0
  %v347 = vsel %vm165, %v92, 0
  %v350 = vsel %vm165, %v93, 0
  %v353 = vsel %vm165, %v94, 0
  %v356 = vsel %vm165, %v95, 0
  %v359 = vsel %vm165, %v96, 0
  %v362 = vsel %vm165, %v97, 0
  %v365 = vsel %vm165, %v98, 0
  %v368 = vsel %vm165, %v99, 0
  %v371 = vsel %vm165, %v100, 0
  %v374 = vsel %vm165, %v101, 0
  %v377 = vsel %vm165, %v102, 0
  %v380 = vsel %vm165, %v103, 0
  %v383 = vsel %vm165, %v104, 0
  %v386 = vsel %vm165, %v105, 0
  %v389 = vsel %vm165, %v106, 0
  %v392 = vsel %vm165, %v107, 0
  %v395 = vsel %vm165, %v108, 0
  %v398 = vsel %vm165, %v109, 0
  %v401 = vsel %vm165, %v110, 0
  %v404 = vsel %vm165, %v111, 0
  %v407 = vsel %vm165, %v112, 0
  %v410 = vsel %vm165, %v113, 0
  %v413 = vsel %vm165, %v114, 0
  %v416 = vsel %vm165, %v115, 0
  %v419 = vsel %vm165, %v116, 0
  %v422 = vsel %vm165, %v117, 0
  %v425 = vsel %vm165, %v118, 0
  %v428 = vsel %vm165, %v119, 0
  %v431 = vsel %vm165, %v120, 0
  %v434 = vsel %vm165, %v121, 0
  %v437 = vsel %vm165, %v122, 0
  %v440 = vsel %vm165, %v123, 0
  %v443 = vsel %vm165, %v124, 0
  %v446 = vsel %vm165, %v125, 0
  %v449 = vsel %vm165, %v126, 0
  %v452 = vsel %vm165, %v127, 0
  %v455 = vsel %vm165, %v128, 0
  %v458 = vsel %vm165, %v129, 0
  %v461 = vsel %vm165, %v130, 0
  %v464 = vsel %vm165, %v131, 0
  %v467 = vsel %vm165, %v132, 0
  %v470 = vsel %vm165, %v133, 0
  %v473 = vsel %vm165, %v134, 0
  %v476 = vsel %vm165, %v135, 0
  %v479 = vsel %vm165, %v136, 0
  %v482 = vsel %vm165, %v137, 0
  %v485 = vsel %vm165, %v138, 0
  %v488 = vsel %vm165, %v139, 0
  %v491 = vsel %vm165, %v140, 0
  %v494 = vsel %vm165, %v141, 0
  %v497 = vsel %vm165, %v142, 0
  %v500 = vsel %vm165, %v143, 0
  %v503 = vsel %vm165, %v144, 0
  %v506 = vsel %vm165, %v145, 0
  %v509 = vsel %vm165, %v146, 0
  %v512 = vsel %vm165, %v147, 0
  %v515 = vsel %vm165, %v148, 0
  %v518 = vsel %vm165, %v149, 0
  %v521 = vsel %vm165, %v150, 0
  %v524 = vsel %vm165, %v151, 0
  %v527 = vsel %vm165, %v152, 0
  %v530 = vsel %vm165, %v153, 0
  %v533 = vsel %vm165, %v154, 0
  %v536 = vsel %vm165, %v155, 0
  %v539 = vsel %vm165, %v156, 0
  %v542 = vsel %vm165, %v157, 0
  %v545 = vsel %vm165, %v158, 0
  %v548 = vsel %vm165, %v159, 0
  %vm550 = vcmask 1043456
  %v552 = vsel %vm550, %v160, 0
  %554 = vmatpush.msra.mxu0 0.0
  %555 = vmatpush.msra.mxu0 0.0
  %556 = vmatpush.msra.mxu0 0.0
  %557 = vmatpush.msra.mxu0 0.0
  %558 = vmatpush.msra.mxu0 0.0
  %559 = vmatpush.msra.mxu0 0.0
  %560 = vmatpush.msra.mxu0 0.0
  %561 = vmatpush.msra.mxu0 0.0
  %562 = vmatpush.msra.mxu0 0.0
  %563 = vmatpush.msra.mxu0 0.0
  %564 = vmatpush.msra.mxu0 0.0
  %565 = vmatpush.msra.mxu0 0.0
  %566 = vmatpush.msra.mxu0 0.0
  %567 = vmatpush.msra.mxu0 0.0
  %568 = vmatpush.msra.mxu0 0.0
  %569 = vmatpush.msra.mxu0 %v552
  %570 = vmatmul.f32.gmra.mxu0 %v167
  %v571 = vpop.f32.mrf.mxu0
  %v572 = vadd.f32 %v163, %v571
  %573 = vmatmul.f32.gmra.mxu0 %v170
  %v574 = vpop.f32.mrf.mxu0
  %v575 = vadd.f32 %v163, %v574
  %576 = vmatmul.f32.gmra.mxu0 %v173
  %v577 = vpop.f32.mrf.mxu0
  %v578 = vadd.f32 %v163, %v577
  %579 = vmatmul.f32.gmra.mxu0 %v176
  %v580 = vpop.f32.mrf.mxu0
  %v581 = vadd.f32 %v163, %v580
  %582 = vmatmul.f32.gmra.mxu0 %v179
  %v583 = vpop.f32.mrf.mxu0
  %v584 = vadd.f32 %v163, %v583
  %585 = vmatmul.f32.gmra.mxu0 %v182
  %v586 = vpop.f32.mrf.mxu0
  %v587 = vadd.f32 %v163, %v586
  %588 = vmatmul.f32.gmra.mxu0 %v185
  %v589 = vpop.f32.mrf.mxu0
  %v590 = vadd.f32 %v163, %v589
  %591 = vmatmul.f32.gmra.mxu0 %v188
  %v592 = vpop.f32.mrf.mxu0
  %v593 = vadd.f32 %v163, %v592
  %594 = vmatmul.f32.gmra.mxu0 %v191
  %v595 = vpop.f32.mrf.mxu0
  %v596 = vadd.f32 %v163, %v595
  %597 = vmatmul.f32.gmra.mxu0 %v194
  %v598 = vpop.f32.mrf.mxu0
  %v599 = vadd.f32 %v163, %v598
  %600 = vmatmul.f32.gmra.mxu0 %v197
  %v601 = vpop.f32.mrf.mxu0
  %v602 = vadd.f32 %v163, %v601
  %603 = vmatmul.f32.gmra.mxu0 %v200
  %v604 = vpop.f32.mrf.mxu0
  %v605 = vadd.f32 %v163, %v604
  %606 = vmatmul.f32.gmra.mxu0 %v203
  %v607 = vpop.f32.mrf.mxu0
  %v608 = vadd.f32 %v163, %v607
  %609 = vmatmul.f32.gmra.mxu0 %v206
  %v610 = vpop.f32.mrf.mxu0
  %v611 = vadd.f32 %v163, %v610
  %612 = vmatmul.f32.gmra.mxu0 %v209
  %v613 = vpop.f32.mrf.mxu0
  %v614 = vadd.f32 %v163, %v613
  %615 = vmatmul.f32.gmra.mxu0 %v212
  %v616 = vpop.f32.mrf.mxu0
  %v617 = vadd.f32 %v163, %v616
  %618 = vmatmul.f32.gmra.mxu0 %v215
  %v619 = vpop.f32.mrf.mxu0
  %v620 = vadd.f32 %v163, %v619
  %621 = vmatmul.f32.gmra.mxu0 %v218
  %v622 = vpop.f32.mrf.mxu0
  %v623 = vadd.f32 %v163, %v622
  %624 = vmatmul.f32.gmra.mxu0 %v221
  %v625 = vpop.f32.mrf.mxu0
  %v626 = vadd.f32 %v163, %v625
  %627 = vmatmul.f32.gmra.mxu0 %v224
  %v628 = vpop.f32.mrf.mxu0
  %v629 = vadd.f32 %v163, %v628
  %630 = vmatmul.f32.gmra.mxu0 %v227
  %v631 = vpop.f32.mrf.mxu0
  %v632 = vadd.f32 %v163, %v631
  %633 = vmatmul.f32.gmra.mxu0 %v230
  %v634 = vpop.f32.mrf.mxu0
  %v635 = vadd.f32 %v163, %v634
  %636 = vmatmul.f32.gmra.mxu0 %v233
  %v637 = vpop.f32.mrf.mxu0
  %v638 = vadd.f32 %v163, %v637
  %639 = vmatmul.f32.gmra.mxu0 %v236
  %v640 = vpop.f32.mrf.mxu0
  %v641 = vadd.f32 %v163, %v640
  %642 = vmatmul.f32.gmra.mxu0 %v239
  %v643 = vpop.f32.mrf.mxu0
  %v644 = vadd.f32 %v163, %v643
  %645 = vmatmul.f32.gmra.mxu0 %v242
  %v646 = vpop.f32.mrf.mxu0
  %v647 = vadd.f32 %v163, %v646
  %648 = vmatmul.f32.gmra.mxu0 %v245
  %v649 = vpop.f32.mrf.mxu0
  %v650 = vadd.f32 %v163, %v649
  %651 = vmatmul.f32.gmra.mxu0 %v248
  %v652 = vpop.f32.mrf.mxu0
  %v653 = vadd.f32 %v163, %v652
  %654 = vmatmul.f32.gmra.mxu0 %v251
  %v655 = vpop.f32.mrf.mxu0
  %v656 = vadd.f32 %v163, %v655
  %657 = vmatmul.f32.gmra.mxu0 %v254
  %v658 = vpop.f32.mrf.mxu0
  %v659 = vadd.f32 %v163, %v658
  %660 = vmatmul.f32.gmra.mxu0 %v257
  %v661 = vpop.f32.mrf.mxu0
  %v662 = vadd.f32 %v163, %v661
  %663 = vmatmul.f32.gmra.mxu0 %v260
  %v664 = vpop.f32.mrf.mxu0
  %v665 = vadd.f32 %v163, %v664
  %666 = vmatmul.f32.gmra.mxu0 %v263
  %v667 = vpop.f32.mrf.mxu0
  %v668 = vadd.f32 %v163, %v667
  %669 = vmatmul.f32.gmra.mxu0 %v266
  %v670 = vpop.f32.mrf.mxu0
  %v671 = vadd.f32 %v163, %v670
  %672 = vmatmul.f32.gmra.mxu0 %v269
  %v673 = vpop.f32.mrf.mxu0
  %v674 = vadd.f32 %v163, %v673
  %675 = vmatmul.f32.gmra.mxu0 %v272
  %v676 = vpop.f32.mrf.mxu0
  %v677 = vadd.f32 %v163, %v676
  %678 = vmatmul.f32.gmra.mxu0 %v275
  %v679 = vpop.f32.mrf.mxu0
  %v680 = vadd.f32 %v163, %v679
  %681 = vmatmul.f32.gmra.mxu0 %v278
  %v682 = vpop.f32.mrf.mxu0
  %v683 = vadd.f32 %v163, %v682
  %684 = vmatmul.f32.gmra.mxu0 %v281
  %v685 = vpop.f32.mrf.mxu0
  %v686 = vadd.f32 %v163, %v685
  %687 = vmatmul.f32.gmra.mxu0 %v284
  %v688 = vpop.f32.mrf.mxu0
  %v689 = vadd.f32 %v163, %v688
  %690 = vmatmul.f32.gmra.mxu0 %v287
  %v691 = vpop.f32.mrf.mxu0
  %v692 = vadd.f32 %v163, %v691
  %693 = vmatmul.f32.gmra.mxu0 %v290
  %v694 = vpop.f32.mrf.mxu0
  %v695 = vadd.f32 %v163, %v694
  %696 = vmatmul.f32.gmra.mxu0 %v293
  %v697 = vpop.f32.mrf.mxu0
  %v698 = vadd.f32 %v163, %v697
  %699 = vmatmul.f32.gmra.mxu0 %v296
  %v700 = vpop.f32.mrf.mxu0
  %v701 = vadd.f32 %v163, %v700
  %702 = vmatmul.f32.gmra.mxu0 %v299
  %v703 = vpop.f32.mrf.mxu0
  %v704 = vadd.f32 %v163, %v703
  %705 = vmatmul.f32.gmra.mxu0 %v302
  %v706 = vpop.f32.mrf.mxu0
  %v707 = vadd.f32 %v163, %v706
  %708 = vmatmul.f32.gmra.mxu0 %v305
  %v709 = vpop.f32.mrf.mxu0
  %v710 = vadd.f32 %v163, %v709
  %711 = vmatmul.f32.gmra.mxu0 %v308
  %v712 = vpop.f32.mrf.mxu0
  %v713 = vadd.f32 %v163, %v712
  %714 = vmatmul.f32.gmra.mxu0 %v311
  %v715 = vpop.f32.mrf.mxu0
  %v716 = vadd.f32 %v163, %v715
  %717 = vmatmul.f32.gmra.mxu0 %v314
  %v718 = vpop.f32.mrf.mxu0
  %v719 = vadd.f32 %v163, %v718
  %720 = vmatmul.f32.gmra.mxu0 %v317
  %v721 = vpop.f32.mrf.mxu0
  %v722 = vadd.f32 %v163, %v721
  %723 = vmatmul.f32.gmra.mxu0 %v320
  %v724 = vpop.f32.mrf.mxu0
  %v725 = vadd.f32 %v163, %v724
  %726 = vmatmul.f32.gmra.mxu0 %v323
  %v727 = vpop.f32.mrf.mxu0
  %v728 = vadd.f32 %v163, %v727
  %729 = vmatmul.f32.gmra.mxu0 %v326
  %v730 = vpop.f32.mrf.mxu0
  %v731 = vadd.f32 %v163, %v730
  %732 = vmatmul.f32.gmra.mxu0 %v329
  %v733 = vpop.f32.mrf.mxu0
  %v734 = vadd.f32 %v163, %v733
  %735 = vmatmul.f32.gmra.mxu0 %v332
  %v736 = vpop.f32.mrf.mxu0
  %v737 = vadd.f32 %v163, %v736
  %738 = vmatmul.f32.gmra.mxu0 %v335
  %v739 = vpop.f32.mrf.mxu0
  %v740 = vadd.f32 %v163, %v739
  %741 = vmatmul.f32.gmra.mxu0 %v338
  %v742 = vpop.f32.mrf.mxu0
  %v743 = vadd.f32 %v163, %v742
  %744 = vmatmul.f32.gmra.mxu0 %v341
  %v745 = vpop.f32.mrf.mxu0
  %v746 = vadd.f32 %v163, %v745
  %747 = vmatmul.f32.gmra.mxu0 %v344
  %v748 = vpop.f32.mrf.mxu0
  %v749 = vadd.f32 %v163, %v748
  %750 = vmatmul.f32.gmra.mxu0 %v347
  %v751 = vpop.f32.mrf.mxu0
  %v752 = vadd.f32 %v163, %v751
  %753 = vmatmul.f32.gmra.mxu0 %v350
  %v754 = vpop.f32.mrf.mxu0
  %v755 = vadd.f32 %v163, %v754
  %756 = vmatmul.f32.gmra.mxu0 %v353
  %v757 = vpop.f32.mrf.mxu0
  %v758 = vadd.f32 %v163, %v757
  %759 = vmatmul.f32.gmra.mxu0 %v356
  %v760 = vpop.f32.mrf.mxu0
  %v761 = vadd.f32 %v163, %v760
  %762 = vmatmul.f32.gmra.mxu0 %v359
  %v763 = vpop.f32.mrf.mxu0
  %v764 = vadd.f32 %v163, %v763
  %765 = vmatmul.f32.gmra.mxu0 %v362
  %v766 = vpop.f32.mrf.mxu0
  %v767 = vadd.f32 %v163, %v766
  %768 = vmatmul.f32.gmra.mxu0 %v365
  %v769 = vpop.f32.mrf.mxu0
  %v770 = vadd.f32 %v163, %v769
  %771 = vmatmul.f32.gmra.mxu0 %v368
  %v772 = vpop.f32.mrf.mxu0
  %v773 = vadd.f32 %v163, %v772
  %774 = vmatmul.f32.gmra.mxu0 %v371
  %v775 = vpop.f32.mrf.mxu0
  %v776 = vadd.f32 %v163, %v775
  %777 = vmatmul.f32.gmra.mxu0 %v374
  %v778 = vpop.f32.mrf.mxu0
  %v779 = vadd.f32 %v163, %v778
  %780 = vmatmul.f32.gmra.mxu0 %v377
  %v781 = vpop.f32.mrf.mxu0
  %v782 = vadd.f32 %v163, %v781
  %783 = vmatmul.f32.gmra.mxu0 %v380
  %v784 = vpop.f32.mrf.mxu0
  %v785 = vadd.f32 %v163, %v784
  %786 = vmatmul.f32.gmra.mxu0 %v383
  %v787 = vpop.f32.mrf.mxu0
  %v788 = vadd.f32 %v163, %v787
  %789 = vmatmul.f32.gmra.mxu0 %v386
  %v790 = vpop.f32.mrf.mxu0
  %v791 = vadd.f32 %v163, %v790
  %792 = vmatmul.f32.gmra.mxu0 %v389
  %v793 = vpop.f32.mrf.mxu0
  %v794 = vadd.f32 %v163, %v793
  %795 = vmatmul.f32.gmra.mxu0 %v392
  %v796 = vpop.f32.mrf.mxu0
  %v797 = vadd.f32 %v163, %v796
  %798 = vmatmul.f32.gmra.mxu0 %v395
  %v799 = vpop.f32.mrf.mxu0
  %v800 = vadd.f32 %v163, %v799
  %801 = vmatmul.f32.gmra.mxu0 %v398
  %v802 = vpop.f32.mrf.mxu0
  %v803 = vadd.f32 %v163, %v802
  %804 = vmatmul.f32.gmra.mxu0 %v401
  %v805 = vpop.f32.mrf.mxu0
  %v806 = vadd.f32 %v163, %v805
  %807 = vmatmul.f32.gmra.mxu0 %v404
  %v808 = vpop.f32.mrf.mxu0
  %v809 = vadd.f32 %v163, %v808
  %810 = vmatmul.f32.gmra.mxu0 %v407
  %v811 = vpop.f32.mrf.mxu0
  %v812 = vadd.f32 %v163, %v811
  %813 = vmatmul.f32.gmra.mxu0 %v410
  %v814 = vpop.f32.mrf.mxu0
  %v815 = vadd.f32 %v163, %v814
  %816 = vmatmul.f32.gmra.mxu0 %v413
  %v817 = vpop.f32.mrf.mxu0
  %v818 = vadd.f32 %v163, %v817
  %819 = vmatmul.f32.gmra.mxu0 %v416
  %v820 = vpop.f32.mrf.mxu0
  %v821 = vadd.f32 %v163, %v820
  %822 = vmatmul.f32.gmra.mxu0 %v419
  %v823 = vpop.f32.mrf.mxu0
  %v824 = vadd.f32 %v163, %v823
  %825 = vmatmul.f32.gmra.mxu0 %v422
  %v826 = vpop.f32.mrf.mxu0
  %v827 = vadd.f32 %v163, %v826
  %828 = vmatmul.f32.gmra.mxu0 %v425
  %v829 = vpop.f32.mrf.mxu0
  %v830 = vadd.f32 %v163, %v829
  %831 = vmatmul.f32.gmra.mxu0 %v428
  %v832 = vpop.f32.mrf.mxu0
  %v833 = vadd.f32 %v163, %v832
  %834 = vmatmul.f32.gmra.mxu0 %v431
  %v835 = vpop.f32.mrf.mxu0
  %v836 = vadd.f32 %v163, %v835
  %837 = vmatmul.f32.gmra.mxu0 %v434
  %v838 = vpop.f32.mrf.mxu0
  %v839 = vadd.f32 %v163, %v838
  %840 = vmatmul.f32.gmra.mxu0 %v437
  %v841 = vpop.f32.mrf.mxu0
  %v842 = vadd.f32 %v163, %v841
  %843 = vmatmul.f32.gmra.mxu0 %v440
  %v844 = vpop.f32.mrf.mxu0
  %v845 = vadd.f32 %v163, %v844
  %846 = vmatmul.f32.gmra.mxu0 %v443
  %v847 = vpop.f32.mrf.mxu0
  %v848 = vadd.f32 %v163, %v847
  %849 = vmatmul.f32.gmra.mxu0 %v446
  %v850 = vpop.f32.mrf.mxu0
  %v851 = vadd.f32 %v163, %v850
  %852 = vmatmul.f32.gmra.mxu0 %v449
  %v853 = vpop.f32.mrf.mxu0
  %v854 = vadd.f32 %v163, %v853
  %855 = vmatmul.f32.gmra.mxu0 %v452
  %v856 = vpop.f32.mrf.mxu0
  %v857 = vadd.f32 %v163, %v856
  %858 = vmatmul.f32.gmra.mxu0 %v455
  %v859 = vpop.f32.mrf.mxu0
  %v860 = vadd.f32 %v163, %v859
  %861 = vmatmul.f32.gmra.mxu0 %v458
  %v862 = vpop.f32.mrf.mxu0
  %v863 = vadd.f32 %v163, %v862
  %864 = vmatmul.f32.gmra.mxu0 %v461
  %v865 = vpop.f32.mrf.mxu0
  %v866 = vadd.f32 %v163, %v865
  %867 = vmatmul.f32.gmra.mxu0 %v464
  %v868 = vpop.f32.mrf.mxu0
  %v869 = vadd.f32 %v163, %v868
  %870 = vmatmul.f32.gmra.mxu0 %v467
  %v871 = vpop.f32.mrf.mxu0
  %v872 = vadd.f32 %v163, %v871
  %873 = vmatmul.f32.gmra.mxu0 %v470
  %v874 = vpop.f32.mrf.mxu0
  %v875 = vadd.f32 %v163, %v874
  %876 = vmatmul.f32.gmra.mxu0 %v473
  %v877 = vpop.f32.mrf.mxu0
  %v878 = vadd.f32 %v163, %v877
  %879 = vmatmul.f32.gmra.mxu0 %v476
  %v880 = vpop.f32.mrf.mxu0
  %v881 = vadd.f32 %v163, %v880
  %882 = vmatmul.f32.gmra.mxu0 %v479
  %v883 = vpop.f32.mrf.mxu0
  %v884 = vadd.f32 %v163, %v883
  %885 = vmatmul.f32.gmra.mxu0 %v482
  %v886 = vpop.f32.mrf.mxu0
  %v887 = vadd.f32 %v163, %v886
  %888 = vmatmul.f32.gmra.mxu0 %v485
  %v889 = vpop.f32.mrf.mxu0
  %v890 = vadd.f32 %v163, %v889
  %891 = vmatmul.f32.gmra.mxu0 %v488
  %v892 = vpop.f32.mrf.mxu0
  %v893 = vadd.f32 %v163, %v892
  %894 = vmatmul.f32.gmra.mxu0 %v491
  %v895 = vpop.f32.mrf.mxu0
  %v896 = vadd.f32 %v163, %v895
  %897 = vmatmul.f32.gmra.mxu0 %v494
  %v898 = vpop.f32.mrf.mxu0
  %v899 = vadd.f32 %v163, %v898
  %900 = vmatmul.f32.gmra.mxu0 %v497
  %v901 = vpop.f32.mrf.mxu0
  %v902 = vadd.f32 %v163, %v901
  %903 = vmatmul.f32.gmra.mxu0 %v500
  %v904 = vpop.f32.mrf.mxu0
  %v905 = vadd.f32 %v163, %v904
  %906 = vmatmul.f32.gmra.mxu0 %v503
  %v907 = vpop.f32.mrf.mxu0
  %v908 = vadd.f32 %v163, %v907
  %909 = vmatmul.f32.gmra.mxu0 %v506
  %v910 = vpop.f32.mrf.mxu0
  %v911 = vadd.f32 %v163, %v910
  %912 = vmatmul.f32.gmra.mxu0 %v509
  %v913 = vpop.f32.mrf.mxu0
  %v914 = vadd.f32 %v163, %v913
  %915 = vmatmul.f32.gmra.mxu0 %v512
  %v916 = vpop.f32.mrf.mxu0
  %v917 = vadd.f32 %v163, %v916
  %918 = vmatmul.f32.gmra.mxu0 %v515
  %v919 = vpop.f32.mrf.mxu0
  %v920 = vadd.f32 %v163, %v919
  %921 = vmatmul.f32.gmra.mxu0 %v518
  %v922 = vpop.f32.mrf.mxu0
  %v923 = vadd.f32 %v163, %v922
  %924 = vmatmul.f32.gmra.mxu0 %v521
  %v925 = vpop.f32.mrf.mxu0
  %v926 = vadd.f32 %v163, %v925
  %927 = vmatmul.f32.gmra.mxu0 %v524
  %v928 = vpop.f32.mrf.mxu0
  %v929 = vadd.f32 %v163, %v928
  %930 = vmatmul.f32.gmra.mxu0 %v527
  %v931 = vpop.f32.mrf.mxu0
  %v932 = vadd.f32 %v163, %v931
  %933 = vmatmul.f32.gmra.mxu0 %v530
  %v934 = vpop.f32.mrf.mxu0
  %v935 = vadd.f32 %v163, %v934
  %936 = vmatmul.f32.gmra.mxu0 %v533
  %v937 = vpop.f32.mrf.mxu0
  %v938 = vadd.f32 %v163, %v937
  %939 = vmatmul.f32.gmra.mxu0 %v536
  %v940 = vpop.f32.mrf.mxu0
  %v941 = vadd.f32 %v163, %v940
  %942 = vmatmul.f32.gmra.mxu0 %v539
  %v943 = vpop.f32.mrf.mxu0
  %v944 = vadd.f32 %v163, %v943
  %945 = vmatmul.f32.gmra.mxu0 %v542
  %v946 = vpop.f32.mrf.mxu0
  %v947 = vadd.f32 %v163, %v946
  %948 = vmatmul.f32.gmra.mxu0 %v545
  %v949 = vpop.f32.mrf.mxu0
  %v950 = vadd.f32 %v163, %v949
  %951 = vmatmul.f32.gmra.mxu0 %v548
  %v952 = vpop.f32.mrf.mxu0
  %v953 = vadd.f32 %v163, %v952
  %954 = vdwg.mxu0
  %v955 = vmax.f32 %v572, 0.0
  %v956 = vmax.f32 %v575, 0.0
  %v957 = vmax.f32 %v578, 0.0
  %v958 = vmax.f32 %v581, 0.0
  %v959 = vmax.f32 %v584, 0.0
  %v960 = vmax.f32 %v587, 0.0
  %v961 = vmax.f32 %v590, 0.0
  %v962 = vmax.f32 %v593, 0.0
  %v963 = vmax.f32 %v596, 0.0
  %v964 = vmax.f32 %v599, 0.0
  %v965 = vmax.f32 %v602, 0.0
  %v966 = vmax.f32 %v605, 0.0
  %v967 = vmax.f32 %v608, 0.0
  %v968 = vmax.f32 %v611, 0.0
  %v969 = vmax.f32 %v614, 0.0
  %v970 = vmax.f32 %v617, 0.0
  %v971 = vmax.f32 %v620, 0.0
  %v972 = vmax.f32 %v623, 0.0
  %v973 = vmax.f32 %v626, 0.0
  %v974 = vmax.f32 %v629, 0.0
  %v975 = vmax.f32 %v632, 0.0
  %v976 = vmax.f32 %v635, 0.0
  %v977 = vmax.f32 %v638, 0.0
  %v978 = vmax.f32 %v641, 0.0
  %v979 = vmax.f32 %v644, 0.0
  %v980 = vmax.f32 %v647, 0.0
  %v981 = vmax.f32 %v650, 0.0
  %v982 = vmax.f32 %v653, 0.0
  %v983 = vmax.f32 %v656, 0.0
  %v984 = vmax.f32 %v659, 0.0
  %v985 = vmax.f32 %v662, 0.0
  %v986 = vmax.f32 %v665, 0.0
  %v987 = vmax.f32 %v668, 0.0
  %v988 = vmax.f32 %v671, 0.0
  %v989 = vmax.f32 %v674, 0.0
  %v990 = vmax.f32 %v677, 0.0
  %v991 = vmax.f32 %v680, 0.0
  %v992 = vmax.f32 %v683, 0.0
  %v993 = vmax.f32 %v686, 0.0
  %v994 = vmax.f32 %v689, 0.0
  %v995 = vmax.f32 %v692, 0.0
  %v996 = vmax.f32 %v695, 0.0
  %v997 = vmax.f32 %v698, 0.0
  %v998 = vmax.f32 %v701, 0.0
  %v999 = vmax.f32 %v704, 0.0
  %v1000 = vmax.f32 %v707, 0.0
  %v1001 = vmax.f32 %v710, 0.0
  %v1002 = vmax.f32 %v713, 0.0
  %v1003 = vmax.f32 %v716, 0.0
  %v1004 = vmax.f32 %v719, 0.0
  %v1005 = vmax.f32 %v722, 0.0
  %v1006 = vmax.f32 %v725, 0.0
  %v1007 = vmax.f32 %v728, 0.0
  %v1008 = vmax.f32 %v731, 0.0
  %v1009 = vmax.f32 %v734, 0.0
  %v1010 = vmax.f32 %v737, 0.0
  %v1011 = vmax.f32 %v740, 0.0
  %v1012 = vmax.f32 %v743, 0.0
  %v1013 = vmax.f32 %v746, 0.0
  %v1014 = vmax.f32 %v749, 0.0
  %v1015 = vmax.f32 %v752, 0.0
  %v1016 = vmax.f32 %v755, 0.0
  %v1017 = vmax.f32 %v758, 0.0
  %v1018 = vmax.f32 %v761, 0.0
  %v1019 = vmax.f32 %v764, 0.0
  %v1020 = vmax.f32 %v767, 0.0
  %v1021 = vmax.f32 %v770, 0.0
  %v1022 = vmax.f32 %v773, 0.0
  %v1023 = vmax.f32 %v776, 0.0
  %v1024 = vmax.f32 %v779, 0.0
  %v1025 = vmax.f32 %v782, 0.0
  %v1026 = vmax.f32 %v785, 0.0
  %v1027 = vmax.f32 %v788, 0.0
  %v1028 = vmax.f32 %v791, 0.0
  %v1029 = vmax.f32 %v794, 0.0
  %v1030 = vmax.f32 %v797, 0.0
  %v1031 = vmax.f32 %v800, 0.0
  %v1032 = vmax.f32 %v803, 0.0
  %v1033 = vmax.f32 %v806, 0.0
  %v1034 = vmax.f32 %v809, 0.0
  %v1035 = vmax.f32 %v812, 0.0
  %v1036 = vmax.f32 %v815, 0.0
  %v1037 = vmax.f32 %v818, 0.0
  %v1038 = vmax.f32 %v821, 0.0
  %v1039 = vmax.f32 %v824, 0.0
  %v1040 = vmax.f32 %v827, 0.0
  %v1041 = vmax.f32 %v830, 0.0
  %v1042 = vmax.f32 %v833, 0.0
  %v1043 = vmax.f32 %v836, 0.0
  %v1044 = vmax.f32 %v839, 0.0
  %v1045 = vmax.f32 %v842, 0.0
  %v1046 = vmax.f32 %v845, 0.0
  %v1047 = vmax.f32 %v848, 0.0
  %v1048 = vmax.f32 %v851, 0.0
  %v1049 = vmax.f32 %v854, 0.0
  %v1050 = vmax.f32 %v857, 0.0
  %v1051 = vmax.f32 %v860, 0.0
  %v1052 = vmax.f32 %v863, 0.0
  %v1053 = vmax.f32 %v866, 0.0
  %v1054 = vmax.f32 %v869, 0.0
  %v1055 = vmax.f32 %v872, 0.0
  %v1056 = vmax.f32 %v875, 0.0
  %v1057 = vmax.f32 %v878, 0.0
  %v1058 = vmax.f32 %v881, 0.0
  %v1059 = vmax.f32 %v884, 0.0
  %v1060 = vmax.f32 %v887, 0.0
  %v1061 = vmax.f32 %v890, 0.0
  %v1062 = vmax.f32 %v893, 0.0
  %v1063 = vmax.f32 %v896, 0.0
  %v1064 = vmax.f32 %v899, 0.0
  %v1065 = vmax.f32 %v902, 0.0
  %v1066 = vmax.f32 %v905, 0.0
  %v1067 = vmax.f32 %v908, 0.0
  %v1068 = vmax.f32 %v911, 0.0
  %v1069 = vmax.f32 %v914, 0.0
  %v1070 = vmax.f32 %v917, 0.0
  %v1071 = vmax.f32 %v920, 0.0
  %v1072 = vmax.f32 %v923, 0.0
  %v1073 = vmax.f32 %v926, 0.0
  %v1074 = vmax.f32 %v929, 0.0
  %v1075 = vmax.f32 %v932, 0.0
  %v1076 = vmax.f32 %v935, 0.0
  %v1077 = vmax.f32 %v938, 0.0
  %v1078 = vmax.f32 %v941, 0.0
  %v1079 = vmax.f32 %v944, 0.0
  %v1080 = vmax.f32 %v947, 0.0
  %v1081 = vmax.f32 %v950, 0.0
  %v1082 = vmax.f32 %v953, 0.0
  %vm1083 = vcmask 64512
  %1084 = vst.msk [vmem:[#allocation2] sm:$0xff] %vm1083, %v955
  %1085 = vst.msk [vmem:[#allocation2 + $0x8] sm:$0xff] %vm1083, %v956
  %1086 = vst.msk [vmem:[#allocation2 + $0x10] sm:$0xff] %vm1083, %v957
  %1087 = vst.msk [vmem:[#allocation2 + $0x18] sm:$0xff] %vm1083, %v958
  %1088 = vst.msk [vmem:[#allocation2 + $0x20] sm:$0xff] %vm1083, %v959
  %1089 = vst.msk [vmem:[#allocation2 + $0x28] sm:$0xff] %vm1083, %v960
  %1090 = vst.msk [vmem:[#allocation2 + $0x30] sm:$0xff] %vm1083, %v961
  %1091 = vst.msk [vmem:[#allocation2 + $0x38] sm:$0xff] %vm1083, %v962
  %1092 = vst.msk [vmem:[#allocation2 + $0x40] sm:$0xff] %vm1083, %v963
  %1093 = vst.msk [vmem:[#allocation2 + $0x48] sm:$0xff] %vm1083, %v964
  %1094 = vst.msk [vmem:[#allocation2 + $0x50] sm:$0xff] %vm1083, %v965
  %1095 = vst.msk [vmem:[#allocation2 + $0x58] sm:$0xff] %vm1083, %v966
  %1096 = vst.msk [vmem:[#allocation2 + $0x60] sm:$0xff] %vm1083, %v967
  %1097 = vst.msk [vmem:[#allocation2 + $0x68] sm:$0xff] %vm1083, %v968
  %1098 = vst.msk [vmem:[#allocation2 + $0x70] sm:$0xff] %vm1083, %v969
  %1099 = vst.msk [vmem:[#allocation2 + $0x78] sm:$0xff] %vm1083, %v970
  %1100 = vst.msk [vmem:[#allocation2 + $0x80] sm:$0xff] %vm1083, %v971
  %1101 = vst.msk [vmem:[#allocation2 + $0x88] sm:$0xff] %vm1083, %v972
  %1102 = vst.msk [vmem:[#allocation2 + $0x90] sm:$0xff] %vm1083, %v973
  %1103 = vst.msk [vmem:[#allocation2 + $0x98] sm:$0xff] %vm1083, %v974
  %1104 = vst.msk [vmem:[#allocation2 + $0xa0] sm:$0xff] %vm1083, %v975
  %1105 = vst.msk [vmem:[#allocation2 + $0xa8] sm:$0xff] %vm1083, %v976
  %1106 = vst.msk [vmem:[#allocation2 + $0xb0] sm:$0xff] %vm1083, %v977
  %1107 = vst.msk [vmem:[#allocation2 + $0xb8] sm:$0xff] %vm1083, %v978
  %1108 = vst.msk [vmem:[#allocation2 + $0xc0] sm:$0xff] %vm1083, %v979
  %1109 = vst.msk [vmem:[#allocation2 + $0xc8] sm:$0xff] %vm1083, %v980
  %1110 = vst.msk [vmem:[#allocation2 + $0xd0] sm:$0xff] %vm1083, %v981
  %1111 = vst.msk [vmem:[#allocation2 + $0xd8] sm:$0xff] %vm1083, %v982
  %1112 = vst.msk [vmem:[#allocation2 + $0xe0] sm:$0xff] %vm1083, %v983
  %1113 = vst.msk [vmem:[#allocation2 + $0xe8] sm:$0xff] %vm1083, %v984
  %1114 = vst.msk [vmem:[#allocation2 + $0xf0] sm:$0xff] %vm1083, %v985
  %1115 = vst.msk [vmem:[#allocation2 + $0xf8] sm:$0xff] %vm1083, %v986
  %1116 = vst.msk [vmem:[#allocation2 + $0x100] sm:$0xff] %vm1083, %v987
  %1117 = vst.msk [vmem:[#allocation2 + $0x108] sm:$0xff] %vm1083, %v988
  %1118 = vst.msk [vmem:[#allocation2 + $0x110] sm:$0xff] %vm1083, %v989
  %1119 = vst.msk [vmem:[#allocation2 + $0x118] sm:$0xff] %vm1083, %v990
  %1120 = vst.msk [vmem:[#allocation2 + $0x120] sm:$0xff] %vm1083, %v991
  %1121 = vst.msk [vmem:[#allocation2 + $0x128] sm:$0xff] %vm1083, %v992
  %1122 = vst.msk [vmem:[#allocation2 + $0x130] sm:$0xff] %vm1083, %v993
  %1123 = vst.msk [vmem:[#allocation2 + $0x138] sm:$0xff] %vm1083, %v994
  %1124 = vst.msk [vmem:[#allocation2 + $0x140] sm:$0xff] %vm1083, %v995
  %1125 = vst.msk [vmem:[#allocation2 + $0x148] sm:$0xff] %vm1083, %v996
  %1126 = vst.msk [vmem:[#allocation2 + $0x150] sm:$0xff] %vm1083, %v997
  %1127 = vst.msk [vmem:[#allocation2 + $0x158] sm:$0xff] %vm1083, %v998
  %1128 = vst.msk [vmem:[#allocation2 + $0x160] sm:$0xff] %vm1083, %v999
  %1129 = vst.msk [vmem:[#allocation2 + $0x168] sm:$0xff] %vm1083, %v1000
  %1130 = vst.msk [vmem:[#allocation2 + $0x170] sm:$0xff] %vm1083, %v1001
  %1131 = vst.msk [vmem:[#allocation2 + $0x178] sm:$0xff] %vm1083, %v1002
  %1132 = vst.msk [vmem:[#allocation2 + $0x180] sm:$0xff] %vm1083, %v1003
  %1133 = vst.msk [vmem:[#allocation2 + $0x188] sm:$0xff] %vm1083, %v1004
  %1134 = vst.msk [vmem:[#allocation2 + $0x190] sm:$0xff] %vm1083, %v1005
  %1135 = vst.msk [vmem:[#allocation2 + $0x198] sm:$0xff] %vm1083, %v1006
  %1136 = vst.msk [vmem:[#allocation2 + $0x1a0] sm:$0xff] %vm1083, %v1007
  %1137 = vst.msk [vmem:[#allocation2 + $0x1a8] sm:$0xff] %vm1083, %v1008
  %1138 = vst.msk [vmem:[#allocation2 + $0x1b0] sm:$0xff] %vm1083, %v1009
  %1139 = vst.msk [vmem:[#allocation2 + $0x1b8] sm:$0xff] %vm1083, %v1010
  %1140 = vst.msk [vmem:[#allocation2 + $0x1c0] sm:$0xff] %vm1083, %v1011
  %1141 = vst.msk [vmem:[#allocation2 + $0x1c8] sm:$0xff] %vm1083, %v1012
  %1142 = vst.msk [vmem:[#allocation2 + $0x1d0] sm:$0xff] %vm1083, %v1013
  %1143 = vst.msk [vmem:[#allocation2 + $0x1d8] sm:$0xff] %vm1083, %v1014
  %1144 = vst.msk [vmem:[#allocation2 + $0x1e0] sm:$0xff] %vm1083, %v1015
  %1145 = vst.msk [vmem:[#allocation2 + $0x1e8] sm:$0xff] %vm1083, %v1016
  %1146 = vst.msk [vmem:[#allocation2 + $0x1f0] sm:$0xff] %vm1083, %v1017
  %1147 = vst.msk [vmem:[#allocation2 + $0x1f8] sm:$0xff] %vm1083, %v1018
  %1148 = vst.msk [vmem:[#allocation2 + $0x200] sm:$0xff] %vm1083, %v1019
  %1149 = vst.msk [vmem:[#allocation2 + $0x208] sm:$0xff] %vm1083, %v1020
  %1150 = vst.msk [vmem:[#allocation2 + $0x210] sm:$0xff] %vm1083, %v1021
  %1151 = vst.msk [vmem:[#allocation2 + $0x218] sm:$0xff] %vm1083, %v1022
  %1152 = vst.msk [vmem:[#allocation2 + $0x220] sm:$0xff] %vm1083, %v1023
  %1153 = vst.msk [vmem:[#allocation2 + $0x228] sm:$0xff] %vm1083, %v1024
  %1154 = vst.msk [vmem:[#allocation2 + $0x230] sm:$0xff] %vm1083, %v1025
  %1155 = vst.msk [vmem:[#allocation2 + $0x238] sm:$0xff] %vm1083, %v1026
  %1156 = vst.msk [vmem:[#allocation2 + $0x240] sm:$0xff] %vm1083, %v1027
  %1157 = vst.msk [vmem:[#allocation2 + $0x248] sm:$0xff] %vm1083, %v1028
  %1158 = vst.msk [vmem:[#allocation2 + $0x250] sm:$0xff] %vm1083, %v1029
  %1159 = vst.msk [vmem:[#allocation2 + $0x258] sm:$0xff] %vm1083, %v1030
  %1160 = vst.msk [vmem:[#allocation2 + $0x260] sm:$0xff] %vm1083, %v1031
  %1161 = vst.msk [vmem:[#allocation2 + $0x268] sm:$0xff] %vm1083, %v1032
  %1162 = vst.msk [vmem:[#allocation2 + $0x270] sm:$0xff] %vm1083, %v1033
  %1163 = vst.msk [vmem:[#allocation2 + $0x278] sm:$0xff] %vm1083, %v1034
  %1164 = vst.msk [vmem:[#allocation2 + $0x280] sm:$0xff] %vm1083, %v1035
  %1165 = vst.msk [vmem:[#allocation2 + $0x288] sm:$0xff] %vm1083, %v1036
  %1166 = vst.msk [vmem:[#allocation2 + $0x290] sm:$0xff] %vm1083, %v1037
  %1167 = vst.msk [vmem:[#allocation2 + $0x298] sm:$0xff] %vm1083, %v1038
  %1168 = vst.msk [vmem:[#allocation2 + $0x2a0] sm:$0xff] %vm1083, %v1039
  %1169 = vst.msk [vmem:[#allocation2 + $0x2a8] sm:$0xff] %vm1083, %v1040
  %1170 = vst.msk [vmem:[#allocation2 + $0x2b0] sm:$0xff] %vm1083, %v1041
  %1171 = vst.msk [vmem:[#allocation2 + $0x2b8] sm:$0xff] %vm1083, %v1042
  %1172 = vst.msk [vmem:[#allocation2 + $0x2c0] sm:$0xff] %vm1083, %v1043
  %1173 = vst.msk [vmem:[#allocation2 + $0x2c8] sm:$0xff] %vm1083, %v1044
  %1174 = vst.msk [vmem:[#allocation2 + $0x2d0] sm:$0xff] %vm1083, %v1045
  %1175 = vst.msk [vmem:[#allocation2 + $0x2d8] sm:$0xff] %vm1083, %v1046
  %1176 = vst.msk [vmem:[#allocation2 + $0x2e0] sm:$0xff] %vm1083, %v1047
  %1177 = vst.msk [vmem:[#allocation2 + $0x2e8] sm:$0xff] %vm1083, %v1048
  %1178 = vst.msk [vmem:[#allocation2 + $0x2f0] sm:$0xff] %vm1083, %v1049
  %1179 = vst.msk [vmem:[#allocation2 + $0x2f8] sm:$0xff] %vm1083, %v1050
  %1180 = vst.msk [vmem:[#allocation2 + $0x300] sm:$0xff] %vm1083, %v1051
  %1181 = vst.msk [vmem:[#allocation2 + $0x308] sm:$0xff] %vm1083, %v1052
  %1182 = vst.msk [vmem:[#allocation2 + $0x310] sm:$0xff] %vm1083, %v1053
  %1183 = vst.msk [vmem:[#allocation2 + $0x318] sm:$0xff] %vm1083, %v1054
  %1184 = vst.msk [vmem:[#allocation2 + $0x320] sm:$0xff] %vm1083, %v1055
  %1185 = vst.msk [vmem:[#allocation2 + $0x328] sm:$0xff] %vm1083, %v1056
  %1186 = vst.msk [vmem:[#allocation2 + $0x330] sm:$0xff] %vm1083, %v1057
  %1187 = vst.msk [vmem:[#allocation2 + $0x338] sm:$0xff] %vm1083, %v1058
  %1188 = vst.msk [vmem:[#allocation2 + $0x340] sm:$0xff] %vm1083, %v1059
  %1189 = vst.msk [vmem:[#allocation2 + $0x348] sm:$0xff] %vm1083, %v1060
  %1190 = vst.msk [vmem:[#allocation2 + $0x350] sm:$0xff] %vm1083, %v1061
  %1191 = vst.msk [vmem:[#allocation2 + $0x358] sm:$0xff] %vm1083, %v1062
  %1192 = vst.msk [vmem:[#allocation2 + $0x360] sm:$0xff] %vm1083, %v1063
  %1193 = vst.msk [vmem:[#allocation2 + $0x368] sm:$0xff] %vm1083, %v1064
  %1194 = vst.msk [vmem:[#allocation2 + $0x370] sm:$0xff] %vm1083, %v1065
  %1195 = vst.msk [vmem:[#allocation2 + $0x378] sm:$0xff] %vm1083, %v1066
  %1196 = vst.msk [vmem:[#allocation2 + $0x380] sm:$0xff] %vm1083, %v1067
  %1197 = vst.msk [vmem:[#allocation2 + $0x388] sm:$0xff] %vm1083, %v1068
  %1198 = vst.msk [vmem:[#allocation2 + $0x390] sm:$0xff] %vm1083, %v1069
  %1199 = vst.msk [vmem:[#allocation2 + $0x398] sm:$0xff] %vm1083, %v1070
  %1200 = vst.msk [vmem:[#allocation2 + $0x3a0] sm:$0xff] %vm1083, %v1071
  %1201 = vst.msk [vmem:[#allocation2 + $0x3a8] sm:$0xff] %vm1083, %v1072
  %1202 = vst.msk [vmem:[#allocation2 + $0x3b0] sm:$0xff] %vm1083, %v1073
  %1203 = vst.msk [vmem:[#allocation2 + $0x3b8] sm:$0xff] %vm1083, %v1074
  %1204 = vst.msk [vmem:[#allocation2 + $0x3c0] sm:$0xff] %vm1083, %v1075
  %1205 = vst.msk [vmem:[#allocation2 + $0x3c8] sm:$0xff] %vm1083, %v1076
  %1206 = vst.msk [vmem:[#allocation2 + $0x3d0] sm:$0xff] %vm1083, %v1077
  %1207 = vst.msk [vmem:[#allocation2 + $0x3d8] sm:$0xff] %vm1083, %v1078
  %1208 = vst.msk [vmem:[#allocation2 + $0x3e0] sm:$0xff] %vm1083, %v1079
  %1209 = vst.msk [vmem:[#allocation2 + $0x3e8] sm:$0xff] %vm1083, %v1080
  %1210 = vst.msk [vmem:[#allocation2 + $0x3f0] sm:$0xff] %vm1083, %v1081
  %1211 = vst.msk [vmem:[#allocation2 + $0x3f8] sm:$0xff] %vm1083, %v1082
  %1212 = vst.msk [vmem:[#allocation2 + $0x400] sm:$0xff] %vm1083, 0.0
  %v1213 = vld [vmem:[#allocation2] sm:$0xff]
  %v1214 = vld [vmem:[#allocation2 + $0x8] sm:$0xff]
  %v1215 = vld [vmem:[#allocation2 + $0x10] sm:$0xff]
  %v1216 = vld [vmem:[#allocation2 + $0x18] sm:$0xff]
  %v1217 = vld [vmem:[#allocation2 + $0x20] sm:$0xff]
  %v1218 = vld [vmem:[#allocation2 + $0x28] sm:$0xff]
  %v1219 = vld [vmem:[#allocation2 + $0x30] sm:$0xff]
  %v1220 = vld [vmem:[#allocation2 + $0x38] sm:$0xff]
  %v1221 = vld [vmem:[#allocation2 + $0x40] sm:$0xff]
  %v1222 = vld [vmem:[#allocation2 + $0x48] sm:$0xff]
  %v1223 = vld [vmem:[#allocation2 + $0x50] sm:$0xff]
  %v1224 = vld [vmem:[#allocation2 + $0x58] sm:$0xff]
  %v1225 = vld [vmem:[#allocation2 + $0x60] sm:$0xff]
  %v1226 = vld [vmem:[#allocation2 + $0x68] sm:$0xff]
  %v1227 = vld [vmem:[#allocation2 + $0x70] sm:$0xff]
  %v1228 = vld [vmem:[#allocation2 + $0x78] sm:$0xff]
  %v1229 = vld [vmem:[#allocation2 + $0x80] sm:$0xff]
  %v1230 = vld [vmem:[#allocation2 + $0x88] sm:$0xff]
  %v1231 = vld [vmem:[#allocation2 + $0x90] sm:$0xff]
  %v1232 = vld [vmem:[#allocation2 + $0x98] sm:$0xff]
  %v1233 = vld [vmem:[#allocation2 + $0xa0] sm:$0xff]
  %v1234 = vld [vmem:[#allocation2 + $0xa8] sm:$0xff]
  %v1235 = vld [vmem:[#allocation2 + $0xb0] sm:$0xff]
  %v1236 = vld [vmem:[#allocation2 + $0xb8] sm:$0xff]
  %v1237 = vld [vmem:[#allocation2 + $0xc0] sm:$0xff]
  %v1238 = vld [vmem:[#allocation2 + $0xc8] sm:$0xff]
  %v1239 = vld [vmem:[#allocation2 + $0xd0] sm:$0xff]
  %v1240 = vld [vmem:[#allocation2 + $0xd8] sm:$0xff]
  %v1241 = vld [vmem:[#allocation2 + $0xe0] sm:$0xff]
  %v1242 = vld [vmem:[#allocation2 + $0xe8] sm:$0xff]
  %v1243 = vld [vmem:[#allocation2 + $0xf0] sm:$0xff]
  %v1244 = vld [vmem:[#allocation2 + $0xf8] sm:$0xff]
  %v1245 = vld [vmem:[#allocation2 + $0x100] sm:$0xff]
  %v1246 = vld [vmem:[#allocation2 + $0x108] sm:$0xff]
  %v1247 = vld [vmem:[#allocation2 + $0x110] sm:$0xff]
  %v1248 = vld [vmem:[#allocation2 + $0x118] sm:$0xff]
  %v1249 = vld [vmem:[#allocation2 + $0x120] sm:$0xff]
  %v1250 = vld [vmem:[#allocation2 + $0x128] sm:$0xff]
  %v1251 = vld [vmem:[#allocation2 + $0x130] sm:$0xff]
  %v1252 = vld [vmem:[#allocation2 + $0x138] sm:$0xff]
  %v1253 = vld [vmem:[#allocation2 + $0x140] sm:$0xff]
  %v1254 = vld [vmem:[#allocation2 + $0x148] sm:$0xff]
  %v1255 = vld [vmem:[#allocation2 + $0x150] sm:$0xff]
  %v1256 = vld [vmem:[#allocation2 + $0x158] sm:$0xff]
  %v1257 = vld [vmem:[#allocation2 + $0x160] sm:$0xff]
  %v1258 = vld [vmem:[#allocation2 + $0x168] sm:$0xff]
  %v1259 = vld [vmem:[#allocation2 + $0x170] sm:$0xff]
  %v1260 = vld [vmem:[#allocation2 + $0x178] sm:$0xff]
  %v1261 = vld [vmem:[#allocation2 + $0x180] sm:$0xff]
  %v1262 = vld [vmem:[#allocation2 + $0x188] sm:$0xff]
  %v1263 = vld [vmem:[#allocation2 + $0x190] sm:$0xff]
  %v1264 = vld [vmem:[#allocation2 + $0x198] sm:$0xff]
  %v1265 = vld [vmem:[#allocation2 + $0x1a0] sm:$0xff]
  %v1266 = vld [vmem:[#allocation2 + $0x1a8] sm:$0xff]
  %v1267 = vld [vmem:[#allocation2 + $0x1b0] sm:$0xff]
  %v1268 = vld [vmem:[#allocation2 + $0x1b8] sm:$0xff]
  %v1269 = vld [vmem:[#allocation2 + $0x1c0] sm:$0xff]
  %v1270 = vld [vmem:[#allocation2 + $0x1c8] sm:$0xff]
  %v1271 = vld [vmem:[#allocation2 + $0x1d0] sm:$0xff]
  %v1272 = vld [vmem:[#allocation2 + $0x1d8] sm:$0xff]
  %v1273 = vld [vmem:[#allocation2 + $0x1e0] sm:$0xff]
  %v1274 = vld [vmem:[#allocation2 + $0x1e8] sm:$0xff]
  %v1275 = vld [vmem:[#allocation2 + $0x1f0] sm:$0xff]
  %v1276 = vld [vmem:[#allocation2 + $0x1f8] sm:$0xff]
  %v1277 = vld [vmem:[#allocation2 + $0x200] sm:$0xff]
  %v1278 = vld [vmem:[#allocation2 + $0x208] sm:$0xff]
  %v1279 = vld [vmem:[#allocation2 + $0x210] sm:$0xff]
  %v1280 = vld [vmem:[#allocation2 + $0x218] sm:$0xff]
  %v1281 = vld [vmem:[#allocation2 + $0x220] sm:$0xff]
  %v1282 = vld [vmem:[#allocation2 + $0x228] sm:$0xff]
  %v1283 = vld [vmem:[#allocation2 + $0x230] sm:$0xff]
  %v1284 = vld [vmem:[#allocation2 + $0x238] sm:$0xff]
  %v1285 = vld [vmem:[#allocation2 + $0x240] sm:$0xff]
  %v1286 = vld [vmem:[#allocation2 + $0x248] sm:$0xff]
  %v1287 = vld [vmem:[#allocation2 + $0x250] sm:$0xff]
  %v1288 = vld [vmem:[#allocation2 + $0x258] sm:$0xff]
  %v1289 = vld [vmem:[#allocation2 + $0x260] sm:$0xff]
  %v1290 = vld [vmem:[#allocation2 + $0x268] sm:$0xff]
  %v1291 = vld [vmem:[#allocation2 + $0x270] sm:$0xff]
  %v1292 = vld [vmem:[#allocation2 + $0x278] sm:$0xff]
  %v1293 = vld [vmem:[#allocation2 + $0x280] sm:$0xff]
  %v1294 = vld [vmem:[#allocation2 + $0x288] sm:$0xff]
  %v1295 = vld [vmem:[#allocation2 + $0x290] sm:$0xff]
  %v1296 = vld [vmem:[#allocation2 + $0x298] sm:$0xff]
  %v1297 = vld [vmem:[#allocation2 + $0x2a0] sm:$0xff]
  %v1298 = vld [vmem:[#allocation2 + $0x2a8] sm:$0xff]
  %v1299 = vld [vmem:[#allocation2 + $0x2b0] sm:$0xff]
  %v1300 = vld [vmem:[#allocation2 + $0x2b8] sm:$0xff]
  %v1301 = vld [vmem:[#allocation2 + $0x2c0] sm:$0xff]
  %v1302 = vld [vmem:[#allocation2 + $0x2c8] sm:$0xff]
  %v1303 = vld [vmem:[#allocation2 + $0x2d0] sm:$0xff]
  %v1304 = vld [vmem:[#allocation2 + $0x2d8] sm:$0xff]
  %v1305 = vld [vmem:[#allocation2 + $0x2e0] sm:$0xff]
  %v1306 = vld [vmem:[#allocation2 + $0x2e8] sm:$0xff]
  %v1307 = vld [vmem:[#allocation2 + $0x2f0] sm:$0xff]
  %v1308 = vld [vmem:[#allocation2 + $0x2f8] sm:$0xff]
  %v1309 = vld [vmem:[#allocation2 + $0x300] sm:$0xff]
  %v1310 = vld [vmem:[#allocation2 + $0x308] sm:$0xff]
  %v1311 = vld [vmem:[#allocation2 + $0x310] sm:$0xff]
  %v1312 = vld [vmem:[#allocation2 + $0x318] sm:$0xff]
  %v1313 = vld [vmem:[#allocation2 + $0x320] sm:$0xff]
  %v1314 = vld [vmem:[#allocation2 + $0x328] sm:$0xff]
  %v1315 = vld [vmem:[#allocation2 + $0x330] sm:$0xff]
  %v1316 = vld [vmem:[#allocation2 + $0x338] sm:$0xff]
  %v1317 = vld [vmem:[#allocation2 + $0x340] sm:$0xff]
  %v1318 = vld [vmem:[#allocation2 + $0x348] sm:$0xff]
  %v1319 = vld [vmem:[#allocation2 + $0x350] sm:$0xff]
  %v1320 = vld [vmem:[#allocation2 + $0x358] sm:$0xff]
  %v1321 = vld [vmem:[#allocation2 + $0x360] sm:$0xff]
  %v1322 = vld [vmem:[#allocation2 + $0x368] sm:$0xff]
  %v1323 = vld [vmem:[#allocation2 + $0x370] sm:$0xff]
  %v1324 = vld [vmem:[#allocation2 + $0x378] sm:$0xff]
  %v1325 = vld [vmem:[#allocation2 + $0x380] sm:$0xff]
  %v1326 = vld [vmem:[#allocation2 + $0x388] sm:$0xff]
  %v1327 = vld [vmem:[#allocation2 + $0x390] sm:$0xff]
  %v1328 = vld [vmem:[#allocation2 + $0x398] sm:$0xff]
  %v1329 = vld [vmem:[#allocation2 + $0x3a0] sm:$0xff]
  %v1330 = vld [vmem:[#allocation2 + $0x3a8] sm:$0xff]
  %v1331 = vld [vmem:[#allocation2 + $0x3b0] sm:$0xff]
  %v1332 = vld [vmem:[#allocation2 + $0x3b8] sm:$0xff]
  %v1333 = vld [vmem:[#allocation2 + $0x3c0] sm:$0xff]
  %v1334 = vld [vmem:[#allocation2 + $0x3c8] sm:$0xff]
  %v1335 = vld [vmem:[#allocation2 + $0x3d0] sm:$0xff]
  %v1336 = vld [vmem:[#allocation2 + $0x3d8] sm:$0xff]
  %v1337 = vld [vmem:[#allocation2 + $0x3e0] sm:$0xff]
  %v1338 = vld [vmem:[#allocation2 + $0x3e8] sm:$0xff]
  %v1339 = vld [vmem:[#allocation2 + $0x3f0] sm:$0xff]
  %v1340 = vld [vmem:[#allocation2 + $0x3f8] sm:$0xff]
  %v1341 = vld [vmem:[%s3] sm:$0xff]
  %v1342 = vld [vmem:[#allocation2 + $0x1] sm:$0xff]
  %v1343 = vld [vmem:[#allocation2 + $0x9] sm:$0xff]
  %v1344 = vld [vmem:[#allocation2 + $0x11] sm:$0xff]
  %v1345 = vld [vmem:[#allocation2 + $0x19] sm:$0xff]
  %v1346 = vld [vmem:[#allocation2 + $0x21] sm:$0xff]
  %v1347 = vld [vmem:[#allocation2 + $0x29] sm:$0xff]
  %v1348 = vld [vmem:[#allocation2 + $0x31] sm:$0xff]
  %v1349 = vld [vmem:[#allocation2 + $0x39] sm:$0xff]
  %v1350 = vld [vmem:[#allocation2 + $0x41] sm:$0xff]
  %v1351 = vld [vmem:[#allocation2 + $0x49] sm:$0xff]
  %v1352 = vld [vmem:[#allocation2 + $0x51] sm:$0xff]
  %v1353 = vld [vmem:[#allocation2 + $0x59] sm:$0xff]
  %v1354 = vld [vmem:[#allocation2 + $0x61] sm:$0xff]
  %v1355 = vld [vmem:[#allocation2 + $0x69] sm:$0xff]
  %v1356 = vld [vmem:[#allocation2 + $0x71] sm:$0xff]
  %v1357 = vld [vmem:[#allocation2 + $0x79] sm:$0xff]
  %v1358 = vld [vmem:[#allocation2 + $0x81] sm:$0xff]
  %v1359 = vld [vmem:[#allocation2 + $0x89] sm:$0xff]
  %v1360 = vld [vmem:[#allocation2 + $0x91] sm:$0xff]
  %v1361 = vld [vmem:[#allocation2 + $0x99] sm:$0xff]
  %v1362 = vld [vmem:[#allocation2 + $0xa1] sm:$0xff]
  %v1363 = vld [vmem:[#allocation2 + $0xa9] sm:$0xff]
  %v1364 = vld [vmem:[#allocation2 + $0xb1] sm:$0xff]
  %v1365 = vld [vmem:[#allocation2 + $0xb9] sm:$0xff]
  %v1366 = vld [vmem:[#allocation2 + $0xc1] sm:$0xff]
  %v1367 = vld [vmem:[#allocation2 + $0xc9] sm:$0xff]
  %v1368 = vld [vmem:[#allocation2 + $0xd1] sm:$0xff]
  %v1369 = vld [vmem:[#allocation2 + $0xd9] sm:$0xff]
  %v1370 = vld [vmem:[#allocation2 + $0xe1] sm:$0xff]
  %v1371 = vld [vmem:[#allocation2 + $0xe9] sm:$0xff]
  %v1372 = vld [vmem:[#allocation2 + $0xf1] sm:$0xff]
  %v1373 = vld [vmem:[#allocation2 + $0xf9] sm:$0xff]
  %v1374 = vld [vmem:[#allocation2 + $0x101] sm:$0xff]
  %v1375 = vld [vmem:[#allocation2 + $0x109] sm:$0xff]
  %v1376 = vld [vmem:[#allocation2 + $0x111] sm:$0xff]
  %v1377 = vld [vmem:[#allocation2 + $0x119] sm:$0xff]
  %v1378 = vld [vmem:[#allocation2 + $0x121] sm:$0xff]
  %v1379 = vld [vmem:[#allocation2 + $0x129] sm:$0xff]
  %v1380 = vld [vmem:[#allocation2 + $0x131] sm:$0xff]
  %v1381 = vld [vmem:[#allocation2 + $0x139] sm:$0xff]
  %v1382 = vld [vmem:[#allocation2 + $0x141] sm:$0xff]
  %v1383 = vld [vmem:[#allocation2 + $0x149] sm:$0xff]
  %v1384 = vld [vmem:[#allocation2 + $0x151] sm:$0xff]
  %v1385 = vld [vmem:[#allocation2 + $0x159] sm:$0xff]
  %v1386 = vld [vmem:[#allocation2 + $0x161] sm:$0xff]
  %v1387 = vld [vmem:[#allocation2 + $0x169] sm:$0xff]
  %v1388 = vld [vmem:[#allocation2 + $0x171] sm:$0xff]
  %v1389 = vld [vmem:[#allocation2 + $0x179] sm:$0xff]
  %v1390 = vld [vmem:[#allocation2 + $0x181] sm:$0xff]
  %v1391 = vld [vmem:[#allocation2 + $0x189] sm:$0xff]
  %v1392 = vld [vmem:[#allocation2 + $0x191] sm:$0xff]
  %v1393 = vld [vmem:[#allocation2 + $0x199] sm:$0xff]
  %v1394 = vld [vmem:[#allocation2 + $0x1a1] sm:$0xff]
  %v1395 = vld [vmem:[#allocation2 + $0x1a9] sm:$0xff]
  %v1396 = vld [vmem:[#allocation2 + $0x1b1] sm:$0xff]
  %v1397 = vld [vmem:[#allocation2 + $0x1b9] sm:$0xff]
  %v1398 = vld [vmem:[#allocation2 + $0x1c1] sm:$0xff]
  %v1399 = vld [vmem:[#allocation2 + $0x1c9] sm:$0xff]
  %v1400 = vld [vmem:[#allocation2 + $0x1d1] sm:$0xff]
  %v1401 = vld [vmem:[#allocation2 + $0x1d9] sm:$0xff]
  %v1402 = vld [vmem:[#allocation2 + $0x1e1] sm:$0xff]
  %v1403 = vld [vmem:[#allocation2 + $0x1e9] sm:$0xff]
  %v1404 = vld [vmem:[#allocation2 + $0x1f1] sm:$0xff]
  %v1405 = vld [vmem:[#allocation2 + $0x1f9] sm:$0xff]
  %v1406 = vld [vmem:[#allocation2 + $0x201] sm:$0xff]
  %v1407 = vld [vmem:[#allocation2 + $0x209] sm:$0xff]
  %v1408 = vld [vmem:[#allocation2 + $0x211] sm:$0xff]
  %v1409 = vld [vmem:[#allocation2 + $0x219] sm:$0xff]
  %v1410 = vld [vmem:[#allocation2 + $0x221] sm:$0xff]
  %v1411 = vld [vmem:[#allocation2 + $0x229] sm:$0xff]
  %v1412 = vld [vmem:[#allocation2 + $0x231] sm:$0xff]
  %v1413 = vld [vmem:[#allocation2 + $0x239] sm:$0xff]
  %v1414 = vld [vmem:[#allocation2 + $0x241] sm:$0xff]
  %v1415 = vld [vmem:[#allocation2 + $0x249] sm:$0xff]
  %v1416 = vld [vmem:[#allocation2 + $0x251] sm:$0xff]
  %v1417 = vld [vmem:[#allocation2 + $0x259] sm:$0xff]
  %v1418 = vld [vmem:[#allocation2 + $0x261] sm:$0xff]
  %v1419 = vld [vmem:[#allocation2 + $0x269] sm:$0xff]
  %v1420 = vld [vmem:[#allocation2 + $0x271] sm:$0xff]
  %v1421 = vld [vmem:[#allocation2 + $0x279] sm:$0xff]
  %v1422 = vld [vmem:[#allocation2 + $0x281] sm:$0xff]
  %v1423 = vld [vmem:[#allocation2 + $0x289] sm:$0xff]
  %v1424 = vld [vmem:[#allocation2 + $0x291] sm:$0xff]
  %v1425 = vld [vmem:[#allocation2 + $0x299] sm:$0xff]
  %v1426 = vld [vmem:[#allocation2 + $0x2a1] sm:$0xff]
  %v1427 = vld [vmem:[#allocation2 + $0x2a9] sm:$0xff]
  %v1428 = vld [vmem:[#allocation2 + $0x2b1] sm:$0xff]
  %v1429 = vld [vmem:[#allocation2 + $0x2b9] sm:$0xff]
  %v1430 = vld [vmem:[#allocation2 + $0x2c1] sm:$0xff]
  %v1431 = vld [vmem:[#allocation2 + $0x2c9] sm:$0xff]
  %v1432 = vld [vmem:[#allocation2 + $0x2d1] sm:$0xff]
  %v1433 = vld [vmem:[#allocation2 + $0x2d9] sm:$0xff]
  %v1434 = vld [vmem:[#allocation2 + $0x2e1] sm:$0xff]
  %v1435 = vld [vmem:[#allocation2 + $0x2e9] sm:$0xff]
  %v1436 = vld [vmem:[#allocation2 + $0x2f1] sm:$0xff]
  %v1437 = vld [vmem:[#allocation2 + $0x2f9] sm:$0xff]
  %v1438 = vld [vmem:[#allocation2 + $0x301] sm:$0xff]
  %v1439 = vld [vmem:[#allocation2 + $0x309] sm:$0xff]
  %v1440 = vld [vmem:[#allocation2 + $0x311] sm:$0xff]
  %v1441 = vld [vmem:[#allocation2 + $0x319] sm:$0xff]
  %v1442 = vld [vmem:[#allocation2 + $0x321] sm:$0xff]
  %v1443 = vld [vmem:[#allocation2 + $0x329] sm:$0xff]
  %v1444 = vld [vmem:[#allocation2 + $0x331] sm:$0xff]
  %v1445 = vld [vmem:[#allocation2 + $0x339] sm:$0xff]
  %v1446 = vld [vmem:[#allocation2 + $0x341] sm:$0xff]
  %v1447 = vld [vmem:[#allocation2 + $0x349] sm:$0xff]
  %v1448 = vld [vmem:[#allocation2 + $0x351] sm:$0xff]
  %v1449 = vld [vmem:[#allocation2 + $0x359] sm:$0xff]
  %v1450 = vld [vmem:[#allocation2 + $0x361] sm:$0xff]
  %v1451 = vld [vmem:[#allocation2 + $0x369] sm:$0xff]
  %v1452 = vld [vmem:[#allocation2 + $0x371] sm:$0xff]
  %v1453 = vld [vmem:[#allocation2 + $0x379] sm:$0xff]
  %v1454 = vld [vmem:[#allocation2 + $0x381] sm:$0xff]
  %v1455 = vld [vmem:[#allocation2 + $0x389] sm:$0xff]
  %v1456 = vld [vmem:[#allocation2 + $0x391] sm:$0xff]
  %v1457 = vld [vmem:[#allocation2 + $0x399] sm:$0xff]
  %v1458 = vld [vmem:[#allocation2 + $0x3a1] sm:$0xff]
  %v1459 = vld [vmem:[#allocation2 + $0x3a9] sm:$0xff]
  %v1460 = vld [vmem:[#allocation2 + $0x3b1] sm:$0xff]
  %v1461 = vld [vmem:[#allocation2 + $0x3b9] sm:$0xff]
  %v1462 = vld [vmem:[#allocation2 + $0x3c1] sm:$0xff]
  %v1463 = vld [vmem:[#allocation2 + $0x3c9] sm:$0xff]
  %v1464 = vld [vmem:[#allocation2 + $0x3d1] sm:$0xff]
  %v1465 = vld [vmem:[#allocation2 + $0x3d9] sm:$0xff]
  %v1466 = vld [vmem:[#allocation2 + $0x3e1] sm:$0xff]
  %v1467 = vld [vmem:[#allocation2 + $0x3e9] sm:$0xff]
  %v1468 = vld [vmem:[#allocation2 + $0x3f1] sm:$0xff]
  %v1469 = vld [vmem:[#allocation2 + $0x3f9] sm:$0xff]
  %s1470 = scalar_lea.vmem %s3, 8
  %v1471 = vld [vmem:[%s1470] sm:$0xff]
  %v1473 = vsel %vm1083, %v1342, 0
  %v1476 = vsel %vm1083, %v1343, 0
  %v1479 = vsel %vm1083, %v1344, 0
  %v1482 = vsel %vm1083, %v1345, 0
  %v1485 = vsel %vm1083, %v1346, 0
  %v1488 = vsel %vm1083, %v1347, 0
  %v1491 = vsel %vm1083, %v1348, 0
  %v1494 = vsel %vm1083, %v1349, 0
  %v1497 = vsel %vm1083, %v1350, 0
  %v1500 = vsel %vm1083, %v1351, 0
  %v1503 = vsel %vm1083, %v1352, 0
  %v1506 = vsel %vm1083, %v1353, 0
  %v1509 = vsel %vm1083, %v1354, 0
  %v1512 = vsel %vm1083, %v1355, 0
  %v1515 = vsel %vm1083, %v1356, 0
  %v1518 = vsel %vm1083, %v1357, 0
  %v1521 = vsel %vm1083, %v1358, 0
  %v1524 = vsel %vm1083, %v1359, 0
  %v1527 = vsel %vm1083, %v1360, 0
  %v1530 = vsel %vm1083, %v1361, 0
  %v1533 = vsel %vm1083, %v1362, 0
  %v1536 = vsel %vm1083, %v1363, 0
  %v1539 = vsel %vm1083, %v1364, 0
  %v1542 = vsel %vm1083, %v1365, 0
  %v1545 = vsel %vm1083, %v1366, 0
  %v1548 = vsel %vm1083, %v1367, 0
  %v1551 = vsel %vm1083, %v1368, 0
  %v1554 = vsel %vm1083, %v1369, 0
  %v1557 = vsel %vm1083, %v1370, 0
  %v1560 = vsel %vm1083, %v1371, 0
  %v1563 = vsel %vm1083, %v1372, 0
  %v1566 = vsel %vm1083, %v1373, 0
  %v1569 = vsel %vm1083, %v1374, 0
  %v1572 = vsel %vm1083, %v1375, 0
  %v1575 = vsel %vm1083, %v1376, 0
  %v1578 = vsel %vm1083, %v1377, 0
  %v1581 = vsel %vm1083, %v1378, 0
  %v1584 = vsel %vm1083, %v1379, 0
  %v1587 = vsel %vm1083, %v1380, 0
  %v1590 = vsel %vm1083, %v1381, 0
  %v1593 = vsel %vm1083, %v1382, 0
  %v1596 = vsel %vm1083, %v1383, 0
  %v1599 = vsel %vm1083, %v1384, 0
  %v1602 = vsel %vm1083, %v1385, 0
  %v1605 = vsel %vm1083, %v1386, 0
  %v1608 = vsel %vm1083, %v1387, 0
  %v1611 = vsel %vm1083, %v1388, 0
  %v1614 = vsel %vm1083, %v1389, 0
  %v1617 = vsel %vm1083, %v1390, 0
  %v1620 = vsel %vm1083, %v1391, 0
  %v1623 = vsel %vm1083, %v1392, 0
  %v1626 = vsel %vm1083, %v1393, 0
  %v1629 = vsel %vm1083, %v1394, 0
  %v1632 = vsel %vm1083, %v1395, 0
  %v1635 = vsel %vm1083, %v1396, 0
  %v1638 = vsel %vm1083, %v1397, 0
  %v1641 = vsel %vm1083, %v1398, 0
  %v1644 = vsel %vm1083, %v1399, 0
  %v1647 = vsel %vm1083, %v1400, 0
  %v1650 = vsel %vm1083, %v1401, 0
  %v1653 = vsel %vm1083, %v1402, 0
  %v1656 = vsel %vm1083, %v1403, 0
  %v1659 = vsel %vm1083, %v1404, 0
  %v1662 = vsel %vm1083, %v1405, 0
  %v1665 = vsel %vm1083, %v1406, 0
  %v1668 = vsel %vm1083, %v1407, 0
  %v1671 = vsel %vm1083, %v1408, 0
  %v1674 = vsel %vm1083, %v1409, 0
  %v1677 = vsel %vm1083, %v1410, 0
  %v1680 = vsel %vm1083, %v1411, 0
  %v1683 = vsel %vm1083, %v1412, 0
  %v1686 = vsel %vm1083, %v1413, 0
  %v1689 = vsel %vm1083, %v1414, 0
  %v1692 = vsel %vm1083, %v1415, 0
  %v1695 = vsel %vm1083, %v1416, 0
  %v1698 = vsel %vm1083, %v1417, 0
  %v1701 = vsel %vm1083, %v1418, 0
  %v1704 = vsel %vm1083, %v1419, 0
  %v1707 = vsel %vm1083, %v1420, 0
  %v1710 = vsel %vm1083, %v1421, 0
  %v1713 = vsel %vm1083, %v1422, 0
  %v1716 = vsel %vm1083, %v1423, 0
  %v1719 = vsel %vm1083, %v1424, 0
  %v1722 = vsel %vm1083, %v1425, 0
  %v1725 = vsel %vm1083, %v1426, 0
  %v1728 = vsel %vm1083, %v1427, 0
  %v1731 = vsel %vm1083, %v1428, 0
  %v1734 = vsel %vm1083, %v1429, 0
  %v1737 = vsel %vm1083, %v1430, 0
  %v1740 = vsel %vm1083, %v1431, 0
  %v1743 = vsel %vm1083, %v1432, 0
  %v1746 = vsel %vm1083, %v1433, 0
  %v1749 = vsel %vm1083, %v1434, 0
  %v1752 = vsel %vm1083, %v1435, 0
  %v1755 = vsel %vm1083, %v1436, 0
  %v1758 = vsel %vm1083, %v1437, 0
  %v1761 = vsel %vm1083, %v1438, 0
  %v1764 = vsel %vm1083, %v1439, 0
  %v1767 = vsel %vm1083, %v1440, 0
  %v1770 = vsel %vm1083, %v1441, 0
  %v1773 = vsel %vm1083, %v1442, 0
  %v1776 = vsel %vm1083, %v1443, 0
  %v1779 = vsel %vm1083, %v1444, 0
  %v1782 = vsel %vm1083, %v1445, 0
  %v1785 = vsel %vm1083, %v1446, 0
  %v1788 = vsel %vm1083, %v1447, 0
  %v1791 = vsel %vm1083, %v1448, 0
  %v1794 = vsel %vm1083, %v1449, 0
  %v1797 = vsel %vm1083, %v1450, 0
  %v1800 = vsel %vm1083, %v1451, 0
  %v1803 = vsel %vm1083, %v1452, 0
  %v1806 = vsel %vm1083, %v1453, 0
  %v1809 = vsel %vm1083, %v1454, 0
  %v1812 = vsel %vm1083, %v1455, 0
  %v1815 = vsel %vm1083, %v1456, 0
  %v1818 = vsel %vm1083, %v1457, 0
  %v1821 = vsel %vm1083, %v1458, 0
  %v1824 = vsel %vm1083, %v1459, 0
  %v1827 = vsel %vm1083, %v1460, 0
  %v1830 = vsel %vm1083, %v1461, 0
  %v1833 = vsel %vm1083, %v1462, 0
  %v1836 = vsel %vm1083, %v1463, 0
  %v1839 = vsel %vm1083, %v1464, 0
  %v1842 = vsel %vm1083, %v1465, 0
  %v1845 = vsel %vm1083, %v1466, 0
  %v1848 = vsel %vm1083, %v1467, 0
  %v1851 = vsel %vm1083, %v1468, 0
  %v1854 = vsel %vm1083, %v1469, 0
  %1856 = vmatpush.msra.mxu0 0.0
  %1857 = vmatpush.msra.mxu0 0.0
  %1858 = vmatpush.msra.mxu0 0.0
  %1859 = vmatpush.msra.mxu0 0.0
  %1860 = vmatpush.msra.mxu0 0.0
  %1861 = vmatpush.msra.mxu0 0.0
  %1862 = vmatpush.msra.mxu0 0.0
  %1863 = vmatpush.msra.mxu0 0.0
  %1864 = vmatpush.msra.mxu0 0.0
  %1865 = vmatpush.msra.mxu0 0.0
  %1866 = vmatpush.msra.mxu0 0.0
  %1867 = vmatpush.msra.mxu0 0.0
  %1868 = vmatpush.msra.mxu0 0.0
  %1869 = vmatpush.msra.mxu0 0.0
  %1870 = vmatpush.msra.mxu0 0.0
  %1871 = vmatpush.msra.mxu0 %v1471
  %1872 = vmatmul.f32.gmra.mxu0 %v1473
  %v1873 = vpop.f32.mrf.mxu0
  %v1874 = vadd.f32 0.0, %v1873
  %1875 = vmatmul.f32.gmra.mxu0 %v1476
  %v1876 = vpop.f32.mrf.mxu0
  %v1877 = vadd.f32 0.0, %v1876
  %1878 = vmatmul.f32.gmra.mxu0 %v1479
  %v1879 = vpop.f32.mrf.mxu0
  %v1880 = vadd.f32 0.0, %v1879
  %1881 = vmatmul.f32.gmra.mxu0 %v1482
  %v1882 = vpop.f32.mrf.mxu0
  %v1883 = vadd.f32 0.0, %v1882
  %1884 = vmatmul.f32.gmra.mxu0 %v1485
  %v1885 = vpop.f32.mrf.mxu0
  %v1886 = vadd.f32 0.0, %v1885
  %1887 = vmatmul.f32.gmra.mxu0 %v1488
  %v1888 = vpop.f32.mrf.mxu0
  %v1889 = vadd.f32 0.0, %v1888
  %1890 = vmatmul.f32.gmra.mxu0 %v1491
  %v1891 = vpop.f32.mrf.mxu0
  %v1892 = vadd.f32 0.0, %v1891
  %1893 = vmatmul.f32.gmra.mxu0 %v1494
  %v1894 = vpop.f32.mrf.mxu0
  %v1895 = vadd.f32 0.0, %v1894
  %1896 = vmatmul.f32.gmra.mxu0 %v1497
  %v1897 = vpop.f32.mrf.mxu0
  %v1898 = vadd.f32 0.0, %v1897
  %1899 = vmatmul.f32.gmra.mxu0 %v1500
  %v1900 = vpop.f32.mrf.mxu0
  %v1901 = vadd.f32 0.0, %v1900
  %1902 = vmatmul.f32.gmra.mxu0 %v1503
  %v1903 = vpop.f32.mrf.mxu0
  %v1904 = vadd.f32 0.0, %v1903
  %1905 = vmatmul.f32.gmra.mxu0 %v1506
  %v1906 = vpop.f32.mrf.mxu0
  %v1907 = vadd.f32 0.0, %v1906
  %1908 = vmatmul.f32.gmra.mxu0 %v1509
  %v1909 = vpop.f32.mrf.mxu0
  %v1910 = vadd.f32 0.0, %v1909
  %1911 = vmatmul.f32.gmra.mxu0 %v1512
  %v1912 = vpop.f32.mrf.mxu0
  %v1913 = vadd.f32 0.0, %v1912
  %1914 = vmatmul.f32.gmra.mxu0 %v1515
  %v1915 = vpop.f32.mrf.mxu0
  %v1916 = vadd.f32 0.0, %v1915
  %1917 = vmatmul.f32.gmra.mxu0 %v1518
  %v1918 = vpop.f32.mrf.mxu0
  %v1919 = vadd.f32 0.0, %v1918
  %1920 = vmatmul.f32.gmra.mxu0 %v1521
  %v1921 = vpop.f32.mrf.mxu0
  %v1922 = vadd.f32 0.0, %v1921
  %1923 = vmatmul.f32.gmra.mxu0 %v1524
  %v1924 = vpop.f32.mrf.mxu0
  %v1925 = vadd.f32 0.0, %v1924
  %1926 = vmatmul.f32.gmra.mxu0 %v1527
  %v1927 = vpop.f32.mrf.mxu0
  %v1928 = vadd.f32 0.0, %v1927
  %1929 = vmatmul.f32.gmra.mxu0 %v1530
  %v1930 = vpop.f32.mrf.mxu0
  %v1931 = vadd.f32 0.0, %v1930
  %1932 = vmatmul.f32.gmra.mxu0 %v1533
  %v1933 = vpop.f32.mrf.mxu0
  %v1934 = vadd.f32 0.0, %v1933
  %1935 = vmatmul.f32.gmra.mxu0 %v1536
  %v1936 = vpop.f32.mrf.mxu0
  %v1937 = vadd.f32 0.0, %v1936
  %1938 = vmatmul.f32.gmra.mxu0 %v1539
  %v1939 = vpop.f32.mrf.mxu0
  %v1940 = vadd.f32 0.0, %v1939
  %1941 = vmatmul.f32.gmra.mxu0 %v1542
  %v1942 = vpop.f32.mrf.mxu0
  %v1943 = vadd.f32 0.0, %v1942
  %1944 = vmatmul.f32.gmra.mxu0 %v1545
  %v1945 = vpop.f32.mrf.mxu0
  %v1946 = vadd.f32 0.0, %v1945
  %1947 = vmatmul.f32.gmra.mxu0 %v1548
  %v1948 = vpop.f32.mrf.mxu0
  %v1949 = vadd.f32 0.0, %v1948
  %1950 = vmatmul.f32.gmra.mxu0 %v1551
  %v1951 = vpop.f32.mrf.mxu0
  %v1952 = vadd.f32 0.0, %v1951
  %1953 = vmatmul.f32.gmra.mxu0 %v1554
  %v1954 = vpop.f32.mrf.mxu0
  %v1955 = vadd.f32 0.0, %v1954
  %1956 = vmatmul.f32.gmra.mxu0 %v1557
  %v1957 = vpop.f32.mrf.mxu0
  %v1958 = vadd.f32 0.0, %v1957
  %1959 = vmatmul.f32.gmra.mxu0 %v1560
  %v1960 = vpop.f32.mrf.mxu0
  %v1961 = vadd.f32 0.0, %v1960
  %1962 = vmatmul.f32.gmra.mxu0 %v1563
  %v1963 = vpop.f32.mrf.mxu0
  %v1964 = vadd.f32 0.0, %v1963
  %1965 = vmatmul.f32.gmra.mxu0 %v1566
  %v1966 = vpop.f32.mrf.mxu0
  %v1967 = vadd.f32 0.0, %v1966
  %1968 = vmatmul.f32.gmra.mxu0 %v1569
  %v1969 = vpop.f32.mrf.mxu0
  %v1970 = vadd.f32 0.0, %v1969
  %1971 = vmatmul.f32.gmra.mxu0 %v1572
  %v1972 = vpop.f32.mrf.mxu0
  %v1973 = vadd.f32 0.0, %v1972
  %1974 = vmatmul.f32.gmra.mxu0 %v1575
  %v1975 = vpop.f32.mrf.mxu0
  %v1976 = vadd.f32 0.0, %v1975
  %1977 = vmatmul.f32.gmra.mxu0 %v1578
  %v1978 = vpop.f32.mrf.mxu0
  %v1979 = vadd.f32 0.0, %v1978
  %1980 = vmatmul.f32.gmra.mxu0 %v1581
  %v1981 = vpop.f32.mrf.mxu0
  %v1982 = vadd.f32 0.0, %v1981
  %1983 = vmatmul.f32.gmra.mxu0 %v1584
  %v1984 = vpop.f32.mrf.mxu0
  %v1985 = vadd.f32 0.0, %v1984
  %1986 = vmatmul.f32.gmra.mxu0 %v1587
  %v1987 = vpop.f32.mrf.mxu0
  %v1988 = vadd.f32 0.0, %v1987
  %1989 = vmatmul.f32.gmra.mxu0 %v1590
  %v1990 = vpop.f32.mrf.mxu0
  %v1991 = vadd.f32 0.0, %v1990
  %1992 = vmatmul.f32.gmra.mxu0 %v1593
  %v1993 = vpop.f32.mrf.mxu0
  %v1994 = vadd.f32 0.0, %v1993
  %1995 = vmatmul.f32.gmra.mxu0 %v1596
  %v1996 = vpop.f32.mrf.mxu0
  %v1997 = vadd.f32 0.0, %v1996
  %1998 = vmatmul.f32.gmra.mxu0 %v1599
  %v1999 = vpop.f32.mrf.mxu0
  %v2000 = vadd.f32 0.0, %v1999
  %2001 = vmatmul.f32.gmra.mxu0 %v1602
  %v2002 = vpop.f32.mrf.mxu0
  %v2003 = vadd.f32 0.0, %v2002
  %2004 = vmatmul.f32.gmra.mxu0 %v1605
  %v2005 = vpop.f32.mrf.mxu0
  %v2006 = vadd.f32 0.0, %v2005
  %2007 = vmatmul.f32.gmra.mxu0 %v1608
  %v2008 = vpop.f32.mrf.mxu0
  %v2009 = vadd.f32 0.0, %v2008
  %2010 = vmatmul.f32.gmra.mxu0 %v1611
  %v2011 = vpop.f32.mrf.mxu0
  %v2012 = vadd.f32 0.0, %v2011
  %2013 = vmatmul.f32.gmra.mxu0 %v1614
  %v2014 = vpop.f32.mrf.mxu0
  %v2015 = vadd.f32 0.0, %v2014
  %2016 = vmatmul.f32.gmra.mxu0 %v1617
  %v2017 = vpop.f32.mrf.mxu0
  %v2018 = vadd.f32 0.0, %v2017
  %2019 = vmatmul.f32.gmra.mxu0 %v1620
  %v2020 = vpop.f32.mrf.mxu0
  %v2021 = vadd.f32 0.0, %v2020
  %2022 = vmatmul.f32.gmra.mxu0 %v1623
  %v2023 = vpop.f32.mrf.mxu0
  %v2024 = vadd.f32 0.0, %v2023
  %2025 = vmatmul.f32.gmra.mxu0 %v1626
  %v2026 = vpop.f32.mrf.mxu0
  %v2027 = vadd.f32 0.0, %v2026
  %2028 = vmatmul.f32.gmra.mxu0 %v1629
  %v2029 = vpop.f32.mrf.mxu0
  %v2030 = vadd.f32 0.0, %v2029
  %2031 = vmatmul.f32.gmra.mxu0 %v1632
  %v2032 = vpop.f32.mrf.mxu0
  %v2033 = vadd.f32 0.0, %v2032
  %2034 = vmatmul.f32.gmra.mxu0 %v1635
  %v2035 = vpop.f32.mrf.mxu0
  %v2036 = vadd.f32 0.0, %v2035
  %2037 = vmatmul.f32.gmra.mxu0 %v1638
  %v2038 = vpop.f32.mrf.mxu0
  %v2039 = vadd.f32 0.0, %v2038
  %2040 = vmatmul.f32.gmra.mxu0 %v1641
  %v2041 = vpop.f32.mrf.mxu0
  %v2042 = vadd.f32 0.0, %v2041
  %2043 = vmatmul.f32.gmra.mxu0 %v1644
  %v2044 = vpop.f32.mrf.mxu0
  %v2045 = vadd.f32 0.0, %v2044
  %2046 = vmatmul.f32.gmra.mxu0 %v1647
  %v2047 = vpop.f32.mrf.mxu0
  %v2048 = vadd.f32 0.0, %v2047
  %2049 = vmatmul.f32.gmra.mxu0 %v1650
  %v2050 = vpop.f32.mrf.mxu0
  %v2051 = vadd.f32 0.0, %v2050
  %2052 = vmatmul.f32.gmra.mxu0 %v1653
  %v2053 = vpop.f32.mrf.mxu0
  %v2054 = vadd.f32 0.0, %v2053
  %2055 = vmatmul.f32.gmra.mxu0 %v1656
  %v2056 = vpop.f32.mrf.mxu0
  %v2057 = vadd.f32 0.0, %v2056
  %2058 = vmatmul.f32.gmra.mxu0 %v1659
  %v2059 = vpop.f32.mrf.mxu0
  %v2060 = vadd.f32 0.0, %v2059
  %2061 = vmatmul.f32.gmra.mxu0 %v1662
  %v2062 = vpop.f32.mrf.mxu0
  %v2063 = vadd.f32 0.0, %v2062
  %2064 = vmatmul.f32.gmra.mxu0 %v1665
  %v2065 = vpop.f32.mrf.mxu0
  %v2066 = vadd.f32 0.0, %v2065
  %2067 = vmatmul.f32.gmra.mxu0 %v1668
  %v2068 = vpop.f32.mrf.mxu0
  %v2069 = vadd.f32 0.0, %v2068
  %2070 = vmatmul.f32.gmra.mxu0 %v1671
  %v2071 = vpop.f32.mrf.mxu0
  %v2072 = vadd.f32 0.0, %v2071
  %2073 = vmatmul.f32.gmra.mxu0 %v1674
  %v2074 = vpop.f32.mrf.mxu0
  %v2075 = vadd.f32 0.0, %v2074
  %2076 = vmatmul.f32.gmra.mxu0 %v1677
  %v2077 = vpop.f32.mrf.mxu0
  %v2078 = vadd.f32 0.0, %v2077
  %2079 = vmatmul.f32.gmra.mxu0 %v1680
  %v2080 = vpop.f32.mrf.mxu0
  %v2081 = vadd.f32 0.0, %v2080
  %2082 = vmatmul.f32.gmra.mxu0 %v1683
  %v2083 = vpop.f32.mrf.mxu0
  %v2084 = vadd.f32 0.0, %v2083
  %2085 = vmatmul.f32.gmra.mxu0 %v1686
  %v2086 = vpop.f32.mrf.mxu0
  %v2087 = vadd.f32 0.0, %v2086
  %2088 = vmatmul.f32.gmra.mxu0 %v1689
  %v2089 = vpop.f32.mrf.mxu0
  %v2090 = vadd.f32 0.0, %v2089
  %2091 = vmatmul.f32.gmra.mxu0 %v1692
  %v2092 = vpop.f32.mrf.mxu0
  %v2093 = vadd.f32 0.0, %v2092
  %2094 = vmatmul.f32.gmra.mxu0 %v1695
  %v2095 = vpop.f32.mrf.mxu0
  %v2096 = vadd.f32 0.0, %v2095
  %2097 = vmatmul.f32.gmra.mxu0 %v1698
  %v2098 = vpop.f32.mrf.mxu0
  %v2099 = vadd.f32 0.0, %v2098
  %2100 = vmatmul.f32.gmra.mxu0 %v1701
  %v2101 = vpop.f32.mrf.mxu0
  %v2102 = vadd.f32 0.0, %v2101
  %2103 = vmatmul.f32.gmra.mxu0 %v1704
  %v2104 = vpop.f32.mrf.mxu0
  %v2105 = vadd.f32 0.0, %v2104
  %2106 = vmatmul.f32.gmra.mxu0 %v1707
  %v2107 = vpop.f32.mrf.mxu0
  %v2108 = vadd.f32 0.0, %v2107
  %2109 = vmatmul.f32.gmra.mxu0 %v1710
  %v2110 = vpop.f32.mrf.mxu0
  %v2111 = vadd.f32 0.0, %v2110
  %2112 = vmatmul.f32.gmra.mxu0 %v1713
  %v2113 = vpop.f32.mrf.mxu0
  %v2114 = vadd.f32 0.0, %v2113
  %2115 = vmatmul.f32.gmra.mxu0 %v1716
  %v2116 = vpop.f32.mrf.mxu0
  %v2117 = vadd.f32 0.0, %v2116
  %2118 = vmatmul.f32.gmra.mxu0 %v1719
  %v2119 = vpop.f32.mrf.mxu0
  %v2120 = vadd.f32 0.0, %v2119
  %2121 = vmatmul.f32.gmra.mxu0 %v1722
  %v2122 = vpop.f32.mrf.mxu0
  %v2123 = vadd.f32 0.0, %v2122
  %2124 = vmatmul.f32.gmra.mxu0 %v1725
  %v2125 = vpop.f32.mrf.mxu0
  %v2126 = vadd.f32 0.0, %v2125
  %2127 = vmatmul.f32.gmra.mxu0 %v1728
  %v2128 = vpop.f32.mrf.mxu0
  %v2129 = vadd.f32 0.0, %v2128
  %2130 = vmatmul.f32.gmra.mxu0 %v1731
  %v2131 = vpop.f32.mrf.mxu0
  %v2132 = vadd.f32 0.0, %v2131
  %2133 = vmatmul.f32.gmra.mxu0 %v1734
  %v2134 = vpop.f32.mrf.mxu0
  %v2135 = vadd.f32 0.0, %v2134
  %2136 = vmatmul.f32.gmra.mxu0 %v1737
  %v2137 = vpop.f32.mrf.mxu0
  %v2138 = vadd.f32 0.0, %v2137
  %2139 = vmatmul.f32.gmra.mxu0 %v1740
  %v2140 = vpop.f32.mrf.mxu0
  %v2141 = vadd.f32 0.0, %v2140
  %2142 = vmatmul.f32.gmra.mxu0 %v1743
  %v2143 = vpop.f32.mrf.mxu0
  %v2144 = vadd.f32 0.0, %v2143
  %2145 = vmatmul.f32.gmra.mxu0 %v1746
  %v2146 = vpop.f32.mrf.mxu0
  %v2147 = vadd.f32 0.0, %v2146
  %2148 = vmatmul.f32.gmra.mxu0 %v1749
  %v2149 = vpop.f32.mrf.mxu0
  %v2150 = vadd.f32 0.0, %v2149
  %2151 = vmatmul.f32.gmra.mxu0 %v1752
  %v2152 = vpop.f32.mrf.mxu0
  %v2153 = vadd.f32 0.0, %v2152
  %2154 = vmatmul.f32.gmra.mxu0 %v1755
  %v2155 = vpop.f32.mrf.mxu0
  %v2156 = vadd.f32 0.0, %v2155
  %2157 = vmatmul.f32.gmra.mxu0 %v1758
  %v2158 = vpop.f32.mrf.mxu0
  %v2159 = vadd.f32 0.0, %v2158
  %2160 = vmatmul.f32.gmra.mxu0 %v1761
  %v2161 = vpop.f32.mrf.mxu0
  %v2162 = vadd.f32 0.0, %v2161
  %2163 = vmatmul.f32.gmra.mxu0 %v1764
  %v2164 = vpop.f32.mrf.mxu0
  %v2165 = vadd.f32 0.0, %v2164
  %2166 = vmatmul.f32.gmra.mxu0 %v1767
  %v2167 = vpop.f32.mrf.mxu0
  %v2168 = vadd.f32 0.0, %v2167
  %2169 = vmatmul.f32.gmra.mxu0 %v1770
  %v2170 = vpop.f32.mrf.mxu0
  %v2171 = vadd.f32 0.0, %v2170
  %2172 = vmatmul.f32.gmra.mxu0 %v1773
  %v2173 = vpop.f32.mrf.mxu0
  %v2174 = vadd.f32 0.0, %v2173
  %2175 = vmatmul.f32.gmra.mxu0 %v1776
  %v2176 = vpop.f32.mrf.mxu0
  %v2177 = vadd.f32 0.0, %v2176
  %2178 = vmatmul.f32.gmra.mxu0 %v1779
  %v2179 = vpop.f32.mrf.mxu0
  %v2180 = vadd.f32 0.0, %v2179
  %2181 = vmatmul.f32.gmra.mxu0 %v1782
  %v2182 = vpop.f32.mrf.mxu0
  %v2183 = vadd.f32 0.0, %v2182
  %2184 = vmatmul.f32.gmra.mxu0 %v1785
  %v2185 = vpop.f32.mrf.mxu0
  %v2186 = vadd.f32 0.0, %v2185
  %2187 = vmatmul.f32.gmra.mxu0 %v1788
  %v2188 = vpop.f32.mrf.mxu0
  %v2189 = vadd.f32 0.0, %v2188
  %2190 = vmatmul.f32.gmra.mxu0 %v1791
  %v2191 = vpop.f32.mrf.mxu0
  %v2192 = vadd.f32 0.0, %v2191
  %2193 = vmatmul.f32.gmra.mxu0 %v1794
  %v2194 = vpop.f32.mrf.mxu0
  %v2195 = vadd.f32 0.0, %v2194
  %2196 = vmatmul.f32.gmra.mxu0 %v1797
  %v2197 = vpop.f32.mrf.mxu0
  %v2198 = vadd.f32 0.0, %v2197
  %2199 = vmatmul.f32.gmra.mxu0 %v1800
  %v2200 = vpop.f32.mrf.mxu0
  %v2201 = vadd.f32 0.0, %v2200
  %2202 = vmatmul.f32.gmra.mxu0 %v1803
  %v2203 = vpop.f32.mrf.mxu0
  %v2204 = vadd.f32 0.0, %v2203
  %2205 = vmatmul.f32.gmra.mxu0 %v1806
  %v2206 = vpop.f32.mrf.mxu0
  %v2207 = vadd.f32 0.0, %v2206
  %2208 = vmatmul.f32.gmra.mxu0 %v1809
  %v2209 = vpop.f32.mrf.mxu0
  %v2210 = vadd.f32 0.0, %v2209
  %2211 = vmatmul.f32.gmra.mxu0 %v1812
  %v2212 = vpop.f32.mrf.mxu0
  %v2213 = vadd.f32 0.0, %v2212
  %2214 = vmatmul.f32.gmra.mxu0 %v1815
  %v2215 = vpop.f32.mrf.mxu0
  %v2216 = vadd.f32 0.0, %v2215
  %2217 = vmatmul.f32.gmra.mxu0 %v1818
  %v2218 = vpop.f32.mrf.mxu0
  %v2219 = vadd.f32 0.0, %v2218
  %2220 = vmatmul.f32.gmra.mxu0 %v1821
  %v2221 = vpop.f32.mrf.mxu0
  %v2222 = vadd.f32 0.0, %v2221
  %2223 = vmatmul.f32.gmra.mxu0 %v1824
  %v2224 = vpop.f32.mrf.mxu0
  %v2225 = vadd.f32 0.0, %v2224
  %2226 = vmatmul.f32.gmra.mxu0 %v1827
  %v2227 = vpop.f32.mrf.mxu0
  %v2228 = vadd.f32 0.0, %v2227
  %2229 = vmatmul.f32.gmra.mxu0 %v1830
  %v2230 = vpop.f32.mrf.mxu0
  %v2231 = vadd.f32 0.0, %v2230
  %2232 = vmatmul.f32.gmra.mxu0 %v1833
  %v2233 = vpop.f32.mrf.mxu0
  %v2234 = vadd.f32 0.0, %v2233
  %2235 = vmatmul.f32.gmra.mxu0 %v1836
  %v2236 = vpop.f32.mrf.mxu0
  %v2237 = vadd.f32 0.0, %v2236
  %2238 = vmatmul.f32.gmra.mxu0 %v1839
  %v2239 = vpop.f32.mrf.mxu0
  %v2240 = vadd.f32 0.0, %v2239
  %2241 = vmatmul.f32.gmra.mxu0 %v1842
  %v2242 = vpop.f32.mrf.mxu0
  %v2243 = vadd.f32 0.0, %v2242
  %2244 = vmatmul.f32.gmra.mxu0 %v1845
  %v2245 = vpop.f32.mrf.mxu0
  %v2246 = vadd.f32 0.0, %v2245
  %2247 = vmatmul.f32.gmra.mxu0 %v1848
  %v2248 = vpop.f32.mrf.mxu0
  %v2249 = vadd.f32 0.0, %v2248
  %2250 = vmatmul.f32.gmra.mxu0 %v1851
  %v2251 = vpop.f32.mrf.mxu0
  %v2252 = vadd.f32 0.0, %v2251
  %2253 = vmatmul.f32.gmra.mxu0 %v1854
  %v2254 = vpop.f32.mrf.mxu0
  %v2255 = vadd.f32 0.0, %v2254
  %2256 = vdwg.mxu0
  %v2258 = vsel %vm1083, %v1213, 0
  %v2261 = vsel %vm1083, %v1214, 0
  %v2264 = vsel %vm1083, %v1215, 0
  %v2267 = vsel %vm1083, %v1216, 0
  %v2270 = vsel %vm1083, %v1217, 0
  %v2273 = vsel %vm1083, %v1218, 0
  %v2276 = vsel %vm1083, %v1219, 0
  %v2279 = vsel %vm1083, %v1220, 0
  %v2282 = vsel %vm1083, %v1221, 0
  %v2285 = vsel %vm1083, %v1222, 0
  %v2288 = vsel %vm1083, %v1223, 0
  %v2291 = vsel %vm1083, %v1224, 0
  %v2294 = vsel %vm1083, %v1225, 0
  %v2297 = vsel %vm1083, %v1226, 0
  %v2300 = vsel %vm1083, %v1227, 0
  %v2303 = vsel %vm1083, %v1228, 0
  %v2306 = vsel %vm1083, %v1229, 0
  %v2309 = vsel %vm1083, %v1230, 0
  %v2312 = vsel %vm1083, %v1231, 0
  %v2315 = vsel %vm1083, %v1232, 0
  %v2318 = vsel %vm1083, %v1233, 0
  %v2321 = vsel %vm1083, %v1234, 0
  %v2324 = vsel %vm1083, %v1235, 0
  %v2327 = vsel %vm1083, %v1236, 0
  %v2330 = vsel %vm1083, %v1237, 0
  %v2333 = vsel %vm1083, %v1238, 0
  %v2336 = vsel %vm1083, %v1239, 0
  %v2339 = vsel %vm1083, %v1240, 0
  %v2342 = vsel %vm1083, %v1241, 0
  %v2345 = vsel %vm1083, %v1242, 0
  %v2348 = vsel %vm1083, %v1243, 0
  %v2351 = vsel %vm1083, %v1244, 0
  %v2354 = vsel %vm1083, %v1245, 0
  %v2357 = vsel %vm1083, %v1246, 0
  %v2360 = vsel %vm1083, %v1247, 0
  %v2363 = vsel %vm1083, %v1248, 0
  %v2366 = vsel %vm1083, %v1249, 0
  %v2369 = vsel %vm1083, %v1250, 0
  %v2372 = vsel %vm1083, %v1251, 0
  %v2375 = vsel %vm1083, %v1252, 0
  %v2378 = vsel %vm1083, %v1253, 0
  %v2381 = vsel %vm1083, %v1254, 0
  %v2384 = vsel %vm1083, %v1255, 0
  %v2387 = vsel %vm1083, %v1256, 0
  %v2390 = vsel %vm1083, %v1257, 0
  %v2393 = vsel %vm1083, %v1258, 0
  %v2396 = vsel %vm1083, %v1259, 0
  %v2399 = vsel %vm1083, %v1260, 0
  %v2402 = vsel %vm1083, %v1261, 0
  %v2405 = vsel %vm1083, %v1262, 0
  %v2408 = vsel %vm1083, %v1263, 0
  %v2411 = vsel %vm1083, %v1264, 0
  %v2414 = vsel %vm1083, %v1265, 0
  %v2417 = vsel %vm1083, %v1266, 0
  %v2420 = vsel %vm1083, %v1267, 0
  %v2423 = vsel %vm1083, %v1268, 0
  %v2426 = vsel %vm1083, %v1269, 0
  %v2429 = vsel %vm1083, %v1270, 0
  %v2432 = vsel %vm1083, %v1271, 0
  %v2435 = vsel %vm1083, %v1272, 0
  %v2438 = vsel %vm1083, %v1273, 0
  %v2441 = vsel %vm1083, %v1274, 0
  %v2444 = vsel %vm1083, %v1275, 0
  %v2447 = vsel %vm1083, %v1276, 0
  %v2450 = vsel %vm1083, %v1277, 0
  %v2453 = vsel %vm1083, %v1278, 0
  %v2456 = vsel %vm1083, %v1279, 0
  %v2459 = vsel %vm1083, %v1280, 0
  %v2462 = vsel %vm1083, %v1281, 0
  %v2465 = vsel %vm1083, %v1282, 0
  %v2468 = vsel %vm1083, %v1283, 0
  %v2471 = vsel %vm1083, %v1284, 0
  %v2474 = vsel %vm1083, %v1285, 0
  %v2477 = vsel %vm1083, %v1286, 0
  %v2480 = vsel %vm1083, %v1287, 0
  %v2483 = vsel %vm1083, %v1288, 0
  %v2486 = vsel %vm1083, %v1289, 0
  %v2489 = vsel %vm1083, %v1290, 0
  %v2492 = vsel %vm1083, %v1291, 0
  %v2495 = vsel %vm1083, %v1292, 0
  %v2498 = vsel %vm1083, %v1293, 0
  %v2501 = vsel %vm1083, %v1294, 0
  %v2504 = vsel %vm1083, %v1295, 0
  %v2507 = vsel %vm1083, %v1296, 0
  %v2510 = vsel %vm1083, %v1297, 0
  %v2513 = vsel %vm1083, %v1298, 0
  %v2516 = vsel %vm1083, %v1299, 0
  %v2519 = vsel %vm1083, %v1300, 0
  %v2522 = vsel %vm1083, %v1301, 0
  %v2525 = vsel %vm1083, %v1302, 0
  %v2528 = vsel %vm1083, %v1303, 0
  %v2531 = vsel %vm1083, %v1304, 0
  %v2534 = vsel %vm1083, %v1305, 0
  %v2537 = vsel %vm1083, %v1306, 0
  %v2540 = vsel %vm1083, %v1307, 0
  %v2543 = vsel %vm1083, %v1308, 0
  %v2546 = vsel %vm1083, %v1309, 0
  %v2549 = vsel %vm1083, %v1310, 0
  %v2552 = vsel %vm1083, %v1311, 0
  %v2555 = vsel %vm1083, %v1312, 0
  %v2558 = vsel %vm1083, %v1313, 0
  %v2561 = vsel %vm1083, %v1314, 0
  %v2564 = vsel %vm1083, %v1315, 0
  %v2567 = vsel %vm1083, %v1316, 0
  %v2570 = vsel %vm1083, %v1317, 0
  %v2573 = vsel %vm1083, %v1318, 0
  %v2576 = vsel %vm1083, %v1319, 0
  %v2579 = vsel %vm1083, %v1320, 0
  %v2582 = vsel %vm1083, %v1321, 0
  %v2585 = vsel %vm1083, %v1322, 0
  %v2588 = vsel %vm1083, %v1323, 0
  %v2591 = vsel %vm1083, %v1324, 0
  %v2594 = vsel %vm1083, %v1325, 0
  %v2597 = vsel %vm1083, %v1326, 0
  %v2600 = vsel %vm1083, %v1327, 0
  %v2603 = vsel %vm1083, %v1328, 0
  %v2606 = vsel %vm1083, %v1329, 0
  %v2609 = vsel %vm1083, %v1330, 0
  %v2612 = vsel %vm1083, %v1331, 0
  %v2615 = vsel %vm1083, %v1332, 0
  %v2618 = vsel %vm1083, %v1333, 0
  %v2621 = vsel %vm1083, %v1334, 0
  %v2624 = vsel %vm1083, %v1335, 0
  %v2627 = vsel %vm1083, %v1336, 0
  %v2630 = vsel %vm1083, %v1337, 0
  %v2633 = vsel %vm1083, %v1338, 0
  %v2636 = vsel %vm1083, %v1339, 0
  %v2639 = vsel %vm1083, %v1340, 0
  %2641 = vmatpush.msra.mxu0 0.0
  %2642 = vmatpush.msra.mxu0 0.0
  %2643 = vmatpush.msra.mxu0 0.0
  %2644 = vmatpush.msra.mxu0 0.0
  %2645 = vmatpush.msra.mxu0 0.0
  %2646 = vmatpush.msra.mxu0 0.0
  %2647 = vmatpush.msra.mxu0 0.0
  %2648 = vmatpush.msra.mxu0 0.0
  %2649 = vmatpush.msra.mxu0 0.0
  %2650 = vmatpush.msra.mxu0 0.0
  %2651 = vmatpush.msra.mxu0 0.0
  %2652 = vmatpush.msra.mxu0 0.0
  %2653 = vmatpush.msra.mxu0 0.0
  %2654 = vmatpush.msra.mxu0 0.0
  %2655 = vmatpush.msra.mxu0 0.0
  %2656 = vmatpush.msra.mxu0 %v1341
  %2657 = vmatmul.f32.gmra.mxu0 %v2258
  %v2658 = vpop.f32.mrf.mxu0
  %v2659 = vadd.f32 %v1874, %v2658
  %2660 = vmatmul.f32.gmra.mxu0 %v2261
  %v2661 = vpop.f32.mrf.mxu0
  %v2662 = vadd.f32 %v1877, %v2661
  %2663 = vmatmul.f32.gmra.mxu0 %v2264
  %v2664 = vpop.f32.mrf.mxu0
  %v2665 = vadd.f32 %v1880, %v2664
  %2666 = vmatmul.f32.gmra.mxu0 %v2267
  %v2667 = vpop.f32.mrf.mxu0
  %v2668 = vadd.f32 %v1883, %v2667
  %2669 = vmatmul.f32.gmra.mxu0 %v2270
  %v2670 = vpop.f32.mrf.mxu0
  %v2671 = vadd.f32 %v1886, %v2670
  %2672 = vmatmul.f32.gmra.mxu0 %v2273
  %v2673 = vpop.f32.mrf.mxu0
  %v2674 = vadd.f32 %v1889, %v2673
  %2675 = vmatmul.f32.gmra.mxu0 %v2276
  %v2676 = vpop.f32.mrf.mxu0
  %v2677 = vadd.f32 %v1892, %v2676
  %2678 = vmatmul.f32.gmra.mxu0 %v2279
  %v2679 = vpop.f32.mrf.mxu0
  %v2680 = vadd.f32 %v1895, %v2679
  %2681 = vmatmul.f32.gmra.mxu0 %v2282
  %v2682 = vpop.f32.mrf.mxu0
  %v2683 = vadd.f32 %v1898, %v2682
  %2684 = vmatmul.f32.gmra.mxu0 %v2285
  %v2685 = vpop.f32.mrf.mxu0
  %v2686 = vadd.f32 %v1901, %v2685
  %2687 = vmatmul.f32.gmra.mxu0 %v2288
  %v2688 = vpop.f32.mrf.mxu0
  %v2689 = vadd.f32 %v1904, %v2688
  %2690 = vmatmul.f32.gmra.mxu0 %v2291
  %v2691 = vpop.f32.mrf.mxu0
  %v2692 = vadd.f32 %v1907, %v2691
  %2693 = vmatmul.f32.gmra.mxu0 %v2294
  %v2694 = vpop.f32.mrf.mxu0
  %v2695 = vadd.f32 %v1910, %v2694
  %2696 = vmatmul.f32.gmra.mxu0 %v2297
  %v2697 = vpop.f32.mrf.mxu0
  %v2698 = vadd.f32 %v1913, %v2697
  %2699 = vmatmul.f32.gmra.mxu0 %v2300
  %v2700 = vpop.f32.mrf.mxu0
  %v2701 = vadd.f32 %v1916, %v2700
  %2702 = vmatmul.f32.gmra.mxu0 %v2303
  %v2703 = vpop.f32.mrf.mxu0
  %v2704 = vadd.f32 %v1919, %v2703
  %2705 = vmatmul.f32.gmra.mxu0 %v2306
  %v2706 = vpop.f32.mrf.mxu0
  %v2707 = vadd.f32 %v1922, %v2706
  %2708 = vmatmul.f32.gmra.mxu0 %v2309
  %v2709 = vpop.f32.mrf.mxu0
  %v2710 = vadd.f32 %v1925, %v2709
  %2711 = vmatmul.f32.gmra.mxu0 %v2312
  %v2712 = vpop.f32.mrf.mxu0
  %v2713 = vadd.f32 %v1928, %v2712
  %2714 = vmatmul.f32.gmra.mxu0 %v2315
  %v2715 = vpop.f32.mrf.mxu0
  %v2716 = vadd.f32 %v1931, %v2715
  %2717 = vmatmul.f32.gmra.mxu0 %v2318
  %v2718 = vpop.f32.mrf.mxu0
  %v2719 = vadd.f32 %v1934, %v2718
  %2720 = vmatmul.f32.gmra.mxu0 %v2321
  %v2721 = vpop.f32.mrf.mxu0
  %v2722 = vadd.f32 %v1937, %v2721
  %2723 = vmatmul.f32.gmra.mxu0 %v2324
  %v2724 = vpop.f32.mrf.mxu0
  %v2725 = vadd.f32 %v1940, %v2724
  %2726 = vmatmul.f32.gmra.mxu0 %v2327
  %v2727 = vpop.f32.mrf.mxu0
  %v2728 = vadd.f32 %v1943, %v2727
  %2729 = vmatmul.f32.gmra.mxu0 %v2330
  %v2730 = vpop.f32.mrf.mxu0
  %v2731 = vadd.f32 %v1946, %v2730
  %2732 = vmatmul.f32.gmra.mxu0 %v2333
  %v2733 = vpop.f32.mrf.mxu0
  %v2734 = vadd.f32 %v1949, %v2733
  %2735 = vmatmul.f32.gmra.mxu0 %v2336
  %v2736 = vpop.f32.mrf.mxu0
  %v2737 = vadd.f32 %v1952, %v2736
  %2738 = vmatmul.f32.gmra.mxu0 %v2339
  %v2739 = vpop.f32.mrf.mxu0
  %v2740 = vadd.f32 %v1955, %v2739
  %2741 = vmatmul.f32.gmra.mxu0 %v2342
  %v2742 = vpop.f32.mrf.mxu0
  %v2743 = vadd.f32 %v1958, %v2742
  %2744 = vmatmul.f32.gmra.mxu0 %v2345
  %v2745 = vpop.f32.mrf.mxu0
  %v2746 = vadd.f32 %v1961, %v2745
  %2747 = vmatmul.f32.gmra.mxu0 %v2348
  %v2748 = vpop.f32.mrf.mxu0
  %v2749 = vadd.f32 %v1964, %v2748
  %2750 = vmatmul.f32.gmra.mxu0 %v2351
  %v2751 = vpop.f32.mrf.mxu0
  %v2752 = vadd.f32 %v1967, %v2751
  %2753 = vmatmul.f32.gmra.mxu0 %v2354
  %v2754 = vpop.f32.mrf.mxu0
  %v2755 = vadd.f32 %v1970, %v2754
  %2756 = vmatmul.f32.gmra.mxu0 %v2357
  %v2757 = vpop.f32.mrf.mxu0
  %v2758 = vadd.f32 %v1973, %v2757
  %2759 = vmatmul.f32.gmra.mxu0 %v2360
  %v2760 = vpop.f32.mrf.mxu0
  %v2761 = vadd.f32 %v1976, %v2760
  %2762 = vmatmul.f32.gmra.mxu0 %v2363
  %v2763 = vpop.f32.mrf.mxu0
  %v2764 = vadd.f32 %v1979, %v2763
  %2765 = vmatmul.f32.gmra.mxu0 %v2366
  %v2766 = vpop.f32.mrf.mxu0
  %v2767 = vadd.f32 %v1982, %v2766
  %2768 = vmatmul.f32.gmra.mxu0 %v2369
  %v2769 = vpop.f32.mrf.mxu0
  %v2770 = vadd.f32 %v1985, %v2769
  %2771 = vmatmul.f32.gmra.mxu0 %v2372
  %v2772 = vpop.f32.mrf.mxu0
  %v2773 = vadd.f32 %v1988, %v2772
  %2774 = vmatmul.f32.gmra.mxu0 %v2375
  %v2775 = vpop.f32.mrf.mxu0
  %v2776 = vadd.f32 %v1991, %v2775
  %2777 = vmatmul.f32.gmra.mxu0 %v2378
  %v2778 = vpop.f32.mrf.mxu0
  %v2779 = vadd.f32 %v1994, %v2778
  %2780 = vmatmul.f32.gmra.mxu0 %v2381
  %v2781 = vpop.f32.mrf.mxu0
  %v2782 = vadd.f32 %v1997, %v2781
  %2783 = vmatmul.f32.gmra.mxu0 %v2384
  %v2784 = vpop.f32.mrf.mxu0
  %v2785 = vadd.f32 %v2000, %v2784
  %2786 = vmatmul.f32.gmra.mxu0 %v2387
  %v2787 = vpop.f32.mrf.mxu0
  %v2788 = vadd.f32 %v2003, %v2787
  %2789 = vmatmul.f32.gmra.mxu0 %v2390
  %v2790 = vpop.f32.mrf.mxu0
  %v2791 = vadd.f32 %v2006, %v2790
  %2792 = vmatmul.f32.gmra.mxu0 %v2393
  %v2793 = vpop.f32.mrf.mxu0
  %v2794 = vadd.f32 %v2009, %v2793
  %2795 = vmatmul.f32.gmra.mxu0 %v2396
  %v2796 = vpop.f32.mrf.mxu0
  %v2797 = vadd.f32 %v2012, %v2796
  %2798 = vmatmul.f32.gmra.mxu0 %v2399
  %v2799 = vpop.f32.mrf.mxu0
  %v2800 = vadd.f32 %v2015, %v2799
  %2801 = vmatmul.f32.gmra.mxu0 %v2402
  %v2802 = vpop.f32.mrf.mxu0
  %v2803 = vadd.f32 %v2018, %v2802
  %2804 = vmatmul.f32.gmra.mxu0 %v2405
  %v2805 = vpop.f32.mrf.mxu0
  %v2806 = vadd.f32 %v2021, %v2805
  %2807 = vmatmul.f32.gmra.mxu0 %v2408
  %v2808 = vpop.f32.mrf.mxu0
  %v2809 = vadd.f32 %v2024, %v2808
  %2810 = vmatmul.f32.gmra.mxu0 %v2411
  %v2811 = vpop.f32.mrf.mxu0
  %v2812 = vadd.f32 %v2027, %v2811
  %2813 = vmatmul.f32.gmra.mxu0 %v2414
  %v2814 = vpop.f32.mrf.mxu0
  %v2815 = vadd.f32 %v2030, %v2814
  %2816 = vmatmul.f32.gmra.mxu0 %v2417
  %v2817 = vpop.f32.mrf.mxu0
  %v2818 = vadd.f32 %v2033, %v2817
  %2819 = vmatmul.f32.gmra.mxu0 %v2420
  %v2820 = vpop.f32.mrf.mxu0
  %v2821 = vadd.f32 %v2036, %v2820
  %2822 = vmatmul.f32.gmra.mxu0 %v2423
  %v2823 = vpop.f32.mrf.mxu0
  %v2824 = vadd.f32 %v2039, %v2823
  %2825 = vmatmul.f32.gmra.mxu0 %v2426
  %v2826 = vpop.f32.mrf.mxu0
  %v2827 = vadd.f32 %v2042, %v2826
  %2828 = vmatmul.f32.gmra.mxu0 %v2429
  %v2829 = vpop.f32.mrf.mxu0
  %v2830 = vadd.f32 %v2045, %v2829
  %2831 = vmatmul.f32.gmra.mxu0 %v2432
  %v2832 = vpop.f32.mrf.mxu0
  %v2833 = vadd.f32 %v2048, %v2832
  %2834 = vmatmul.f32.gmra.mxu0 %v2435
  %v2835 = vpop.f32.mrf.mxu0
  %v2836 = vadd.f32 %v2051, %v2835
  %2837 = vmatmul.f32.gmra.mxu0 %v2438
  %v2838 = vpop.f32.mrf.mxu0
  %v2839 = vadd.f32 %v2054, %v2838
  %2840 = vmatmul.f32.gmra.mxu0 %v2441
  %v2841 = vpop.f32.mrf.mxu0
  %v2842 = vadd.f32 %v2057, %v2841
  %2843 = vmatmul.f32.gmra.mxu0 %v2444
  %v2844 = vpop.f32.mrf.mxu0
  %v2845 = vadd.f32 %v2060, %v2844
  %2846 = vmatmul.f32.gmra.mxu0 %v2447
  %v2847 = vpop.f32.mrf.mxu0
  %v2848 = vadd.f32 %v2063, %v2847
  %2849 = vmatmul.f32.gmra.mxu0 %v2450
  %v2850 = vpop.f32.mrf.mxu0
  %v2851 = vadd.f32 %v2066, %v2850
  %2852 = vmatmul.f32.gmra.mxu0 %v2453
  %v2853 = vpop.f32.mrf.mxu0
  %v2854 = vadd.f32 %v2069, %v2853
  %2855 = vmatmul.f32.gmra.mxu0 %v2456
  %v2856 = vpop.f32.mrf.mxu0
  %v2857 = vadd.f32 %v2072, %v2856
  %2858 = vmatmul.f32.gmra.mxu0 %v2459
  %v2859 = vpop.f32.mrf.mxu0
  %v2860 = vadd.f32 %v2075, %v2859
  %2861 = vmatmul.f32.gmra.mxu0 %v2462
  %v2862 = vpop.f32.mrf.mxu0
  %v2863 = vadd.f32 %v2078, %v2862
  %2864 = vmatmul.f32.gmra.mxu0 %v2465
  %v2865 = vpop.f32.mrf.mxu0
  %v2866 = vadd.f32 %v2081, %v2865
  %2867 = vmatmul.f32.gmra.mxu0 %v2468
  %v2868 = vpop.f32.mrf.mxu0
  %v2869 = vadd.f32 %v2084, %v2868
  %2870 = vmatmul.f32.gmra.mxu0 %v2471
  %v2871 = vpop.f32.mrf.mxu0
  %v2872 = vadd.f32 %v2087, %v2871
  %2873 = vmatmul.f32.gmra.mxu0 %v2474
  %v2874 = vpop.f32.mrf.mxu0
  %v2875 = vadd.f32 %v2090, %v2874
  %2876 = vmatmul.f32.gmra.mxu0 %v2477
  %v2877 = vpop.f32.mrf.mxu0
  %v2878 = vadd.f32 %v2093, %v2877
  %2879 = vmatmul.f32.gmra.mxu0 %v2480
  %v2880 = vpop.f32.mrf.mxu0
  %v2881 = vadd.f32 %v2096, %v2880
  %2882 = vmatmul.f32.gmra.mxu0 %v2483
  %v2883 = vpop.f32.mrf.mxu0
  %v2884 = vadd.f32 %v2099, %v2883
  %2885 = vmatmul.f32.gmra.mxu0 %v2486
  %v2886 = vpop.f32.mrf.mxu0
  %v2887 = vadd.f32 %v2102, %v2886
  %2888 = vmatmul.f32.gmra.mxu0 %v2489
  %v2889 = vpop.f32.mrf.mxu0
  %v2890 = vadd.f32 %v2105, %v2889
  %2891 = vmatmul.f32.gmra.mxu0 %v2492
  %v2892 = vpop.f32.mrf.mxu0
  %v2893 = vadd.f32 %v2108, %v2892
  %2894 = vmatmul.f32.gmra.mxu0 %v2495
  %v2895 = vpop.f32.mrf.mxu0
  %v2896 = vadd.f32 %v2111, %v2895
  %2897 = vmatmul.f32.gmra.mxu0 %v2498
  %v2898 = vpop.f32.mrf.mxu0
  %v2899 = vadd.f32 %v2114, %v2898
  %2900 = vmatmul.f32.gmra.mxu0 %v2501
  %v2901 = vpop.f32.mrf.mxu0
  %v2902 = vadd.f32 %v2117, %v2901
  %2903 = vmatmul.f32.gmra.mxu0 %v2504
  %v2904 = vpop.f32.mrf.mxu0
  %v2905 = vadd.f32 %v2120, %v2904
  %2906 = vmatmul.f32.gmra.mxu0 %v2507
  %v2907 = vpop.f32.mrf.mxu0
  %v2908 = vadd.f32 %v2123, %v2907
  %2909 = vmatmul.f32.gmra.mxu0 %v2510
  %v2910 = vpop.f32.mrf.mxu0
  %v2911 = vadd.f32 %v2126, %v2910
  %2912 = vmatmul.f32.gmra.mxu0 %v2513
  %v2913 = vpop.f32.mrf.mxu0
  %v2914 = vadd.f32 %v2129, %v2913
  %2915 = vmatmul.f32.gmra.mxu0 %v2516
  %v2916 = vpop.f32.mrf.mxu0
  %v2917 = vadd.f32 %v2132, %v2916
  %2918 = vmatmul.f32.gmra.mxu0 %v2519
  %v2919 = vpop.f32.mrf.mxu0
  %v2920 = vadd.f32 %v2135, %v2919
  %2921 = vmatmul.f32.gmra.mxu0 %v2522
  %v2922 = vpop.f32.mrf.mxu0
  %v2923 = vadd.f32 %v2138, %v2922
  %2924 = vmatmul.f32.gmra.mxu0 %v2525
  %v2925 = vpop.f32.mrf.mxu0
  %v2926 = vadd.f32 %v2141, %v2925
  %2927 = vmatmul.f32.gmra.mxu0 %v2528
  %v2928 = vpop.f32.mrf.mxu0
  %v2929 = vadd.f32 %v2144, %v2928
  %2930 = vmatmul.f32.gmra.mxu0 %v2531
  %v2931 = vpop.f32.mrf.mxu0
  %v2932 = vadd.f32 %v2147, %v2931
  %2933 = vmatmul.f32.gmra.mxu0 %v2534
  %v2934 = vpop.f32.mrf.mxu0
  %v2935 = vadd.f32 %v2150, %v2934
  %2936 = vmatmul.f32.gmra.mxu0 %v2537
  %v2937 = vpop.f32.mrf.mxu0
  %v2938 = vadd.f32 %v2153, %v2937
  %2939 = vmatmul.f32.gmra.mxu0 %v2540
  %v2940 = vpop.f32.mrf.mxu0
  %v2941 = vadd.f32 %v2156, %v2940
  %2942 = vmatmul.f32.gmra.mxu0 %v2543
  %v2943 = vpop.f32.mrf.mxu0
  %v2944 = vadd.f32 %v2159, %v2943
  %2945 = vmatmul.f32.gmra.mxu0 %v2546
  %v2946 = vpop.f32.mrf.mxu0
  %v2947 = vadd.f32 %v2162, %v2946
  %2948 = vmatmul.f32.gmra.mxu0 %v2549
  %v2949 = vpop.f32.mrf.mxu0
  %v2950 = vadd.f32 %v2165, %v2949
  %2951 = vmatmul.f32.gmra.mxu0 %v2552
  %v2952 = vpop.f32.mrf.mxu0
  %v2953 = vadd.f32 %v2168, %v2952
  %2954 = vmatmul.f32.gmra.mxu0 %v2555
  %v2955 = vpop.f32.mrf.mxu0
  %v2956 = vadd.f32 %v2171, %v2955
  %2957 = vmatmul.f32.gmra.mxu0 %v2558
  %v2958 = vpop.f32.mrf.mxu0
  %v2959 = vadd.f32 %v2174, %v2958
  %2960 = vmatmul.f32.gmra.mxu0 %v2561
  %v2961 = vpop.f32.mrf.mxu0
  %v2962 = vadd.f32 %v2177, %v2961
  %2963 = vmatmul.f32.gmra.mxu0 %v2564
  %v2964 = vpop.f32.mrf.mxu0
  %v2965 = vadd.f32 %v2180, %v2964
  %2966 = vmatmul.f32.gmra.mxu0 %v2567
  %v2967 = vpop.f32.mrf.mxu0
  %v2968 = vadd.f32 %v2183, %v2967
  %2969 = vmatmul.f32.gmra.mxu0 %v2570
  %v2970 = vpop.f32.mrf.mxu0
  %v2971 = vadd.f32 %v2186, %v2970
  %2972 = vmatmul.f32.gmra.mxu0 %v2573
  %v2973 = vpop.f32.mrf.mxu0
  %v2974 = vadd.f32 %v2189, %v2973
  %2975 = vmatmul.f32.gmra.mxu0 %v2576
  %v2976 = vpop.f32.mrf.mxu0
  %v2977 = vadd.f32 %v2192, %v2976
  %2978 = vmatmul.f32.gmra.mxu0 %v2579
  %v2979 = vpop.f32.mrf.mxu0
  %v2980 = vadd.f32 %v2195, %v2979
  %2981 = vmatmul.f32.gmra.mxu0 %v2582
  %v2982 = vpop.f32.mrf.mxu0
  %v2983 = vadd.f32 %v2198, %v2982
  %2984 = vmatmul.f32.gmra.mxu0 %v2585
  %v2985 = vpop.f32.mrf.mxu0
  %v2986 = vadd.f32 %v2201, %v2985
  %2987 = vmatmul.f32.gmra.mxu0 %v2588
  %v2988 = vpop.f32.mrf.mxu0
  %v2989 = vadd.f32 %v2204, %v2988
  %2990 = vmatmul.f32.gmra.mxu0 %v2591
  %v2991 = vpop.f32.mrf.mxu0
  %v2992 = vadd.f32 %v2207, %v2991
  %2993 = vmatmul.f32.gmra.mxu0 %v2594
  %v2994 = vpop.f32.mrf.mxu0
  %v2995 = vadd.f32 %v2210, %v2994
  %2996 = vmatmul.f32.gmra.mxu0 %v2597
  %v2997 = vpop.f32.mrf.mxu0
  %v2998 = vadd.f32 %v2213, %v2997
  %2999 = vmatmul.f32.gmra.mxu0 %v2600
  %v3000 = vpop.f32.mrf.mxu0
  %v3001 = vadd.f32 %v2216, %v3000
  %3002 = vmatmul.f32.gmra.mxu0 %v2603
  %v3003 = vpop.f32.mrf.mxu0
  %v3004 = vadd.f32 %v2219, %v3003
  %3005 = vmatmul.f32.gmra.mxu0 %v2606
  %v3006 = vpop.f32.mrf.mxu0
  %v3007 = vadd.f32 %v2222, %v3006
  %3008 = vmatmul.f32.gmra.mxu0 %v2609
  %v3009 = vpop.f32.mrf.mxu0
  %v3010 = vadd.f32 %v2225, %v3009
  %3011 = vmatmul.f32.gmra.mxu0 %v2612
  %v3012 = vpop.f32.mrf.mxu0
  %v3013 = vadd.f32 %v2228, %v3012
  %3014 = vmatmul.f32.gmra.mxu0 %v2615
  %v3015 = vpop.f32.mrf.mxu0
  %v3016 = vadd.f32 %v2231, %v3015
  %3017 = vmatmul.f32.gmra.mxu0 %v2618
  %v3018 = vpop.f32.mrf.mxu0
  %v3019 = vadd.f32 %v2234, %v3018
  %3020 = vmatmul.f32.gmra.mxu0 %v2621
  %v3021 = vpop.f32.mrf.mxu0
  %v3022 = vadd.f32 %v2237, %v3021
  %3023 = vmatmul.f32.gmra.mxu0 %v2624
  %v3024 = vpop.f32.mrf.mxu0
  %v3025 = vadd.f32 %v2240, %v3024
  %3026 = vmatmul.f32.gmra.mxu0 %v2627
  %v3027 = vpop.f32.mrf.mxu0
  %v3028 = vadd.f32 %v2243, %v3027
  %3029 = vmatmul.f32.gmra.mxu0 %v2630
  %v3030 = vpop.f32.mrf.mxu0
  %v3031 = vadd.f32 %v2246, %v3030
  %3032 = vmatmul.f32.gmra.mxu0 %v2633
  %v3033 = vpop.f32.mrf.mxu0
  %v3034 = vadd.f32 %v2249, %v3033
  %3035 = vmatmul.f32.gmra.mxu0 %v2636
  %v3036 = vpop.f32.mrf.mxu0
  %v3037 = vadd.f32 %v2252, %v3036
  %3038 = vmatmul.f32.gmra.mxu0 %v2639
  %v3039 = vpop.f32.mrf.mxu0
  %v3040 = vadd.f32 %v2255, %v3039
  %3041 = vdwg.mxu0
  %v3042 = vld [vmem:[#allocation2 + $0x2] sm:$0xff]
  %v3043 = vld [vmem:[#allocation2 + $0xa] sm:$0xff]
  %v3044 = vld [vmem:[#allocation2 + $0x12] sm:$0xff]
  %v3045 = vld [vmem:[#allocation2 + $0x1a] sm:$0xff]
  %v3046 = vld [vmem:[#allocation2 + $0x22] sm:$0xff]
  %v3047 = vld [vmem:[#allocation2 + $0x2a] sm:$0xff]
  %v3048 = vld [vmem:[#allocation2 + $0x32] sm:$0xff]
  %v3049 = vld [vmem:[#allocation2 + $0x3a] sm:$0xff]
  %v3050 = vld [vmem:[#allocation2 + $0x42] sm:$0xff]
  %v3051 = vld [vmem:[#allocation2 + $0x4a] sm:$0xff]
  %v3052 = vld [vmem:[#allocation2 + $0x52] sm:$0xff]
  %v3053 = vld [vmem:[#allocation2 + $0x5a] sm:$0xff]
  %v3054 = vld [vmem:[#allocation2 + $0x62] sm:$0xff]
  %v3055 = vld [vmem:[#allocation2 + $0x6a] sm:$0xff]
  %v3056 = vld [vmem:[#allocation2 + $0x72] sm:$0xff]
  %v3057 = vld [vmem:[#allocation2 + $0x7a] sm:$0xff]
  %v3058 = vld [vmem:[#allocation2 + $0x82] sm:$0xff]
  %v3059 = vld [vmem:[#allocation2 + $0x8a] sm:$0xff]
  %v3060 = vld [vmem:[#allocation2 + $0x92] sm:$0xff]
  %v3061 = vld [vmem:[#allocation2 + $0x9a] sm:$0xff]
  %v3062 = vld [vmem:[#allocation2 + $0xa2] sm:$0xff]
  %v3063 = vld [vmem:[#allocation2 + $0xaa] sm:$0xff]
  %v3064 = vld [vmem:[#allocation2 + $0xb2] sm:$0xff]
  %v3065 = vld [vmem:[#allocation2 + $0xba] sm:$0xff]
  %v3066 = vld [vmem:[#allocation2 + $0xc2] sm:$0xff]
  %v3067 = vld [vmem:[#allocation2 + $0xca] sm:$0xff]
  %v3068 = vld [vmem:[#allocation2 + $0xd2] sm:$0xff]
  %v3069 = vld [vmem:[#allocation2 + $0xda] sm:$0xff]
  %v3070 = vld [vmem:[#allocation2 + $0xe2] sm:$0xff]
  %v3071 = vld [vmem:[#allocation2 + $0xea] sm:$0xff]
  %v3072 = vld [vmem:[#allocation2 + $0xf2] sm:$0xff]
  %v3073 = vld [vmem:[#allocation2 + $0xfa] sm:$0xff]
  %v3074 = vld [vmem:[#allocation2 + $0x102] sm:$0xff]
  %v3075 = vld [vmem:[#allocation2 + $0x10a] sm:$0xff]
  %v3076 = vld [vmem:[#allocation2 + $0x112] sm:$0xff]
  %v3077 = vld [vmem:[#allocation2 + $0x11a] sm:$0xff]
  %v3078 = vld [vmem:[#allocation2 + $0x122] sm:$0xff]
  %v3079 = vld [vmem:[#allocation2 + $0x12a] sm:$0xff]
  %v3080 = vld [vmem:[#allocation2 + $0x132] sm:$0xff]
  %v3081 = vld [vmem:[#allocation2 + $0x13a] sm:$0xff]
  %v3082 = vld [vmem:[#allocation2 + $0x142] sm:$0xff]
  %v3083 = vld [vmem:[#allocation2 + $0x14a] sm:$0xff]
  %v3084 = vld [vmem:[#allocation2 + $0x152] sm:$0xff]
  %v3085 = vld [vmem:[#allocation2 + $0x15a] sm:$0xff]
  %v3086 = vld [vmem:[#allocation2 + $0x162] sm:$0xff]
  %v3087 = vld [vmem:[#allocation2 + $0x16a] sm:$0xff]
  %v3088 = vld [vmem:[#allocation2 + $0x172] sm:$0xff]
  %v3089 = vld [vmem:[#allocation2 + $0x17a] sm:$0xff]
  %v3090 = vld [vmem:[#allocation2 + $0x182] sm:$0xff]
  %v3091 = vld [vmem:[#allocation2 + $0x18a] sm:$0xff]
  %v3092 = vld [vmem:[#allocation2 + $0x192] sm:$0xff]
  %v3093 = vld [vmem:[#allocation2 + $0x19a] sm:$0xff]
  %v3094 = vld [vmem:[#allocation2 + $0x1a2] sm:$0xff]
  %v3095 = vld [vmem:[#allocation2 + $0x1aa] sm:$0xff]
  %v3096 = vld [vmem:[#allocation2 + $0x1b2] sm:$0xff]
  %v3097 = vld [vmem:[#allocation2 + $0x1ba] sm:$0xff]
  %v3098 = vld [vmem:[#allocation2 + $0x1c2] sm:$0xff]
  %v3099 = vld [vmem:[#allocation2 + $0x1ca] sm:$0xff]
  %v3100 = vld [vmem:[#allocation2 + $0x1d2] sm:$0xff]
  %v3101 = vld [vmem:[#allocation2 + $0x1da] sm:$0xff]
  %v3102 = vld [vmem:[#allocation2 + $0x1e2] sm:$0xff]
  %v3103 = vld [vmem:[#allocation2 + $0x1ea] sm:$0xff]
  %v3104 = vld [vmem:[#allocation2 + $0x1f2] sm:$0xff]
  %v3105 = vld [vmem:[#allocation2 + $0x1fa] sm:$0xff]
  %v3106 = vld [vmem:[#allocation2 + $0x202] sm:$0xff]
  %v3107 = vld [vmem:[#allocation2 + $0x20a] sm:$0xff]
  %v3108 = vld [vmem:[#allocation2 + $0x212] sm:$0xff]
  %v3109 = vld [vmem:[#allocation2 + $0x21a] sm:$0xff]
  %v3110 = vld [vmem:[#allocation2 + $0x222] sm:$0xff]
  %v3111 = vld [vmem:[#allocation2 + $0x22a] sm:$0xff]
  %v3112 = vld [vmem:[#allocation2 + $0x232] sm:$0xff]
  %v3113 = vld [vmem:[#allocation2 + $0x23a] sm:$0xff]
  %v3114 = vld [vmem:[#allocation2 + $0x242] sm:$0xff]
  %v3115 = vld [vmem:[#allocation2 + $0x24a] sm:$0xff]
  %v3116 = vld [vmem:[#allocation2 + $0x252] sm:$0xff]
  %v3117 = vld [vmem:[#allocation2 + $0x25a] sm:$0xff]
  %v3118 = vld [vmem:[#allocation2 + $0x262] sm:$0xff]
  %v3119 = vld [vmem:[#allocation2 + $0x26a] sm:$0xff]
  %v3120 = vld [vmem:[#allocation2 + $0x272] sm:$0xff]
  %v3121 = vld [vmem:[#allocation2 + $0x27a] sm:$0xff]
  %v3122 = vld [vmem:[#allocation2 + $0x282] sm:$0xff]
  %v3123 = vld [vmem:[#allocation2 + $0x28a] sm:$0xff]
  %v3124 = vld [vmem:[#allocation2 + $0x292] sm:$0xff]
  %v3125 = vld [vmem:[#allocation2 + $0x29a] sm:$0xff]
  %v3126 = vld [vmem:[#allocation2 + $0x2a2] sm:$0xff]
  %v3127 = vld [vmem:[#allocation2 + $0x2aa] sm:$0xff]
  %v3128 = vld [vmem:[#allocation2 + $0x2b2] sm:$0xff]
  %v3129 = vld [vmem:[#allocation2 + $0x2ba] sm:$0xff]
  %v3130 = vld [vmem:[#allocation2 + $0x2c2] sm:$0xff]
  %v3131 = vld [vmem:[#allocation2 + $0x2ca] sm:$0xff]
  %v3132 = vld [vmem:[#allocation2 + $0x2d2] sm:$0xff]
  %v3133 = vld [vmem:[#allocation2 + $0x2da] sm:$0xff]
  %v3134 = vld [vmem:[#allocation2 + $0x2e2] sm:$0xff]
  %v3135 = vld [vmem:[#allocation2 + $0x2ea] sm:$0xff]
  %v3136 = vld [vmem:[#allocation2 + $0x2f2] sm:$0xff]
  %v3137 = vld [vmem:[#allocation2 + $0x2fa] sm:$0xff]
  %v3138 = vld [vmem:[#allocation2 + $0x302] sm:$0xff]
  %v3139 = vld [vmem:[#allocation2 + $0x30a] sm:$0xff]
  %v3140 = vld [vmem:[#allocation2 + $0x312] sm:$0xff]
  %v3141 = vld [vmem:[#allocation2 + $0x31a] sm:$0xff]
  %v3142 = vld [vmem:[#allocation2 + $0x322] sm:$0xff]
  %v3143 = vld [vmem:[#allocation2 + $0x32a] sm:$0xff]
  %v3144 = vld [vmem:[#allocation2 + $0x332] sm:$0xff]
  %v3145 = vld [vmem:[#allocation2 + $0x33a] sm:$0xff]
  %v3146 = vld [vmem:[#allocation2 + $0x342] sm:$0xff]
  %v3147 = vld [vmem:[#allocation2 + $0x34a] sm:$0xff]
  %v3148 = vld [vmem:[#allocation2 + $0x352] sm:$0xff]
  %v3149 = vld [vmem:[#allocation2 + $0x35a] sm:$0xff]
  %v3150 = vld [vmem:[#allocation2 + $0x362] sm:$0xff]
  %v3151 = vld [vmem:[#allocation2 + $0x36a] sm:$0xff]
  %v3152 = vld [vmem:[#allocation2 + $0x372] sm:$0xff]
  %v3153 = vld [vmem:[#allocation2 + $0x37a] sm:$0xff]
  %v3154 = vld [vmem:[#allocation2 + $0x382] sm:$0xff]
  %v3155 = vld [vmem:[#allocation2 + $0x38a] sm:$0xff]
  %v3156 = vld [vmem:[#allocation2 + $0x392] sm:$0xff]
  %v3157 = vld [vmem:[#allocation2 + $0x39a] sm:$0xff]
  %v3158 = vld [vmem:[#allocation2 + $0x3a2] sm:$0xff]
  %v3159 = vld [vmem:[#allocation2 + $0x3aa] sm:$0xff]
  %v3160 = vld [vmem:[#allocation2 + $0x3b2] sm:$0xff]
  %v3161 = vld [vmem:[#allocation2 + $0x3ba] sm:$0xff]
  %v3162 = vld [vmem:[#allocation2 + $0x3c2] sm:$0xff]
  %v3163 = vld [vmem:[#allocation2 + $0x3ca] sm:$0xff]
  %v3164 = vld [vmem:[#allocation2 + $0x3d2] sm:$0xff]
  %v3165 = vld [vmem:[#allocation2 + $0x3da] sm:$0xff]
  %v3166 = vld [vmem:[#allocation2 + $0x3e2] sm:$0xff]
  %v3167 = vld [vmem:[#allocation2 + $0x3ea] sm:$0xff]
  %v3168 = vld [vmem:[#allocation2 + $0x3f2] sm:$0xff]
  %v3169 = vld [vmem:[#allocation2 + $0x3fa] sm:$0xff]
  %s3170 = scalar_lea.vmem %s3, 16
  %v3171 = vld [vmem:[%s3170] sm:$0xff]
  %v3173 = vsel %vm1083, %v3042, 0
  %v3176 = vsel %vm1083, %v3043, 0
  %v3179 = vsel %vm1083, %v3044, 0
  %v3182 = vsel %vm1083, %v3045, 0
  %v3185 = vsel %vm1083, %v3046, 0
  %v3188 = vsel %vm1083, %v3047, 0
  %v3191 = vsel %vm1083, %v3048, 0
  %v3194 = vsel %vm1083, %v3049, 0
  %v3197 = vsel %vm1083, %v3050, 0
  %v3200 = vsel %vm1083, %v3051, 0
  %v3203 = vsel %vm1083, %v3052, 0
  %v3206 = vsel %vm1083, %v3053, 0
  %v3209 = vsel %vm1083, %v3054, 0
  %v3212 = vsel %vm1083, %v3055, 0
  %v3215 = vsel %vm1083, %v3056, 0
  %v3218 = vsel %vm1083, %v3057, 0
  %v3221 = vsel %vm1083, %v3058, 0
  %v3224 = vsel %vm1083, %v3059, 0
  %v3227 = vsel %vm1083, %v3060, 0
  %v3230 = vsel %vm1083, %v3061, 0
  %v3233 = vsel %vm1083, %v3062, 0
  %v3236 = vsel %vm1083, %v3063, 0
  %v3239 = vsel %vm1083, %v3064, 0
  %v3242 = vsel %vm1083, %v3065, 0
  %v3245 = vsel %vm1083, %v3066, 0
  %v3248 = vsel %vm1083, %v3067, 0
  %v3251 = vsel %vm1083, %v3068, 0
  %v3254 = vsel %vm1083, %v3069, 0
  %v3257 = vsel %vm1083, %v3070, 0
  %v3260 = vsel %vm1083, %v3071, 0
  %v3263 = vsel %vm1083, %v3072, 0
  %v3266 = vsel %vm1083, %v3073, 0
  %v3269 = vsel %vm1083, %v3074, 0
  %v3272 = vsel %vm1083, %v3075, 0
  %v3275 = vsel %vm1083, %v3076, 0
  %v3278 = vsel %vm1083, %v3077, 0
  %v3281 = vsel %vm1083, %v3078, 0
  %v3284 = vsel %vm1083, %v3079, 0
  %v3287 = vsel %vm1083, %v3080, 0
  %v3290 = vsel %vm1083, %v3081, 0
  %v3293 = vsel %vm1083, %v3082, 0
  %v3296 = vsel %vm1083, %v3083, 0
  %v3299 = vsel %vm1083, %v3084, 0
  %v3302 = vsel %vm1083, %v3085, 0
  %v3305 = vsel %vm1083, %v3086, 0
  %v3308 = vsel %vm1083, %v3087, 0
  %v3311 = vsel %vm1083, %v3088, 0
  %v3314 = vsel %vm1083, %v3089, 0
  %v3317 = vsel %vm1083, %v3090, 0
  %v3320 = vsel %vm1083, %v3091, 0
  %v3323 = vsel %vm1083, %v3092, 0
  %v3326 = vsel %vm1083, %v3093, 0
  %v3329 = vsel %vm1083, %v3094, 0
  %v3332 = vsel %vm1083, %v3095, 0
  %v3335 = vsel %vm1083, %v3096, 0
  %v3338 = vsel %vm1083, %v3097, 0
  %v3341 = vsel %vm1083, %v3098, 0
  %v3344 = vsel %vm1083, %v3099, 0
  %v3347 = vsel %vm1083, %v3100, 0
  %v3350 = vsel %vm1083, %v3101, 0
  %v3353 = vsel %vm1083, %v3102, 0
  %v3356 = vsel %vm1083, %v3103, 0
  %v3359 = vsel %vm1083, %v3104, 0
  %v3362 = vsel %vm1083, %v3105, 0
  %v3365 = vsel %vm1083, %v3106, 0
  %v3368 = vsel %vm1083, %v3107, 0
  %v3371 = vsel %vm1083, %v3108, 0
  %v3374 = vsel %vm1083, %v3109, 0
  %v3377 = vsel %vm1083, %v3110, 0
  %v3380 = vsel %vm1083, %v3111, 0
  %v3383 = vsel %vm1083, %v3112, 0
  %v3386 = vsel %vm1083, %v3113, 0
  %v3389 = vsel %vm1083, %v3114, 0
  %v3392 = vsel %vm1083, %v3115, 0
  %v3395 = vsel %vm1083, %v3116, 0
  %v3398 = vsel %vm1083, %v3117, 0
  %v3401 = vsel %vm1083, %v3118, 0
  %v3404 = vsel %vm1083, %v3119, 0
  %v3407 = vsel %vm1083, %v3120, 0
  %v3410 = vsel %vm1083, %v3121, 0
  %v3413 = vsel %vm1083, %v3122, 0
  %v3416 = vsel %vm1083, %v3123, 0
  %v3419 = vsel %vm1083, %v3124, 0
  %v3422 = vsel %vm1083, %v3125, 0
  %v3425 = vsel %vm1083, %v3126, 0
  %v3428 = vsel %vm1083, %v3127, 0
  %v3431 = vsel %vm1083, %v3128, 0
  %v3434 = vsel %vm1083, %v3129, 0
  %v3437 = vsel %vm1083, %v3130, 0
  %v3440 = vsel %vm1083, %v3131, 0
  %v3443 = vsel %vm1083, %v3132, 0
  %v3446 = vsel %vm1083, %v3133, 0
  %v3449 = vsel %vm1083, %v3134, 0
  %v3452 = vsel %vm1083, %v3135, 0
  %v3455 = vsel %vm1083, %v3136, 0
  %v3458 = vsel %vm1083, %v3137, 0
  %v3461 = vsel %vm1083, %v3138, 0
  %v3464 = vsel %vm1083, %v3139, 0
  %v3467 = vsel %vm1083, %v3140, 0
  %v3470 = vsel %vm1083, %v3141, 0
  %v3473 = vsel %vm1083, %v3142, 0
  %v3476 = vsel %vm1083, %v3143, 0
  %v3479 = vsel %vm1083, %v3144, 0
  %v3482 = vsel %vm1083, %v3145, 0
  %v3485 = vsel %vm1083, %v3146, 0
  %v3488 = vsel %vm1083, %v3147, 0
  %v3491 = vsel %vm1083, %v3148, 0
  %v3494 = vsel %vm1083, %v3149, 0
  %v3497 = vsel %vm1083, %v3150, 0
  %v3500 = vsel %vm1083, %v3151, 0
  %v3503 = vsel %vm1083, %v3152, 0
  %v3506 = vsel %vm1083, %v3153, 0
  %v3509 = vsel %vm1083, %v3154, 0
  %v3512 = vsel %vm1083, %v3155, 0
  %v3515 = vsel %vm1083, %v3156, 0
  %v3518 = vsel %vm1083, %v3157, 0
  %v3521 = vsel %vm1083, %v3158, 0
  %v3524 = vsel %vm1083, %v3159, 0
  %v3527 = vsel %vm1083, %v3160, 0
  %v3530 = vsel %vm1083, %v3161, 0
  %v3533 = vsel %vm1083, %v3162, 0
  %v3536 = vsel %vm1083, %v3163, 0
  %v3539 = vsel %vm1083, %v3164, 0
  %v3542 = vsel %vm1083, %v3165, 0
  %v3545 = vsel %vm1083, %v3166, 0
  %v3548 = vsel %vm1083, %v3167, 0
  %v3551 = vsel %vm1083, %v3168, 0
  %v3554 = vsel %vm1083, %v3169, 0
  %3556 = vmatpush.msra.mxu0 0.0
  %3557 = vmatpush.msra.mxu0 0.0
  %3558 = vmatpush.msra.mxu0 0.0
  %3559 = vmatpush.msra.mxu0 0.0
  %3560 = vmatpush.msra.mxu0 0.0
  %3561 = vmatpush.msra.mxu0 0.0
  %3562 = vmatpush.msra.mxu0 0.0
  %3563 = vmatpush.msra.mxu0 0.0
  %3564 = vmatpush.msra.mxu0 0.0
  %3565 = vmatpush.msra.mxu0 0.0
  %3566 = vmatpush.msra.mxu0 0.0
  %3567 = vmatpush.msra.mxu0 0.0
  %3568 = vmatpush.msra.mxu0 0.0
  %3569 = vmatpush.msra.mxu0 0.0
  %3570 = vmatpush.msra.mxu0 0.0
  %3571 = vmatpush.msra.mxu0 %v3171
  %3572 = vmatmul.f32.gmra.mxu0 %v3173
  %v3573 = vpop.f32.mrf.mxu0
  %v3574 = vadd.f32 0.0, %v3573
  %3575 = vmatmul.f32.gmra.mxu0 %v3176
  %v3576 = vpop.f32.mrf.mxu0
  %v3577 = vadd.f32 0.0, %v3576
  %3578 = vmatmul.f32.gmra.mxu0 %v3179
  %v3579 = vpop.f32.mrf.mxu0
  %v3580 = vadd.f32 0.0, %v3579
  %3581 = vmatmul.f32.gmra.mxu0 %v3182
  %v3582 = vpop.f32.mrf.mxu0
  %v3583 = vadd.f32 0.0, %v3582
  %3584 = vmatmul.f32.gmra.mxu0 %v3185
  %v3585 = vpop.f32.mrf.mxu0
  %v3586 = vadd.f32 0.0, %v3585
  %3587 = vmatmul.f32.gmra.mxu0 %v3188
  %v3588 = vpop.f32.mrf.mxu0
  %v3589 = vadd.f32 0.0, %v3588
  %3590 = vmatmul.f32.gmra.mxu0 %v3191
  %v3591 = vpop.f32.mrf.mxu0
  %v3592 = vadd.f32 0.0, %v3591
  %3593 = vmatmul.f32.gmra.mxu0 %v3194
  %v3594 = vpop.f32.mrf.mxu0
  %v3595 = vadd.f32 0.0, %v3594
  %3596 = vmatmul.f32.gmra.mxu0 %v3197
  %v3597 = vpop.f32.mrf.mxu0
  %v3598 = vadd.f32 0.0, %v3597
  %3599 = vmatmul.f32.gmra.mxu0 %v3200
  %v3600 = vpop.f32.mrf.mxu0
  %v3601 = vadd.f32 0.0, %v3600
  %3602 = vmatmul.f32.gmra.mxu0 %v3203
  %v3603 = vpop.f32.mrf.mxu0
  %v3604 = vadd.f32 0.0, %v3603
  %3605 = vmatmul.f32.gmra.mxu0 %v3206
  %v3606 = vpop.f32.mrf.mxu0
  %v3607 = vadd.f32 0.0, %v3606
  %3608 = vmatmul.f32.gmra.mxu0 %v3209
  %v3609 = vpop.f32.mrf.mxu0
  %v3610 = vadd.f32 0.0, %v3609
  %3611 = vmatmul.f32.gmra.mxu0 %v3212
  %v3612 = vpop.f32.mrf.mxu0
  %v3613 = vadd.f32 0.0, %v3612
  %3614 = vmatmul.f32.gmra.mxu0 %v3215
  %v3615 = vpop.f32.mrf.mxu0
  %v3616 = vadd.f32 0.0, %v3615
  %3617 = vmatmul.f32.gmra.mxu0 %v3218
  %v3618 = vpop.f32.mrf.mxu0
  %v3619 = vadd.f32 0.0, %v3618
  %3620 = vmatmul.f32.gmra.mxu0 %v3221
  %v3621 = vpop.f32.mrf.mxu0
  %v3622 = vadd.f32 0.0, %v3621
  %3623 = vmatmul.f32.gmra.mxu0 %v3224
  %v3624 = vpop.f32.mrf.mxu0
  %v3625 = vadd.f32 0.0, %v3624
  %3626 = vmatmul.f32.gmra.mxu0 %v3227
  %v3627 = vpop.f32.mrf.mxu0
  %v3628 = vadd.f32 0.0, %v3627
  %3629 = vmatmul.f32.gmra.mxu0 %v3230
  %v3630 = vpop.f32.mrf.mxu0
  %v3631 = vadd.f32 0.0, %v3630
  %3632 = vmatmul.f32.gmra.mxu0 %v3233
  %v3633 = vpop.f32.mrf.mxu0
  %v3634 = vadd.f32 0.0, %v3633
  %3635 = vmatmul.f32.gmra.mxu0 %v3236
  %v3636 = vpop.f32.mrf.mxu0
  %v3637 = vadd.f32 0.0, %v3636
  %3638 = vmatmul.f32.gmra.mxu0 %v3239
  %v3639 = vpop.f32.mrf.mxu0
  %v3640 = vadd.f32 0.0, %v3639
  %3641 = vmatmul.f32.gmra.mxu0 %v3242
  %v3642 = vpop.f32.mrf.mxu0
  %v3643 = vadd.f32 0.0, %v3642
  %3644 = vmatmul.f32.gmra.mxu0 %v3245
  %v3645 = vpop.f32.mrf.mxu0
  %v3646 = vadd.f32 0.0, %v3645
  %3647 = vmatmul.f32.gmra.mxu0 %v3248
  %v3648 = vpop.f32.mrf.mxu0
  %v3649 = vadd.f32 0.0, %v3648
  %3650 = vmatmul.f32.gmra.mxu0 %v3251
  %v3651 = vpop.f32.mrf.mxu0
  %v3652 = vadd.f32 0.0, %v3651
  %3653 = vmatmul.f32.gmra.mxu0 %v3254
  %v3654 = vpop.f32.mrf.mxu0
  %v3655 = vadd.f32 0.0, %v3654
  %3656 = vmatmul.f32.gmra.mxu0 %v3257
  %v3657 = vpop.f32.mrf.mxu0
  %v3658 = vadd.f32 0.0, %v3657
  %3659 = vmatmul.f32.gmra.mxu0 %v3260
  %v3660 = vpop.f32.mrf.mxu0
  %v3661 = vadd.f32 0.0, %v3660
  %3662 = vmatmul.f32.gmra.mxu0 %v3263
  %v3663 = vpop.f32.mrf.mxu0
  %v3664 = vadd.f32 0.0, %v3663
  %3665 = vmatmul.f32.gmra.mxu0 %v3266
  %v3666 = vpop.f32.mrf.mxu0
  %v3667 = vadd.f32 0.0, %v3666
  %3668 = vmatmul.f32.gmra.mxu0 %v3269
  %v3669 = vpop.f32.mrf.mxu0
  %v3670 = vadd.f32 0.0, %v3669
  %3671 = vmatmul.f32.gmra.mxu0 %v3272
  %v3672 = vpop.f32.mrf.mxu0
  %v3673 = vadd.f32 0.0, %v3672
  %3674 = vmatmul.f32.gmra.mxu0 %v3275
  %v3675 = vpop.f32.mrf.mxu0
  %v3676 = vadd.f32 0.0, %v3675
  %3677 = vmatmul.f32.gmra.mxu0 %v3278
  %v3678 = vpop.f32.mrf.mxu0
  %v3679 = vadd.f32 0.0, %v3678
  %3680 = vmatmul.f32.gmra.mxu0 %v3281
  %v3681 = vpop.f32.mrf.mxu0
  %v3682 = vadd.f32 0.0, %v3681
  %3683 = vmatmul.f32.gmra.mxu0 %v3284
  %v3684 = vpop.f32.mrf.mxu0
  %v3685 = vadd.f32 0.0, %v3684
  %3686 = vmatmul.f32.gmra.mxu0 %v3287
  %v3687 = vpop.f32.mrf.mxu0
  %v3688 = vadd.f32 0.0, %v3687
  %3689 = vmatmul.f32.gmra.mxu0 %v3290
  %v3690 = vpop.f32.mrf.mxu0
  %v3691 = vadd.f32 0.0, %v3690
  %3692 = vmatmul.f32.gmra.mxu0 %v3293
  %v3693 = vpop.f32.mrf.mxu0
  %v3694 = vadd.f32 0.0, %v3693
  %3695 = vmatmul.f32.gmra.mxu0 %v3296
  %v3696 = vpop.f32.mrf.mxu0
  %v3697 = vadd.f32 0.0, %v3696
  %3698 = vmatmul.f32.gmra.mxu0 %v3299
  %v3699 = vpop.f32.mrf.mxu0
  %v3700 = vadd.f32 0.0, %v3699
  %3701 = vmatmul.f32.gmra.mxu0 %v3302
  %v3702 = vpop.f32.mrf.mxu0
  %v3703 = vadd.f32 0.0, %v3702
  %3704 = vmatmul.f32.gmra.mxu0 %v3305
  %v3705 = vpop.f32.mrf.mxu0
  %v3706 = vadd.f32 0.0, %v3705
  %3707 = vmatmul.f32.gmra.mxu0 %v3308
  %v3708 = vpop.f32.mrf.mxu0
  %v3709 = vadd.f32 0.0, %v3708
  %3710 = vmatmul.f32.gmra.mxu0 %v3311
  %v3711 = vpop.f32.mrf.mxu0
  %v3712 = vadd.f32 0.0, %v3711
  %3713 = vmatmul.f32.gmra.mxu0 %v3314
  %v3714 = vpop.f32.mrf.mxu0
  %v3715 = vadd.f32 0.0, %v3714
  %3716 = vmatmul.f32.gmra.mxu0 %v3317
  %v3717 = vpop.f32.mrf.mxu0
  %v3718 = vadd.f32 0.0, %v3717
  %3719 = vmatmul.f32.gmra.mxu0 %v3320
  %v3720 = vpop.f32.mrf.mxu0
  %v3721 = vadd.f32 0.0, %v3720
  %3722 = vmatmul.f32.gmra.mxu0 %v3323
  %v3723 = vpop.f32.mrf.mxu0
  %v3724 = vadd.f32 0.0, %v3723
  %3725 = vmatmul.f32.gmra.mxu0 %v3326
  %v3726 = vpop.f32.mrf.mxu0
  %v3727 = vadd.f32 0.0, %v3726
  %3728 = vmatmul.f32.gmra.mxu0 %v3329
  %v3729 = vpop.f32.mrf.mxu0
  %v3730 = vadd.f32 0.0, %v3729
  %3731 = vmatmul.f32.gmra.mxu0 %v3332
  %v3732 = vpop.f32.mrf.mxu0
  %v3733 = vadd.f32 0.0, %v3732
  %3734 = vmatmul.f32.gmra.mxu0 %v3335
  %v3735 = vpop.f32.mrf.mxu0
  %v3736 = vadd.f32 0.0, %v3735
  %3737 = vmatmul.f32.gmra.mxu0 %v3338
  %v3738 = vpop.f32.mrf.mxu0
  %v3739 = vadd.f32 0.0, %v3738
  %3740 = vmatmul.f32.gmra.mxu0 %v3341
  %v3741 = vpop.f32.mrf.mxu0
  %v3742 = vadd.f32 0.0, %v3741
  %3743 = vmatmul.f32.gmra.mxu0 %v3344
  %v3744 = vpop.f32.mrf.mxu0
  %v3745 = vadd.f32 0.0, %v3744
  %3746 = vmatmul.f32.gmra.mxu0 %v3347
  %v3747 = vpop.f32.mrf.mxu0
  %v3748 = vadd.f32 0.0, %v3747
  %3749 = vmatmul.f32.gmra.mxu0 %v3350
  %v3750 = vpop.f32.mrf.mxu0
  %v3751 = vadd.f32 0.0, %v3750
  %3752 = vmatmul.f32.gmra.mxu0 %v3353
  %v3753 = vpop.f32.mrf.mxu0
  %v3754 = vadd.f32 0.0, %v3753
  %3755 = vmatmul.f32.gmra.mxu0 %v3356
  %v3756 = vpop.f32.mrf.mxu0
  %v3757 = vadd.f32 0.0, %v3756
  %3758 = vmatmul.f32.gmra.mxu0 %v3359
  %v3759 = vpop.f32.mrf.mxu0
  %v3760 = vadd.f32 0.0, %v3759
  %3761 = vmatmul.f32.gmra.mxu0 %v3362
  %v3762 = vpop.f32.mrf.mxu0
  %v3763 = vadd.f32 0.0, %v3762
  %3764 = vmatmul.f32.gmra.mxu0 %v3365
  %v3765 = vpop.f32.mrf.mxu0
  %v3766 = vadd.f32 0.0, %v3765
  %3767 = vmatmul.f32.gmra.mxu0 %v3368
  %v3768 = vpop.f32.mrf.mxu0
  %v3769 = vadd.f32 0.0, %v3768
  %3770 = vmatmul.f32.gmra.mxu0 %v3371
  %v3771 = vpop.f32.mrf.mxu0
  %v3772 = vadd.f32 0.0, %v3771
  %3773 = vmatmul.f32.gmra.mxu0 %v3374
  %v3774 = vpop.f32.mrf.mxu0
  %v3775 = vadd.f32 0.0, %v3774
  %3776 = vmatmul.f32.gmra.mxu0 %v3377
  %v3777 = vpop.f32.mrf.mxu0
  %v3778 = vadd.f32 0.0, %v3777
  %3779 = vmatmul.f32.gmra.mxu0 %v3380
  %v3780 = vpop.f32.mrf.mxu0
  %v3781 = vadd.f32 0.0, %v3780
  %3782 = vmatmul.f32.gmra.mxu0 %v3383
  %v3783 = vpop.f32.mrf.mxu0
  %v3784 = vadd.f32 0.0, %v3783
  %3785 = vmatmul.f32.gmra.mxu0 %v3386
  %v3786 = vpop.f32.mrf.mxu0
  %v3787 = vadd.f32 0.0, %v3786
  %3788 = vmatmul.f32.gmra.mxu0 %v3389
  %v3789 = vpop.f32.mrf.mxu0
  %v3790 = vadd.f32 0.0, %v3789
  %3791 = vmatmul.f32.gmra.mxu0 %v3392
  %v3792 = vpop.f32.mrf.mxu0
  %v3793 = vadd.f32 0.0, %v3792
  %3794 = vmatmul.f32.gmra.mxu0 %v3395
  %v3795 = vpop.f32.mrf.mxu0
  %v3796 = vadd.f32 0.0, %v3795
  %3797 = vmatmul.f32.gmra.mxu0 %v3398
  %v3798 = vpop.f32.mrf.mxu0
  %v3799 = vadd.f32 0.0, %v3798
  %3800 = vmatmul.f32.gmra.mxu0 %v3401
  %v3801 = vpop.f32.mrf.mxu0
  %v3802 = vadd.f32 0.0, %v3801
  %3803 = vmatmul.f32.gmra.mxu0 %v3404
  %v3804 = vpop.f32.mrf.mxu0
  %v3805 = vadd.f32 0.0, %v3804
  %3806 = vmatmul.f32.gmra.mxu0 %v3407
  %v3807 = vpop.f32.mrf.mxu0
  %v3808 = vadd.f32 0.0, %v3807
  %3809 = vmatmul.f32.gmra.mxu0 %v3410
  %v3810 = vpop.f32.mrf.mxu0
  %v3811 = vadd.f32 0.0, %v3810
  %3812 = vmatmul.f32.gmra.mxu0 %v3413
  %v3813 = vpop.f32.mrf.mxu0
  %v3814 = vadd.f32 0.0, %v3813
  %3815 = vmatmul.f32.gmra.mxu0 %v3416
  %v3816 = vpop.f32.mrf.mxu0
  %v3817 = vadd.f32 0.0, %v3816
  %3818 = vmatmul.f32.gmra.mxu0 %v3419
  %v3819 = vpop.f32.mrf.mxu0
  %v3820 = vadd.f32 0.0, %v3819
  %3821 = vmatmul.f32.gmra.mxu0 %v3422
  %v3822 = vpop.f32.mrf.mxu0
  %v3823 = vadd.f32 0.0, %v3822
  %3824 = vmatmul.f32.gmra.mxu0 %v3425
  %v3825 = vpop.f32.mrf.mxu0
  %v3826 = vadd.f32 0.0, %v3825
  %3827 = vmatmul.f32.gmra.mxu0 %v3428
  %v3828 = vpop.f32.mrf.mxu0
  %v3829 = vadd.f32 0.0, %v3828
  %3830 = vmatmul.f32.gmra.mxu0 %v3431
  %v3831 = vpop.f32.mrf.mxu0
  %v3832 = vadd.f32 0.0, %v3831
  %3833 = vmatmul.f32.gmra.mxu0 %v3434
  %v3834 = vpop.f32.mrf.mxu0
  %v3835 = vadd.f32 0.0, %v3834
  %3836 = vmatmul.f32.gmra.mxu0 %v3437
  %v3837 = vpop.f32.mrf.mxu0
  %v3838 = vadd.f32 0.0, %v3837
  %3839 = vmatmul.f32.gmra.mxu0 %v3440
  %v3840 = vpop.f32.mrf.mxu0
  %v3841 = vadd.f32 0.0, %v3840
  %3842 = vmatmul.f32.gmra.mxu0 %v3443
  %v3843 = vpop.f32.mrf.mxu0
  %v3844 = vadd.f32 0.0, %v3843
  %3845 = vmatmul.f32.gmra.mxu0 %v3446
  %v3846 = vpop.f32.mrf.mxu0
  %v3847 = vadd.f32 0.0, %v3846
  %3848 = vmatmul.f32.gmra.mxu0 %v3449
  %v3849 = vpop.f32.mrf.mxu0
  %v3850 = vadd.f32 0.0, %v3849
  %3851 = vmatmul.f32.gmra.mxu0 %v3452
  %v3852 = vpop.f32.mrf.mxu0
  %v3853 = vadd.f32 0.0, %v3852
  %3854 = vmatmul.f32.gmra.mxu0 %v3455
  %v3855 = vpop.f32.mrf.mxu0
  %v3856 = vadd.f32 0.0, %v3855
  %3857 = vmatmul.f32.gmra.mxu0 %v3458
  %v3858 = vpop.f32.mrf.mxu0
  %v3859 = vadd.f32 0.0, %v3858
  %3860 = vmatmul.f32.gmra.mxu0 %v3461
  %v3861 = vpop.f32.mrf.mxu0
  %v3862 = vadd.f32 0.0, %v3861
  %3863 = vmatmul.f32.gmra.mxu0 %v3464
  %v3864 = vpop.f32.mrf.mxu0
  %v3865 = vadd.f32 0.0, %v3864
  %3866 = vmatmul.f32.gmra.mxu0 %v3467
  %v3867 = vpop.f32.mrf.mxu0
  %v3868 = vadd.f32 0.0, %v3867
  %3869 = vmatmul.f32.gmra.mxu0 %v3470
  %v3870 = vpop.f32.mrf.mxu0
  %v3871 = vadd.f32 0.0, %v3870
  %3872 = vmatmul.f32.gmra.mxu0 %v3473
  %v3873 = vpop.f32.mrf.mxu0
  %v3874 = vadd.f32 0.0, %v3873
  %3875 = vmatmul.f32.gmra.mxu0 %v3476
  %v3876 = vpop.f32.mrf.mxu0
  %v3877 = vadd.f32 0.0, %v3876
  %3878 = vmatmul.f32.gmra.mxu0 %v3479
  %v3879 = vpop.f32.mrf.mxu0
  %v3880 = vadd.f32 0.0, %v3879
  %3881 = vmatmul.f32.gmra.mxu0 %v3482
  %v3882 = vpop.f32.mrf.mxu0
  %v3883 = vadd.f32 0.0, %v3882
  %3884 = vmatmul.f32.gmra.mxu0 %v3485
  %v3885 = vpop.f32.mrf.mxu0
  %v3886 = vadd.f32 0.0, %v3885
  %3887 = vmatmul.f32.gmra.mxu0 %v3488
  %v3888 = vpop.f32.mrf.mxu0
  %v3889 = vadd.f32 0.0, %v3888
  %3890 = vmatmul.f32.gmra.mxu0 %v3491
  %v3891 = vpop.f32.mrf.mxu0
  %v3892 = vadd.f32 0.0, %v3891
  %3893 = vmatmul.f32.gmra.mxu0 %v3494
  %v3894 = vpop.f32.mrf.mxu0
  %v3895 = vadd.f32 0.0, %v3894
  %3896 = vmatmul.f32.gmra.mxu0 %v3497
  %v3897 = vpop.f32.mrf.mxu0
  %v3898 = vadd.f32 0.0, %v3897
  %3899 = vmatmul.f32.gmra.mxu0 %v3500
  %v3900 = vpop.f32.mrf.mxu0
  %v3901 = vadd.f32 0.0, %v3900
  %3902 = vmatmul.f32.gmra.mxu0 %v3503
  %v3903 = vpop.f32.mrf.mxu0
  %v3904 = vadd.f32 0.0, %v3903
  %3905 = vmatmul.f32.gmra.mxu0 %v3506
  %v3906 = vpop.f32.mrf.mxu0
  %v3907 = vadd.f32 0.0, %v3906
  %3908 = vmatmul.f32.gmra.mxu0 %v3509
  %v3909 = vpop.f32.mrf.mxu0
  %v3910 = vadd.f32 0.0, %v3909
  %3911 = vmatmul.f32.gmra.mxu0 %v3512
  %v3912 = vpop.f32.mrf.mxu0
  %v3913 = vadd.f32 0.0, %v3912
  %3914 = vmatmul.f32.gmra.mxu0 %v3515
  %v3915 = vpop.f32.mrf.mxu0
  %v3916 = vadd.f32 0.0, %v3915
  %3917 = vmatmul.f32.gmra.mxu0 %v3518
  %v3918 = vpop.f32.mrf.mxu0
  %v3919 = vadd.f32 0.0, %v3918
  %3920 = vmatmul.f32.gmra.mxu0 %v3521
  %v3921 = vpop.f32.mrf.mxu0
  %v3922 = vadd.f32 0.0, %v3921
  %3923 = vmatmul.f32.gmra.mxu0 %v3524
  %v3924 = vpop.f32.mrf.mxu0
  %v3925 = vadd.f32 0.0, %v3924
  %3926 = vmatmul.f32.gmra.mxu0 %v3527
  %v3927 = vpop.f32.mrf.mxu0
  %v3928 = vadd.f32 0.0, %v3927
  %3929 = vmatmul.f32.gmra.mxu0 %v3530
  %v3930 = vpop.f32.mrf.mxu0
  %v3931 = vadd.f32 0.0, %v3930
  %3932 = vmatmul.f32.gmra.mxu0 %v3533
  %v3933 = vpop.f32.mrf.mxu0
  %v3934 = vadd.f32 0.0, %v3933
  %3935 = vmatmul.f32.gmra.mxu0 %v3536
  %v3936 = vpop.f32.mrf.mxu0
  %v3937 = vadd.f32 0.0, %v3936
  %3938 = vmatmul.f32.gmra.mxu0 %v3539
  %v3939 = vpop.f32.mrf.mxu0
  %v3940 = vadd.f32 0.0, %v3939
  %3941 = vmatmul.f32.gmra.mxu0 %v3542
  %v3942 = vpop.f32.mrf.mxu0
  %v3943 = vadd.f32 0.0, %v3942
  %3944 = vmatmul.f32.gmra.mxu0 %v3545
  %v3945 = vpop.f32.mrf.mxu0
  %v3946 = vadd.f32 0.0, %v3945
  %3947 = vmatmul.f32.gmra.mxu0 %v3548
  %v3948 = vpop.f32.mrf.mxu0
  %v3949 = vadd.f32 0.0, %v3948
  %3950 = vmatmul.f32.gmra.mxu0 %v3551
  %v3951 = vpop.f32.mrf.mxu0
  %v3952 = vadd.f32 0.0, %v3951
  %3953 = vmatmul.f32.gmra.mxu0 %v3554
  %v3954 = vpop.f32.mrf.mxu0
  %v3955 = vadd.f32 0.0, %v3954
  %3956 = vdwg.mxu0
  %v3957 = vadd.f32 %v2659, %v3574
  %v3958 = vadd.f32 %v2662, %v3577
  %v3959 = vadd.f32 %v2665, %v3580
  %v3960 = vadd.f32 %v2668, %v3583
  %v3961 = vadd.f32 %v2671, %v3586
  %v3962 = vadd.f32 %v2674, %v3589
  %v3963 = vadd.f32 %v2677, %v3592
  %v3964 = vadd.f32 %v2680, %v3595
  %v3965 = vadd.f32 %v2683, %v3598
  %v3966 = vadd.f32 %v2686, %v3601
  %v3967 = vadd.f32 %v2689, %v3604
  %v3968 = vadd.f32 %v2692, %v3607
  %v3969 = vadd.f32 %v2695, %v3610
  %v3970 = vadd.f32 %v2698, %v3613
  %v3971 = vadd.f32 %v2701, %v3616
  %v3972 = vadd.f32 %v2704, %v3619
  %v3973 = vadd.f32 %v2707, %v3622
  %v3974 = vadd.f32 %v2710, %v3625
  %v3975 = vadd.f32 %v2713, %v3628
  %v3976 = vadd.f32 %v2716, %v3631
  %v3977 = vadd.f32 %v2719, %v3634
  %v3978 = vadd.f32 %v2722, %v3637
  %v3979 = vadd.f32 %v2725, %v3640
  %v3980 = vadd.f32 %v2728, %v3643
  %v3981 = vadd.f32 %v2731, %v3646
  %v3982 = vadd.f32 %v2734, %v3649
  %v3983 = vadd.f32 %v2737, %v3652
  %v3984 = vadd.f32 %v2740, %v3655
  %v3985 = vadd.f32 %v2743, %v3658
  %v3986 = vadd.f32 %v2746, %v3661
  %v3987 = vadd.f32 %v2749, %v3664
  %v3988 = vadd.f32 %v2752, %v3667
  %v3989 = vadd.f32 %v2755, %v3670
  %v3990 = vadd.f32 %v2758, %v3673
  %v3991 = vadd.f32 %v2761, %v3676
  %v3992 = vadd.f32 %v2764, %v3679
  %v3993 = vadd.f32 %v2767, %v3682
  %v3994 = vadd.f32 %v2770, %v3685
  %v3995 = vadd.f32 %v2773, %v3688
  %v3996 = vadd.f32 %v2776, %v3691
  %v3997 = vadd.f32 %v2779, %v3694
  %v3998 = vadd.f32 %v2782, %v3697
  %v3999 = vadd.f32 %v2785, %v3700
  %v4000 = vadd.f32 %v2788, %v3703
  %v4001 = vadd.f32 %v2791, %v3706
  %v4002 = vadd.f32 %v2794, %v3709
  %v4003 = vadd.f32 %v2797, %v3712
  %v4004 = vadd.f32 %v2800, %v3715
  %v4005 = vadd.f32 %v2803, %v3718
  %v4006 = vadd.f32 %v2806, %v3721
  %v4007 = vadd.f32 %v2809, %v3724
  %v4008 = vadd.f32 %v2812, %v3727
  %v4009 = vadd.f32 %v2815, %v3730
  %v4010 = vadd.f32 %v2818, %v3733
  %v4011 = vadd.f32 %v2821, %v3736
  %v4012 = vadd.f32 %v2824, %v3739
  %v4013 = vadd.f32 %v2827, %v3742
  %v4014 = vadd.f32 %v2830, %v3745
  %v4015 = vadd.f32 %v2833, %v3748
  %v4016 = vadd.f32 %v2836, %v3751
  %v4017 = vadd.f32 %v2839, %v3754
  %v4018 = vadd.f32 %v2842, %v3757
  %v4019 = vadd.f32 %v2845, %v3760
  %v4020 = vadd.f32 %v2848, %v3763
  %v4021 = vadd.f32 %v2851, %v3766
  %v4022 = vadd.f32 %v2854, %v3769
  %v4023 = vadd.f32 %v2857, %v3772
  %v4024 = vadd.f32 %v2860, %v3775
  %v4025 = vadd.f32 %v2863, %v3778
  %v4026 = vadd.f32 %v2866, %v3781
  %v4027 = vadd.f32 %v2869, %v3784
  %v4028 = vadd.f32 %v2872, %v3787
  %v4029 = vadd.f32 %v2875, %v3790
  %v4030 = vadd.f32 %v2878, %v3793
  %v4031 = vadd.f32 %v2881, %v3796
  %v4032 = vadd.f32 %v2884, %v3799
  %v4033 = vadd.f32 %v2887, %v3802
  %v4034 = vadd.f32 %v2890, %v3805
  %v4035 = vadd.f32 %v2893, %v3808
  %v4036 = vadd.f32 %v2896, %v3811
  %v4037 = vadd.f32 %v2899, %v3814
  %v4038 = vadd.f32 %v2902, %v3817
  %v4039 = vadd.f32 %v2905, %v3820
  %v4040 = vadd.f32 %v2908, %v3823
  %v4041 = vadd.f32 %v2911, %v3826
  %v4042 = vadd.f32 %v2914, %v3829
  %v4043 = vadd.f32 %v2917, %v3832
  %v4044 = vadd.f32 %v2920, %v3835
  %v4045 = vadd.f32 %v2923, %v3838
  %v4046 = vadd.f32 %v2926, %v3841
  %v4047 = vadd.f32 %v2929, %v3844
  %v4048 = vadd.f32 %v2932, %v3847
  %v4049 = vadd.f32 %v2935, %v3850
  %v4050 = vadd.f32 %v2938, %v3853
  %v4051 = vadd.f32 %v2941, %v3856
  %v4052 = vadd.f32 %v2944, %v3859
  %v4053 = vadd.f32 %v2947, %v3862
  %v4054 = vadd.f32 %v2950, %v3865
  %v4055 = vadd.f32 %v2953, %v3868
  %v4056 = vadd.f32 %v2956, %v3871
  %v4057 = vadd.f32 %v2959, %v3874
  %v4058 = vadd.f32 %v2962, %v3877
  %v4059 = vadd.f32 %v2965, %v3880
  %v4060 = vadd.f32 %v2968, %v3883
  %v4061 = vadd.f32 %v2971, %v3886
  %v4062 = vadd.f32 %v2974, %v3889
  %v4063 = vadd.f32 %v2977, %v3892
  %v4064 = vadd.f32 %v2980, %v3895
  %v4065 = vadd.f32 %v2983, %v3898
  %v4066 = vadd.f32 %v2986, %v3901
  %v4067 = vadd.f32 %v2989, %v3904
  %v4068 = vadd.f32 %v2992, %v3907
  %v4069 = vadd.f32 %v2995, %v3910
  %v4070 = vadd.f32 %v2998, %v3913
  %v4071 = vadd.f32 %v3001, %v3916
  %v4072 = vadd.f32 %v3004, %v3919
  %v4073 = vadd.f32 %v3007, %v3922
  %v4074 = vadd.f32 %v3010, %v3925
  %v4075 = vadd.f32 %v3013, %v3928
  %v4076 = vadd.f32 %v3016, %v3931
  %v4077 = vadd.f32 %v3019, %v3934
  %v4078 = vadd.f32 %v3022, %v3937
  %v4079 = vadd.f32 %v3025, %v3940
  %v4080 = vadd.f32 %v3028, %v3943
  %v4081 = vadd.f32 %v3031, %v3946
  %v4082 = vadd.f32 %v3034, %v3949
  %v4083 = vadd.f32 %v3037, %v3952
  %v4084 = vadd.f32 %v3040, %v3955
  %v4085 = vld [vmem:[#allocation2 + $0x3] sm:$0xff]
  %v4086 = vld [vmem:[#allocation2 + $0xb] sm:$0xff]
  %v4087 = vld [vmem:[#allocation2 + $0x13] sm:$0xff]
  %v4088 = vld [vmem:[#allocation2 + $0x1b] sm:$0xff]
  %v4089 = vld [vmem:[#allocation2 + $0x23] sm:$0xff]
  %v4090 = vld [vmem:[#allocation2 + $0x2b] sm:$0xff]
  %v4091 = vld [vmem:[#allocation2 + $0x33] sm:$0xff]
  %v4092 = vld [vmem:[#allocation2 + $0x3b] sm:$0xff]
  %v4093 = vld [vmem:[#allocation2 + $0x43] sm:$0xff]
  %v4094 = vld [vmem:[#allocation2 + $0x4b] sm:$0xff]
  %v4095 = vld [vmem:[#allocation2 + $0x53] sm:$0xff]
  %v4096 = vld [vmem:[#allocation2 + $0x5b] sm:$0xff]
  %v4097 = vld [vmem:[#allocation2 + $0x63] sm:$0xff]
  %v4098 = vld [vmem:[#allocation2 + $0x6b] sm:$0xff]
  %v4099 = vld [vmem:[#allocation2 + $0x73] sm:$0xff]
  %v4100 = vld [vmem:[#allocation2 + $0x7b] sm:$0xff]
  %v4101 = vld [vmem:[#allocation2 + $0x83] sm:$0xff]
  %v4102 = vld [vmem:[#allocation2 + $0x8b] sm:$0xff]
  %v4103 = vld [vmem:[#allocation2 + $0x93] sm:$0xff]
  %v4104 = vld [vmem:[#allocation2 + $0x9b] sm:$0xff]
  %v4105 = vld [vmem:[#allocation2 + $0xa3] sm:$0xff]
  %v4106 = vld [vmem:[#allocation2 + $0xab] sm:$0xff]
  %v4107 = vld [vmem:[#allocation2 + $0xb3] sm:$0xff]
  %v4108 = vld [vmem:[#allocation2 + $0xbb] sm:$0xff]
  %v4109 = vld [vmem:[#allocation2 + $0xc3] sm:$0xff]
  %v4110 = vld [vmem:[#allocation2 + $0xcb] sm:$0xff]
  %v4111 = vld [vmem:[#allocation2 + $0xd3] sm:$0xff]
  %v4112 = vld [vmem:[#allocation2 + $0xdb] sm:$0xff]
  %v4113 = vld [vmem:[#allocation2 + $0xe3] sm:$0xff]
  %v4114 = vld [vmem:[#allocation2 + $0xeb] sm:$0xff]
  %v4115 = vld [vmem:[#allocation2 + $0xf3] sm:$0xff]
  %v4116 = vld [vmem:[#allocation2 + $0xfb] sm:$0xff]
  %v4117 = vld [vmem:[#allocation2 + $0x103] sm:$0xff]
  %v4118 = vld [vmem:[#allocation2 + $0x10b] sm:$0xff]
  %v4119 = vld [vmem:[#allocation2 + $0x113] sm:$0xff]
  %v4120 = vld [vmem:[#allocation2 + $0x11b] sm:$0xff]
  %v4121 = vld [vmem:[#allocation2 + $0x123] sm:$0xff]
  %v4122 = vld [vmem:[#allocation2 + $0x12b] sm:$0xff]
  %v4123 = vld [vmem:[#allocation2 + $0x133] sm:$0xff]
  %v4124 = vld [vmem:[#allocation2 + $0x13b] sm:$0xff]
  %v4125 = vld [vmem:[#allocation2 + $0x143] sm:$0xff]
  %v4126 = vld [vmem:[#allocation2 + $0x14b] sm:$0xff]
  %v4127 = vld [vmem:[#allocation2 + $0x153] sm:$0xff]
  %v4128 = vld [vmem:[#allocation2 + $0x15b] sm:$0xff]
  %v4129 = vld [vmem:[#allocation2 + $0x163] sm:$0xff]
  %v4130 = vld [vmem:[#allocation2 + $0x16b] sm:$0xff]
  %v4131 = vld [vmem:[#allocation2 + $0x173] sm:$0xff]
  %v4132 = vld [vmem:[#allocation2 + $0x17b] sm:$0xff]
  %v4133 = vld [vmem:[#allocation2 + $0x183] sm:$0xff]
  %v4134 = vld [vmem:[#allocation2 + $0x18b] sm:$0xff]
  %v4135 = vld [vmem:[#allocation2 + $0x193] sm:$0xff]
  %v4136 = vld [vmem:[#allocation2 + $0x19b] sm:$0xff]
  %v4137 = vld [vmem:[#allocation2 + $0x1a3] sm:$0xff]
  %v4138 = vld [vmem:[#allocation2 + $0x1ab] sm:$0xff]
  %v4139 = vld [vmem:[#allocation2 + $0x1b3] sm:$0xff]
  %v4140 = vld [vmem:[#allocation2 + $0x1bb] sm:$0xff]
  %v4141 = vld [vmem:[#allocation2 + $0x1c3] sm:$0xff]
  %v4142 = vld [vmem:[#allocation2 + $0x1cb] sm:$0xff]
  %v4143 = vld [vmem:[#allocation2 + $0x1d3] sm:$0xff]
  %v4144 = vld [vmem:[#allocation2 + $0x1db] sm:$0xff]
  %v4145 = vld [vmem:[#allocation2 + $0x1e3] sm:$0xff]
  %v4146 = vld [vmem:[#allocation2 + $0x1eb] sm:$0xff]
  %v4147 = vld [vmem:[#allocation2 + $0x1f3] sm:$0xff]
  %v4148 = vld [vmem:[#allocation2 + $0x1fb] sm:$0xff]
  %v4149 = vld [vmem:[#allocation2 + $0x203] sm:$0xff]
  %v4150 = vld [vmem:[#allocation2 + $0x20b] sm:$0xff]
  %v4151 = vld [vmem:[#allocation2 + $0x213] sm:$0xff]
  %v4152 = vld [vmem:[#allocation2 + $0x21b] sm:$0xff]
  %v4153 = vld [vmem:[#allocation2 + $0x223] sm:$0xff]
  %v4154 = vld [vmem:[#allocation2 + $0x22b] sm:$0xff]
  %v4155 = vld [vmem:[#allocation2 + $0x233] sm:$0xff]
  %v4156 = vld [vmem:[#allocation2 + $0x23b] sm:$0xff]
  %v4157 = vld [vmem:[#allocation2 + $0x243] sm:$0xff]
  %v4158 = vld [vmem:[#allocation2 + $0x24b] sm:$0xff]
  %v4159 = vld [vmem:[#allocation2 + $0x253] sm:$0xff]
  %v4160 = vld [vmem:[#allocation2 + $0x25b] sm:$0xff]
  %v4161 = vld [vmem:[#allocation2 + $0x263] sm:$0xff]
  %v4162 = vld [vmem:[#allocation2 + $0x26b] sm:$0xff]
  %v4163 = vld [vmem:[#allocation2 + $0x273] sm:$0xff]
  %v4164 = vld [vmem:[#allocation2 + $0x27b] sm:$0xff]
  %v4165 = vld [vmem:[#allocation2 + $0x283] sm:$0xff]
  %v4166 = vld [vmem:[#allocation2 + $0x28b] sm:$0xff]
  %v4167 = vld [vmem:[#allocation2 + $0x293] sm:$0xff]
  %v4168 = vld [vmem:[#allocation2 + $0x29b] sm:$0xff]
  %v4169 = vld [vmem:[#allocation2 + $0x2a3] sm:$0xff]
  %v4170 = vld [vmem:[#allocation2 + $0x2ab] sm:$0xff]
  %v4171 = vld [vmem:[#allocation2 + $0x2b3] sm:$0xff]
  %v4172 = vld [vmem:[#allocation2 + $0x2bb] sm:$0xff]
  %v4173 = vld [vmem:[#allocation2 + $0x2c3] sm:$0xff]
  %v4174 = vld [vmem:[#allocation2 + $0x2cb] sm:$0xff]
  %v4175 = vld [vmem:[#allocation2 + $0x2d3] sm:$0xff]
  %v4176 = vld [vmem:[#allocation2 + $0x2db] sm:$0xff]
  %v4177 = vld [vmem:[#allocation2 + $0x2e3] sm:$0xff]
  %v4178 = vld [vmem:[#allocation2 + $0x2eb] sm:$0xff]
  %v4179 = vld [vmem:[#allocation2 + $0x2f3] sm:$0xff]
  %v4180 = vld [vmem:[#allocation2 + $0x2fb] sm:$0xff]
  %v4181 = vld [vmem:[#allocation2 + $0x303] sm:$0xff]
  %v4182 = vld [vmem:[#allocation2 + $0x30b] sm:$0xff]
  %v4183 = vld [vmem:[#allocation2 + $0x313] sm:$0xff]
  %v4184 = vld [vmem:[#allocation2 + $0x31b] sm:$0xff]
  %v4185 = vld [vmem:[#allocation2 + $0x323] sm:$0xff]
  %v4186 = vld [vmem:[#allocation2 + $0x32b] sm:$0xff]
  %v4187 = vld [vmem:[#allocation2 + $0x333] sm:$0xff]
  %v4188 = vld [vmem:[#allocation2 + $0x33b] sm:$0xff]
  %v4189 = vld [vmem:[#allocation2 + $0x343] sm:$0xff]
  %v4190 = vld [vmem:[#allocation2 + $0x34b] sm:$0xff]
  %v4191 = vld [vmem:[#allocation2 + $0x353] sm:$0xff]
  %v4192 = vld [vmem:[#allocation2 + $0x35b] sm:$0xff]
  %v4193 = vld [vmem:[#allocation2 + $0x363] sm:$0xff]
  %v4194 = vld [vmem:[#allocation2 + $0x36b] sm:$0xff]
  %v4195 = vld [vmem:[#allocation2 + $0x373] sm:$0xff]
  %v4196 = vld [vmem:[#allocation2 + $0x37b] sm:$0xff]
  %v4197 = vld [vmem:[#allocation2 + $0x383] sm:$0xff]
  %v4198 = vld [vmem:[#allocation2 + $0x38b] sm:$0xff]
  %v4199 = vld [vmem:[#allocation2 + $0x393] sm:$0xff]
  %v4200 = vld [vmem:[#allocation2 + $0x39b] sm:$0xff]
  %v4201 = vld [vmem:[#allocation2 + $0x3a3] sm:$0xff]
  %v4202 = vld [vmem:[#allocation2 + $0x3ab] sm:$0xff]
  %v4203 = vld [vmem:[#allocation2 + $0x3b3] sm:$0xff]
  %v4204 = vld [vmem:[#allocation2 + $0x3bb] sm:$0xff]
  %v4205 = vld [vmem:[#allocation2 + $0x3c3] sm:$0xff]
  %v4206 = vld [vmem:[#allocation2 + $0x3cb] sm:$0xff]
  %v4207 = vld [vmem:[#allocation2 + $0x3d3] sm:$0xff]
  %v4208 = vld [vmem:[#allocation2 + $0x3db] sm:$0xff]
  %v4209 = vld [vmem:[#allocation2 + $0x3e3] sm:$0xff]
  %v4210 = vld [vmem:[#allocation2 + $0x3eb] sm:$0xff]
  %v4211 = vld [vmem:[#allocation2 + $0x3f3] sm:$0xff]
  %v4212 = vld [vmem:[#allocation2 + $0x3fb] sm:$0xff]
  %s4213 = scalar_lea.vmem %s3, 24
  %v4214 = vld [vmem:[%s4213] sm:$0xff]
  %v4216 = vsel %vm1083, %v4085, 0
  %v4219 = vsel %vm1083, %v4086, 0
  %v4222 = vsel %vm1083, %v4087, 0
  %v4225 = vsel %vm1083, %v4088, 0
  %v4228 = vsel %vm1083, %v4089, 0
  %v4231 = vsel %vm1083, %v4090, 0
  %v4234 = vsel %vm1083, %v4091, 0
  %v4237 = vsel %vm1083, %v4092, 0
  %v4240 = vsel %vm1083, %v4093, 0
  %v4243 = vsel %vm1083, %v4094, 0
  %v4246 = vsel %vm1083, %v4095, 0
  %v4249 = vsel %vm1083, %v4096, 0
  %v4252 = vsel %vm1083, %v4097, 0
  %v4255 = vsel %vm1083, %v4098, 0
  %v4258 = vsel %vm1083, %v4099, 0
  %v4261 = vsel %vm1083, %v4100, 0
  %v4264 = vsel %vm1083, %v4101, 0
  %v4267 = vsel %vm1083, %v4102, 0
  %v4270 = vsel %vm1083, %v4103, 0
  %v4273 = vsel %vm1083, %v4104, 0
  %v4276 = vsel %vm1083, %v4105, 0
  %v4279 = vsel %vm1083, %v4106, 0
  %v4282 = vsel %vm1083, %v4107, 0
  %v4285 = vsel %vm1083, %v4108, 0
  %v4288 = vsel %vm1083, %v4109, 0
  %v4291 = vsel %vm1083, %v4110, 0
  %v4294 = vsel %vm1083, %v4111, 0
  %v4297 = vsel %vm1083, %v4112, 0
  %v4300 = vsel %vm1083, %v4113, 0
  %v4303 = vsel %vm1083, %v4114, 0
  %v4306 = vsel %vm1083, %v4115, 0
  %v4309 = vsel %vm1083, %v4116, 0
  %v4312 = vsel %vm1083, %v4117, 0
  %v4315 = vsel %vm1083, %v4118, 0
  %v4318 = vsel %vm1083, %v4119, 0
  %v4321 = vsel %vm1083, %v4120, 0
  %v4324 = vsel %vm1083, %v4121, 0
  %v4327 = vsel %vm1083, %v4122, 0
  %v4330 = vsel %vm1083, %v4123, 0
  %v4333 = vsel %vm1083, %v4124, 0
  %v4336 = vsel %vm1083, %v4125, 0
  %v4339 = vsel %vm1083, %v4126, 0
  %v4342 = vsel %vm1083, %v4127, 0
  %v4345 = vsel %vm1083, %v4128, 0
  %v4348 = vsel %vm1083, %v4129, 0
  %v4351 = vsel %vm1083, %v4130, 0
  %v4354 = vsel %vm1083, %v4131, 0
  %v4357 = vsel %vm1083, %v4132, 0
  %v4360 = vsel %vm1083, %v4133, 0
  %v4363 = vsel %vm1083, %v4134, 0
  %v4366 = vsel %vm1083, %v4135, 0
  %v4369 = vsel %vm1083, %v4136, 0
  %v4372 = vsel %vm1083, %v4137, 0
  %v4375 = vsel %vm1083, %v4138, 0
  %v4378 = vsel %vm1083, %v4139, 0
  %v4381 = vsel %vm1083, %v4140, 0
  %v4384 = vsel %vm1083, %v4141, 0
  %v4387 = vsel %vm1083, %v4142, 0
  %v4390 = vsel %vm1083, %v4143, 0
  %v4393 = vsel %vm1083, %v4144, 0
  %v4396 = vsel %vm1083, %v4145, 0
  %v4399 = vsel %vm1083, %v4146, 0
  %v4402 = vsel %vm1083, %v4147, 0
  %v4405 = vsel %vm1083, %v4148, 0
  %v4408 = vsel %vm1083, %v4149, 0
  %v4411 = vsel %vm1083, %v4150, 0
  %v4414 = vsel %vm1083, %v4151, 0
  %v4417 = vsel %vm1083, %v4152, 0
  %v4420 = vsel %vm1083, %v4153, 0
  %v4423 = vsel %vm1083, %v4154, 0
  %v4426 = vsel %vm1083, %v4155, 0
  %v4429 = vsel %vm1083, %v4156, 0
  %v4432 = vsel %vm1083, %v4157, 0
  %v4435 = vsel %vm1083, %v4158, 0
  %v4438 = vsel %vm1083, %v4159, 0
  %v4441 = vsel %vm1083, %v4160, 0
  %v4444 = vsel %vm1083, %v4161, 0
  %v4447 = vsel %vm1083, %v4162, 0
  %v4450 = vsel %vm1083, %v4163, 0
  %v4453 = vsel %vm1083, %v4164, 0
  %v4456 = vsel %vm1083, %v4165, 0
  %v4459 = vsel %vm1083, %v4166, 0
  %v4462 = vsel %vm1083, %v4167, 0
  %v4465 = vsel %vm1083, %v4168, 0
  %v4468 = vsel %vm1083, %v4169, 0
  %v4471 = vsel %vm1083, %v4170, 0
  %v4474 = vsel %vm1083, %v4171, 0
  %v4477 = vsel %vm1083, %v4172, 0
  %v4480 = vsel %vm1083, %v4173, 0
  %v4483 = vsel %vm1083, %v4174, 0
  %v4486 = vsel %vm1083, %v4175, 0
  %v4489 = vsel %vm1083, %v4176, 0
  %v4492 = vsel %vm1083, %v4177, 0
  %v4495 = vsel %vm1083, %v4178, 0
  %v4498 = vsel %vm1083, %v4179, 0
  %v4501 = vsel %vm1083, %v4180, 0
  %v4504 = vsel %vm1083, %v4181, 0
  %v4507 = vsel %vm1083, %v4182, 0
  %v4510 = vsel %vm1083, %v4183, 0
  %v4513 = vsel %vm1083, %v4184, 0
  %v4516 = vsel %vm1083, %v4185, 0
  %v4519 = vsel %vm1083, %v4186, 0
  %v4522 = vsel %vm1083, %v4187, 0
  %v4525 = vsel %vm1083, %v4188, 0
  %v4528 = vsel %vm1083, %v4189, 0
  %v4531 = vsel %vm1083, %v4190, 0
  %v4534 = vsel %vm1083, %v4191, 0
  %v4537 = vsel %vm1083, %v4192, 0
  %v4540 = vsel %vm1083, %v4193, 0
  %v4543 = vsel %vm1083, %v4194, 0
  %v4546 = vsel %vm1083, %v4195, 0
  %v4549 = vsel %vm1083, %v4196, 0
  %v4552 = vsel %vm1083, %v4197, 0
  %v4555 = vsel %vm1083, %v4198, 0
  %v4558 = vsel %vm1083, %v4199, 0
  %v4561 = vsel %vm1083, %v4200, 0
  %v4564 = vsel %vm1083, %v4201, 0
  %v4567 = vsel %vm1083, %v4202, 0
  %v4570 = vsel %vm1083, %v4203, 0
  %v4573 = vsel %vm1083, %v4204, 0
  %v4576 = vsel %vm1083, %v4205, 0
  %v4579 = vsel %vm1083, %v4206, 0
  %v4582 = vsel %vm1083, %v4207, 0
  %v4585 = vsel %vm1083, %v4208, 0
  %v4588 = vsel %vm1083, %v4209, 0
  %v4591 = vsel %vm1083, %v4210, 0
  %v4594 = vsel %vm1083, %v4211, 0
  %v4597 = vsel %vm1083, %v4212, 0
  %4599 = vmatpush.msra.mxu0 0.0
  %4600 = vmatpush.msra.mxu0 0.0
  %4601 = vmatpush.msra.mxu0 0.0
  %4602 = vmatpush.msra.mxu0 0.0
  %4603 = vmatpush.msra.mxu0 0.0
  %4604 = vmatpush.msra.mxu0 0.0
  %4605 = vmatpush.msra.mxu0 0.0
  %4606 = vmatpush.msra.mxu0 0.0
  %4607 = vmatpush.msra.mxu0 0.0
  %4608 = vmatpush.msra.mxu0 0.0
  %4609 = vmatpush.msra.mxu0 0.0
  %4610 = vmatpush.msra.mxu0 0.0
  %4611 = vmatpush.msra.mxu0 0.0
  %4612 = vmatpush.msra.mxu0 0.0
  %4613 = vmatpush.msra.mxu0 0.0
  %4614 = vmatpush.msra.mxu0 %v4214
  %4615 = vmatmul.f32.gmra.mxu0 %v4216
  %v4616 = vpop.f32.mrf.mxu0
  %v4617 = vadd.f32 0.0, %v4616
  %4618 = vmatmul.f32.gmra.mxu0 %v4219
  %v4619 = vpop.f32.mrf.mxu0
  %v4620 = vadd.f32 0.0, %v4619
  %4621 = vmatmul.f32.gmra.mxu0 %v4222
  %v4622 = vpop.f32.mrf.mxu0
  %v4623 = vadd.f32 0.0, %v4622
  %4624 = vmatmul.f32.gmra.mxu0 %v4225
  %v4625 = vpop.f32.mrf.mxu0
  %v4626 = vadd.f32 0.0, %v4625
  %4627 = vmatmul.f32.gmra.mxu0 %v4228
  %v4628 = vpop.f32.mrf.mxu0
  %v4629 = vadd.f32 0.0, %v4628
  %4630 = vmatmul.f32.gmra.mxu0 %v4231
  %v4631 = vpop.f32.mrf.mxu0
  %v4632 = vadd.f32 0.0, %v4631
  %4633 = vmatmul.f32.gmra.mxu0 %v4234
  %v4634 = vpop.f32.mrf.mxu0
  %v4635 = vadd.f32 0.0, %v4634
  %4636 = vmatmul.f32.gmra.mxu0 %v4237
  %v4637 = vpop.f32.mrf.mxu0
  %v4638 = vadd.f32 0.0, %v4637
  %4639 = vmatmul.f32.gmra.mxu0 %v4240
  %v4640 = vpop.f32.mrf.mxu0
  %v4641 = vadd.f32 0.0, %v4640
  %4642 = vmatmul.f32.gmra.mxu0 %v4243
  %v4643 = vpop.f32.mrf.mxu0
  %v4644 = vadd.f32 0.0, %v4643
  %4645 = vmatmul.f32.gmra.mxu0 %v4246
  %v4646 = vpop.f32.mrf.mxu0
  %v4647 = vadd.f32 0.0, %v4646
  %4648 = vmatmul.f32.gmra.mxu0 %v4249
  %v4649 = vpop.f32.mrf.mxu0
  %v4650 = vadd.f32 0.0, %v4649
  %4651 = vmatmul.f32.gmra.mxu0 %v4252
  %v4652 = vpop.f32.mrf.mxu0
  %v4653 = vadd.f32 0.0, %v4652
  %4654 = vmatmul.f32.gmra.mxu0 %v4255
  %v4655 = vpop.f32.mrf.mxu0
  %v4656 = vadd.f32 0.0, %v4655
  %4657 = vmatmul.f32.gmra.mxu0 %v4258
  %v4658 = vpop.f32.mrf.mxu0
  %v4659 = vadd.f32 0.0, %v4658
  %4660 = vmatmul.f32.gmra.mxu0 %v4261
  %v4661 = vpop.f32.mrf.mxu0
  %v4662 = vadd.f32 0.0, %v4661
  %4663 = vmatmul.f32.gmra.mxu0 %v4264
  %v4664 = vpop.f32.mrf.mxu0
  %v4665 = vadd.f32 0.0, %v4664
  %4666 = vmatmul.f32.gmra.mxu0 %v4267
  %v4667 = vpop.f32.mrf.mxu0
  %v4668 = vadd.f32 0.0, %v4667
  %4669 = vmatmul.f32.gmra.mxu0 %v4270
  %v4670 = vpop.f32.mrf.mxu0
  %v4671 = vadd.f32 0.0, %v4670
  %4672 = vmatmul.f32.gmra.mxu0 %v4273
  %v4673 = vpop.f32.mrf.mxu0
  %v4674 = vadd.f32 0.0, %v4673
  %4675 = vmatmul.f32.gmra.mxu0 %v4276
  %v4676 = vpop.f32.mrf.mxu0
  %v4677 = vadd.f32 0.0, %v4676
  %4678 = vmatmul.f32.gmra.mxu0 %v4279
  %v4679 = vpop.f32.mrf.mxu0
  %v4680 = vadd.f32 0.0, %v4679
  %4681 = vmatmul.f32.gmra.mxu0 %v4282
  %v4682 = vpop.f32.mrf.mxu0
  %v4683 = vadd.f32 0.0, %v4682
  %4684 = vmatmul.f32.gmra.mxu0 %v4285
  %v4685 = vpop.f32.mrf.mxu0
  %v4686 = vadd.f32 0.0, %v4685
  %4687 = vmatmul.f32.gmra.mxu0 %v4288
  %v4688 = vpop.f32.mrf.mxu0
  %v4689 = vadd.f32 0.0, %v4688
  %4690 = vmatmul.f32.gmra.mxu0 %v4291
  %v4691 = vpop.f32.mrf.mxu0
  %v4692 = vadd.f32 0.0, %v4691
  %4693 = vmatmul.f32.gmra.mxu0 %v4294
  %v4694 = vpop.f32.mrf.mxu0
  %v4695 = vadd.f32 0.0, %v4694
  %4696 = vmatmul.f32.gmra.mxu0 %v4297
  %v4697 = vpop.f32.mrf.mxu0
  %v4698 = vadd.f32 0.0, %v4697
  %4699 = vmatmul.f32.gmra.mxu0 %v4300
  %v4700 = vpop.f32.mrf.mxu0
  %v4701 = vadd.f32 0.0, %v4700
  %4702 = vmatmul.f32.gmra.mxu0 %v4303
  %v4703 = vpop.f32.mrf.mxu0
  %v4704 = vadd.f32 0.0, %v4703
  %4705 = vmatmul.f32.gmra.mxu0 %v4306
  %v4706 = vpop.f32.mrf.mxu0
  %v4707 = vadd.f32 0.0, %v4706
  %4708 = vmatmul.f32.gmra.mxu0 %v4309
  %v4709 = vpop.f32.mrf.mxu0
  %v4710 = vadd.f32 0.0, %v4709
  %4711 = vmatmul.f32.gmra.mxu0 %v4312
  %v4712 = vpop.f32.mrf.mxu0
  %v4713 = vadd.f32 0.0, %v4712
  %4714 = vmatmul.f32.gmra.mxu0 %v4315
  %v4715 = vpop.f32.mrf.mxu0
  %v4716 = vadd.f32 0.0, %v4715
  %4717 = vmatmul.f32.gmra.mxu0 %v4318
  %v4718 = vpop.f32.mrf.mxu0
  %v4719 = vadd.f32 0.0, %v4718
  %4720 = vmatmul.f32.gmra.mxu0 %v4321
  %v4721 = vpop.f32.mrf.mxu0
  %v4722 = vadd.f32 0.0, %v4721
  %4723 = vmatmul.f32.gmra.mxu0 %v4324
  %v4724 = vpop.f32.mrf.mxu0
  %v4725 = vadd.f32 0.0, %v4724
  %4726 = vmatmul.f32.gmra.mxu0 %v4327
  %v4727 = vpop.f32.mrf.mxu0
  %v4728 = vadd.f32 0.0, %v4727
  %4729 = vmatmul.f32.gmra.mxu0 %v4330
  %v4730 = vpop.f32.mrf.mxu0
  %v4731 = vadd.f32 0.0, %v4730
  %4732 = vmatmul.f32.gmra.mxu0 %v4333
  %v4733 = vpop.f32.mrf.mxu0
  %v4734 = vadd.f32 0.0, %v4733
  %4735 = vmatmul.f32.gmra.mxu0 %v4336
  %v4736 = vpop.f32.mrf.mxu0
  %v4737 = vadd.f32 0.0, %v4736
  %4738 = vmatmul.f32.gmra.mxu0 %v4339
  %v4739 = vpop.f32.mrf.mxu0
  %v4740 = vadd.f32 0.0, %v4739
  %4741 = vmatmul.f32.gmra.mxu0 %v4342
  %v4742 = vpop.f32.mrf.mxu0
  %v4743 = vadd.f32 0.0, %v4742
  %4744 = vmatmul.f32.gmra.mxu0 %v4345
  %v4745 = vpop.f32.mrf.mxu0
  %v4746 = vadd.f32 0.0, %v4745
  %4747 = vmatmul.f32.gmra.mxu0 %v4348
  %v4748 = vpop.f32.mrf.mxu0
  %v4749 = vadd.f32 0.0, %v4748
  %4750 = vmatmul.f32.gmra.mxu0 %v4351
  %v4751 = vpop.f32.mrf.mxu0
  %v4752 = vadd.f32 0.0, %v4751
  %4753 = vmatmul.f32.gmra.mxu0 %v4354
  %v4754 = vpop.f32.mrf.mxu0
  %v4755 = vadd.f32 0.0, %v4754
  %4756 = vmatmul.f32.gmra.mxu0 %v4357
  %v4757 = vpop.f32.mrf.mxu0
  %v4758 = vadd.f32 0.0, %v4757
  %4759 = vmatmul.f32.gmra.mxu0 %v4360
  %v4760 = vpop.f32.mrf.mxu0
  %v4761 = vadd.f32 0.0, %v4760
  %4762 = vmatmul.f32.gmra.mxu0 %v4363
  %v4763 = vpop.f32.mrf.mxu0
  %v4764 = vadd.f32 0.0, %v4763
  %4765 = vmatmul.f32.gmra.mxu0 %v4366
  %v4766 = vpop.f32.mrf.mxu0
  %v4767 = vadd.f32 0.0, %v4766
  %4768 = vmatmul.f32.gmra.mxu0 %v4369
  %v4769 = vpop.f32.mrf.mxu0
  %v4770 = vadd.f32 0.0, %v4769
  %4771 = vmatmul.f32.gmra.mxu0 %v4372
  %v4772 = vpop.f32.mrf.mxu0
  %v4773 = vadd.f32 0.0, %v4772
  %4774 = vmatmul.f32.gmra.mxu0 %v4375
  %v4775 = vpop.f32.mrf.mxu0
  %v4776 = vadd.f32 0.0, %v4775
  %4777 = vmatmul.f32.gmra.mxu0 %v4378
  %v4778 = vpop.f32.mrf.mxu0
  %v4779 = vadd.f32 0.0, %v4778
  %4780 = vmatmul.f32.gmra.mxu0 %v4381
  %v4781 = vpop.f32.mrf.mxu0
  %v4782 = vadd.f32 0.0, %v4781
  %4783 = vmatmul.f32.gmra.mxu0 %v4384
  %v4784 = vpop.f32.mrf.mxu0
  %v4785 = vadd.f32 0.0, %v4784
  %4786 = vmatmul.f32.gmra.mxu0 %v4387
  %v4787 = vpop.f32.mrf.mxu0
  %v4788 = vadd.f32 0.0, %v4787
  %4789 = vmatmul.f32.gmra.mxu0 %v4390
  %v4790 = vpop.f32.mrf.mxu0
  %v4791 = vadd.f32 0.0, %v4790
  %4792 = vmatmul.f32.gmra.mxu0 %v4393
  %v4793 = vpop.f32.mrf.mxu0
  %v4794 = vadd.f32 0.0, %v4793
  %4795 = vmatmul.f32.gmra.mxu0 %v4396
  %v4796 = vpop.f32.mrf.mxu0
  %v4797 = vadd.f32 0.0, %v4796
  %4798 = vmatmul.f32.gmra.mxu0 %v4399
  %v4799 = vpop.f32.mrf.mxu0
  %v4800 = vadd.f32 0.0, %v4799
  %4801 = vmatmul.f32.gmra.mxu0 %v4402
  %v4802 = vpop.f32.mrf.mxu0
  %v4803 = vadd.f32 0.0, %v4802
  %4804 = vmatmul.f32.gmra.mxu0 %v4405
  %v4805 = vpop.f32.mrf.mxu0
  %v4806 = vadd.f32 0.0, %v4805
  %4807 = vmatmul.f32.gmra.mxu0 %v4408
  %v4808 = vpop.f32.mrf.mxu0
  %v4809 = vadd.f32 0.0, %v4808
  %4810 = vmatmul.f32.gmra.mxu0 %v4411
  %v4811 = vpop.f32.mrf.mxu0
  %v4812 = vadd.f32 0.0, %v4811
  %4813 = vmatmul.f32.gmra.mxu0 %v4414
  %v4814 = vpop.f32.mrf.mxu0
  %v4815 = vadd.f32 0.0, %v4814
  %4816 = vmatmul.f32.gmra.mxu0 %v4417
  %v4817 = vpop.f32.mrf.mxu0
  %v4818 = vadd.f32 0.0, %v4817
  %4819 = vmatmul.f32.gmra.mxu0 %v4420
  %v4820 = vpop.f32.mrf.mxu0
  %v4821 = vadd.f32 0.0, %v4820
  %4822 = vmatmul.f32.gmra.mxu0 %v4423
  %v4823 = vpop.f32.mrf.mxu0
  %v4824 = vadd.f32 0.0, %v4823
  %4825 = vmatmul.f32.gmra.mxu0 %v4426
  %v4826 = vpop.f32.mrf.mxu0
  %v4827 = vadd.f32 0.0, %v4826
  %4828 = vmatmul.f32.gmra.mxu0 %v4429
  %v4829 = vpop.f32.mrf.mxu0
  %v4830 = vadd.f32 0.0, %v4829
  %4831 = vmatmul.f32.gmra.mxu0 %v4432
  %v4832 = vpop.f32.mrf.mxu0
  %v4833 = vadd.f32 0.0, %v4832
  %4834 = vmatmul.f32.gmra.mxu0 %v4435
  %v4835 = vpop.f32.mrf.mxu0
  %v4836 = vadd.f32 0.0, %v4835
  %4837 = vmatmul.f32.gmra.mxu0 %v4438
  %v4838 = vpop.f32.mrf.mxu0
  %v4839 = vadd.f32 0.0, %v4838
  %4840 = vmatmul.f32.gmra.mxu0 %v4441
  %v4841 = vpop.f32.mrf.mxu0
  %v4842 = vadd.f32 0.0, %v4841
  %4843 = vmatmul.f32.gmra.mxu0 %v4444
  %v4844 = vpop.f32.mrf.mxu0
  %v4845 = vadd.f32 0.0, %v4844
  %4846 = vmatmul.f32.gmra.mxu0 %v4447
  %v4847 = vpop.f32.mrf.mxu0
  %v4848 = vadd.f32 0.0, %v4847
  %4849 = vmatmul.f32.gmra.mxu0 %v4450
  %v4850 = vpop.f32.mrf.mxu0
  %v4851 = vadd.f32 0.0, %v4850
  %4852 = vmatmul.f32.gmra.mxu0 %v4453
  %v4853 = vpop.f32.mrf.mxu0
  %v4854 = vadd.f32 0.0, %v4853
  %4855 = vmatmul.f32.gmra.mxu0 %v4456
  %v4856 = vpop.f32.mrf.mxu0
  %v4857 = vadd.f32 0.0, %v4856
  %4858 = vmatmul.f32.gmra.mxu0 %v4459
  %v4859 = vpop.f32.mrf.mxu0
  %v4860 = vadd.f32 0.0, %v4859
  %4861 = vmatmul.f32.gmra.mxu0 %v4462
  %v4862 = vpop.f32.mrf.mxu0
  %v4863 = vadd.f32 0.0, %v4862
  %4864 = vmatmul.f32.gmra.mxu0 %v4465
  %v4865 = vpop.f32.mrf.mxu0
  %v4866 = vadd.f32 0.0, %v4865
  %4867 = vmatmul.f32.gmra.mxu0 %v4468
  %v4868 = vpop.f32.mrf.mxu0
  %v4869 = vadd.f32 0.0, %v4868
  %4870 = vmatmul.f32.gmra.mxu0 %v4471
  %v4871 = vpop.f32.mrf.mxu0
  %v4872 = vadd.f32 0.0, %v4871
  %4873 = vmatmul.f32.gmra.mxu0 %v4474
  %v4874 = vpop.f32.mrf.mxu0
  %v4875 = vadd.f32 0.0, %v4874
  %4876 = vmatmul.f32.gmra.mxu0 %v4477
  %v4877 = vpop.f32.mrf.mxu0
  %v4878 = vadd.f32 0.0, %v4877
  %4879 = vmatmul.f32.gmra.mxu0 %v4480
  %v4880 = vpop.f32.mrf.mxu0
  %v4881 = vadd.f32 0.0, %v4880
  %4882 = vmatmul.f32.gmra.mxu0 %v4483
  %v4883 = vpop.f32.mrf.mxu0
  %v4884 = vadd.f32 0.0, %v4883
  %4885 = vmatmul.f32.gmra.mxu0 %v4486
  %v4886 = vpop.f32.mrf.mxu0
  %v4887 = vadd.f32 0.0, %v4886
  %4888 = vmatmul.f32.gmra.mxu0 %v4489
  %v4889 = vpop.f32.mrf.mxu0
  %v4890 = vadd.f32 0.0, %v4889
  %4891 = vmatmul.f32.gmra.mxu0 %v4492
  %v4892 = vpop.f32.mrf.mxu0
  %v4893 = vadd.f32 0.0, %v4892
  %4894 = vmatmul.f32.gmra.mxu0 %v4495
  %v4895 = vpop.f32.mrf.mxu0
  %v4896 = vadd.f32 0.0, %v4895
  %4897 = vmatmul.f32.gmra.mxu0 %v4498
  %v4898 = vpop.f32.mrf.mxu0
  %v4899 = vadd.f32 0.0, %v4898
  %4900 = vmatmul.f32.gmra.mxu0 %v4501
  %v4901 = vpop.f32.mrf.mxu0
  %v4902 = vadd.f32 0.0, %v4901
  %4903 = vmatmul.f32.gmra.mxu0 %v4504
  %v4904 = vpop.f32.mrf.mxu0
  %v4905 = vadd.f32 0.0, %v4904
  %4906 = vmatmul.f32.gmra.mxu0 %v4507
  %v4907 = vpop.f32.mrf.mxu0
  %v4908 = vadd.f32 0.0, %v4907
  %4909 = vmatmul.f32.gmra.mxu0 %v4510
  %v4910 = vpop.f32.mrf.mxu0
  %v4911 = vadd.f32 0.0, %v4910
  %4912 = vmatmul.f32.gmra.mxu0 %v4513
  %v4913 = vpop.f32.mrf.mxu0
  %v4914 = vadd.f32 0.0, %v4913
  %4915 = vmatmul.f32.gmra.mxu0 %v4516
  %v4916 = vpop.f32.mrf.mxu0
  %v4917 = vadd.f32 0.0, %v4916
  %4918 = vmatmul.f32.gmra.mxu0 %v4519
  %v4919 = vpop.f32.mrf.mxu0
  %v4920 = vadd.f32 0.0, %v4919
  %4921 = vmatmul.f32.gmra.mxu0 %v4522
  %v4922 = vpop.f32.mrf.mxu0
  %v4923 = vadd.f32 0.0, %v4922
  %4924 = vmatmul.f32.gmra.mxu0 %v4525
  %v4925 = vpop.f32.mrf.mxu0
  %v4926 = vadd.f32 0.0, %v4925
  %4927 = vmatmul.f32.gmra.mxu0 %v4528
  %v4928 = vpop.f32.mrf.mxu0
  %v4929 = vadd.f32 0.0, %v4928
  %4930 = vmatmul.f32.gmra.mxu0 %v4531
  %v4931 = vpop.f32.mrf.mxu0
  %v4932 = vadd.f32 0.0, %v4931
  %4933 = vmatmul.f32.gmra.mxu0 %v4534
  %v4934 = vpop.f32.mrf.mxu0
  %v4935 = vadd.f32 0.0, %v4934
  %4936 = vmatmul.f32.gmra.mxu0 %v4537
  %v4937 = vpop.f32.mrf.mxu0
  %v4938 = vadd.f32 0.0, %v4937
  %4939 = vmatmul.f32.gmra.mxu0 %v4540
  %v4940 = vpop.f32.mrf.mxu0
  %v4941 = vadd.f32 0.0, %v4940
  %4942 = vmatmul.f32.gmra.mxu0 %v4543
  %v4943 = vpop.f32.mrf.mxu0
  %v4944 = vadd.f32 0.0, %v4943
  %4945 = vmatmul.f32.gmra.mxu0 %v4546
  %v4946 = vpop.f32.mrf.mxu0
  %v4947 = vadd.f32 0.0, %v4946
  %4948 = vmatmul.f32.gmra.mxu0 %v4549
  %v4949 = vpop.f32.mrf.mxu0
  %v4950 = vadd.f32 0.0, %v4949
  %4951 = vmatmul.f32.gmra.mxu0 %v4552
  %v4952 = vpop.f32.mrf.mxu0
  %v4953 = vadd.f32 0.0, %v4952
  %4954 = vmatmul.f32.gmra.mxu0 %v4555
  %v4955 = vpop.f32.mrf.mxu0
  %v4956 = vadd.f32 0.0, %v4955
  %4957 = vmatmul.f32.gmra.mxu0 %v4558
  %v4958 = vpop.f32.mrf.mxu0
  %v4959 = vadd.f32 0.0, %v4958
  %4960 = vmatmul.f32.gmra.mxu0 %v4561
  %v4961 = vpop.f32.mrf.mxu0
  %v4962 = vadd.f32 0.0, %v4961
  %4963 = vmatmul.f32.gmra.mxu0 %v4564
  %v4964 = vpop.f32.mrf.mxu0
  %v4965 = vadd.f32 0.0, %v4964
  %4966 = vmatmul.f32.gmra.mxu0 %v4567
  %v4967 = vpop.f32.mrf.mxu0
  %v4968 = vadd.f32 0.0, %v4967
  %4969 = vmatmul.f32.gmra.mxu0 %v4570
  %v4970 = vpop.f32.mrf.mxu0
  %v4971 = vadd.f32 0.0, %v4970
  %4972 = vmatmul.f32.gmra.mxu0 %v4573
  %v4973 = vpop.f32.mrf.mxu0
  %v4974 = vadd.f32 0.0, %v4973
  %4975 = vmatmul.f32.gmra.mxu0 %v4576
  %v4976 = vpop.f32.mrf.mxu0
  %v4977 = vadd.f32 0.0, %v4976
  %4978 = vmatmul.f32.gmra.mxu0 %v4579
  %v4979 = vpop.f32.mrf.mxu0
  %v4980 = vadd.f32 0.0, %v4979
  %4981 = vmatmul.f32.gmra.mxu0 %v4582
  %v4982 = vpop.f32.mrf.mxu0
  %v4983 = vadd.f32 0.0, %v4982
  %4984 = vmatmul.f32.gmra.mxu0 %v4585
  %v4985 = vpop.f32.mrf.mxu0
  %v4986 = vadd.f32 0.0, %v4985
  %4987 = vmatmul.f32.gmra.mxu0 %v4588
  %v4988 = vpop.f32.mrf.mxu0
  %v4989 = vadd.f32 0.0, %v4988
  %4990 = vmatmul.f32.gmra.mxu0 %v4591
  %v4991 = vpop.f32.mrf.mxu0
  %v4992 = vadd.f32 0.0, %v4991
  %4993 = vmatmul.f32.gmra.mxu0 %v4594
  %v4994 = vpop.f32.mrf.mxu0
  %v4995 = vadd.f32 0.0, %v4994
  %4996 = vmatmul.f32.gmra.mxu0 %v4597
  %v4997 = vpop.f32.mrf.mxu0
  %v4998 = vadd.f32 0.0, %v4997
  %4999 = vdwg.mxu0
  %v5000 = vadd.f32 %v3957, %v4617
  %v5001 = vadd.f32 %v3958, %v4620
  %v5002 = vadd.f32 %v3959, %v4623
  %v5003 = vadd.f32 %v3960, %v4626
  %v5004 = vadd.f32 %v3961, %v4629
  %v5005 = vadd.f32 %v3962, %v4632
  %v5006 = vadd.f32 %v3963, %v4635
  %v5007 = vadd.f32 %v3964, %v4638
  %v5008 = vadd.f32 %v3965, %v4641
  %v5009 = vadd.f32 %v3966, %v4644
  %v5010 = vadd.f32 %v3967, %v4647
  %v5011 = vadd.f32 %v3968, %v4650
  %v5012 = vadd.f32 %v3969, %v4653
  %v5013 = vadd.f32 %v3970, %v4656
  %v5014 = vadd.f32 %v3971, %v4659
  %v5015 = vadd.f32 %v3972, %v4662
  %v5016 = vadd.f32 %v3973, %v4665
  %v5017 = vadd.f32 %v3974, %v4668
  %v5018 = vadd.f32 %v3975, %v4671
  %v5019 = vadd.f32 %v3976, %v4674
  %v5020 = vadd.f32 %v3977, %v4677
  %v5021 = vadd.f32 %v3978, %v4680
  %v5022 = vadd.f32 %v3979, %v4683
  %v5023 = vadd.f32 %v3980, %v4686
  %v5024 = vadd.f32 %v3981, %v4689
  %v5025 = vadd.f32 %v3982, %v4692
  %v5026 = vadd.f32 %v3983, %v4695
  %v5027 = vadd.f32 %v3984, %v4698
  %v5028 = vadd.f32 %v3985, %v4701
  %v5029 = vadd.f32 %v3986, %v4704
  %v5030 = vadd.f32 %v3987, %v4707
  %v5031 = vadd.f32 %v3988, %v4710
  %v5032 = vadd.f32 %v3989, %v4713
  %v5033 = vadd.f32 %v3990, %v4716
  %v5034 = vadd.f32 %v3991, %v4719
  %v5035 = vadd.f32 %v3992, %v4722
  %v5036 = vadd.f32 %v3993, %v4725
  %v5037 = vadd.f32 %v3994, %v4728
  %v5038 = vadd.f32 %v3995, %v4731
  %v5039 = vadd.f32 %v3996, %v4734
  %v5040 = vadd.f32 %v3997, %v4737
  %v5041 = vadd.f32 %v3998, %v4740
  %v5042 = vadd.f32 %v3999, %v4743
  %v5043 = vadd.f32 %v4000, %v4746
  %v5044 = vadd.f32 %v4001, %v4749
  %v5045 = vadd.f32 %v4002, %v4752
  %v5046 = vadd.f32 %v4003, %v4755
  %v5047 = vadd.f32 %v4004, %v4758
  %v5048 = vadd.f32 %v4005, %v4761
  %v5049 = vadd.f32 %v4006, %v4764
  %v5050 = vadd.f32 %v4007, %v4767
  %v5051 = vadd.f32 %v4008, %v4770
  %v5052 = vadd.f32 %v4009, %v4773
  %v5053 = vadd.f32 %v4010, %v4776
  %v5054 = vadd.f32 %v4011, %v4779
  %v5055 = vadd.f32 %v4012, %v4782
  %v5056 = vadd.f32 %v4013, %v4785
  %v5057 = vadd.f32 %v4014, %v4788
  %v5058 = vadd.f32 %v4015, %v4791
  %v5059 = vadd.f32 %v4016, %v4794
  %v5060 = vadd.f32 %v4017, %v4797
  %v5061 = vadd.f32 %v4018, %v4800
  %v5062 = vadd.f32 %v4019, %v4803
  %v5063 = vadd.f32 %v4020, %v4806
  %v5064 = vadd.f32 %v4021, %v4809
  %v5065 = vadd.f32 %v4022, %v4812
  %v5066 = vadd.f32 %v4023, %v4815
  %v5067 = vadd.f32 %v4024, %v4818
  %v5068 = vadd.f32 %v4025, %v4821
  %v5069 = vadd.f32 %v4026, %v4824
  %v5070 = vadd.f32 %v4027, %v4827
  %v5071 = vadd.f32 %v4028, %v4830
  %v5072 = vadd.f32 %v4029, %v4833
  %v5073 = vadd.f32 %v4030, %v4836
  %v5074 = vadd.f32 %v4031, %v4839
  %v5075 = vadd.f32 %v4032, %v4842
  %v5076 = vadd.f32 %v4033, %v4845
  %v5077 = vadd.f32 %v4034, %v4848
  %v5078 = vadd.f32 %v4035, %v4851
  %v5079 = vadd.f32 %v4036, %v4854
  %v5080 = vadd.f32 %v4037, %v4857
  %v5081 = vadd.f32 %v4038, %v4860
  %v5082 = vadd.f32 %v4039, %v4863
  %v5083 = vadd.f32 %v4040, %v4866
  %v5084 = vadd.f32 %v4041, %v4869
  %v5085 = vadd.f32 %v4042, %v4872
  %v5086 = vadd.f32 %v4043, %v4875
  %v5087 = vadd.f32 %v4044, %v4878
  %v5088 = vadd.f32 %v4045, %v4881
  %v5089 = vadd.f32 %v4046, %v4884
  %v5090 = vadd.f32 %v4047, %v4887
  %v5091 = vadd.f32 %v4048, %v4890
  %v5092 = vadd.f32 %v4049, %v4893
  %v5093 = vadd.f32 %v4050, %v4896
  %v5094 = vadd.f32 %v4051, %v4899
  %v5095 = vadd.f32 %v4052, %v4902
  %v5096 = vadd.f32 %v4053, %v4905
  %v5097 = vadd.f32 %v4054, %v4908
  %v5098 = vadd.f32 %v4055, %v4911
  %v5099 = vadd.f32 %v4056, %v4914
  %v5100 = vadd.f32 %v4057, %v4917
  %v5101 = vadd.f32 %v4058, %v4920
  %v5102 = vadd.f32 %v4059, %v4923
  %v5103 = vadd.f32 %v4060, %v4926
  %v5104 = vadd.f32 %v4061, %v4929
  %v5105 = vadd.f32 %v4062, %v4932
  %v5106 = vadd.f32 %v4063, %v4935
  %v5107 = vadd.f32 %v4064, %v4938
  %v5108 = vadd.f32 %v4065, %v4941
  %v5109 = vadd.f32 %v4066, %v4944
  %v5110 = vadd.f32 %v4067, %v4947
  %v5111 = vadd.f32 %v4068, %v4950
  %v5112 = vadd.f32 %v4069, %v4953
  %v5113 = vadd.f32 %v4070, %v4956
  %v5114 = vadd.f32 %v4071, %v4959
  %v5115 = vadd.f32 %v4072, %v4962
  %v5116 = vadd.f32 %v4073, %v4965
  %v5117 = vadd.f32 %v4074, %v4968
  %v5118 = vadd.f32 %v4075, %v4971
  %v5119 = vadd.f32 %v4076, %v4974
  %v5120 = vadd.f32 %v4077, %v4977
  %v5121 = vadd.f32 %v4078, %v4980
  %v5122 = vadd.f32 %v4079, %v4983
  %v5123 = vadd.f32 %v4080, %v4986
  %v5124 = vadd.f32 %v4081, %v4989
  %v5125 = vadd.f32 %v4082, %v4992
  %v5126 = vadd.f32 %v4083, %v4995
  %v5127 = vadd.f32 %v4084, %v4998
  %v5128 = vld [vmem:[#allocation2 + $0x4] sm:$0xff]
  %v5129 = vld [vmem:[#allocation2 + $0xc] sm:$0xff]
  %v5130 = vld [vmem:[#allocation2 + $0x14] sm:$0xff]
  %v5131 = vld [vmem:[#allocation2 + $0x1c] sm:$0xff]
  %v5132 = vld [vmem:[#allocation2 + $0x24] sm:$0xff]
  %v5133 = vld [vmem:[#allocation2 + $0x2c] sm:$0xff]
  %v5134 = vld [vmem:[#allocation2 + $0x34] sm:$0xff]
  %v5135 = vld [vmem:[#allocation2 + $0x3c] sm:$0xff]
  %v5136 = vld [vmem:[#allocation2 + $0x44] sm:$0xff]
  %v5137 = vld [vmem:[#allocation2 + $0x4c] sm:$0xff]
  %v5138 = vld [vmem:[#allocation2 + $0x54] sm:$0xff]
  %v5139 = vld [vmem:[#allocation2 + $0x5c] sm:$0xff]
  %v5140 = vld [vmem:[#allocation2 + $0x64] sm:$0xff]
  %v5141 = vld [vmem:[#allocation2 + $0x6c] sm:$0xff]
  %v5142 = vld [vmem:[#allocation2 + $0x74] sm:$0xff]
  %v5143 = vld [vmem:[#allocation2 + $0x7c] sm:$0xff]
  %v5144 = vld [vmem:[#allocation2 + $0x84] sm:$0xff]
  %v5145 = vld [vmem:[#allocation2 + $0x8c] sm:$0xff]
  %v5146 = vld [vmem:[#allocation2 + $0x94] sm:$0xff]
  %v5147 = vld [vmem:[#allocation2 + $0x9c] sm:$0xff]
  %v5148 = vld [vmem:[#allocation2 + $0xa4] sm:$0xff]
  %v5149 = vld [vmem:[#allocation2 + $0xac] sm:$0xff]
  %v5150 = vld [vmem:[#allocation2 + $0xb4] sm:$0xff]
  %v5151 = vld [vmem:[#allocation2 + $0xbc] sm:$0xff]
  %v5152 = vld [vmem:[#allocation2 + $0xc4] sm:$0xff]
  %v5153 = vld [vmem:[#allocation2 + $0xcc] sm:$0xff]
  %v5154 = vld [vmem:[#allocation2 + $0xd4] sm:$0xff]
  %v5155 = vld [vmem:[#allocation2 + $0xdc] sm:$0xff]
  %v5156 = vld [vmem:[#allocation2 + $0xe4] sm:$0xff]
  %v5157 = vld [vmem:[#allocation2 + $0xec] sm:$0xff]
  %v5158 = vld [vmem:[#allocation2 + $0xf4] sm:$0xff]
  %v5159 = vld [vmem:[#allocation2 + $0xfc] sm:$0xff]
  %v5160 = vld [vmem:[#allocation2 + $0x104] sm:$0xff]
  %v5161 = vld [vmem:[#allocation2 + $0x10c] sm:$0xff]
  %v5162 = vld [vmem:[#allocation2 + $0x114] sm:$0xff]
  %v5163 = vld [vmem:[#allocation2 + $0x11c] sm:$0xff]
  %v5164 = vld [vmem:[#allocation2 + $0x124] sm:$0xff]
  %v5165 = vld [vmem:[#allocation2 + $0x12c] sm:$0xff]
  %v5166 = vld [vmem:[#allocation2 + $0x134] sm:$0xff]
  %v5167 = vld [vmem:[#allocation2 + $0x13c] sm:$0xff]
  %v5168 = vld [vmem:[#allocation2 + $0x144] sm:$0xff]
  %v5169 = vld [vmem:[#allocation2 + $0x14c] sm:$0xff]
  %v5170 = vld [vmem:[#allocation2 + $0x154] sm:$0xff]
  %v5171 = vld [vmem:[#allocation2 + $0x15c] sm:$0xff]
  %v5172 = vld [vmem:[#allocation2 + $0x164] sm:$0xff]
  %v5173 = vld [vmem:[#allocation2 + $0x16c] sm:$0xff]
  %v5174 = vld [vmem:[#allocation2 + $0x174] sm:$0xff]
  %v5175 = vld [vmem:[#allocation2 + $0x17c] sm:$0xff]
  %v5176 = vld [vmem:[#allocation2 + $0x184] sm:$0xff]
  %v5177 = vld [vmem:[#allocation2 + $0x18c] sm:$0xff]
  %v5178 = vld [vmem:[#allocation2 + $0x194] sm:$0xff]
  %v5179 = vld [vmem:[#allocation2 + $0x19c] sm:$0xff]
  %v5180 = vld [vmem:[#allocation2 + $0x1a4] sm:$0xff]
  %v5181 = vld [vmem:[#allocation2 + $0x1ac] sm:$0xff]
  %v5182 = vld [vmem:[#allocation2 + $0x1b4] sm:$0xff]
  %v5183 = vld [vmem:[#allocation2 + $0x1bc] sm:$0xff]
  %v5184 = vld [vmem:[#allocation2 + $0x1c4] sm:$0xff]
  %v5185 = vld [vmem:[#allocation2 + $0x1cc] sm:$0xff]
  %v5186 = vld [vmem:[#allocation2 + $0x1d4] sm:$0xff]
  %v5187 = vld [vmem:[#allocation2 + $0x1dc] sm:$0xff]
  %v5188 = vld [vmem:[#allocation2 + $0x1e4] sm:$0xff]
  %v5189 = vld [vmem:[#allocation2 + $0x1ec] sm:$0xff]
  %v5190 = vld [vmem:[#allocation2 + $0x1f4] sm:$0xff]
  %v5191 = vld [vmem:[#allocation2 + $0x1fc] sm:$0xff]
  %v5192 = vld [vmem:[#allocation2 + $0x204] sm:$0xff]
  %v5193 = vld [vmem:[#allocation2 + $0x20c] sm:$0xff]
  %v5194 = vld [vmem:[#allocation2 + $0x214] sm:$0xff]
  %v5195 = vld [vmem:[#allocation2 + $0x21c] sm:$0xff]
  %v5196 = vld [vmem:[#allocation2 + $0x224] sm:$0xff]
  %v5197 = vld [vmem:[#allocation2 + $0x22c] sm:$0xff]
  %v5198 = vld [vmem:[#allocation2 + $0x234] sm:$0xff]
  %v5199 = vld [vmem:[#allocation2 + $0x23c] sm:$0xff]
  %v5200 = vld [vmem:[#allocation2 + $0x244] sm:$0xff]
  %v5201 = vld [vmem:[#allocation2 + $0x24c] sm:$0xff]
  %v5202 = vld [vmem:[#allocation2 + $0x254] sm:$0xff]
  %v5203 = vld [vmem:[#allocation2 + $0x25c] sm:$0xff]
  %v5204 = vld [vmem:[#allocation2 + $0x264] sm:$0xff]
  %v5205 = vld [vmem:[#allocation2 + $0x26c] sm:$0xff]
  %v5206 = vld [vmem:[#allocation2 + $0x274] sm:$0xff]
  %v5207 = vld [vmem:[#allocation2 + $0x27c] sm:$0xff]
  %v5208 = vld [vmem:[#allocation2 + $0x284] sm:$0xff]
  %v5209 = vld [vmem:[#allocation2 + $0x28c] sm:$0xff]
  %v5210 = vld [vmem:[#allocation2 + $0x294] sm:$0xff]
  %v5211 = vld [vmem:[#allocation2 + $0x29c] sm:$0xff]
  %v5212 = vld [vmem:[#allocation2 + $0x2a4] sm:$0xff]
  %v5213 = vld [vmem:[#allocation2 + $0x2ac] sm:$0xff]
  %v5214 = vld [vmem:[#allocation2 + $0x2b4] sm:$0xff]
  %v5215 = vld [vmem:[#allocation2 + $0x2bc] sm:$0xff]
  %v5216 = vld [vmem:[#allocation2 + $0x2c4] sm:$0xff]
  %v5217 = vld [vmem:[#allocation2 + $0x2cc] sm:$0xff]
  %v5218 = vld [vmem:[#allocation2 + $0x2d4] sm:$0xff]
  %v5219 = vld [vmem:[#allocation2 + $0x2dc] sm:$0xff]
  %v5220 = vld [vmem:[#allocation2 + $0x2e4] sm:$0xff]
  %v5221 = vld [vmem:[#allocation2 + $0x2ec] sm:$0xff]
  %v5222 = vld [vmem:[#allocation2 + $0x2f4] sm:$0xff]
  %v5223 = vld [vmem:[#allocation2 + $0x2fc] sm:$0xff]
  %v5224 = vld [vmem:[#allocation2 + $0x304] sm:$0xff]
  %v5225 = vld [vmem:[#allocation2 + $0x30c] sm:$0xff]
  %v5226 = vld [vmem:[#allocation2 + $0x314] sm:$0xff]
  %v5227 = vld [vmem:[#allocation2 + $0x31c] sm:$0xff]
  %v5228 = vld [vmem:[#allocation2 + $0x324] sm:$0xff]
  %v5229 = vld [vmem:[#allocation2 + $0x32c] sm:$0xff]
  %v5230 = vld [vmem:[#allocation2 + $0x334] sm:$0xff]
  %v5231 = vld [vmem:[#allocation2 + $0x33c] sm:$0xff]
  %v5232 = vld [vmem:[#allocation2 + $0x344] sm:$0xff]
  %v5233 = vld [vmem:[#allocation2 + $0x34c] sm:$0xff]
  %v5234 = vld [vmem:[#allocation2 + $0x354] sm:$0xff]
  %v5235 = vld [vmem:[#allocation2 + $0x35c] sm:$0xff]
  %v5236 = vld [vmem:[#allocation2 + $0x364] sm:$0xff]
  %v5237 = vld [vmem:[#allocation2 + $0x36c] sm:$0xff]
  %v5238 = vld [vmem:[#allocation2 + $0x374] sm:$0xff]
  %v5239 = vld [vmem:[#allocation2 + $0x37c] sm:$0xff]
  %v5240 = vld [vmem:[#allocation2 + $0x384] sm:$0xff]
  %v5241 = vld [vmem:[#allocation2 + $0x38c] sm:$0xff]
  %v5242 = vld [vmem:[#allocation2 + $0x394] sm:$0xff]
  %v5243 = vld [vmem:[#allocation2 + $0x39c] sm:$0xff]
  %v5244 = vld [vmem:[#allocation2 + $0x3a4] sm:$0xff]
  %v5245 = vld [vmem:[#allocation2 + $0x3ac] sm:$0xff]
  %v5246 = vld [vmem:[#allocation2 + $0x3b4] sm:$0xff]
  %v5247 = vld [vmem:[#allocation2 + $0x3bc] sm:$0xff]
  %v5248 = vld [vmem:[#allocation2 + $0x3c4] sm:$0xff]
  %v5249 = vld [vmem:[#allocation2 + $0x3cc] sm:$0xff]
  %v5250 = vld [vmem:[#allocation2 + $0x3d4] sm:$0xff]
  %v5251 = vld [vmem:[#allocation2 + $0x3dc] sm:$0xff]
  %v5252 = vld [vmem:[#allocation2 + $0x3e4] sm:$0xff]
  %v5253 = vld [vmem:[#allocation2 + $0x3ec] sm:$0xff]
  %v5254 = vld [vmem:[#allocation2 + $0x3f4] sm:$0xff]
  %v5255 = vld [vmem:[#allocation2 + $0x3fc] sm:$0xff]
  %s5256 = scalar_lea.vmem %s3, 32
  %v5257 = vld [vmem:[%s5256] sm:$0xff]
  %v5259 = vsel %vm1083, %v5128, 0
  %v5262 = vsel %vm1083, %v5129, 0
  %v5265 = vsel %vm1083, %v5130, 0
  %v5268 = vsel %vm1083, %v5131, 0
  %v5271 = vsel %vm1083, %v5132, 0
  %v5274 = vsel %vm1083, %v5133, 0
  %v5277 = vsel %vm1083, %v5134, 0
  %v5280 = vsel %vm1083, %v5135, 0
  %v5283 = vsel %vm1083, %v5136, 0
  %v5286 = vsel %vm1083, %v5137, 0
  %v5289 = vsel %vm1083, %v5138, 0
  %v5292 = vsel %vm1083, %v5139, 0
  %v5295 = vsel %vm1083, %v5140, 0
  %v5298 = vsel %vm1083, %v5141, 0
  %v5301 = vsel %vm1083, %v5142, 0
  %v5304 = vsel %vm1083, %v5143, 0
  %v5307 = vsel %vm1083, %v5144, 0
  %v5310 = vsel %vm1083, %v5145, 0
  %v5313 = vsel %vm1083, %v5146, 0
  %v5316 = vsel %vm1083, %v5147, 0
  %v5319 = vsel %vm1083, %v5148, 0
  %v5322 = vsel %vm1083, %v5149, 0
  %v5325 = vsel %vm1083, %v5150, 0
  %v5328 = vsel %vm1083, %v5151, 0
  %v5331 = vsel %vm1083, %v5152, 0
  %v5334 = vsel %vm1083, %v5153, 0
  %v5337 = vsel %vm1083, %v5154, 0
  %v5340 = vsel %vm1083, %v5155, 0
  %v5343 = vsel %vm1083, %v5156, 0
  %v5346 = vsel %vm1083, %v5157, 0
  %v5349 = vsel %vm1083, %v5158, 0
  %v5352 = vsel %vm1083, %v5159, 0
  %v5355 = vsel %vm1083, %v5160, 0
  %v5358 = vsel %vm1083, %v5161, 0
  %v5361 = vsel %vm1083, %v5162, 0
  %v5364 = vsel %vm1083, %v5163, 0
  %v5367 = vsel %vm1083, %v5164, 0
  %v5370 = vsel %vm1083, %v5165, 0
  %v5373 = vsel %vm1083, %v5166, 0
  %v5376 = vsel %vm1083, %v5167, 0
  %v5379 = vsel %vm1083, %v5168, 0
  %v5382 = vsel %vm1083, %v5169, 0
  %v5385 = vsel %vm1083, %v5170, 0
  %v5388 = vsel %vm1083, %v5171, 0
  %v5391 = vsel %vm1083, %v5172, 0
  %v5394 = vsel %vm1083, %v5173, 0
  %v5397 = vsel %vm1083, %v5174, 0
  %v5400 = vsel %vm1083, %v5175, 0
  %v5403 = vsel %vm1083, %v5176, 0
  %v5406 = vsel %vm1083, %v5177, 0
  %v5409 = vsel %vm1083, %v5178, 0
  %v5412 = vsel %vm1083, %v5179, 0
  %v5415 = vsel %vm1083, %v5180, 0
  %v5418 = vsel %vm1083, %v5181, 0
  %v5421 = vsel %vm1083, %v5182, 0
  %v5424 = vsel %vm1083, %v5183, 0
  %v5427 = vsel %vm1083, %v5184, 0
  %v5430 = vsel %vm1083, %v5185, 0
  %v5433 = vsel %vm1083, %v5186, 0
  %v5436 = vsel %vm1083, %v5187, 0
  %v5439 = vsel %vm1083, %v5188, 0
  %v5442 = vsel %vm1083, %v5189, 0
  %v5445 = vsel %vm1083, %v5190, 0
  %v5448 = vsel %vm1083, %v5191, 0
  %v5451 = vsel %vm1083, %v5192, 0
  %v5454 = vsel %vm1083, %v5193, 0
  %v5457 = vsel %vm1083, %v5194, 0
  %v5460 = vsel %vm1083, %v5195, 0
  %v5463 = vsel %vm1083, %v5196, 0
  %v5466 = vsel %vm1083, %v5197, 0
  %v5469 = vsel %vm1083, %v5198, 0
  %v5472 = vsel %vm1083, %v5199, 0
  %v5475 = vsel %vm1083, %v5200, 0
  %v5478 = vsel %vm1083, %v5201, 0
  %v5481 = vsel %vm1083, %v5202, 0
  %v5484 = vsel %vm1083, %v5203, 0
  %v5487 = vsel %vm1083, %v5204, 0
  %v5490 = vsel %vm1083, %v5205, 0
  %v5493 = vsel %vm1083, %v5206, 0
  %v5496 = vsel %vm1083, %v5207, 0
  %v5499 = vsel %vm1083, %v5208, 0
  %v5502 = vsel %vm1083, %v5209, 0
  %v5505 = vsel %vm1083, %v5210, 0
  %v5508 = vsel %vm1083, %v5211, 0
  %v5511 = vsel %vm1083, %v5212, 0
  %v5514 = vsel %vm1083, %v5213, 0
  %v5517 = vsel %vm1083, %v5214, 0
  %v5520 = vsel %vm1083, %v5215, 0
  %v5523 = vsel %vm1083, %v5216, 0
  %v5526 = vsel %vm1083, %v5217, 0
  %v5529 = vsel %vm1083, %v5218, 0
  %v5532 = vsel %vm1083, %v5219, 0
  %v5535 = vsel %vm1083, %v5220, 0
  %v5538 = vsel %vm1083, %v5221, 0
  %v5541 = vsel %vm1083, %v5222, 0
  %v5544 = vsel %vm1083, %v5223, 0
  %v5547 = vsel %vm1083, %v5224, 0
  %v5550 = vsel %vm1083, %v5225, 0
  %v5553 = vsel %vm1083, %v5226, 0
  %v5556 = vsel %vm1083, %v5227, 0
  %v5559 = vsel %vm1083, %v5228, 0
  %v5562 = vsel %vm1083, %v5229, 0
  %v5565 = vsel %vm1083, %v5230, 0
  %v5568 = vsel %vm1083, %v5231, 0
  %v5571 = vsel %vm1083, %v5232, 0
  %v5574 = vsel %vm1083, %v5233, 0
  %v5577 = vsel %vm1083, %v5234, 0
  %v5580 = vsel %vm1083, %v5235, 0
  %v5583 = vsel %vm1083, %v5236, 0
  %v5586 = vsel %vm1083, %v5237, 0
  %v5589 = vsel %vm1083, %v5238, 0
  %v5592 = vsel %vm1083, %v5239, 0
  %v5595 = vsel %vm1083, %v5240, 0
  %v5598 = vsel %vm1083, %v5241, 0
  %v5601 = vsel %vm1083, %v5242, 0
  %v5604 = vsel %vm1083, %v5243, 0
  %v5607 = vsel %vm1083, %v5244, 0
  %v5610 = vsel %vm1083, %v5245, 0
  %v5613 = vsel %vm1083, %v5246, 0
  %v5616 = vsel %vm1083, %v5247, 0
  %v5619 = vsel %vm1083, %v5248, 0
  %v5622 = vsel %vm1083, %v5249, 0
  %v5625 = vsel %vm1083, %v5250, 0
  %v5628 = vsel %vm1083, %v5251, 0
  %v5631 = vsel %vm1083, %v5252, 0
  %v5634 = vsel %vm1083, %v5253, 0
  %v5637 = vsel %vm1083, %v5254, 0
  %v5640 = vsel %vm1083, %v5255, 0
  %5642 = vmatpush.msra.mxu0 0.0
  %5643 = vmatpush.msra.mxu0 0.0
  %5644 = vmatpush.msra.mxu0 0.0
  %5645 = vmatpush.msra.mxu0 0.0
  %5646 = vmatpush.msra.mxu0 0.0
  %5647 = vmatpush.msra.mxu0 0.0
  %5648 = vmatpush.msra.mxu0 0.0
  %5649 = vmatpush.msra.mxu0 0.0
  %5650 = vmatpush.msra.mxu0 0.0
  %5651 = vmatpush.msra.mxu0 0.0
  %5652 = vmatpush.msra.mxu0 0.0
  %5653 = vmatpush.msra.mxu0 0.0
  %5654 = vmatpush.msra.mxu0 0.0
  %5655 = vmatpush.msra.mxu0 0.0
  %5656 = vmatpush.msra.mxu0 0.0
  %5657 = vmatpush.msra.mxu0 %v5257
  %5658 = vmatmul.f32.gmra.mxu0 %v5259
  %v5659 = vpop.f32.mrf.mxu0
  %v5660 = vadd.f32 0.0, %v5659
  %5661 = vmatmul.f32.gmra.mxu0 %v5262
  %v5662 = vpop.f32.mrf.mxu0
  %v5663 = vadd.f32 0.0, %v5662
  %5664 = vmatmul.f32.gmra.mxu0 %v5265
  %v5665 = vpop.f32.mrf.mxu0
  %v5666 = vadd.f32 0.0, %v5665
  %5667 = vmatmul.f32.gmra.mxu0 %v5268
  %v5668 = vpop.f32.mrf.mxu0
  %v5669 = vadd.f32 0.0, %v5668
  %5670 = vmatmul.f32.gmra.mxu0 %v5271
  %v5671 = vpop.f32.mrf.mxu0
  %v5672 = vadd.f32 0.0, %v5671
  %5673 = vmatmul.f32.gmra.mxu0 %v5274
  %v5674 = vpop.f32.mrf.mxu0
  %v5675 = vadd.f32 0.0, %v5674
  %5676 = vmatmul.f32.gmra.mxu0 %v5277
  %v5677 = vpop.f32.mrf.mxu0
  %v5678 = vadd.f32 0.0, %v5677
  %5679 = vmatmul.f32.gmra.mxu0 %v5280
  %v5680 = vpop.f32.mrf.mxu0
  %v5681 = vadd.f32 0.0, %v5680
  %5682 = vmatmul.f32.gmra.mxu0 %v5283
  %v5683 = vpop.f32.mrf.mxu0
  %v5684 = vadd.f32 0.0, %v5683
  %5685 = vmatmul.f32.gmra.mxu0 %v5286
  %v5686 = vpop.f32.mrf.mxu0
  %v5687 = vadd.f32 0.0, %v5686
  %5688 = vmatmul.f32.gmra.mxu0 %v5289
  %v5689 = vpop.f32.mrf.mxu0
  %v5690 = vadd.f32 0.0, %v5689
  %5691 = vmatmul.f32.gmra.mxu0 %v5292
  %v5692 = vpop.f32.mrf.mxu0
  %v5693 = vadd.f32 0.0, %v5692
  %5694 = vmatmul.f32.gmra.mxu0 %v5295
  %v5695 = vpop.f32.mrf.mxu0
  %v5696 = vadd.f32 0.0, %v5695
  %5697 = vmatmul.f32.gmra.mxu0 %v5298
  %v5698 = vpop.f32.mrf.mxu0
  %v5699 = vadd.f32 0.0, %v5698
  %5700 = vmatmul.f32.gmra.mxu0 %v5301
  %v5701 = vpop.f32.mrf.mxu0
  %v5702 = vadd.f32 0.0, %v5701
  %5703 = vmatmul.f32.gmra.mxu0 %v5304
  %v5704 = vpop.f32.mrf.mxu0
  %v5705 = vadd.f32 0.0, %v5704
  %5706 = vmatmul.f32.gmra.mxu0 %v5307
  %v5707 = vpop.f32.mrf.mxu0
  %v5708 = vadd.f32 0.0, %v5707
  %5709 = vmatmul.f32.gmra.mxu0 %v5310
  %v5710 = vpop.f32.mrf.mxu0
  %v5711 = vadd.f32 0.0, %v5710
  %5712 = vmatmul.f32.gmra.mxu0 %v5313
  %v5713 = vpop.f32.mrf.mxu0
  %v5714 = vadd.f32 0.0, %v5713
  %5715 = vmatmul.f32.gmra.mxu0 %v5316
  %v5716 = vpop.f32.mrf.mxu0
  %v5717 = vadd.f32 0.0, %v5716
  %5718 = vmatmul.f32.gmra.mxu0 %v5319
  %v5719 = vpop.f32.mrf.mxu0
  %v5720 = vadd.f32 0.0, %v5719
  %5721 = vmatmul.f32.gmra.mxu0 %v5322
  %v5722 = vpop.f32.mrf.mxu0
  %v5723 = vadd.f32 0.0, %v5722
  %5724 = vmatmul.f32.gmra.mxu0 %v5325
  %v5725 = vpop.f32.mrf.mxu0
  %v5726 = vadd.f32 0.0, %v5725
  %5727 = vmatmul.f32.gmra.mxu0 %v5328
  %v5728 = vpop.f32.mrf.mxu0
  %v5729 = vadd.f32 0.0, %v5728
  %5730 = vmatmul.f32.gmra.mxu0 %v5331
  %v5731 = vpop.f32.mrf.mxu0
  %v5732 = vadd.f32 0.0, %v5731
  %5733 = vmatmul.f32.gmra.mxu0 %v5334
  %v5734 = vpop.f32.mrf.mxu0
  %v5735 = vadd.f32 0.0, %v5734
  %5736 = vmatmul.f32.gmra.mxu0 %v5337
  %v5737 = vpop.f32.mrf.mxu0
  %v5738 = vadd.f32 0.0, %v5737
  %5739 = vmatmul.f32.gmra.mxu0 %v5340
  %v5740 = vpop.f32.mrf.mxu0
  %v5741 = vadd.f32 0.0, %v5740
  %5742 = vmatmul.f32.gmra.mxu0 %v5343
  %v5743 = vpop.f32.mrf.mxu0
  %v5744 = vadd.f32 0.0, %v5743
  %5745 = vmatmul.f32.gmra.mxu0 %v5346
  %v5746 = vpop.f32.mrf.mxu0
  %v5747 = vadd.f32 0.0, %v5746
  %5748 = vmatmul.f32.gmra.mxu0 %v5349
  %v5749 = vpop.f32.mrf.mxu0
  %v5750 = vadd.f32 0.0, %v5749
  %5751 = vmatmul.f32.gmra.mxu0 %v5352
  %v5752 = vpop.f32.mrf.mxu0
  %v5753 = vadd.f32 0.0, %v5752
  %5754 = vmatmul.f32.gmra.mxu0 %v5355
  %v5755 = vpop.f32.mrf.mxu0
  %v5756 = vadd.f32 0.0, %v5755
  %5757 = vmatmul.f32.gmra.mxu0 %v5358
  %v5758 = vpop.f32.mrf.mxu0
  %v5759 = vadd.f32 0.0, %v5758
  %5760 = vmatmul.f32.gmra.mxu0 %v5361
  %v5761 = vpop.f32.mrf.mxu0
  %v5762 = vadd.f32 0.0, %v5761
  %5763 = vmatmul.f32.gmra.mxu0 %v5364
  %v5764 = vpop.f32.mrf.mxu0
  %v5765 = vadd.f32 0.0, %v5764
  %5766 = vmatmul.f32.gmra.mxu0 %v5367
  %v5767 = vpop.f32.mrf.mxu0
  %v5768 = vadd.f32 0.0, %v5767
  %5769 = vmatmul.f32.gmra.mxu0 %v5370
  %v5770 = vpop.f32.mrf.mxu0
  %v5771 = vadd.f32 0.0, %v5770
  %5772 = vmatmul.f32.gmra.mxu0 %v5373
  %v5773 = vpop.f32.mrf.mxu0
  %v5774 = vadd.f32 0.0, %v5773
  %5775 = vmatmul.f32.gmra.mxu0 %v5376
  %v5776 = vpop.f32.mrf.mxu0
  %v5777 = vadd.f32 0.0, %v5776
  %5778 = vmatmul.f32.gmra.mxu0 %v5379
  %v5779 = vpop.f32.mrf.mxu0
  %v5780 = vadd.f32 0.0, %v5779
  %5781 = vmatmul.f32.gmra.mxu0 %v5382
  %v5782 = vpop.f32.mrf.mxu0
  %v5783 = vadd.f32 0.0, %v5782
  %5784 = vmatmul.f32.gmra.mxu0 %v5385
  %v5785 = vpop.f32.mrf.mxu0
  %v5786 = vadd.f32 0.0, %v5785
  %5787 = vmatmul.f32.gmra.mxu0 %v5388
  %v5788 = vpop.f32.mrf.mxu0
  %v5789 = vadd.f32 0.0, %v5788
  %5790 = vmatmul.f32.gmra.mxu0 %v5391
  %v5791 = vpop.f32.mrf.mxu0
  %v5792 = vadd.f32 0.0, %v5791
  %5793 = vmatmul.f32.gmra.mxu0 %v5394
  %v5794 = vpop.f32.mrf.mxu0
  %v5795 = vadd.f32 0.0, %v5794
  %5796 = vmatmul.f32.gmra.mxu0 %v5397
  %v5797 = vpop.f32.mrf.mxu0
  %v5798 = vadd.f32 0.0, %v5797
  %5799 = vmatmul.f32.gmra.mxu0 %v5400
  %v5800 = vpop.f32.mrf.mxu0
  %v5801 = vadd.f32 0.0, %v5800
  %5802 = vmatmul.f32.gmra.mxu0 %v5403
  %v5803 = vpop.f32.mrf.mxu0
  %v5804 = vadd.f32 0.0, %v5803
  %5805 = vmatmul.f32.gmra.mxu0 %v5406
  %v5806 = vpop.f32.mrf.mxu0
  %v5807 = vadd.f32 0.0, %v5806
  %5808 = vmatmul.f32.gmra.mxu0 %v5409
  %v5809 = vpop.f32.mrf.mxu0
  %v5810 = vadd.f32 0.0, %v5809
  %5811 = vmatmul.f32.gmra.mxu0 %v5412
  %v5812 = vpop.f32.mrf.mxu0
  %v5813 = vadd.f32 0.0, %v5812
  %5814 = vmatmul.f32.gmra.mxu0 %v5415
  %v5815 = vpop.f32.mrf.mxu0
  %v5816 = vadd.f32 0.0, %v5815
  %5817 = vmatmul.f32.gmra.mxu0 %v5418
  %v5818 = vpop.f32.mrf.mxu0
  %v5819 = vadd.f32 0.0, %v5818
  %5820 = vmatmul.f32.gmra.mxu0 %v5421
  %v5821 = vpop.f32.mrf.mxu0
  %v5822 = vadd.f32 0.0, %v5821
  %5823 = vmatmul.f32.gmra.mxu0 %v5424
  %v5824 = vpop.f32.mrf.mxu0
  %v5825 = vadd.f32 0.0, %v5824
  %5826 = vmatmul.f32.gmra.mxu0 %v5427
  %v5827 = vpop.f32.mrf.mxu0
  %v5828 = vadd.f32 0.0, %v5827
  %5829 = vmatmul.f32.gmra.mxu0 %v5430
  %v5830 = vpop.f32.mrf.mxu0
  %v5831 = vadd.f32 0.0, %v5830
  %5832 = vmatmul.f32.gmra.mxu0 %v5433
  %v5833 = vpop.f32.mrf.mxu0
  %v5834 = vadd.f32 0.0, %v5833
  %5835 = vmatmul.f32.gmra.mxu0 %v5436
  %v5836 = vpop.f32.mrf.mxu0
  %v5837 = vadd.f32 0.0, %v5836
  %5838 = vmatmul.f32.gmra.mxu0 %v5439
  %v5839 = vpop.f32.mrf.mxu0
  %v5840 = vadd.f32 0.0, %v5839
  %5841 = vmatmul.f32.gmra.mxu0 %v5442
  %v5842 = vpop.f32.mrf.mxu0
  %v5843 = vadd.f32 0.0, %v5842
  %5844 = vmatmul.f32.gmra.mxu0 %v5445
  %v5845 = vpop.f32.mrf.mxu0
  %v5846 = vadd.f32 0.0, %v5845
  %5847 = vmatmul.f32.gmra.mxu0 %v5448
  %v5848 = vpop.f32.mrf.mxu0
  %v5849 = vadd.f32 0.0, %v5848
  %5850 = vmatmul.f32.gmra.mxu0 %v5451
  %v5851 = vpop.f32.mrf.mxu0
  %v5852 = vadd.f32 0.0, %v5851
  %5853 = vmatmul.f32.gmra.mxu0 %v5454
  %v5854 = vpop.f32.mrf.mxu0
  %v5855 = vadd.f32 0.0, %v5854
  %5856 = vmatmul.f32.gmra.mxu0 %v5457
  %v5857 = vpop.f32.mrf.mxu0
  %v5858 = vadd.f32 0.0, %v5857
  %5859 = vmatmul.f32.gmra.mxu0 %v5460
  %v5860 = vpop.f32.mrf.mxu0
  %v5861 = vadd.f32 0.0, %v5860
  %5862 = vmatmul.f32.gmra.mxu0 %v5463
  %v5863 = vpop.f32.mrf.mxu0
  %v5864 = vadd.f32 0.0, %v5863
  %5865 = vmatmul.f32.gmra.mxu0 %v5466
  %v5866 = vpop.f32.mrf.mxu0
  %v5867 = vadd.f32 0.0, %v5866
  %5868 = vmatmul.f32.gmra.mxu0 %v5469
  %v5869 = vpop.f32.mrf.mxu0
  %v5870 = vadd.f32 0.0, %v5869
  %5871 = vmatmul.f32.gmra.mxu0 %v5472
  %v5872 = vpop.f32.mrf.mxu0
  %v5873 = vadd.f32 0.0, %v5872
  %5874 = vmatmul.f32.gmra.mxu0 %v5475
  %v5875 = vpop.f32.mrf.mxu0
  %v5876 = vadd.f32 0.0, %v5875
  %5877 = vmatmul.f32.gmra.mxu0 %v5478
  %v5878 = vpop.f32.mrf.mxu0
  %v5879 = vadd.f32 0.0, %v5878
  %5880 = vmatmul.f32.gmra.mxu0 %v5481
  %v5881 = vpop.f32.mrf.mxu0
  %v5882 = vadd.f32 0.0, %v5881
  %5883 = vmatmul.f32.gmra.mxu0 %v5484
  %v5884 = vpop.f32.mrf.mxu0
  %v5885 = vadd.f32 0.0, %v5884
  %5886 = vmatmul.f32.gmra.mxu0 %v5487
  %v5887 = vpop.f32.mrf.mxu0
  %v5888 = vadd.f32 0.0, %v5887
  %5889 = vmatmul.f32.gmra.mxu0 %v5490
  %v5890 = vpop.f32.mrf.mxu0
  %v5891 = vadd.f32 0.0, %v5890
  %5892 = vmatmul.f32.gmra.mxu0 %v5493
  %v5893 = vpop.f32.mrf.mxu0
  %v5894 = vadd.f32 0.0, %v5893
  %5895 = vmatmul.f32.gmra.mxu0 %v5496
  %v5896 = vpop.f32.mrf.mxu0
  %v5897 = vadd.f32 0.0, %v5896
  %5898 = vmatmul.f32.gmra.mxu0 %v5499
  %v5899 = vpop.f32.mrf.mxu0
  %v5900 = vadd.f32 0.0, %v5899
  %5901 = vmatmul.f32.gmra.mxu0 %v5502
  %v5902 = vpop.f32.mrf.mxu0
  %v5903 = vadd.f32 0.0, %v5902
  %5904 = vmatmul.f32.gmra.mxu0 %v5505
  %v5905 = vpop.f32.mrf.mxu0
  %v5906 = vadd.f32 0.0, %v5905
  %5907 = vmatmul.f32.gmra.mxu0 %v5508
  %v5908 = vpop.f32.mrf.mxu0
  %v5909 = vadd.f32 0.0, %v5908
  %5910 = vmatmul.f32.gmra.mxu0 %v5511
  %v5911 = vpop.f32.mrf.mxu0
  %v5912 = vadd.f32 0.0, %v5911
  %5913 = vmatmul.f32.gmra.mxu0 %v5514
  %v5914 = vpop.f32.mrf.mxu0
  %v5915 = vadd.f32 0.0, %v5914
  %5916 = vmatmul.f32.gmra.mxu0 %v5517
  %v5917 = vpop.f32.mrf.mxu0
  %v5918 = vadd.f32 0.0, %v5917
  %5919 = vmatmul.f32.gmra.mxu0 %v5520
  %v5920 = vpop.f32.mrf.mxu0
  %v5921 = vadd.f32 0.0, %v5920
  %5922 = vmatmul.f32.gmra.mxu0 %v5523
  %v5923 = vpop.f32.mrf.mxu0
  %v5924 = vadd.f32 0.0, %v5923
  %5925 = vmatmul.f32.gmra.mxu0 %v5526
  %v5926 = vpop.f32.mrf.mxu0
  %v5927 = vadd.f32 0.0, %v5926
  %5928 = vmatmul.f32.gmra.mxu0 %v5529
  %v5929 = vpop.f32.mrf.mxu0
  %v5930 = vadd.f32 0.0, %v5929
  %5931 = vmatmul.f32.gmra.mxu0 %v5532
  %v5932 = vpop.f32.mrf.mxu0
  %v5933 = vadd.f32 0.0, %v5932
  %5934 = vmatmul.f32.gmra.mxu0 %v5535
  %v5935 = vpop.f32.mrf.mxu0
  %v5936 = vadd.f32 0.0, %v5935
  %5937 = vmatmul.f32.gmra.mxu0 %v5538
  %v5938 = vpop.f32.mrf.mxu0
  %v5939 = vadd.f32 0.0, %v5938
  %5940 = vmatmul.f32.gmra.mxu0 %v5541
  %v5941 = vpop.f32.mrf.mxu0
  %v5942 = vadd.f32 0.0, %v5941
  %5943 = vmatmul.f32.gmra.mxu0 %v5544
  %v5944 = vpop.f32.mrf.mxu0
  %v5945 = vadd.f32 0.0, %v5944
  %5946 = vmatmul.f32.gmra.mxu0 %v5547
  %v5947 = vpop.f32.mrf.mxu0
  %v5948 = vadd.f32 0.0, %v5947
  %5949 = vmatmul.f32.gmra.mxu0 %v5550
  %v5950 = vpop.f32.mrf.mxu0
  %v5951 = vadd.f32 0.0, %v5950
  %5952 = vmatmul.f32.gmra.mxu0 %v5553
  %v5953 = vpop.f32.mrf.mxu0
  %v5954 = vadd.f32 0.0, %v5953
  %5955 = vmatmul.f32.gmra.mxu0 %v5556
  %v5956 = vpop.f32.mrf.mxu0
  %v5957 = vadd.f32 0.0, %v5956
  %5958 = vmatmul.f32.gmra.mxu0 %v5559
  %v5959 = vpop.f32.mrf.mxu0
  %v5960 = vadd.f32 0.0, %v5959
  %5961 = vmatmul.f32.gmra.mxu0 %v5562
  %v5962 = vpop.f32.mrf.mxu0
  %v5963 = vadd.f32 0.0, %v5962
  %5964 = vmatmul.f32.gmra.mxu0 %v5565
  %v5965 = vpop.f32.mrf.mxu0
  %v5966 = vadd.f32 0.0, %v5965
  %5967 = vmatmul.f32.gmra.mxu0 %v5568
  %v5968 = vpop.f32.mrf.mxu0
  %v5969 = vadd.f32 0.0, %v5968
  %5970 = vmatmul.f32.gmra.mxu0 %v5571
  %v5971 = vpop.f32.mrf.mxu0
  %v5972 = vadd.f32 0.0, %v5971
  %5973 = vmatmul.f32.gmra.mxu0 %v5574
  %v5974 = vpop.f32.mrf.mxu0
  %v5975 = vadd.f32 0.0, %v5974
  %5976 = vmatmul.f32.gmra.mxu0 %v5577
  %v5977 = vpop.f32.mrf.mxu0
  %v5978 = vadd.f32 0.0, %v5977
  %5979 = vmatmul.f32.gmra.mxu0 %v5580
  %v5980 = vpop.f32.mrf.mxu0
  %v5981 = vadd.f32 0.0, %v5980
  %5982 = vmatmul.f32.gmra.mxu0 %v5583
  %v5983 = vpop.f32.mrf.mxu0
  %v5984 = vadd.f32 0.0, %v5983
  %5985 = vmatmul.f32.gmra.mxu0 %v5586
  %v5986 = vpop.f32.mrf.mxu0
  %v5987 = vadd.f32 0.0, %v5986
  %5988 = vmatmul.f32.gmra.mxu0 %v5589
  %v5989 = vpop.f32.mrf.mxu0
  %v5990 = vadd.f32 0.0, %v5989
  %5991 = vmatmul.f32.gmra.mxu0 %v5592
  %v5992 = vpop.f32.mrf.mxu0
  %v5993 = vadd.f32 0.0, %v5992
  %5994 = vmatmul.f32.gmra.mxu0 %v5595
  %v5995 = vpop.f32.mrf.mxu0
  %v5996 = vadd.f32 0.0, %v5995
  %5997 = vmatmul.f32.gmra.mxu0 %v5598
  %v5998 = vpop.f32.mrf.mxu0
  %v5999 = vadd.f32 0.0, %v5998
  %6000 = vmatmul.f32.gmra.mxu0 %v5601
  %v6001 = vpop.f32.mrf.mxu0
  %v6002 = vadd.f32 0.0, %v6001
  %6003 = vmatmul.f32.gmra.mxu0 %v5604
  %v6004 = vpop.f32.mrf.mxu0
  %v6005 = vadd.f32 0.0, %v6004
  %6006 = vmatmul.f32.gmra.mxu0 %v5607
  %v6007 = vpop.f32.mrf.mxu0
  %v6008 = vadd.f32 0.0, %v6007
  %6009 = vmatmul.f32.gmra.mxu0 %v5610
  %v6010 = vpop.f32.mrf.mxu0
  %v6011 = vadd.f32 0.0, %v6010
  %6012 = vmatmul.f32.gmra.mxu0 %v5613
  %v6013 = vpop.f32.mrf.mxu0
  %v6014 = vadd.f32 0.0, %v6013
  %6015 = vmatmul.f32.gmra.mxu0 %v5616
  %v6016 = vpop.f32.mrf.mxu0
  %v6017 = vadd.f32 0.0, %v6016
  %6018 = vmatmul.f32.gmra.mxu0 %v5619
  %v6019 = vpop.f32.mrf.mxu0
  %v6020 = vadd.f32 0.0, %v6019
  %6021 = vmatmul.f32.gmra.mxu0 %v5622
  %v6022 = vpop.f32.mrf.mxu0
  %v6023 = vadd.f32 0.0, %v6022
  %6024 = vmatmul.f32.gmra.mxu0 %v5625
  %v6025 = vpop.f32.mrf.mxu0
  %v6026 = vadd.f32 0.0, %v6025
  %6027 = vmatmul.f32.gmra.mxu0 %v5628
  %v6028 = vpop.f32.mrf.mxu0
  %v6029 = vadd.f32 0.0, %v6028
  %6030 = vmatmul.f32.gmra.mxu0 %v5631
  %v6031 = vpop.f32.mrf.mxu0
  %v6032 = vadd.f32 0.0, %v6031
  %6033 = vmatmul.f32.gmra.mxu0 %v5634
  %v6034 = vpop.f32.mrf.mxu0
  %v6035 = vadd.f32 0.0, %v6034
  %6036 = vmatmul.f32.gmra.mxu0 %v5637
  %v6037 = vpop.f32.mrf.mxu0
  %v6038 = vadd.f32 0.0, %v6037
  %6039 = vmatmul.f32.gmra.mxu0 %v5640
  %v6040 = vpop.f32.mrf.mxu0
  %v6041 = vadd.f32 0.0, %v6040
  %6042 = vdwg.mxu0
  %v6043 = vadd.f32 %v5000, %v5660
  %v6044 = vadd.f32 %v5001, %v5663
  %v6045 = vadd.f32 %v5002, %v5666
  %v6046 = vadd.f32 %v5003, %v5669
  %v6047 = vadd.f32 %v5004, %v5672
  %v6048 = vadd.f32 %v5005, %v5675
  %v6049 = vadd.f32 %v5006, %v5678
  %v6050 = vadd.f32 %v5007, %v5681
  %v6051 = vadd.f32 %v5008, %v5684
  %v6052 = vadd.f32 %v5009, %v5687
  %v6053 = vadd.f32 %v5010, %v5690
  %v6054 = vadd.f32 %v5011, %v5693
  %v6055 = vadd.f32 %v5012, %v5696
  %v6056 = vadd.f32 %v5013, %v5699
  %v6057 = vadd.f32 %v5014, %v5702
  %v6058 = vadd.f32 %v5015, %v5705
  %v6059 = vadd.f32 %v5016, %v5708
  %v6060 = vadd.f32 %v5017, %v5711
  %v6061 = vadd.f32 %v5018, %v5714
  %v6062 = vadd.f32 %v5019, %v5717
  %v6063 = vadd.f32 %v5020, %v5720
  %v6064 = vadd.f32 %v5021, %v5723
  %v6065 = vadd.f32 %v5022, %v5726
  %v6066 = vadd.f32 %v5023, %v5729
  %v6067 = vadd.f32 %v5024, %v5732
  %v6068 = vadd.f32 %v5025, %v5735
  %v6069 = vadd.f32 %v5026, %v5738
  %v6070 = vadd.f32 %v5027, %v5741
  %v6071 = vadd.f32 %v5028, %v5744
  %v6072 = vadd.f32 %v5029, %v5747
  %v6073 = vadd.f32 %v5030, %v5750
  %v6074 = vadd.f32 %v5031, %v5753
  %v6075 = vadd.f32 %v5032, %v5756
  %v6076 = vadd.f32 %v5033, %v5759
  %v6077 = vadd.f32 %v5034, %v5762
  %v6078 = vadd.f32 %v5035, %v5765
  %v6079 = vadd.f32 %v5036, %v5768
  %v6080 = vadd.f32 %v5037, %v5771
  %v6081 = vadd.f32 %v5038, %v5774
  %v6082 = vadd.f32 %v5039, %v5777
  %v6083 = vadd.f32 %v5040, %v5780
  %v6084 = vadd.f32 %v5041, %v5783
  %v6085 = vadd.f32 %v5042, %v5786
  %v6086 = vadd.f32 %v5043, %v5789
  %v6087 = vadd.f32 %v5044, %v5792
  %v6088 = vadd.f32 %v5045, %v5795
  %v6089 = vadd.f32 %v5046, %v5798
  %v6090 = vadd.f32 %v5047, %v5801
  %v6091 = vadd.f32 %v5048, %v5804
  %v6092 = vadd.f32 %v5049, %v5807
  %v6093 = vadd.f32 %v5050, %v5810
  %v6094 = vadd.f32 %v5051, %v5813
  %v6095 = vadd.f32 %v5052, %v5816
  %v6096 = vadd.f32 %v5053, %v5819
  %v6097 = vadd.f32 %v5054, %v5822
  %v6098 = vadd.f32 %v5055, %v5825
  %v6099 = vadd.f32 %v5056, %v5828
  %v6100 = vadd.f32 %v5057, %v5831
  %v6101 = vadd.f32 %v5058, %v5834
  %v6102 = vadd.f32 %v5059, %v5837
  %v6103 = vadd.f32 %v5060, %v5840
  %v6104 = vadd.f32 %v5061, %v5843
  %v6105 = vadd.f32 %v5062, %v5846
  %v6106 = vadd.f32 %v5063, %v5849
  %v6107 = vadd.f32 %v5064, %v5852
  %v6108 = vadd.f32 %v5065, %v5855
  %v6109 = vadd.f32 %v5066, %v5858
  %v6110 = vadd.f32 %v5067, %v5861
  %v6111 = vadd.f32 %v5068, %v5864
  %v6112 = vadd.f32 %v5069, %v5867
  %v6113 = vadd.f32 %v5070, %v5870
  %v6114 = vadd.f32 %v5071, %v5873
  %v6115 = vadd.f32 %v5072, %v5876
  %v6116 = vadd.f32 %v5073, %v5879
  %v6117 = vadd.f32 %v5074, %v5882
  %v6118 = vadd.f32 %v5075, %v5885
  %v6119 = vadd.f32 %v5076, %v5888
  %v6120 = vadd.f32 %v5077, %v5891
  %v6121 = vadd.f32 %v5078, %v5894
  %v6122 = vadd.f32 %v5079, %v5897
  %v6123 = vadd.f32 %v5080, %v5900
  %v6124 = vadd.f32 %v5081, %v5903
  %v6125 = vadd.f32 %v5082, %v5906
  %v6126 = vadd.f32 %v5083, %v5909
  %v6127 = vadd.f32 %v5084, %v5912
  %v6128 = vadd.f32 %v5085, %v5915
  %v6129 = vadd.f32 %v5086, %v5918
  %v6130 = vadd.f32 %v5087, %v5921
  %v6131 = vadd.f32 %v5088, %v5924
  %v6132 = vadd.f32 %v5089, %v5927
  %v6133 = vadd.f32 %v5090, %v5930
  %v6134 = vadd.f32 %v5091, %v5933
  %v6135 = vadd.f32 %v5092, %v5936
  %v6136 = vadd.f32 %v5093, %v5939
  %v6137 = vadd.f32 %v5094, %v5942
  %v6138 = vadd.f32 %v5095, %v5945
  %v6139 = vadd.f32 %v5096, %v5948
  %v6140 = vadd.f32 %v5097, %v5951
  %v6141 = vadd.f32 %v5098, %v5954
  %v6142 = vadd.f32 %v5099, %v5957
  %v6143 = vadd.f32 %v5100, %v5960
  %v6144 = vadd.f32 %v5101, %v5963
  %v6145 = vadd.f32 %v5102, %v5966
  %v6146 = vadd.f32 %v5103, %v5969
  %v6147 = vadd.f32 %v5104, %v5972
  %v6148 = vadd.f32 %v5105, %v5975
  %v6149 = vadd.f32 %v5106, %v5978
  %v6150 = vadd.f32 %v5107, %v5981
  %v6151 = vadd.f32 %v5108, %v5984
  %v6152 = vadd.f32 %v5109, %v5987
  %v6153 = vadd.f32 %v5110, %v5990
  %v6154 = vadd.f32 %v5111, %v5993
  %v6155 = vadd.f32 %v5112, %v5996
  %v6156 = vadd.f32 %v5113, %v5999
  %v6157 = vadd.f32 %v5114, %v6002
  %v6158 = vadd.f32 %v5115, %v6005
  %v6159 = vadd.f32 %v5116, %v6008
  %v6160 = vadd.f32 %v5117, %v6011
  %v6161 = vadd.f32 %v5118, %v6014
  %v6162 = vadd.f32 %v5119, %v6017
  %v6163 = vadd.f32 %v5120, %v6020
  %v6164 = vadd.f32 %v5121, %v6023
  %v6165 = vadd.f32 %v5122, %v6026
  %v6166 = vadd.f32 %v5123, %v6029
  %v6167 = vadd.f32 %v5124, %v6032
  %v6168 = vadd.f32 %v5125, %v6035
  %v6169 = vadd.f32 %v5126, %v6038
  %v6170 = vadd.f32 %v5127, %v6041
  %v6171 = vld [vmem:[#allocation2 + $0x5] sm:$0xff]
  %v6172 = vld [vmem:[#allocation2 + $0xd] sm:$0xff]
  %v6173 = vld [vmem:[#allocation2 + $0x15] sm:$0xff]
  %v6174 = vld [vmem:[#allocation2 + $0x1d] sm:$0xff]
  %v6175 = vld [vmem:[#allocation2 + $0x25] sm:$0xff]
  %v6176 = vld [vmem:[#allocation2 + $0x2d] sm:$0xff]
  %v6177 = vld [vmem:[#allocation2 + $0x35] sm:$0xff]
  %v6178 = vld [vmem:[#allocation2 + $0x3d] sm:$0xff]
  %v6179 = vld [vmem:[#allocation2 + $0x45] sm:$0xff]
  %v6180 = vld [vmem:[#allocation2 + $0x4d] sm:$0xff]
  %v6181 = vld [vmem:[#allocation2 + $0x55] sm:$0xff]
  %v6182 = vld [vmem:[#allocation2 + $0x5d] sm:$0xff]
  %v6183 = vld [vmem:[#allocation2 + $0x65] sm:$0xff]
  %v6184 = vld [vmem:[#allocation2 + $0x6d] sm:$0xff]
  %v6185 = vld [vmem:[#allocation2 + $0x75] sm:$0xff]
  %v6186 = vld [vmem:[#allocation2 + $0x7d] sm:$0xff]
  %v6187 = vld [vmem:[#allocation2 + $0x85] sm:$0xff]
  %v6188 = vld [vmem:[#allocation2 + $0x8d] sm:$0xff]
  %v6189 = vld [vmem:[#allocation2 + $0x95] sm:$0xff]
  %v6190 = vld [vmem:[#allocation2 + $0x9d] sm:$0xff]
  %v6191 = vld [vmem:[#allocation2 + $0xa5] sm:$0xff]
  %v6192 = vld [vmem:[#allocation2 + $0xad] sm:$0xff]
  %v6193 = vld [vmem:[#allocation2 + $0xb5] sm:$0xff]
  %v6194 = vld [vmem:[#allocation2 + $0xbd] sm:$0xff]
  %v6195 = vld [vmem:[#allocation2 + $0xc5] sm:$0xff]
  %v6196 = vld [vmem:[#allocation2 + $0xcd] sm:$0xff]
  %v6197 = vld [vmem:[#allocation2 + $0xd5] sm:$0xff]
  %v6198 = vld [vmem:[#allocation2 + $0xdd] sm:$0xff]
  %v6199 = vld [vmem:[#allocation2 + $0xe5] sm:$0xff]
  %v6200 = vld [vmem:[#allocation2 + $0xed] sm:$0xff]
  %v6201 = vld [vmem:[#allocation2 + $0xf5] sm:$0xff]
  %v6202 = vld [vmem:[#allocation2 + $0xfd] sm:$0xff]
  %v6203 = vld [vmem:[#allocation2 + $0x105] sm:$0xff]
  %v6204 = vld [vmem:[#allocation2 + $0x10d] sm:$0xff]
  %v6205 = vld [vmem:[#allocation2 + $0x115] sm:$0xff]
  %v6206 = vld [vmem:[#allocation2 + $0x11d] sm:$0xff]
  %v6207 = vld [vmem:[#allocation2 + $0x125] sm:$0xff]
  %v6208 = vld [vmem:[#allocation2 + $0x12d] sm:$0xff]
  %v6209 = vld [vmem:[#allocation2 + $0x135] sm:$0xff]
  %v6210 = vld [vmem:[#allocation2 + $0x13d] sm:$0xff]
  %v6211 = vld [vmem:[#allocation2 + $0x145] sm:$0xff]
  %v6212 = vld [vmem:[#allocation2 + $0x14d] sm:$0xff]
  %v6213 = vld [vmem:[#allocation2 + $0x155] sm:$0xff]
  %v6214 = vld [vmem:[#allocation2 + $0x15d] sm:$0xff]
  %v6215 = vld [vmem:[#allocation2 + $0x165] sm:$0xff]
  %v6216 = vld [vmem:[#allocation2 + $0x16d] sm:$0xff]
  %v6217 = vld [vmem:[#allocation2 + $0x175] sm:$0xff]
  %v6218 = vld [vmem:[#allocation2 + $0x17d] sm:$0xff]
  %v6219 = vld [vmem:[#allocation2 + $0x185] sm:$0xff]
  %v6220 = vld [vmem:[#allocation2 + $0x18d] sm:$0xff]
  %v6221 = vld [vmem:[#allocation2 + $0x195] sm:$0xff]
  %v6222 = vld [vmem:[#allocation2 + $0x19d] sm:$0xff]
  %v6223 = vld [vmem:[#allocation2 + $0x1a5] sm:$0xff]
  %v6224 = vld [vmem:[#allocation2 + $0x1ad] sm:$0xff]
  %v6225 = vld [vmem:[#allocation2 + $0x1b5] sm:$0xff]
  %v6226 = vld [vmem:[#allocation2 + $0x1bd] sm:$0xff]
  %v6227 = vld [vmem:[#allocation2 + $0x1c5] sm:$0xff]
  %v6228 = vld [vmem:[#allocation2 + $0x1cd] sm:$0xff]
  %v6229 = vld [vmem:[#allocation2 + $0x1d5] sm:$0xff]
  %v6230 = vld [vmem:[#allocation2 + $0x1dd] sm:$0xff]
  %v6231 = vld [vmem:[#allocation2 + $0x1e5] sm:$0xff]
  %v6232 = vld [vmem:[#allocation2 + $0x1ed] sm:$0xff]
  %v6233 = vld [vmem:[#allocation2 + $0x1f5] sm:$0xff]
  %v6234 = vld [vmem:[#allocation2 + $0x1fd] sm:$0xff]
  %v6235 = vld [vmem:[#allocation2 + $0x205] sm:$0xff]
  %v6236 = vld [vmem:[#allocation2 + $0x20d] sm:$0xff]
  %v6237 = vld [vmem:[#allocation2 + $0x215] sm:$0xff]
  %v6238 = vld [vmem:[#allocation2 + $0x21d] sm:$0xff]
  %v6239 = vld [vmem:[#allocation2 + $0x225] sm:$0xff]
  %v6240 = vld [vmem:[#allocation2 + $0x22d] sm:$0xff]
  %v6241 = vld [vmem:[#allocation2 + $0x235] sm:$0xff]
  %v6242 = vld [vmem:[#allocation2 + $0x23d] sm:$0xff]
  %v6243 = vld [vmem:[#allocation2 + $0x245] sm:$0xff]
  %v6244 = vld [vmem:[#allocation2 + $0x24d] sm:$0xff]
  %v6245 = vld [vmem:[#allocation2 + $0x255] sm:$0xff]
  %v6246 = vld [vmem:[#allocation2 + $0x25d] sm:$0xff]
  %v6247 = vld [vmem:[#allocation2 + $0x265] sm:$0xff]
  %v6248 = vld [vmem:[#allocation2 + $0x26d] sm:$0xff]
  %v6249 = vld [vmem:[#allocation2 + $0x275] sm:$0xff]
  %v6250 = vld [vmem:[#allocation2 + $0x27d] sm:$0xff]
  %v6251 = vld [vmem:[#allocation2 + $0x285] sm:$0xff]
  %v6252 = vld [vmem:[#allocation2 + $0x28d] sm:$0xff]
  %v6253 = vld [vmem:[#allocation2 + $0x295] sm:$0xff]
  %v6254 = vld [vmem:[#allocation2 + $0x29d] sm:$0xff]
  %v6255 = vld [vmem:[#allocation2 + $0x2a5] sm:$0xff]
  %v6256 = vld [vmem:[#allocation2 + $0x2ad] sm:$0xff]
  %v6257 = vld [vmem:[#allocation2 + $0x2b5] sm:$0xff]
  %v6258 = vld [vmem:[#allocation2 + $0x2bd] sm:$0xff]
  %v6259 = vld [vmem:[#allocation2 + $0x2c5] sm:$0xff]
  %v6260 = vld [vmem:[#allocation2 + $0x2cd] sm:$0xff]
  %v6261 = vld [vmem:[#allocation2 + $0x2d5] sm:$0xff]
  %v6262 = vld [vmem:[#allocation2 + $0x2dd] sm:$0xff]
  %v6263 = vld [vmem:[#allocation2 + $0x2e5] sm:$0xff]
  %v6264 = vld [vmem:[#allocation2 + $0x2ed] sm:$0xff]
  %v6265 = vld [vmem:[#allocation2 + $0x2f5] sm:$0xff]
  %v6266 = vld [vmem:[#allocation2 + $0x2fd] sm:$0xff]
  %v6267 = vld [vmem:[#allocation2 + $0x305] sm:$0xff]
  %v6268 = vld [vmem:[#allocation2 + $0x30d] sm:$0xff]
  %v6269 = vld [vmem:[#allocation2 + $0x315] sm:$0xff]
  %v6270 = vld [vmem:[#allocation2 + $0x31d] sm:$0xff]
  %v6271 = vld [vmem:[#allocation2 + $0x325] sm:$0xff]
  %v6272 = vld [vmem:[#allocation2 + $0x32d] sm:$0xff]
  %v6273 = vld [vmem:[#allocation2 + $0x335] sm:$0xff]
  %v6274 = vld [vmem:[#allocation2 + $0x33d] sm:$0xff]
  %v6275 = vld [vmem:[#allocation2 + $0x345] sm:$0xff]
  %v6276 = vld [vmem:[#allocation2 + $0x34d] sm:$0xff]
  %v6277 = vld [vmem:[#allocation2 + $0x355] sm:$0xff]
  %v6278 = vld [vmem:[#allocation2 + $0x35d] sm:$0xff]
  %v6279 = vld [vmem:[#allocation2 + $0x365] sm:$0xff]
  %v6280 = vld [vmem:[#allocation2 + $0x36d] sm:$0xff]
  %v6281 = vld [vmem:[#allocation2 + $0x375] sm:$0xff]
  %v6282 = vld [vmem:[#allocation2 + $0x37d] sm:$0xff]
  %v6283 = vld [vmem:[#allocation2 + $0x385] sm:$0xff]
  %v6284 = vld [vmem:[#allocation2 + $0x38d] sm:$0xff]
  %v6285 = vld [vmem:[#allocation2 + $0x395] sm:$0xff]
  %v6286 = vld [vmem:[#allocation2 + $0x39d] sm:$0xff]
  %v6287 = vld [vmem:[#allocation2 + $0x3a5] sm:$0xff]
  %v6288 = vld [vmem:[#allocation2 + $0x3ad] sm:$0xff]
  %v6289 = vld [vmem:[#allocation2 + $0x3b5] sm:$0xff]
  %v6290 = vld [vmem:[#allocation2 + $0x3bd] sm:$0xff]
  %v6291 = vld [vmem:[#allocation2 + $0x3c5] sm:$0xff]
  %v6292 = vld [vmem:[#allocation2 + $0x3cd] sm:$0xff]
  %v6293 = vld [vmem:[#allocation2 + $0x3d5] sm:$0xff]
  %v6294 = vld [vmem:[#allocation2 + $0x3dd] sm:$0xff]
  %v6295 = vld [vmem:[#allocation2 + $0x3e5] sm:$0xff]
  %v6296 = vld [vmem:[#allocation2 + $0x3ed] sm:$0xff]
  %v6297 = vld [vmem:[#allocation2 + $0x3f5] sm:$0xff]
  %v6298 = vld [vmem:[#allocation2 + $0x3fd] sm:$0xff]
  %s6299 = scalar_lea.vmem %s3, 40
  %v6300 = vld [vmem:[%s6299] sm:$0xff]
  %v6302 = vsel %vm1083, %v6171, 0
  %v6305 = vsel %vm1083, %v6172, 0
  %v6308 = vsel %vm1083, %v6173, 0
  %v6311 = vsel %vm1083, %v6174, 0
  %v6314 = vsel %vm1083, %v6175, 0
  %v6317 = vsel %vm1083, %v6176, 0
  %v6320 = vsel %vm1083, %v6177, 0
  %v6323 = vsel %vm1083, %v6178, 0
  %v6326 = vsel %vm1083, %v6179, 0
  %v6329 = vsel %vm1083, %v6180, 0
  %v6332 = vsel %vm1083, %v6181, 0
  %v6335 = vsel %vm1083, %v6182, 0
  %v6338 = vsel %vm1083, %v6183, 0
  %v6341 = vsel %vm1083, %v6184, 0
  %v6344 = vsel %vm1083, %v6185, 0
  %v6347 = vsel %vm1083, %v6186, 0
  %v6350 = vsel %vm1083, %v6187, 0
  %v6353 = vsel %vm1083, %v6188, 0
  %v6356 = vsel %vm1083, %v6189, 0
  %v6359 = vsel %vm1083, %v6190, 0
  %v6362 = vsel %vm1083, %v6191, 0
  %v6365 = vsel %vm1083, %v6192, 0
  %v6368 = vsel %vm1083, %v6193, 0
  %v6371 = vsel %vm1083, %v6194, 0
  %v6374 = vsel %vm1083, %v6195, 0
  %v6377 = vsel %vm1083, %v6196, 0
  %v6380 = vsel %vm1083, %v6197, 0
  %v6383 = vsel %vm1083, %v6198, 0
  %v6386 = vsel %vm1083, %v6199, 0
  %v6389 = vsel %vm1083, %v6200, 0
  %v6392 = vsel %vm1083, %v6201, 0
  %v6395 = vsel %vm1083, %v6202, 0
  %v6398 = vsel %vm1083, %v6203, 0
  %v6401 = vsel %vm1083, %v6204, 0
  %v6404 = vsel %vm1083, %v6205, 0
  %v6407 = vsel %vm1083, %v6206, 0
  %v6410 = vsel %vm1083, %v6207, 0
  %v6413 = vsel %vm1083, %v6208, 0
  %v6416 = vsel %vm1083, %v6209, 0
  %v6419 = vsel %vm1083, %v6210, 0
  %v6422 = vsel %vm1083, %v6211, 0
  %v6425 = vsel %vm1083, %v6212, 0
  %v6428 = vsel %vm1083, %v6213, 0
  %v6431 = vsel %vm1083, %v6214, 0
  %v6434 = vsel %vm1083, %v6215, 0
  %v6437 = vsel %vm1083, %v6216, 0
  %v6440 = vsel %vm1083, %v6217, 0
  %v6443 = vsel %vm1083, %v6218, 0
  %v6446 = vsel %vm1083, %v6219, 0
  %v6449 = vsel %vm1083, %v6220, 0
  %v6452 = vsel %vm1083, %v6221, 0
  %v6455 = vsel %vm1083, %v6222, 0
  %v6458 = vsel %vm1083, %v6223, 0
  %v6461 = vsel %vm1083, %v6224, 0
  %v6464 = vsel %vm1083, %v6225, 0
  %v6467 = vsel %vm1083, %v6226, 0
  %v6470 = vsel %vm1083, %v6227, 0
  %v6473 = vsel %vm1083, %v6228, 0
  %v6476 = vsel %vm1083, %v6229, 0
  %v6479 = vsel %vm1083, %v6230, 0
  %v6482 = vsel %vm1083, %v6231, 0
  %v6485 = vsel %vm1083, %v6232, 0
  %v6488 = vsel %vm1083, %v6233, 0
  %v6491 = vsel %vm1083, %v6234, 0
  %v6494 = vsel %vm1083, %v6235, 0
  %v6497 = vsel %vm1083, %v6236, 0
  %v6500 = vsel %vm1083, %v6237, 0
  %v6503 = vsel %vm1083, %v6238, 0
  %v6506 = vsel %vm1083, %v6239, 0
  %v6509 = vsel %vm1083, %v6240, 0
  %v6512 = vsel %vm1083, %v6241, 0
  %v6515 = vsel %vm1083, %v6242, 0
  %v6518 = vsel %vm1083, %v6243, 0
  %v6521 = vsel %vm1083, %v6244, 0
  %v6524 = vsel %vm1083, %v6245, 0
  %v6527 = vsel %vm1083, %v6246, 0
  %v6530 = vsel %vm1083, %v6247, 0
  %v6533 = vsel %vm1083, %v6248, 0
  %v6536 = vsel %vm1083, %v6249, 0
  %v6539 = vsel %vm1083, %v6250, 0
  %v6542 = vsel %vm1083, %v6251, 0
  %v6545 = vsel %vm1083, %v6252, 0
  %v6548 = vsel %vm1083, %v6253, 0
  %v6551 = vsel %vm1083, %v6254, 0
  %v6554 = vsel %vm1083, %v6255, 0
  %v6557 = vsel %vm1083, %v6256, 0
  %v6560 = vsel %vm1083, %v6257, 0
  %v6563 = vsel %vm1083, %v6258, 0
  %v6566 = vsel %vm1083, %v6259, 0
  %v6569 = vsel %vm1083, %v6260, 0
  %v6572 = vsel %vm1083, %v6261, 0
  %v6575 = vsel %vm1083, %v6262, 0
  %v6578 = vsel %vm1083, %v6263, 0
  %v6581 = vsel %vm1083, %v6264, 0
  %v6584 = vsel %vm1083, %v6265, 0
  %v6587 = vsel %vm1083, %v6266, 0
  %v6590 = vsel %vm1083, %v6267, 0
  %v6593 = vsel %vm1083, %v6268, 0
  %v6596 = vsel %vm1083, %v6269, 0
  %v6599 = vsel %vm1083, %v6270, 0
  %v6602 = vsel %vm1083, %v6271, 0
  %v6605 = vsel %vm1083, %v6272, 0
  %v6608 = vsel %vm1083, %v6273, 0
  %v6611 = vsel %vm1083, %v6274, 0
  %v6614 = vsel %vm1083, %v6275, 0
  %v6617 = vsel %vm1083, %v6276, 0
  %v6620 = vsel %vm1083, %v6277, 0
  %v6623 = vsel %vm1083, %v6278, 0
  %v6626 = vsel %vm1083, %v6279, 0
  %v6629 = vsel %vm1083, %v6280, 0
  %v6632 = vsel %vm1083, %v6281, 0
  %v6635 = vsel %vm1083, %v6282, 0
  %v6638 = vsel %vm1083, %v6283, 0
  %v6641 = vsel %vm1083, %v6284, 0
  %v6644 = vsel %vm1083, %v6285, 0
  %v6647 = vsel %vm1083, %v6286, 0
  %v6650 = vsel %vm1083, %v6287, 0
  %v6653 = vsel %vm1083, %v6288, 0
  %v6656 = vsel %vm1083, %v6289, 0
  %v6659 = vsel %vm1083, %v6290, 0
  %v6662 = vsel %vm1083, %v6291, 0
  %v6665 = vsel %vm1083, %v6292, 0
  %v6668 = vsel %vm1083, %v6293, 0
  %v6671 = vsel %vm1083, %v6294, 0
  %v6674 = vsel %vm1083, %v6295, 0
  %v6677 = vsel %vm1083, %v6296, 0
  %v6680 = vsel %vm1083, %v6297, 0
  %v6683 = vsel %vm1083, %v6298, 0
  %6685 = vmatpush.msra.mxu0 0.0
  %6686 = vmatpush.msra.mxu0 0.0
  %6687 = vmatpush.msra.mxu0 0.0
  %6688 = vmatpush.msra.mxu0 0.0
  %6689 = vmatpush.msra.mxu0 0.0
  %6690 = vmatpush.msra.mxu0 0.0
  %6691 = vmatpush.msra.mxu0 0.0
  %6692 = vmatpush.msra.mxu0 0.0
  %6693 = vmatpush.msra.mxu0 0.0
  %6694 = vmatpush.msra.mxu0 0.0
  %6695 = vmatpush.msra.mxu0 0.0
  %6696 = vmatpush.msra.mxu0 0.0
  %6697 = vmatpush.msra.mxu0 0.0
  %6698 = vmatpush.msra.mxu0 0.0
  %6699 = vmatpush.msra.mxu0 0.0
  %6700 = vmatpush.msra.mxu0 %v6300
  %6701 = vmatmul.f32.gmra.mxu0 %v6302
  %v6702 = vpop.f32.mrf.mxu0
  %v6703 = vadd.f32 0.0, %v6702
  %6704 = vmatmul.f32.gmra.mxu0 %v6305
  %v6705 = vpop.f32.mrf.mxu0
  %v6706 = vadd.f32 0.0, %v6705
  %6707 = vmatmul.f32.gmra.mxu0 %v6308
  %v6708 = vpop.f32.mrf.mxu0
  %v6709 = vadd.f32 0.0, %v6708
  %6710 = vmatmul.f32.gmra.mxu0 %v6311
  %v6711 = vpop.f32.mrf.mxu0
  %v6712 = vadd.f32 0.0, %v6711
  %6713 = vmatmul.f32.gmra.mxu0 %v6314
  %v6714 = vpop.f32.mrf.mxu0
  %v6715 = vadd.f32 0.0, %v6714
  %6716 = vmatmul.f32.gmra.mxu0 %v6317
  %v6717 = vpop.f32.mrf.mxu0
  %v6718 = vadd.f32 0.0, %v6717
  %6719 = vmatmul.f32.gmra.mxu0 %v6320
  %v6720 = vpop.f32.mrf.mxu0
  %v6721 = vadd.f32 0.0, %v6720
  %6722 = vmatmul.f32.gmra.mxu0 %v6323
  %v6723 = vpop.f32.mrf.mxu0
  %v6724 = vadd.f32 0.0, %v6723
  %6725 = vmatmul.f32.gmra.mxu0 %v6326
  %v6726 = vpop.f32.mrf.mxu0
  %v6727 = vadd.f32 0.0, %v6726
  %6728 = vmatmul.f32.gmra.mxu0 %v6329
  %v6729 = vpop.f32.mrf.mxu0
  %v6730 = vadd.f32 0.0, %v6729
  %6731 = vmatmul.f32.gmra.mxu0 %v6332
  %v6732 = vpop.f32.mrf.mxu0
  %v6733 = vadd.f32 0.0, %v6732
  %6734 = vmatmul.f32.gmra.mxu0 %v6335
  %v6735 = vpop.f32.mrf.mxu0
  %v6736 = vadd.f32 0.0, %v6735
  %6737 = vmatmul.f32.gmra.mxu0 %v6338
  %v6738 = vpop.f32.mrf.mxu0
  %v6739 = vadd.f32 0.0, %v6738
  %6740 = vmatmul.f32.gmra.mxu0 %v6341
  %v6741 = vpop.f32.mrf.mxu0
  %v6742 = vadd.f32 0.0, %v6741
  %6743 = vmatmul.f32.gmra.mxu0 %v6344
  %v6744 = vpop.f32.mrf.mxu0
  %v6745 = vadd.f32 0.0, %v6744
  %6746 = vmatmul.f32.gmra.mxu0 %v6347
  %v6747 = vpop.f32.mrf.mxu0
  %v6748 = vadd.f32 0.0, %v6747
  %6749 = vmatmul.f32.gmra.mxu0 %v6350
  %v6750 = vpop.f32.mrf.mxu0
  %v6751 = vadd.f32 0.0, %v6750
  %6752 = vmatmul.f32.gmra.mxu0 %v6353
  %v6753 = vpop.f32.mrf.mxu0
  %v6754 = vadd.f32 0.0, %v6753
  %6755 = vmatmul.f32.gmra.mxu0 %v6356
  %v6756 = vpop.f32.mrf.mxu0
  %v6757 = vadd.f32 0.0, %v6756
  %6758 = vmatmul.f32.gmra.mxu0 %v6359
  %v6759 = vpop.f32.mrf.mxu0
  %v6760 = vadd.f32 0.0, %v6759
  %6761 = vmatmul.f32.gmra.mxu0 %v6362
  %v6762 = vpop.f32.mrf.mxu0
  %v6763 = vadd.f32 0.0, %v6762
  %6764 = vmatmul.f32.gmra.mxu0 %v6365
  %v6765 = vpop.f32.mrf.mxu0
  %v6766 = vadd.f32 0.0, %v6765
  %6767 = vmatmul.f32.gmra.mxu0 %v6368
  %v6768 = vpop.f32.mrf.mxu0
  %v6769 = vadd.f32 0.0, %v6768
  %6770 = vmatmul.f32.gmra.mxu0 %v6371
  %v6771 = vpop.f32.mrf.mxu0
  %v6772 = vadd.f32 0.0, %v6771
  %6773 = vmatmul.f32.gmra.mxu0 %v6374
  %v6774 = vpop.f32.mrf.mxu0
  %v6775 = vadd.f32 0.0, %v6774
  %6776 = vmatmul.f32.gmra.mxu0 %v6377
  %v6777 = vpop.f32.mrf.mxu0
  %v6778 = vadd.f32 0.0, %v6777
  %6779 = vmatmul.f32.gmra.mxu0 %v6380
  %v6780 = vpop.f32.mrf.mxu0
  %v6781 = vadd.f32 0.0, %v6780
  %6782 = vmatmul.f32.gmra.mxu0 %v6383
  %v6783 = vpop.f32.mrf.mxu0
  %v6784 = vadd.f32 0.0, %v6783
  %6785 = vmatmul.f32.gmra.mxu0 %v6386
  %v6786 = vpop.f32.mrf.mxu0
  %v6787 = vadd.f32 0.0, %v6786
  %6788 = vmatmul.f32.gmra.mxu0 %v6389
  %v6789 = vpop.f32.mrf.mxu0
  %v6790 = vadd.f32 0.0, %v6789
  %6791 = vmatmul.f32.gmra.mxu0 %v6392
  %v6792 = vpop.f32.mrf.mxu0
  %v6793 = vadd.f32 0.0, %v6792
  %6794 = vmatmul.f32.gmra.mxu0 %v6395
  %v6795 = vpop.f32.mrf.mxu0
  %v6796 = vadd.f32 0.0, %v6795
  %6797 = vmatmul.f32.gmra.mxu0 %v6398
  %v6798 = vpop.f32.mrf.mxu0
  %v6799 = vadd.f32 0.0, %v6798
  %6800 = vmatmul.f32.gmra.mxu0 %v6401
  %v6801 = vpop.f32.mrf.mxu0
  %v6802 = vadd.f32 0.0, %v6801
  %6803 = vmatmul.f32.gmra.mxu0 %v6404
  %v6804 = vpop.f32.mrf.mxu0
  %v6805 = vadd.f32 0.0, %v6804
  %6806 = vmatmul.f32.gmra.mxu0 %v6407
  %v6807 = vpop.f32.mrf.mxu0
  %v6808 = vadd.f32 0.0, %v6807
  %6809 = vmatmul.f32.gmra.mxu0 %v6410
  %v6810 = vpop.f32.mrf.mxu0
  %v6811 = vadd.f32 0.0, %v6810
  %6812 = vmatmul.f32.gmra.mxu0 %v6413
  %v6813 = vpop.f32.mrf.mxu0
  %v6814 = vadd.f32 0.0, %v6813
  %6815 = vmatmul.f32.gmra.mxu0 %v6416
  %v6816 = vpop.f32.mrf.mxu0
  %v6817 = vadd.f32 0.0, %v6816
  %6818 = vmatmul.f32.gmra.mxu0 %v6419
  %v6819 = vpop.f32.mrf.mxu0
  %v6820 = vadd.f32 0.0, %v6819
  %6821 = vmatmul.f32.gmra.mxu0 %v6422
  %v6822 = vpop.f32.mrf.mxu0
  %v6823 = vadd.f32 0.0, %v6822
  %6824 = vmatmul.f32.gmra.mxu0 %v6425
  %v6825 = vpop.f32.mrf.mxu0
  %v6826 = vadd.f32 0.0, %v6825
  %6827 = vmatmul.f32.gmra.mxu0 %v6428
  %v6828 = vpop.f32.mrf.mxu0
  %v6829 = vadd.f32 0.0, %v6828
  %6830 = vmatmul.f32.gmra.mxu0 %v6431
  %v6831 = vpop.f32.mrf.mxu0
  %v6832 = vadd.f32 0.0, %v6831
  %6833 = vmatmul.f32.gmra.mxu0 %v6434
  %v6834 = vpop.f32.mrf.mxu0
  %v6835 = vadd.f32 0.0, %v6834
  %6836 = vmatmul.f32.gmra.mxu0 %v6437
  %v6837 = vpop.f32.mrf.mxu0
  %v6838 = vadd.f32 0.0, %v6837
  %6839 = vmatmul.f32.gmra.mxu0 %v6440
  %v6840 = vpop.f32.mrf.mxu0
  %v6841 = vadd.f32 0.0, %v6840
  %6842 = vmatmul.f32.gmra.mxu0 %v6443
  %v6843 = vpop.f32.mrf.mxu0
  %v6844 = vadd.f32 0.0, %v6843
  %6845 = vmatmul.f32.gmra.mxu0 %v6446
  %v6846 = vpop.f32.mrf.mxu0
  %v6847 = vadd.f32 0.0, %v6846
  %6848 = vmatmul.f32.gmra.mxu0 %v6449
  %v6849 = vpop.f32.mrf.mxu0
  %v6850 = vadd.f32 0.0, %v6849
  %6851 = vmatmul.f32.gmra.mxu0 %v6452
  %v6852 = vpop.f32.mrf.mxu0
  %v6853 = vadd.f32 0.0, %v6852
  %6854 = vmatmul.f32.gmra.mxu0 %v6455
  %v6855 = vpop.f32.mrf.mxu0
  %v6856 = vadd.f32 0.0, %v6855
  %6857 = vmatmul.f32.gmra.mxu0 %v6458
  %v6858 = vpop.f32.mrf.mxu0
  %v6859 = vadd.f32 0.0, %v6858
  %6860 = vmatmul.f32.gmra.mxu0 %v6461
  %v6861 = vpop.f32.mrf.mxu0
  %v6862 = vadd.f32 0.0, %v6861
  %6863 = vmatmul.f32.gmra.mxu0 %v6464
  %v6864 = vpop.f32.mrf.mxu0
  %v6865 = vadd.f32 0.0, %v6864
  %6866 = vmatmul.f32.gmra.mxu0 %v6467
  %v6867 = vpop.f32.mrf.mxu0
  %v6868 = vadd.f32 0.0, %v6867
  %6869 = vmatmul.f32.gmra.mxu0 %v6470
  %v6870 = vpop.f32.mrf.mxu0
  %v6871 = vadd.f32 0.0, %v6870
  %6872 = vmatmul.f32.gmra.mxu0 %v6473
  %v6873 = vpop.f32.mrf.mxu0
  %v6874 = vadd.f32 0.0, %v6873
  %6875 = vmatmul.f32.gmra.mxu0 %v6476
  %v6876 = vpop.f32.mrf.mxu0
  %v6877 = vadd.f32 0.0, %v6876
  %6878 = vmatmul.f32.gmra.mxu0 %v6479
  %v6879 = vpop.f32.mrf.mxu0
  %v6880 = vadd.f32 0.0, %v6879
  %6881 = vmatmul.f32.gmra.mxu0 %v6482
  %v6882 = vpop.f32.mrf.mxu0
  %v6883 = vadd.f32 0.0, %v6882
  %6884 = vmatmul.f32.gmra.mxu0 %v6485
  %v6885 = vpop.f32.mrf.mxu0
  %v6886 = vadd.f32 0.0, %v6885
  %6887 = vmatmul.f32.gmra.mxu0 %v6488
  %v6888 = vpop.f32.mrf.mxu0
  %v6889 = vadd.f32 0.0, %v6888
  %6890 = vmatmul.f32.gmra.mxu0 %v6491
  %v6891 = vpop.f32.mrf.mxu0
  %v6892 = vadd.f32 0.0, %v6891
  %6893 = vmatmul.f32.gmra.mxu0 %v6494
  %v6894 = vpop.f32.mrf.mxu0
  %v6895 = vadd.f32 0.0, %v6894
  %6896 = vmatmul.f32.gmra.mxu0 %v6497
  %v6897 = vpop.f32.mrf.mxu0
  %v6898 = vadd.f32 0.0, %v6897
  %6899 = vmatmul.f32.gmra.mxu0 %v6500
  %v6900 = vpop.f32.mrf.mxu0
  %v6901 = vadd.f32 0.0, %v6900
  %6902 = vmatmul.f32.gmra.mxu0 %v6503
  %v6903 = vpop.f32.mrf.mxu0
  %v6904 = vadd.f32 0.0, %v6903
  %6905 = vmatmul.f32.gmra.mxu0 %v6506
  %v6906 = vpop.f32.mrf.mxu0
  %v6907 = vadd.f32 0.0, %v6906
  %6908 = vmatmul.f32.gmra.mxu0 %v6509
  %v6909 = vpop.f32.mrf.mxu0
  %v6910 = vadd.f32 0.0, %v6909
  %6911 = vmatmul.f32.gmra.mxu0 %v6512
  %v6912 = vpop.f32.mrf.mxu0
  %v6913 = vadd.f32 0.0, %v6912
  %6914 = vmatmul.f32.gmra.mxu0 %v6515
  %v6915 = vpop.f32.mrf.mxu0
  %v6916 = vadd.f32 0.0, %v6915
  %6917 = vmatmul.f32.gmra.mxu0 %v6518
  %v6918 = vpop.f32.mrf.mxu0
  %v6919 = vadd.f32 0.0, %v6918
  %6920 = vmatmul.f32.gmra.mxu0 %v6521
  %v6921 = vpop.f32.mrf.mxu0
  %v6922 = vadd.f32 0.0, %v6921
  %6923 = vmatmul.f32.gmra.mxu0 %v6524
  %v6924 = vpop.f32.mrf.mxu0
  %v6925 = vadd.f32 0.0, %v6924
  %6926 = vmatmul.f32.gmra.mxu0 %v6527
  %v6927 = vpop.f32.mrf.mxu0
  %v6928 = vadd.f32 0.0, %v6927
  %6929 = vmatmul.f32.gmra.mxu0 %v6530
  %v6930 = vpop.f32.mrf.mxu0
  %v6931 = vadd.f32 0.0, %v6930
  %6932 = vmatmul.f32.gmra.mxu0 %v6533
  %v6933 = vpop.f32.mrf.mxu0
  %v6934 = vadd.f32 0.0, %v6933
  %6935 = vmatmul.f32.gmra.mxu0 %v6536
  %v6936 = vpop.f32.mrf.mxu0
  %v6937 = vadd.f32 0.0, %v6936
  %6938 = vmatmul.f32.gmra.mxu0 %v6539
  %v6939 = vpop.f32.mrf.mxu0
  %v6940 = vadd.f32 0.0, %v6939
  %6941 = vmatmul.f32.gmra.mxu0 %v6542
  %v6942 = vpop.f32.mrf.mxu0
  %v6943 = vadd.f32 0.0, %v6942
  %6944 = vmatmul.f32.gmra.mxu0 %v6545
  %v6945 = vpop.f32.mrf.mxu0
  %v6946 = vadd.f32 0.0, %v6945
  %6947 = vmatmul.f32.gmra.mxu0 %v6548
  %v6948 = vpop.f32.mrf.mxu0
  %v6949 = vadd.f32 0.0, %v6948
  %6950 = vmatmul.f32.gmra.mxu0 %v6551
  %v6951 = vpop.f32.mrf.mxu0
  %v6952 = vadd.f32 0.0, %v6951
  %6953 = vmatmul.f32.gmra.mxu0 %v6554
  %v6954 = vpop.f32.mrf.mxu0
  %v6955 = vadd.f32 0.0, %v6954
  %6956 = vmatmul.f32.gmra.mxu0 %v6557
  %v6957 = vpop.f32.mrf.mxu0
  %v6958 = vadd.f32 0.0, %v6957
  %6959 = vmatmul.f32.gmra.mxu0 %v6560
  %v6960 = vpop.f32.mrf.mxu0
  %v6961 = vadd.f32 0.0, %v6960
  %6962 = vmatmul.f32.gmra.mxu0 %v6563
  %v6963 = vpop.f32.mrf.mxu0
  %v6964 = vadd.f32 0.0, %v6963
  %6965 = vmatmul.f32.gmra.mxu0 %v6566
  %v6966 = vpop.f32.mrf.mxu0
  %v6967 = vadd.f32 0.0, %v6966
  %6968 = vmatmul.f32.gmra.mxu0 %v6569
  %v6969 = vpop.f32.mrf.mxu0
  %v6970 = vadd.f32 0.0, %v6969
  %6971 = vmatmul.f32.gmra.mxu0 %v6572
  %v6972 = vpop.f32.mrf.mxu0
  %v6973 = vadd.f32 0.0, %v6972
  %6974 = vmatmul.f32.gmra.mxu0 %v6575
  %v6975 = vpop.f32.mrf.mxu0
  %v6976 = vadd.f32 0.0, %v6975
  %6977 = vmatmul.f32.gmra.mxu0 %v6578
  %v6978 = vpop.f32.mrf.mxu0
  %v6979 = vadd.f32 0.0, %v6978
  %6980 = vmatmul.f32.gmra.mxu0 %v6581
  %v6981 = vpop.f32.mrf.mxu0
  %v6982 = vadd.f32 0.0, %v6981
  %6983 = vmatmul.f32.gmra.mxu0 %v6584
  %v6984 = vpop.f32.mrf.mxu0
  %v6985 = vadd.f32 0.0, %v6984
  %6986 = vmatmul.f32.gmra.mxu0 %v6587
  %v6987 = vpop.f32.mrf.mxu0
  %v6988 = vadd.f32 0.0, %v6987
  %6989 = vmatmul.f32.gmra.mxu0 %v6590
  %v6990 = vpop.f32.mrf.mxu0
  %v6991 = vadd.f32 0.0, %v6990
  %6992 = vmatmul.f32.gmra.mxu0 %v6593
  %v6993 = vpop.f32.mrf.mxu0
  %v6994 = vadd.f32 0.0, %v6993
  %6995 = vmatmul.f32.gmra.mxu0 %v6596
  %v6996 = vpop.f32.mrf.mxu0
  %v6997 = vadd.f32 0.0, %v6996
  %6998 = vmatmul.f32.gmra.mxu0 %v6599
  %v6999 = vpop.f32.mrf.mxu0
  %v7000 = vadd.f32 0.0, %v6999
  %7001 = vmatmul.f32.gmra.mxu0 %v6602
  %v7002 = vpop.f32.mrf.mxu0
  %v7003 = vadd.f32 0.0, %v7002
  %7004 = vmatmul.f32.gmra.mxu0 %v6605
  %v7005 = vpop.f32.mrf.mxu0
  %v7006 = vadd.f32 0.0, %v7005
  %7007 = vmatmul.f32.gmra.mxu0 %v6608
  %v7008 = vpop.f32.mrf.mxu0
  %v7009 = vadd.f32 0.0, %v7008
  %7010 = vmatmul.f32.gmra.mxu0 %v6611
  %v7011 = vpop.f32.mrf.mxu0
  %v7012 = vadd.f32 0.0, %v7011
  %7013 = vmatmul.f32.gmra.mxu0 %v6614
  %v7014 = vpop.f32.mrf.mxu0
  %v7015 = vadd.f32 0.0, %v7014
  %7016 = vmatmul.f32.gmra.mxu0 %v6617
  %v7017 = vpop.f32.mrf.mxu0
  %v7018 = vadd.f32 0.0, %v7017
  %7019 = vmatmul.f32.gmra.mxu0 %v6620
  %v7020 = vpop.f32.mrf.mxu0
  %v7021 = vadd.f32 0.0, %v7020
  %7022 = vmatmul.f32.gmra.mxu0 %v6623
  %v7023 = vpop.f32.mrf.mxu0
  %v7024 = vadd.f32 0.0, %v7023
  %7025 = vmatmul.f32.gmra.mxu0 %v6626
  %v7026 = vpop.f32.mrf.mxu0
  %v7027 = vadd.f32 0.0, %v7026
  %7028 = vmatmul.f32.gmra.mxu0 %v6629
  %v7029 = vpop.f32.mrf.mxu0
  %v7030 = vadd.f32 0.0, %v7029
  %7031 = vmatmul.f32.gmra.mxu0 %v6632
  %v7032 = vpop.f32.mrf.mxu0
  %v7033 = vadd.f32 0.0, %v7032
  %7034 = vmatmul.f32.gmra.mxu0 %v6635
  %v7035 = vpop.f32.mrf.mxu0
  %v7036 = vadd.f32 0.0, %v7035
  %7037 = vmatmul.f32.gmra.mxu0 %v6638
  %v7038 = vpop.f32.mrf.mxu0
  %v7039 = vadd.f32 0.0, %v7038
  %7040 = vmatmul.f32.gmra.mxu0 %v6641
  %v7041 = vpop.f32.mrf.mxu0
  %v7042 = vadd.f32 0.0, %v7041
  %7043 = vmatmul.f32.gmra.mxu0 %v6644
  %v7044 = vpop.f32.mrf.mxu0
  %v7045 = vadd.f32 0.0, %v7044
  %7046 = vmatmul.f32.gmra.mxu0 %v6647
  %v7047 = vpop.f32.mrf.mxu0
  %v7048 = vadd.f32 0.0, %v7047
  %7049 = vmatmul.f32.gmra.mxu0 %v6650
  %v7050 = vpop.f32.mrf.mxu0
  %v7051 = vadd.f32 0.0, %v7050
  %7052 = vmatmul.f32.gmra.mxu0 %v6653
  %v7053 = vpop.f32.mrf.mxu0
  %v7054 = vadd.f32 0.0, %v7053
  %7055 = vmatmul.f32.gmra.mxu0 %v6656
  %v7056 = vpop.f32.mrf.mxu0
  %v7057 = vadd.f32 0.0, %v7056
  %7058 = vmatmul.f32.gmra.mxu0 %v6659
  %v7059 = vpop.f32.mrf.mxu0
  %v7060 = vadd.f32 0.0, %v7059
  %7061 = vmatmul.f32.gmra.mxu0 %v6662
  %v7062 = vpop.f32.mrf.mxu0
  %v7063 = vadd.f32 0.0, %v7062
  %7064 = vmatmul.f32.gmra.mxu0 %v6665
  %v7065 = vpop.f32.mrf.mxu0
  %v7066 = vadd.f32 0.0, %v7065
  %7067 = vmatmul.f32.gmra.mxu0 %v6668
  %v7068 = vpop.f32.mrf.mxu0
  %v7069 = vadd.f32 0.0, %v7068
  %7070 = vmatmul.f32.gmra.mxu0 %v6671
  %v7071 = vpop.f32.mrf.mxu0
  %v7072 = vadd.f32 0.0, %v7071
  %7073 = vmatmul.f32.gmra.mxu0 %v6674
  %v7074 = vpop.f32.mrf.mxu0
  %v7075 = vadd.f32 0.0, %v7074
  %7076 = vmatmul.f32.gmra.mxu0 %v6677
  %v7077 = vpop.f32.mrf.mxu0
  %v7078 = vadd.f32 0.0, %v7077
  %7079 = vmatmul.f32.gmra.mxu0 %v6680
  %v7080 = vpop.f32.mrf.mxu0
  %v7081 = vadd.f32 0.0, %v7080
  %7082 = vmatmul.f32.gmra.mxu0 %v6683
  %v7083 = vpop.f32.mrf.mxu0
  %v7084 = vadd.f32 0.0, %v7083
  %7085 = vdwg.mxu0
  %v7086 = vadd.f32 %v6043, %v6703
  %v7087 = vadd.f32 %v6044, %v6706
  %v7088 = vadd.f32 %v6045, %v6709
  %v7089 = vadd.f32 %v6046, %v6712
  %v7090 = vadd.f32 %v6047, %v6715
  %v7091 = vadd.f32 %v6048, %v6718
  %v7092 = vadd.f32 %v6049, %v6721
  %v7093 = vadd.f32 %v6050, %v6724
  %v7094 = vadd.f32 %v6051, %v6727
  %v7095 = vadd.f32 %v6052, %v6730
  %v7096 = vadd.f32 %v6053, %v6733
  %v7097 = vadd.f32 %v6054, %v6736
  %v7098 = vadd.f32 %v6055, %v6739
  %v7099 = vadd.f32 %v6056, %v6742
  %v7100 = vadd.f32 %v6057, %v6745
  %v7101 = vadd.f32 %v6058, %v6748
  %v7102 = vadd.f32 %v6059, %v6751
  %v7103 = vadd.f32 %v6060, %v6754
  %v7104 = vadd.f32 %v6061, %v6757
  %v7105 = vadd.f32 %v6062, %v6760
  %v7106 = vadd.f32 %v6063, %v6763
  %v7107 = vadd.f32 %v6064, %v6766
  %v7108 = vadd.f32 %v6065, %v6769
  %v7109 = vadd.f32 %v6066, %v6772
  %v7110 = vadd.f32 %v6067, %v6775
  %v7111 = vadd.f32 %v6068, %v6778
  %v7112 = vadd.f32 %v6069, %v6781
  %v7113 = vadd.f32 %v6070, %v6784
  %v7114 = vadd.f32 %v6071, %v6787
  %v7115 = vadd.f32 %v6072, %v6790
  %v7116 = vadd.f32 %v6073, %v6793
  %v7117 = vadd.f32 %v6074, %v6796
  %v7118 = vadd.f32 %v6075, %v6799
  %v7119 = vadd.f32 %v6076, %v6802
  %v7120 = vadd.f32 %v6077, %v6805
  %v7121 = vadd.f32 %v6078, %v6808
  %v7122 = vadd.f32 %v6079, %v6811
  %v7123 = vadd.f32 %v6080, %v6814
  %v7124 = vadd.f32 %v6081, %v6817
  %v7125 = vadd.f32 %v6082, %v6820
  %v7126 = vadd.f32 %v6083, %v6823
  %v7127 = vadd.f32 %v6084, %v6826
  %v7128 = vadd.f32 %v6085, %v6829
  %v7129 = vadd.f32 %v6086, %v6832
  %v7130 = vadd.f32 %v6087, %v6835
  %v7131 = vadd.f32 %v6088, %v6838
  %v7132 = vadd.f32 %v6089, %v6841
  %v7133 = vadd.f32 %v6090, %v6844
  %v7134 = vadd.f32 %v6091, %v6847
  %v7135 = vadd.f32 %v6092, %v6850
  %v7136 = vadd.f32 %v6093, %v6853
  %v7137 = vadd.f32 %v6094, %v6856
  %v7138 = vadd.f32 %v6095, %v6859
  %v7139 = vadd.f32 %v6096, %v6862
  %v7140 = vadd.f32 %v6097, %v6865
  %v7141 = vadd.f32 %v6098, %v6868
  %v7142 = vadd.f32 %v6099, %v6871
  %v7143 = vadd.f32 %v6100, %v6874
  %v7144 = vadd.f32 %v6101, %v6877
  %v7145 = vadd.f32 %v6102, %v6880
  %v7146 = vadd.f32 %v6103, %v6883
  %v7147 = vadd.f32 %v6104, %v6886
  %v7148 = vadd.f32 %v6105, %v6889
  %v7149 = vadd.f32 %v6106, %v6892
  %v7150 = vadd.f32 %v6107, %v6895
  %v7151 = vadd.f32 %v6108, %v6898
  %v7152 = vadd.f32 %v6109, %v6901
  %v7153 = vadd.f32 %v6110, %v6904
  %v7154 = vadd.f32 %v6111, %v6907
  %v7155 = vadd.f32 %v6112, %v6910
  %v7156 = vadd.f32 %v6113, %v6913
  %v7157 = vadd.f32 %v6114, %v6916
  %v7158 = vadd.f32 %v6115, %v6919
  %v7159 = vadd.f32 %v6116, %v6922
  %v7160 = vadd.f32 %v6117, %v6925
  %v7161 = vadd.f32 %v6118, %v6928
  %v7162 = vadd.f32 %v6119, %v6931
  %v7163 = vadd.f32 %v6120, %v6934
  %v7164 = vadd.f32 %v6121, %v6937
  %v7165 = vadd.f32 %v6122, %v6940
  %v7166 = vadd.f32 %v6123, %v6943
  %v7167 = vadd.f32 %v6124, %v6946
  %v7168 = vadd.f32 %v6125, %v6949
  %v7169 = vadd.f32 %v6126, %v6952
  %v7170 = vadd.f32 %v6127, %v6955
  %v7171 = vadd.f32 %v6128, %v6958
  %v7172 = vadd.f32 %v6129, %v6961
  %v7173 = vadd.f32 %v6130, %v6964
  %v7174 = vadd.f32 %v6131, %v6967
  %v7175 = vadd.f32 %v6132, %v6970
  %v7176 = vadd.f32 %v6133, %v6973
  %v7177 = vadd.f32 %v6134, %v6976
  %v7178 = vadd.f32 %v6135, %v6979
  %v7179 = vadd.f32 %v6136, %v6982
  %v7180 = vadd.f32 %v6137, %v6985
  %v7181 = vadd.f32 %v6138, %v6988
  %v7182 = vadd.f32 %v6139, %v6991
  %v7183 = vadd.f32 %v6140, %v6994
  %v7184 = vadd.f32 %v6141, %v6997
  %v7185 = vadd.f32 %v6142, %v7000
  %v7186 = vadd.f32 %v6143, %v7003
  %v7187 = vadd.f32 %v6144, %v7006
  %v7188 = vadd.f32 %v6145, %v7009
  %v7189 = vadd.f32 %v6146, %v7012
  %v7190 = vadd.f32 %v6147, %v7015
  %v7191 = vadd.f32 %v6148, %v7018
  %v7192 = vadd.f32 %v6149, %v7021
  %v7193 = vadd.f32 %v6150, %v7024
  %v7194 = vadd.f32 %v6151, %v7027
  %v7195 = vadd.f32 %v6152, %v7030
  %v7196 = vadd.f32 %v6153, %v7033
  %v7197 = vadd.f32 %v6154, %v7036
  %v7198 = vadd.f32 %v6155, %v7039
  %v7199 = vadd.f32 %v6156, %v7042
  %v7200 = vadd.f32 %v6157, %v7045
  %v7201 = vadd.f32 %v6158, %v7048
  %v7202 = vadd.f32 %v6159, %v7051
  %v7203 = vadd.f32 %v6160, %v7054
  %v7204 = vadd.f32 %v6161, %v7057
  %v7205 = vadd.f32 %v6162, %v7060
  %v7206 = vadd.f32 %v6163, %v7063
  %v7207 = vadd.f32 %v6164, %v7066
  %v7208 = vadd.f32 %v6165, %v7069
  %v7209 = vadd.f32 %v6166, %v7072
  %v7210 = vadd.f32 %v6167, %v7075
  %v7211 = vadd.f32 %v6168, %v7078
  %v7212 = vadd.f32 %v6169, %v7081
  %v7213 = vadd.f32 %v6170, %v7084
  %v7214 = vld [vmem:[#allocation2 + $0x6] sm:$0xff]
  %v7215 = vld [vmem:[#allocation2 + $0xe] sm:$0xff]
  %v7216 = vld [vmem:[#allocation2 + $0x16] sm:$0xff]
  %v7217 = vld [vmem:[#allocation2 + $0x1e] sm:$0xff]
  %v7218 = vld [vmem:[#allocation2 + $0x26] sm:$0xff]
  %v7219 = vld [vmem:[#allocation2 + $0x2e] sm:$0xff]
  %v7220 = vld [vmem:[#allocation2 + $0x36] sm:$0xff]
  %v7221 = vld [vmem:[#allocation2 + $0x3e] sm:$0xff]
  %v7222 = vld [vmem:[#allocation2 + $0x46] sm:$0xff]
  %v7223 = vld [vmem:[#allocation2 + $0x4e] sm:$0xff]
  %v7224 = vld [vmem:[#allocation2 + $0x56] sm:$0xff]
  %v7225 = vld [vmem:[#allocation2 + $0x5e] sm:$0xff]
  %v7226 = vld [vmem:[#allocation2 + $0x66] sm:$0xff]
  %v7227 = vld [vmem:[#allocation2 + $0x6e] sm:$0xff]
  %v7228 = vld [vmem:[#allocation2 + $0x76] sm:$0xff]
  %v7229 = vld [vmem:[#allocation2 + $0x7e] sm:$0xff]
  %v7230 = vld [vmem:[#allocation2 + $0x86] sm:$0xff]
  %v7231 = vld [vmem:[#allocation2 + $0x8e] sm:$0xff]
  %v7232 = vld [vmem:[#allocation2 + $0x96] sm:$0xff]
  %v7233 = vld [vmem:[#allocation2 + $0x9e] sm:$0xff]
  %v7234 = vld [vmem:[#allocation2 + $0xa6] sm:$0xff]
  %v7235 = vld [vmem:[#allocation2 + $0xae] sm:$0xff]
  %v7236 = vld [vmem:[#allocation2 + $0xb6] sm:$0xff]
  %v7237 = vld [vmem:[#allocation2 + $0xbe] sm:$0xff]
  %v7238 = vld [vmem:[#allocation2 + $0xc6] sm:$0xff]
  %v7239 = vld [vmem:[#allocation2 + $0xce] sm:$0xff]
  %v7240 = vld [vmem:[#allocation2 + $0xd6] sm:$0xff]
  %v7241 = vld [vmem:[#allocation2 + $0xde] sm:$0xff]
  %v7242 = vld [vmem:[#allocation2 + $0xe6] sm:$0xff]
  %v7243 = vld [vmem:[#allocation2 + $0xee] sm:$0xff]
  %v7244 = vld [vmem:[#allocation2 + $0xf6] sm:$0xff]
  %v7245 = vld [vmem:[#allocation2 + $0xfe] sm:$0xff]
  %v7246 = vld [vmem:[#allocation2 + $0x106] sm:$0xff]
  %v7247 = vld [vmem:[#allocation2 + $0x10e] sm:$0xff]
  %v7248 = vld [vmem:[#allocation2 + $0x116] sm:$0xff]
  %v7249 = vld [vmem:[#allocation2 + $0x11e] sm:$0xff]
  %v7250 = vld [vmem:[#allocation2 + $0x126] sm:$0xff]
  %v7251 = vld [vmem:[#allocation2 + $0x12e] sm:$0xff]
  %v7252 = vld [vmem:[#allocation2 + $0x136] sm:$0xff]
  %v7253 = vld [vmem:[#allocation2 + $0x13e] sm:$0xff]
  %v7254 = vld [vmem:[#allocation2 + $0x146] sm:$0xff]
  %v7255 = vld [vmem:[#allocation2 + $0x14e] sm:$0xff]
  %v7256 = vld [vmem:[#allocation2 + $0x156] sm:$0xff]
  %v7257 = vld [vmem:[#allocation2 + $0x15e] sm:$0xff]
  %v7258 = vld [vmem:[#allocation2 + $0x166] sm:$0xff]
  %v7259 = vld [vmem:[#allocation2 + $0x16e] sm:$0xff]
  %v7260 = vld [vmem:[#allocation2 + $0x176] sm:$0xff]
  %v7261 = vld [vmem:[#allocation2 + $0x17e] sm:$0xff]
  %v7262 = vld [vmem:[#allocation2 + $0x186] sm:$0xff]
  %v7263 = vld [vmem:[#allocation2 + $0x18e] sm:$0xff]
  %v7264 = vld [vmem:[#allocation2 + $0x196] sm:$0xff]
  %v7265 = vld [vmem:[#allocation2 + $0x19e] sm:$0xff]
  %v7266 = vld [vmem:[#allocation2 + $0x1a6] sm:$0xff]
  %v7267 = vld [vmem:[#allocation2 + $0x1ae] sm:$0xff]
  %v7268 = vld [vmem:[#allocation2 + $0x1b6] sm:$0xff]
  %v7269 = vld [vmem:[#allocation2 + $0x1be] sm:$0xff]
  %v7270 = vld [vmem:[#allocation2 + $0x1c6] sm:$0xff]
  %v7271 = vld [vmem:[#allocation2 + $0x1ce] sm:$0xff]
  %v7272 = vld [vmem:[#allocation2 + $0x1d6] sm:$0xff]
  %v7273 = vld [vmem:[#allocation2 + $0x1de] sm:$0xff]
  %v7274 = vld [vmem:[#allocation2 + $0x1e6] sm:$0xff]
  %v7275 = vld [vmem:[#allocation2 + $0x1ee] sm:$0xff]
  %v7276 = vld [vmem:[#allocation2 + $0x1f6] sm:$0xff]
  %v7277 = vld [vmem:[#allocation2 + $0x1fe] sm:$0xff]
  %v7278 = vld [vmem:[#allocation2 + $0x206] sm:$0xff]
  %v7279 = vld [vmem:[#allocation2 + $0x20e] sm:$0xff]
  %v7280 = vld [vmem:[#allocation2 + $0x216] sm:$0xff]
  %v7281 = vld [vmem:[#allocation2 + $0x21e] sm:$0xff]
  %v7282 = vld [vmem:[#allocation2 + $0x226] sm:$0xff]
  %v7283 = vld [vmem:[#allocation2 + $0x22e] sm:$0xff]
  %v7284 = vld [vmem:[#allocation2 + $0x236] sm:$0xff]
  %v7285 = vld [vmem:[#allocation2 + $0x23e] sm:$0xff]
  %v7286 = vld [vmem:[#allocation2 + $0x246] sm:$0xff]
  %v7287 = vld [vmem:[#allocation2 + $0x24e] sm:$0xff]
  %v7288 = vld [vmem:[#allocation2 + $0x256] sm:$0xff]
  %v7289 = vld [vmem:[#allocation2 + $0x25e] sm:$0xff]
  %v7290 = vld [vmem:[#allocation2 + $0x266] sm:$0xff]
  %v7291 = vld [vmem:[#allocation2 + $0x26e] sm:$0xff]
  %v7292 = vld [vmem:[#allocation2 + $0x276] sm:$0xff]
  %v7293 = vld [vmem:[#allocation2 + $0x27e] sm:$0xff]
  %v7294 = vld [vmem:[#allocation2 + $0x286] sm:$0xff]
  %v7295 = vld [vmem:[#allocation2 + $0x28e] sm:$0xff]
  %v7296 = vld [vmem:[#allocation2 + $0x296] sm:$0xff]
  %v7297 = vld [vmem:[#allocation2 + $0x29e] sm:$0xff]
  %v7298 = vld [vmem:[#allocation2 + $0x2a6] sm:$0xff]
  %v7299 = vld [vmem:[#allocation2 + $0x2ae] sm:$0xff]
  %v7300 = vld [vmem:[#allocation2 + $0x2b6] sm:$0xff]
  %v7301 = vld [vmem:[#allocation2 + $0x2be] sm:$0xff]
  %v7302 = vld [vmem:[#allocation2 + $0x2c6] sm:$0xff]
  %v7303 = vld [vmem:[#allocation2 + $0x2ce] sm:$0xff]
  %v7304 = vld [vmem:[#allocation2 + $0x2d6] sm:$0xff]
  %v7305 = vld [vmem:[#allocation2 + $0x2de] sm:$0xff]
  %v7306 = vld [vmem:[#allocation2 + $0x2e6] sm:$0xff]
  %v7307 = vld [vmem:[#allocation2 + $0x2ee] sm:$0xff]
  %v7308 = vld [vmem:[#allocation2 + $0x2f6] sm:$0xff]
  %v7309 = vld [vmem:[#allocation2 + $0x2fe] sm:$0xff]
  %v7310 = vld [vmem:[#allocation2 + $0x306] sm:$0xff]
  %v7311 = vld [vmem:[#allocation2 + $0x30e] sm:$0xff]
  %v7312 = vld [vmem:[#allocation2 + $0x316] sm:$0xff]
  %v7313 = vld [vmem:[#allocation2 + $0x31e] sm:$0xff]
  %v7314 = vld [vmem:[#allocation2 + $0x326] sm:$0xff]
  %v7315 = vld [vmem:[#allocation2 + $0x32e] sm:$0xff]
  %v7316 = vld [vmem:[#allocation2 + $0x336] sm:$0xff]
  %v7317 = vld [vmem:[#allocation2 + $0x33e] sm:$0xff]
  %v7318 = vld [vmem:[#allocation2 + $0x346] sm:$0xff]
  %v7319 = vld [vmem:[#allocation2 + $0x34e] sm:$0xff]
  %v7320 = vld [vmem:[#allocation2 + $0x356] sm:$0xff]
  %v7321 = vld [vmem:[#allocation2 + $0x35e] sm:$0xff]
  %v7322 = vld [vmem:[#allocation2 + $0x366] sm:$0xff]
  %v7323 = vld [vmem:[#allocation2 + $0x36e] sm:$0xff]
  %v7324 = vld [vmem:[#allocation2 + $0x376] sm:$0xff]
  %v7325 = vld [vmem:[#allocation2 + $0x37e] sm:$0xff]
  %v7326 = vld [vmem:[#allocation2 + $0x386] sm:$0xff]
  %v7327 = vld [vmem:[#allocation2 + $0x38e] sm:$0xff]
  %v7328 = vld [vmem:[#allocation2 + $0x396] sm:$0xff]
  %v7329 = vld [vmem:[#allocation2 + $0x39e] sm:$0xff]
  %v7330 = vld [vmem:[#allocation2 + $0x3a6] sm:$0xff]
  %v7331 = vld [vmem:[#allocation2 + $0x3ae] sm:$0xff]
  %v7332 = vld [vmem:[#allocation2 + $0x3b6] sm:$0xff]
  %v7333 = vld [vmem:[#allocation2 + $0x3be] sm:$0xff]
  %v7334 = vld [vmem:[#allocation2 + $0x3c6] sm:$0xff]
  %v7335 = vld [vmem:[#allocation2 + $0x3ce] sm:$0xff]
  %v7336 = vld [vmem:[#allocation2 + $0x3d6] sm:$0xff]
  %v7337 = vld [vmem:[#allocation2 + $0x3de] sm:$0xff]
  %v7338 = vld [vmem:[#allocation2 + $0x3e6] sm:$0xff]
  %v7339 = vld [vmem:[#allocation2 + $0x3ee] sm:$0xff]
  %v7340 = vld [vmem:[#allocation2 + $0x3f6] sm:$0xff]
  %v7341 = vld [vmem:[#allocation2 + $0x3fe] sm:$0xff]
  %s7342 = scalar_lea.vmem %s3, 48
  %v7343 = vld [vmem:[%s7342] sm:$0xff]
  %v7345 = vsel %vm1083, %v7214, 0
  %v7348 = vsel %vm1083, %v7215, 0
  %v7351 = vsel %vm1083, %v7216, 0
  %v7354 = vsel %vm1083, %v7217, 0
  %v7357 = vsel %vm1083, %v7218, 0
  %v7360 = vsel %vm1083, %v7219, 0
  %v7363 = vsel %vm1083, %v7220, 0
  %v7366 = vsel %vm1083, %v7221, 0
  %v7369 = vsel %vm1083, %v7222, 0
  %v7372 = vsel %vm1083, %v7223, 0
  %v7375 = vsel %vm1083, %v7224, 0
  %v7378 = vsel %vm1083, %v7225, 0
  %v7381 = vsel %vm1083, %v7226, 0
  %v7384 = vsel %vm1083, %v7227, 0
  %v7387 = vsel %vm1083, %v7228, 0
  %v7390 = vsel %vm1083, %v7229, 0
  %v7393 = vsel %vm1083, %v7230, 0
  %v7396 = vsel %vm1083, %v7231, 0
  %v7399 = vsel %vm1083, %v7232, 0
  %v7402 = vsel %vm1083, %v7233, 0
  %v7405 = vsel %vm1083, %v7234, 0
  %v7408 = vsel %vm1083, %v7235, 0
  %v7411 = vsel %vm1083, %v7236, 0
  %v7414 = vsel %vm1083, %v7237, 0
  %v7417 = vsel %vm1083, %v7238, 0
  %v7420 = vsel %vm1083, %v7239, 0
  %v7423 = vsel %vm1083, %v7240, 0
  %v7426 = vsel %vm1083, %v7241, 0
  %v7429 = vsel %vm1083, %v7242, 0
  %v7432 = vsel %vm1083, %v7243, 0
  %v7435 = vsel %vm1083, %v7244, 0
  %v7438 = vsel %vm1083, %v7245, 0
  %v7441 = vsel %vm1083, %v7246, 0
  %v7444 = vsel %vm1083, %v7247, 0
  %v7447 = vsel %vm1083, %v7248, 0
  %v7450 = vsel %vm1083, %v7249, 0
  %v7453 = vsel %vm1083, %v7250, 0
  %v7456 = vsel %vm1083, %v7251, 0
  %v7459 = vsel %vm1083, %v7252, 0
  %v7462 = vsel %vm1083, %v7253, 0
  %v7465 = vsel %vm1083, %v7254, 0
  %v7468 = vsel %vm1083, %v7255, 0
  %v7471 = vsel %vm1083, %v7256, 0
  %v7474 = vsel %vm1083, %v7257, 0
  %v7477 = vsel %vm1083, %v7258, 0
  %v7480 = vsel %vm1083, %v7259, 0
  %v7483 = vsel %vm1083, %v7260, 0
  %v7486 = vsel %vm1083, %v7261, 0
  %v7489 = vsel %vm1083, %v7262, 0
  %v7492 = vsel %vm1083, %v7263, 0
  %v7495 = vsel %vm1083, %v7264, 0
  %v7498 = vsel %vm1083, %v7265, 0
  %v7501 = vsel %vm1083, %v7266, 0
  %v7504 = vsel %vm1083, %v7267, 0
  %v7507 = vsel %vm1083, %v7268, 0
  %v7510 = vsel %vm1083, %v7269, 0
  %v7513 = vsel %vm1083, %v7270, 0
  %v7516 = vsel %vm1083, %v7271, 0
  %v7519 = vsel %vm1083, %v7272, 0
  %v7522 = vsel %vm1083, %v7273, 0
  %v7525 = vsel %vm1083, %v7274, 0
  %v7528 = vsel %vm1083, %v7275, 0
  %v7531 = vsel %vm1083, %v7276, 0
  %v7534 = vsel %vm1083, %v7277, 0
  %v7537 = vsel %vm1083, %v7278, 0
  %v7540 = vsel %vm1083, %v7279, 0
  %v7543 = vsel %vm1083, %v7280, 0
  %v7546 = vsel %vm1083, %v7281, 0
  %v7549 = vsel %vm1083, %v7282, 0
  %v7552 = vsel %vm1083, %v7283, 0
  %v7555 = vsel %vm1083, %v7284, 0
  %v7558 = vsel %vm1083, %v7285, 0
  %v7561 = vsel %vm1083, %v7286, 0
  %v7564 = vsel %vm1083, %v7287, 0
  %v7567 = vsel %vm1083, %v7288, 0
  %v7570 = vsel %vm1083, %v7289, 0
  %v7573 = vsel %vm1083, %v7290, 0
  %v7576 = vsel %vm1083, %v7291, 0
  %v7579 = vsel %vm1083, %v7292, 0
  %v7582 = vsel %vm1083, %v7293, 0
  %v7585 = vsel %vm1083, %v7294, 0
  %v7588 = vsel %vm1083, %v7295, 0
  %v7591 = vsel %vm1083, %v7296, 0
  %v7594 = vsel %vm1083, %v7297, 0
  %v7597 = vsel %vm1083, %v7298, 0
  %v7600 = vsel %vm1083, %v7299, 0
  %v7603 = vsel %vm1083, %v7300, 0
  %v7606 = vsel %vm1083, %v7301, 0
  %v7609 = vsel %vm1083, %v7302, 0
  %v7612 = vsel %vm1083, %v7303, 0
  %v7615 = vsel %vm1083, %v7304, 0
  %v7618 = vsel %vm1083, %v7305, 0
  %v7621 = vsel %vm1083, %v7306, 0
  %v7624 = vsel %vm1083, %v7307, 0
  %v7627 = vsel %vm1083, %v7308, 0
  %v7630 = vsel %vm1083, %v7309, 0
  %v7633 = vsel %vm1083, %v7310, 0
  %v7636 = vsel %vm1083, %v7311, 0
  %v7639 = vsel %vm1083, %v7312, 0
  %v7642 = vsel %vm1083, %v7313, 0
  %v7645 = vsel %vm1083, %v7314, 0
  %v7648 = vsel %vm1083, %v7315, 0
  %v7651 = vsel %vm1083, %v7316, 0
  %v7654 = vsel %vm1083, %v7317, 0
  %v7657 = vsel %vm1083, %v7318, 0
  %v7660 = vsel %vm1083, %v7319, 0
  %v7663 = vsel %vm1083, %v7320, 0
  %v7666 = vsel %vm1083, %v7321, 0
  %v7669 = vsel %vm1083, %v7322, 0
  %v7672 = vsel %vm1083, %v7323, 0
  %v7675 = vsel %vm1083, %v7324, 0
  %v7678 = vsel %vm1083, %v7325, 0
  %v7681 = vsel %vm1083, %v7326, 0
  %v7684 = vsel %vm1083, %v7327, 0
  %v7687 = vsel %vm1083, %v7328, 0
  %v7690 = vsel %vm1083, %v7329, 0
  %v7693 = vsel %vm1083, %v7330, 0
  %v7696 = vsel %vm1083, %v7331, 0
  %v7699 = vsel %vm1083, %v7332, 0
  %v7702 = vsel %vm1083, %v7333, 0
  %v7705 = vsel %vm1083, %v7334, 0
  %v7708 = vsel %vm1083, %v7335, 0
  %v7711 = vsel %vm1083, %v7336, 0
  %v7714 = vsel %vm1083, %v7337, 0
  %v7717 = vsel %vm1083, %v7338, 0
  %v7720 = vsel %vm1083, %v7339, 0
  %v7723 = vsel %vm1083, %v7340, 0
  %v7726 = vsel %vm1083, %v7341, 0
  %7728 = vmatpush.msra.mxu0 0.0
  %7729 = vmatpush.msra.mxu0 0.0
  %7730 = vmatpush.msra.mxu0 0.0
  %7731 = vmatpush.msra.mxu0 0.0
  %7732 = vmatpush.msra.mxu0 0.0
  %7733 = vmatpush.msra.mxu0 0.0
  %7734 = vmatpush.msra.mxu0 0.0
  %7735 = vmatpush.msra.mxu0 0.0
  %7736 = vmatpush.msra.mxu0 0.0
  %7737 = vmatpush.msra.mxu0 0.0
  %7738 = vmatpush.msra.mxu0 0.0
  %7739 = vmatpush.msra.mxu0 0.0
  %7740 = vmatpush.msra.mxu0 0.0
  %7741 = vmatpush.msra.mxu0 0.0
  %7742 = vmatpush.msra.mxu0 0.0
  %7743 = vmatpush.msra.mxu0 %v7343
  %7744 = vmatmul.f32.gmra.mxu0 %v7345
  %v7745 = vpop.f32.mrf.mxu0
  %v7746 = vadd.f32 0.0, %v7745
  %7747 = vmatmul.f32.gmra.mxu0 %v7348
  %v7748 = vpop.f32.mrf.mxu0
  %v7749 = vadd.f32 0.0, %v7748
  %7750 = vmatmul.f32.gmra.mxu0 %v7351
  %v7751 = vpop.f32.mrf.mxu0
  %v7752 = vadd.f32 0.0, %v7751
  %7753 = vmatmul.f32.gmra.mxu0 %v7354
  %v7754 = vpop.f32.mrf.mxu0
  %v7755 = vadd.f32 0.0, %v7754
  %7756 = vmatmul.f32.gmra.mxu0 %v7357
  %v7757 = vpop.f32.mrf.mxu0
  %v7758 = vadd.f32 0.0, %v7757
  %7759 = vmatmul.f32.gmra.mxu0 %v7360
  %v7760 = vpop.f32.mrf.mxu0
  %v7761 = vadd.f32 0.0, %v7760
  %7762 = vmatmul.f32.gmra.mxu0 %v7363
  %v7763 = vpop.f32.mrf.mxu0
  %v7764 = vadd.f32 0.0, %v7763
  %7765 = vmatmul.f32.gmra.mxu0 %v7366
  %v7766 = vpop.f32.mrf.mxu0
  %v7767 = vadd.f32 0.0, %v7766
  %7768 = vmatmul.f32.gmra.mxu0 %v7369
  %v7769 = vpop.f32.mrf.mxu0
  %v7770 = vadd.f32 0.0, %v7769
  %7771 = vmatmul.f32.gmra.mxu0 %v7372
  %v7772 = vpop.f32.mrf.mxu0
  %v7773 = vadd.f32 0.0, %v7772
  %7774 = vmatmul.f32.gmra.mxu0 %v7375
  %v7775 = vpop.f32.mrf.mxu0
  %v7776 = vadd.f32 0.0, %v7775
  %7777 = vmatmul.f32.gmra.mxu0 %v7378
  %v7778 = vpop.f32.mrf.mxu0
  %v7779 = vadd.f32 0.0, %v7778
  %7780 = vmatmul.f32.gmra.mxu0 %v7381
  %v7781 = vpop.f32.mrf.mxu0
  %v7782 = vadd.f32 0.0, %v7781
  %7783 = vmatmul.f32.gmra.mxu0 %v7384
  %v7784 = vpop.f32.mrf.mxu0
  %v7785 = vadd.f32 0.0, %v7784
  %7786 = vmatmul.f32.gmra.mxu0 %v7387
  %v7787 = vpop.f32.mrf.mxu0
  %v7788 = vadd.f32 0.0, %v7787
  %7789 = vmatmul.f32.gmra.mxu0 %v7390
  %v7790 = vpop.f32.mrf.mxu0
  %v7791 = vadd.f32 0.0, %v7790
  %7792 = vmatmul.f32.gmra.mxu0 %v7393
  %v7793 = vpop.f32.mrf.mxu0
  %v7794 = vadd.f32 0.0, %v7793
  %7795 = vmatmul.f32.gmra.mxu0 %v7396
  %v7796 = vpop.f32.mrf.mxu0
  %v7797 = vadd.f32 0.0, %v7796
  %7798 = vmatmul.f32.gmra.mxu0 %v7399
  %v7799 = vpop.f32.mrf.mxu0
  %v7800 = vadd.f32 0.0, %v7799
  %7801 = vmatmul.f32.gmra.mxu0 %v7402
  %v7802 = vpop.f32.mrf.mxu0
  %v7803 = vadd.f32 0.0, %v7802
  %7804 = vmatmul.f32.gmra.mxu0 %v7405
  %v7805 = vpop.f32.mrf.mxu0
  %v7806 = vadd.f32 0.0, %v7805
  %7807 = vmatmul.f32.gmra.mxu0 %v7408
  %v7808 = vpop.f32.mrf.mxu0
  %v7809 = vadd.f32 0.0, %v7808
  %7810 = vmatmul.f32.gmra.mxu0 %v7411
  %v7811 = vpop.f32.mrf.mxu0
  %v7812 = vadd.f32 0.0, %v7811
  %7813 = vmatmul.f32.gmra.mxu0 %v7414
  %v7814 = vpop.f32.mrf.mxu0
  %v7815 = vadd.f32 0.0, %v7814
  %7816 = vmatmul.f32.gmra.mxu0 %v7417
  %v7817 = vpop.f32.mrf.mxu0
  %v7818 = vadd.f32 0.0, %v7817
  %7819 = vmatmul.f32.gmra.mxu0 %v7420
  %v7820 = vpop.f32.mrf.mxu0
  %v7821 = vadd.f32 0.0, %v7820
  %7822 = vmatmul.f32.gmra.mxu0 %v7423
  %v7823 = vpop.f32.mrf.mxu0
  %v7824 = vadd.f32 0.0, %v7823
  %7825 = vmatmul.f32.gmra.mxu0 %v7426
  %v7826 = vpop.f32.mrf.mxu0
  %v7827 = vadd.f32 0.0, %v7826
  %7828 = vmatmul.f32.gmra.mxu0 %v7429
  %v7829 = vpop.f32.mrf.mxu0
  %v7830 = vadd.f32 0.0, %v7829
  %7831 = vmatmul.f32.gmra.mxu0 %v7432
  %v7832 = vpop.f32.mrf.mxu0
  %v7833 = vadd.f32 0.0, %v7832
  %7834 = vmatmul.f32.gmra.mxu0 %v7435
  %v7835 = vpop.f32.mrf.mxu0
  %v7836 = vadd.f32 0.0, %v7835
  %7837 = vmatmul.f32.gmra.mxu0 %v7438
  %v7838 = vpop.f32.mrf.mxu0
  %v7839 = vadd.f32 0.0, %v7838
  %7840 = vmatmul.f32.gmra.mxu0 %v7441
  %v7841 = vpop.f32.mrf.mxu0
  %v7842 = vadd.f32 0.0, %v7841
  %7843 = vmatmul.f32.gmra.mxu0 %v7444
  %v7844 = vpop.f32.mrf.mxu0
  %v7845 = vadd.f32 0.0, %v7844
  %7846 = vmatmul.f32.gmra.mxu0 %v7447
  %v7847 = vpop.f32.mrf.mxu0
  %v7848 = vadd.f32 0.0, %v7847
  %7849 = vmatmul.f32.gmra.mxu0 %v7450
  %v7850 = vpop.f32.mrf.mxu0
  %v7851 = vadd.f32 0.0, %v7850
  %7852 = vmatmul.f32.gmra.mxu0 %v7453
  %v7853 = vpop.f32.mrf.mxu0
  %v7854 = vadd.f32 0.0, %v7853
  %7855 = vmatmul.f32.gmra.mxu0 %v7456
  %v7856 = vpop.f32.mrf.mxu0
  %v7857 = vadd.f32 0.0, %v7856
  %7858 = vmatmul.f32.gmra.mxu0 %v7459
  %v7859 = vpop.f32.mrf.mxu0
  %v7860 = vadd.f32 0.0, %v7859
  %7861 = vmatmul.f32.gmra.mxu0 %v7462
  %v7862 = vpop.f32.mrf.mxu0
  %v7863 = vadd.f32 0.0, %v7862
  %7864 = vmatmul.f32.gmra.mxu0 %v7465
  %v7865 = vpop.f32.mrf.mxu0
  %v7866 = vadd.f32 0.0, %v7865
  %7867 = vmatmul.f32.gmra.mxu0 %v7468
  %v7868 = vpop.f32.mrf.mxu0
  %v7869 = vadd.f32 0.0, %v7868
  %7870 = vmatmul.f32.gmra.mxu0 %v7471
  %v7871 = vpop.f32.mrf.mxu0
  %v7872 = vadd.f32 0.0, %v7871
  %7873 = vmatmul.f32.gmra.mxu0 %v7474
  %v7874 = vpop.f32.mrf.mxu0
  %v7875 = vadd.f32 0.0, %v7874
  %7876 = vmatmul.f32.gmra.mxu0 %v7477
  %v7877 = vpop.f32.mrf.mxu0
  %v7878 = vadd.f32 0.0, %v7877
  %7879 = vmatmul.f32.gmra.mxu0 %v7480
  %v7880 = vpop.f32.mrf.mxu0
  %v7881 = vadd.f32 0.0, %v7880
  %7882 = vmatmul.f32.gmra.mxu0 %v7483
  %v7883 = vpop.f32.mrf.mxu0
  %v7884 = vadd.f32 0.0, %v7883
  %7885 = vmatmul.f32.gmra.mxu0 %v7486
  %v7886 = vpop.f32.mrf.mxu0
  %v7887 = vadd.f32 0.0, %v7886
  %7888 = vmatmul.f32.gmra.mxu0 %v7489
  %v7889 = vpop.f32.mrf.mxu0
  %v7890 = vadd.f32 0.0, %v7889
  %7891 = vmatmul.f32.gmra.mxu0 %v7492
  %v7892 = vpop.f32.mrf.mxu0
  %v7893 = vadd.f32 0.0, %v7892
  %7894 = vmatmul.f32.gmra.mxu0 %v7495
  %v7895 = vpop.f32.mrf.mxu0
  %v7896 = vadd.f32 0.0, %v7895
  %7897 = vmatmul.f32.gmra.mxu0 %v7498
  %v7898 = vpop.f32.mrf.mxu0
  %v7899 = vadd.f32 0.0, %v7898
  %7900 = vmatmul.f32.gmra.mxu0 %v7501
  %v7901 = vpop.f32.mrf.mxu0
  %v7902 = vadd.f32 0.0, %v7901
  %7903 = vmatmul.f32.gmra.mxu0 %v7504
  %v7904 = vpop.f32.mrf.mxu0
  %v7905 = vadd.f32 0.0, %v7904
  %7906 = vmatmul.f32.gmra.mxu0 %v7507
  %v7907 = vpop.f32.mrf.mxu0
  %v7908 = vadd.f32 0.0, %v7907
  %7909 = vmatmul.f32.gmra.mxu0 %v7510
  %v7910 = vpop.f32.mrf.mxu0
  %v7911 = vadd.f32 0.0, %v7910
  %7912 = vmatmul.f32.gmra.mxu0 %v7513
  %v7913 = vpop.f32.mrf.mxu0
  %v7914 = vadd.f32 0.0, %v7913
  %7915 = vmatmul.f32.gmra.mxu0 %v7516
  %v7916 = vpop.f32.mrf.mxu0
  %v7917 = vadd.f32 0.0, %v7916
  %7918 = vmatmul.f32.gmra.mxu0 %v7519
  %v7919 = vpop.f32.mrf.mxu0
  %v7920 = vadd.f32 0.0, %v7919
  %7921 = vmatmul.f32.gmra.mxu0 %v7522
  %v7922 = vpop.f32.mrf.mxu0
  %v7923 = vadd.f32 0.0, %v7922
  %7924 = vmatmul.f32.gmra.mxu0 %v7525
  %v7925 = vpop.f32.mrf.mxu0
  %v7926 = vadd.f32 0.0, %v7925
  %7927 = vmatmul.f32.gmra.mxu0 %v7528
  %v7928 = vpop.f32.mrf.mxu0
  %v7929 = vadd.f32 0.0, %v7928
  %7930 = vmatmul.f32.gmra.mxu0 %v7531
  %v7931 = vpop.f32.mrf.mxu0
  %v7932 = vadd.f32 0.0, %v7931
  %7933 = vmatmul.f32.gmra.mxu0 %v7534
  %v7934 = vpop.f32.mrf.mxu0
  %v7935 = vadd.f32 0.0, %v7934
  %7936 = vmatmul.f32.gmra.mxu0 %v7537
  %v7937 = vpop.f32.mrf.mxu0
  %v7938 = vadd.f32 0.0, %v7937
  %7939 = vmatmul.f32.gmra.mxu0 %v7540
  %v7940 = vpop.f32.mrf.mxu0
  %v7941 = vadd.f32 0.0, %v7940
  %7942 = vmatmul.f32.gmra.mxu0 %v7543
  %v7943 = vpop.f32.mrf.mxu0
  %v7944 = vadd.f32 0.0, %v7943
  %7945 = vmatmul.f32.gmra.mxu0 %v7546
  %v7946 = vpop.f32.mrf.mxu0
  %v7947 = vadd.f32 0.0, %v7946
  %7948 = vmatmul.f32.gmra.mxu0 %v7549
  %v7949 = vpop.f32.mrf.mxu0
  %v7950 = vadd.f32 0.0, %v7949
  %7951 = vmatmul.f32.gmra.mxu0 %v7552
  %v7952 = vpop.f32.mrf.mxu0
  %v7953 = vadd.f32 0.0, %v7952
  %7954 = vmatmul.f32.gmra.mxu0 %v7555
  %v7955 = vpop.f32.mrf.mxu0
  %v7956 = vadd.f32 0.0, %v7955
  %7957 = vmatmul.f32.gmra.mxu0 %v7558
  %v7958 = vpop.f32.mrf.mxu0
  %v7959 = vadd.f32 0.0, %v7958
  %7960 = vmatmul.f32.gmra.mxu0 %v7561
  %v7961 = vpop.f32.mrf.mxu0
  %v7962 = vadd.f32 0.0, %v7961
  %7963 = vmatmul.f32.gmra.mxu0 %v7564
  %v7964 = vpop.f32.mrf.mxu0
  %v7965 = vadd.f32 0.0, %v7964
  %7966 = vmatmul.f32.gmra.mxu0 %v7567
  %v7967 = vpop.f32.mrf.mxu0
  %v7968 = vadd.f32 0.0, %v7967
  %7969 = vmatmul.f32.gmra.mxu0 %v7570
  %v7970 = vpop.f32.mrf.mxu0
  %v7971 = vadd.f32 0.0, %v7970
  %7972 = vmatmul.f32.gmra.mxu0 %v7573
  %v7973 = vpop.f32.mrf.mxu0
  %v7974 = vadd.f32 0.0, %v7973
  %7975 = vmatmul.f32.gmra.mxu0 %v7576
  %v7976 = vpop.f32.mrf.mxu0
  %v7977 = vadd.f32 0.0, %v7976
  %7978 = vmatmul.f32.gmra.mxu0 %v7579
  %v7979 = vpop.f32.mrf.mxu0
  %v7980 = vadd.f32 0.0, %v7979
  %7981 = vmatmul.f32.gmra.mxu0 %v7582
  %v7982 = vpop.f32.mrf.mxu0
  %v7983 = vadd.f32 0.0, %v7982
  %7984 = vmatmul.f32.gmra.mxu0 %v7585
  %v7985 = vpop.f32.mrf.mxu0
  %v7986 = vadd.f32 0.0, %v7985
  %7987 = vmatmul.f32.gmra.mxu0 %v7588
  %v7988 = vpop.f32.mrf.mxu0
  %v7989 = vadd.f32 0.0, %v7988
  %7990 = vmatmul.f32.gmra.mxu0 %v7591
  %v7991 = vpop.f32.mrf.mxu0
  %v7992 = vadd.f32 0.0, %v7991
  %7993 = vmatmul.f32.gmra.mxu0 %v7594
  %v7994 = vpop.f32.mrf.mxu0
  %v7995 = vadd.f32 0.0, %v7994
  %7996 = vmatmul.f32.gmra.mxu0 %v7597
  %v7997 = vpop.f32.mrf.mxu0
  %v7998 = vadd.f32 0.0, %v7997
  %7999 = vmatmul.f32.gmra.mxu0 %v7600
  %v8000 = vpop.f32.mrf.mxu0
  %v8001 = vadd.f32 0.0, %v8000
  %8002 = vmatmul.f32.gmra.mxu0 %v7603
  %v8003 = vpop.f32.mrf.mxu0
  %v8004 = vadd.f32 0.0, %v8003
  %8005 = vmatmul.f32.gmra.mxu0 %v7606
  %v8006 = vpop.f32.mrf.mxu0
  %v8007 = vadd.f32 0.0, %v8006
  %8008 = vmatmul.f32.gmra.mxu0 %v7609
  %v8009 = vpop.f32.mrf.mxu0
  %v8010 = vadd.f32 0.0, %v8009
  %8011 = vmatmul.f32.gmra.mxu0 %v7612
  %v8012 = vpop.f32.mrf.mxu0
  %v8013 = vadd.f32 0.0, %v8012
  %8014 = vmatmul.f32.gmra.mxu0 %v7615
  %v8015 = vpop.f32.mrf.mxu0
  %v8016 = vadd.f32 0.0, %v8015
  %8017 = vmatmul.f32.gmra.mxu0 %v7618
  %v8018 = vpop.f32.mrf.mxu0
  %v8019 = vadd.f32 0.0, %v8018
  %8020 = vmatmul.f32.gmra.mxu0 %v7621
  %v8021 = vpop.f32.mrf.mxu0
  %v8022 = vadd.f32 0.0, %v8021
  %8023 = vmatmul.f32.gmra.mxu0 %v7624
  %v8024 = vpop.f32.mrf.mxu0
  %v8025 = vadd.f32 0.0, %v8024
  %8026 = vmatmul.f32.gmra.mxu0 %v7627
  %v8027 = vpop.f32.mrf.mxu0
  %v8028 = vadd.f32 0.0, %v8027
  %8029 = vmatmul.f32.gmra.mxu0 %v7630
  %v8030 = vpop.f32.mrf.mxu0
  %v8031 = vadd.f32 0.0, %v8030
  %8032 = vmatmul.f32.gmra.mxu0 %v7633
  %v8033 = vpop.f32.mrf.mxu0
  %v8034 = vadd.f32 0.0, %v8033
  %8035 = vmatmul.f32.gmra.mxu0 %v7636
  %v8036 = vpop.f32.mrf.mxu0
  %v8037 = vadd.f32 0.0, %v8036
  %8038 = vmatmul.f32.gmra.mxu0 %v7639
  %v8039 = vpop.f32.mrf.mxu0
  %v8040 = vadd.f32 0.0, %v8039
  %8041 = vmatmul.f32.gmra.mxu0 %v7642
  %v8042 = vpop.f32.mrf.mxu0
  %v8043 = vadd.f32 0.0, %v8042
  %8044 = vmatmul.f32.gmra.mxu0 %v7645
  %v8045 = vpop.f32.mrf.mxu0
  %v8046 = vadd.f32 0.0, %v8045
  %8047 = vmatmul.f32.gmra.mxu0 %v7648
  %v8048 = vpop.f32.mrf.mxu0
  %v8049 = vadd.f32 0.0, %v8048
  %8050 = vmatmul.f32.gmra.mxu0 %v7651
  %v8051 = vpop.f32.mrf.mxu0
  %v8052 = vadd.f32 0.0, %v8051
  %8053 = vmatmul.f32.gmra.mxu0 %v7654
  %v8054 = vpop.f32.mrf.mxu0
  %v8055 = vadd.f32 0.0, %v8054
  %8056 = vmatmul.f32.gmra.mxu0 %v7657
  %v8057 = vpop.f32.mrf.mxu0
  %v8058 = vadd.f32 0.0, %v8057
  %8059 = vmatmul.f32.gmra.mxu0 %v7660
  %v8060 = vpop.f32.mrf.mxu0
  %v8061 = vadd.f32 0.0, %v8060
  %8062 = vmatmul.f32.gmra.mxu0 %v7663
  %v8063 = vpop.f32.mrf.mxu0
  %v8064 = vadd.f32 0.0, %v8063
  %8065 = vmatmul.f32.gmra.mxu0 %v7666
  %v8066 = vpop.f32.mrf.mxu0
  %v8067 = vadd.f32 0.0, %v8066
  %8068 = vmatmul.f32.gmra.mxu0 %v7669
  %v8069 = vpop.f32.mrf.mxu0
  %v8070 = vadd.f32 0.0, %v8069
  %8071 = vmatmul.f32.gmra.mxu0 %v7672
  %v8072 = vpop.f32.mrf.mxu0
  %v8073 = vadd.f32 0.0, %v8072
  %8074 = vmatmul.f32.gmra.mxu0 %v7675
  %v8075 = vpop.f32.mrf.mxu0
  %v8076 = vadd.f32 0.0, %v8075
  %8077 = vmatmul.f32.gmra.mxu0 %v7678
  %v8078 = vpop.f32.mrf.mxu0
  %v8079 = vadd.f32 0.0, %v8078
  %8080 = vmatmul.f32.gmra.mxu0 %v7681
  %v8081 = vpop.f32.mrf.mxu0
  %v8082 = vadd.f32 0.0, %v8081
  %8083 = vmatmul.f32.gmra.mxu0 %v7684
  %v8084 = vpop.f32.mrf.mxu0
  %v8085 = vadd.f32 0.0, %v8084
  %8086 = vmatmul.f32.gmra.mxu0 %v7687
  %v8087 = vpop.f32.mrf.mxu0
  %v8088 = vadd.f32 0.0, %v8087
  %8089 = vmatmul.f32.gmra.mxu0 %v7690
  %v8090 = vpop.f32.mrf.mxu0
  %v8091 = vadd.f32 0.0, %v8090
  %8092 = vmatmul.f32.gmra.mxu0 %v7693
  %v8093 = vpop.f32.mrf.mxu0
  %v8094 = vadd.f32 0.0, %v8093
  %8095 = vmatmul.f32.gmra.mxu0 %v7696
  %v8096 = vpop.f32.mrf.mxu0
  %v8097 = vadd.f32 0.0, %v8096
  %8098 = vmatmul.f32.gmra.mxu0 %v7699
  %v8099 = vpop.f32.mrf.mxu0
  %v8100 = vadd.f32 0.0, %v8099
  %8101 = vmatmul.f32.gmra.mxu0 %v7702
  %v8102 = vpop.f32.mrf.mxu0
  %v8103 = vadd.f32 0.0, %v8102
  %8104 = vmatmul.f32.gmra.mxu0 %v7705
  %v8105 = vpop.f32.mrf.mxu0
  %v8106 = vadd.f32 0.0, %v8105
  %8107 = vmatmul.f32.gmra.mxu0 %v7708
  %v8108 = vpop.f32.mrf.mxu0
  %v8109 = vadd.f32 0.0, %v8108
  %8110 = vmatmul.f32.gmra.mxu0 %v7711
  %v8111 = vpop.f32.mrf.mxu0
  %v8112 = vadd.f32 0.0, %v8111
  %8113 = vmatmul.f32.gmra.mxu0 %v7714
  %v8114 = vpop.f32.mrf.mxu0
  %v8115 = vadd.f32 0.0, %v8114
  %8116 = vmatmul.f32.gmra.mxu0 %v7717
  %v8117 = vpop.f32.mrf.mxu0
  %v8118 = vadd.f32 0.0, %v8117
  %8119 = vmatmul.f32.gmra.mxu0 %v7720
  %v8120 = vpop.f32.mrf.mxu0
  %v8121 = vadd.f32 0.0, %v8120
  %8122 = vmatmul.f32.gmra.mxu0 %v7723
  %v8123 = vpop.f32.mrf.mxu0
  %v8124 = vadd.f32 0.0, %v8123
  %8125 = vmatmul.f32.gmra.mxu0 %v7726
  %v8126 = vpop.f32.mrf.mxu0
  %v8127 = vadd.f32 0.0, %v8126
  %8128 = vdwg.mxu0
  %v8129 = vadd.f32 %v7086, %v7746
  %v8130 = vadd.f32 %v7087, %v7749
  %v8131 = vadd.f32 %v7088, %v7752
  %v8132 = vadd.f32 %v7089, %v7755
  %v8133 = vadd.f32 %v7090, %v7758
  %v8134 = vadd.f32 %v7091, %v7761
  %v8135 = vadd.f32 %v7092, %v7764
  %v8136 = vadd.f32 %v7093, %v7767
  %v8137 = vadd.f32 %v7094, %v7770
  %v8138 = vadd.f32 %v7095, %v7773
  %v8139 = vadd.f32 %v7096, %v7776
  %v8140 = vadd.f32 %v7097, %v7779
  %v8141 = vadd.f32 %v7098, %v7782
  %v8142 = vadd.f32 %v7099, %v7785
  %v8143 = vadd.f32 %v7100, %v7788
  %v8144 = vadd.f32 %v7101, %v7791
  %v8145 = vadd.f32 %v7102, %v7794
  %v8146 = vadd.f32 %v7103, %v7797
  %v8147 = vadd.f32 %v7104, %v7800
  %v8148 = vadd.f32 %v7105, %v7803
  %v8149 = vadd.f32 %v7106, %v7806
  %v8150 = vadd.f32 %v7107, %v7809
  %v8151 = vadd.f32 %v7108, %v7812
  %v8152 = vadd.f32 %v7109, %v7815
  %v8153 = vadd.f32 %v7110, %v7818
  %v8154 = vadd.f32 %v7111, %v7821
  %v8155 = vadd.f32 %v7112, %v7824
  %v8156 = vadd.f32 %v7113, %v7827
  %v8157 = vadd.f32 %v7114, %v7830
  %v8158 = vadd.f32 %v7115, %v7833
  %v8159 = vadd.f32 %v7116, %v7836
  %v8160 = vadd.f32 %v7117, %v7839
  %v8161 = vadd.f32 %v7118, %v7842
  %v8162 = vadd.f32 %v7119, %v7845
  %v8163 = vadd.f32 %v7120, %v7848
  %v8164 = vadd.f32 %v7121, %v7851
  %v8165 = vadd.f32 %v7122, %v7854
  %v8166 = vadd.f32 %v7123, %v7857
  %v8167 = vadd.f32 %v7124, %v7860
  %v8168 = vadd.f32 %v7125, %v7863
  %v8169 = vadd.f32 %v7126, %v7866
  %v8170 = vadd.f32 %v7127, %v7869
  %v8171 = vadd.f32 %v7128, %v7872
  %v8172 = vadd.f32 %v7129, %v7875
  %v8173 = vadd.f32 %v7130, %v7878
  %v8174 = vadd.f32 %v7131, %v7881
  %v8175 = vadd.f32 %v7132, %v7884
  %v8176 = vadd.f32 %v7133, %v7887
  %v8177 = vadd.f32 %v7134, %v7890
  %v8178 = vadd.f32 %v7135, %v7893
  %v8179 = vadd.f32 %v7136, %v7896
  %v8180 = vadd.f32 %v7137, %v7899
  %v8181 = vadd.f32 %v7138, %v7902
  %v8182 = vadd.f32 %v7139, %v7905
  %v8183 = vadd.f32 %v7140, %v7908
  %v8184 = vadd.f32 %v7141, %v7911
  %v8185 = vadd.f32 %v7142, %v7914
  %v8186 = vadd.f32 %v7143, %v7917
  %v8187 = vadd.f32 %v7144, %v7920
  %v8188 = vadd.f32 %v7145, %v7923
  %v8189 = vadd.f32 %v7146, %v7926
  %v8190 = vadd.f32 %v7147, %v7929
  %v8191 = vadd.f32 %v7148, %v7932
  %v8192 = vadd.f32 %v7149, %v7935
  %v8193 = vadd.f32 %v7150, %v7938
  %v8194 = vadd.f32 %v7151, %v7941
  %v8195 = vadd.f32 %v7152, %v7944
  %v8196 = vadd.f32 %v7153, %v7947
  %v8197 = vadd.f32 %v7154, %v7950
  %v8198 = vadd.f32 %v7155, %v7953
  %v8199 = vadd.f32 %v7156, %v7956
  %v8200 = vadd.f32 %v7157, %v7959
  %v8201 = vadd.f32 %v7158, %v7962
  %v8202 = vadd.f32 %v7159, %v7965
  %v8203 = vadd.f32 %v7160, %v7968
  %v8204 = vadd.f32 %v7161, %v7971
  %v8205 = vadd.f32 %v7162, %v7974
  %v8206 = vadd.f32 %v7163, %v7977
  %v8207 = vadd.f32 %v7164, %v7980
  %v8208 = vadd.f32 %v7165, %v7983
  %v8209 = vadd.f32 %v7166, %v7986
  %v8210 = vadd.f32 %v7167, %v7989
  %v8211 = vadd.f32 %v7168, %v7992
  %v8212 = vadd.f32 %v7169, %v7995
  %v8213 = vadd.f32 %v7170, %v7998
  %v8214 = vadd.f32 %v7171, %v8001
  %v8215 = vadd.f32 %v7172, %v8004
  %v8216 = vadd.f32 %v7173, %v8007
  %v8217 = vadd.f32 %v7174, %v8010
  %v8218 = vadd.f32 %v7175, %v8013
  %v8219 = vadd.f32 %v7176, %v8016
  %v8220 = vadd.f32 %v7177, %v8019
  %v8221 = vadd.f32 %v7178, %v8022
  %v8222 = vadd.f32 %v7179, %v8025
  %v8223 = vadd.f32 %v7180, %v8028
  %v8224 = vadd.f32 %v7181, %v8031
  %v8225 = vadd.f32 %v7182, %v8034
  %v8226 = vadd.f32 %v7183, %v8037
  %v8227 = vadd.f32 %v7184, %v8040
  %v8228 = vadd.f32 %v7185, %v8043
  %v8229 = vadd.f32 %v7186, %v8046
  %v8230 = vadd.f32 %v7187, %v8049
  %v8231 = vadd.f32 %v7188, %v8052
  %v8232 = vadd.f32 %v7189, %v8055
  %v8233 = vadd.f32 %v7190, %v8058
  %v8234 = vadd.f32 %v7191, %v8061
  %v8235 = vadd.f32 %v7192, %v8064
  %v8236 = vadd.f32 %v7193, %v8067
  %v8237 = vadd.f32 %v7194, %v8070
  %v8238 = vadd.f32 %v7195, %v8073
  %v8239 = vadd.f32 %v7196, %v8076
  %v8240 = vadd.f32 %v7197, %v8079
  %v8241 = vadd.f32 %v7198, %v8082
  %v8242 = vadd.f32 %v7199, %v8085
  %v8243 = vadd.f32 %v7200, %v8088
  %v8244 = vadd.f32 %v7201, %v8091
  %v8245 = vadd.f32 %v7202, %v8094
  %v8246 = vadd.f32 %v7203, %v8097
  %v8247 = vadd.f32 %v7204, %v8100
  %v8248 = vadd.f32 %v7205, %v8103
  %v8249 = vadd.f32 %v7206, %v8106
  %v8250 = vadd.f32 %v7207, %v8109
  %v8251 = vadd.f32 %v7208, %v8112
  %v8252 = vadd.f32 %v7209, %v8115
  %v8253 = vadd.f32 %v7210, %v8118
  %v8254 = vadd.f32 %v7211, %v8121
  %v8255 = vadd.f32 %v7212, %v8124
  %v8256 = vadd.f32 %v7213, %v8127
  %v8257 = vld [vmem:[#allocation2 + $0x7] sm:$0xff]
  %v8258 = vld [vmem:[#allocation2 + $0xf] sm:$0xff]
  %v8259 = vld [vmem:[#allocation2 + $0x17] sm:$0xff]
  %v8260 = vld [vmem:[#allocation2 + $0x1f] sm:$0xff]
  %v8261 = vld [vmem:[#allocation2 + $0x27] sm:$0xff]
  %v8262 = vld [vmem:[#allocation2 + $0x2f] sm:$0xff]
  %v8263 = vld [vmem:[#allocation2 + $0x37] sm:$0xff]
  %v8264 = vld [vmem:[#allocation2 + $0x3f] sm:$0xff]
  %v8265 = vld [vmem:[#allocation2 + $0x47] sm:$0xff]
  %v8266 = vld [vmem:[#allocation2 + $0x4f] sm:$0xff]
  %v8267 = vld [vmem:[#allocation2 + $0x57] sm:$0xff]
  %v8268 = vld [vmem:[#allocation2 + $0x5f] sm:$0xff]
  %v8269 = vld [vmem:[#allocation2 + $0x67] sm:$0xff]
  %v8270 = vld [vmem:[#allocation2 + $0x6f] sm:$0xff]
  %v8271 = vld [vmem:[#allocation2 + $0x77] sm:$0xff]
  %v8272 = vld [vmem:[#allocation2 + $0x7f] sm:$0xff]
  %v8273 = vld [vmem:[#allocation2 + $0x87] sm:$0xff]
  %v8274 = vld [vmem:[#allocation2 + $0x8f] sm:$0xff]
  %v8275 = vld [vmem:[#allocation2 + $0x97] sm:$0xff]
  %v8276 = vld [vmem:[#allocation2 + $0x9f] sm:$0xff]
  %v8277 = vld [vmem:[#allocation2 + $0xa7] sm:$0xff]
  %v8278 = vld [vmem:[#allocation2 + $0xaf] sm:$0xff]
  %v8279 = vld [vmem:[#allocation2 + $0xb7] sm:$0xff]
  %v8280 = vld [vmem:[#allocation2 + $0xbf] sm:$0xff]
  %v8281 = vld [vmem:[#allocation2 + $0xc7] sm:$0xff]
  %v8282 = vld [vmem:[#allocation2 + $0xcf] sm:$0xff]
  %v8283 = vld [vmem:[#allocation2 + $0xd7] sm:$0xff]
  %v8284 = vld [vmem:[#allocation2 + $0xdf] sm:$0xff]
  %v8285 = vld [vmem:[#allocation2 + $0xe7] sm:$0xff]
  %v8286 = vld [vmem:[#allocation2 + $0xef] sm:$0xff]
  %v8287 = vld [vmem:[#allocation2 + $0xf7] sm:$0xff]
  %v8288 = vld [vmem:[#allocation2 + $0xff] sm:$0xff]
  %v8289 = vld [vmem:[#allocation2 + $0x107] sm:$0xff]
  %v8290 = vld [vmem:[#allocation2 + $0x10f] sm:$0xff]
  %v8291 = vld [vmem:[#allocation2 + $0x117] sm:$0xff]
  %v8292 = vld [vmem:[#allocation2 + $0x11f] sm:$0xff]
  %v8293 = vld [vmem:[#allocation2 + $0x127] sm:$0xff]
  %v8294 = vld [vmem:[#allocation2 + $0x12f] sm:$0xff]
  %v8295 = vld [vmem:[#allocation2 + $0x137] sm:$0xff]
  %v8296 = vld [vmem:[#allocation2 + $0x13f] sm:$0xff]
  %v8297 = vld [vmem:[#allocation2 + $0x147] sm:$0xff]
  %v8298 = vld [vmem:[#allocation2 + $0x14f] sm:$0xff]
  %v8299 = vld [vmem:[#allocation2 + $0x157] sm:$0xff]
  %v8300 = vld [vmem:[#allocation2 + $0x15f] sm:$0xff]
  %v8301 = vld [vmem:[#allocation2 + $0x167] sm:$0xff]
  %v8302 = vld [vmem:[#allocation2 + $0x16f] sm:$0xff]
  %v8303 = vld [vmem:[#allocation2 + $0x177] sm:$0xff]
  %v8304 = vld [vmem:[#allocation2 + $0x17f] sm:$0xff]
  %v8305 = vld [vmem:[#allocation2 + $0x187] sm:$0xff]
  %v8306 = vld [vmem:[#allocation2 + $0x18f] sm:$0xff]
  %v8307 = vld [vmem:[#allocation2 + $0x197] sm:$0xff]
  %v8308 = vld [vmem:[#allocation2 + $0x19f] sm:$0xff]
  %v8309 = vld [vmem:[#allocation2 + $0x1a7] sm:$0xff]
  %v8310 = vld [vmem:[#allocation2 + $0x1af] sm:$0xff]
  %v8311 = vld [vmem:[#allocation2 + $0x1b7] sm:$0xff]
  %v8312 = vld [vmem:[#allocation2 + $0x1bf] sm:$0xff]
  %v8313 = vld [vmem:[#allocation2 + $0x1c7] sm:$0xff]
  %v8314 = vld [vmem:[#allocation2 + $0x1cf] sm:$0xff]
  %v8315 = vld [vmem:[#allocation2 + $0x1d7] sm:$0xff]
  %v8316 = vld [vmem:[#allocation2 + $0x1df] sm:$0xff]
  %v8317 = vld [vmem:[#allocation2 + $0x1e7] sm:$0xff]
  %v8318 = vld [vmem:[#allocation2 + $0x1ef] sm:$0xff]
  %v8319 = vld [vmem:[#allocation2 + $0x1f7] sm:$0xff]
  %v8320 = vld [vmem:[#allocation2 + $0x1ff] sm:$0xff]
  %v8321 = vld [vmem:[#allocation2 + $0x207] sm:$0xff]
  %v8322 = vld [vmem:[#allocation2 + $0x20f] sm:$0xff]
  %v8323 = vld [vmem:[#allocation2 + $0x217] sm:$0xff]
  %v8324 = vld [vmem:[#allocation2 + $0x21f] sm:$0xff]
  %v8325 = vld [vmem:[#allocation2 + $0x227] sm:$0xff]
  %v8326 = vld [vmem:[#allocation2 + $0x22f] sm:$0xff]
  %v8327 = vld [vmem:[#allocation2 + $0x237] sm:$0xff]
  %v8328 = vld [vmem:[#allocation2 + $0x23f] sm:$0xff]
  %v8329 = vld [vmem:[#allocation2 + $0x247] sm:$0xff]
  %v8330 = vld [vmem:[#allocation2 + $0x24f] sm:$0xff]
  %v8331 = vld [vmem:[#allocation2 + $0x257] sm:$0xff]
  %v8332 = vld [vmem:[#allocation2 + $0x25f] sm:$0xff]
  %v8333 = vld [vmem:[#allocation2 + $0x267] sm:$0xff]
  %v8334 = vld [vmem:[#allocation2 + $0x26f] sm:$0xff]
  %v8335 = vld [vmem:[#allocation2 + $0x277] sm:$0xff]
  %v8336 = vld [vmem:[#allocation2 + $0x27f] sm:$0xff]
  %v8337 = vld [vmem:[#allocation2 + $0x287] sm:$0xff]
  %v8338 = vld [vmem:[#allocation2 + $0x28f] sm:$0xff]
  %v8339 = vld [vmem:[#allocation2 + $0x297] sm:$0xff]
  %v8340 = vld [vmem:[#allocation2 + $0x29f] sm:$0xff]
  %v8341 = vld [vmem:[#allocation2 + $0x2a7] sm:$0xff]
  %v8342 = vld [vmem:[#allocation2 + $0x2af] sm:$0xff]
  %v8343 = vld [vmem:[#allocation2 + $0x2b7] sm:$0xff]
  %v8344 = vld [vmem:[#allocation2 + $0x2bf] sm:$0xff]
  %v8345 = vld [vmem:[#allocation2 + $0x2c7] sm:$0xff]
  %v8346 = vld [vmem:[#allocation2 + $0x2cf] sm:$0xff]
  %v8347 = vld [vmem:[#allocation2 + $0x2d7] sm:$0xff]
  %v8348 = vld [vmem:[#allocation2 + $0x2df] sm:$0xff]
  %v8349 = vld [vmem:[#allocation2 + $0x2e7] sm:$0xff]
  %v8350 = vld [vmem:[#allocation2 + $0x2ef] sm:$0xff]
  %v8351 = vld [vmem:[#allocation2 + $0x2f7] sm:$0xff]
  %v8352 = vld [vmem:[#allocation2 + $0x2ff] sm:$0xff]
  %v8353 = vld [vmem:[#allocation2 + $0x307] sm:$0xff]
  %v8354 = vld [vmem:[#allocation2 + $0x30f] sm:$0xff]
  %v8355 = vld [vmem:[#allocation2 + $0x317] sm:$0xff]
  %v8356 = vld [vmem:[#allocation2 + $0x31f] sm:$0xff]
  %v8357 = vld [vmem:[#allocation2 + $0x327] sm:$0xff]
  %v8358 = vld [vmem:[#allocation2 + $0x32f] sm:$0xff]
  %v8359 = vld [vmem:[#allocation2 + $0x337] sm:$0xff]
  %v8360 = vld [vmem:[#allocation2 + $0x33f] sm:$0xff]
  %v8361 = vld [vmem:[#allocation2 + $0x347] sm:$0xff]
  %v8362 = vld [vmem:[#allocation2 + $0x34f] sm:$0xff]
  %v8363 = vld [vmem:[#allocation2 + $0x357] sm:$0xff]
  %v8364 = vld [vmem:[#allocation2 + $0x35f] sm:$0xff]
  %v8365 = vld [vmem:[#allocation2 + $0x367] sm:$0xff]
  %v8366 = vld [vmem:[#allocation2 + $0x36f] sm:$0xff]
  %v8367 = vld [vmem:[#allocation2 + $0x377] sm:$0xff]
  %v8368 = vld [vmem:[#allocation2 + $0x37f] sm:$0xff]
  %v8369 = vld [vmem:[#allocation2 + $0x387] sm:$0xff]
  %v8370 = vld [vmem:[#allocation2 + $0x38f] sm:$0xff]
  %v8371 = vld [vmem:[#allocation2 + $0x397] sm:$0xff]
  %v8372 = vld [vmem:[#allocation2 + $0x39f] sm:$0xff]
  %v8373 = vld [vmem:[#allocation2 + $0x3a7] sm:$0xff]
  %v8374 = vld [vmem:[#allocation2 + $0x3af] sm:$0xff]
  %v8375 = vld [vmem:[#allocation2 + $0x3b7] sm:$0xff]
  %v8376 = vld [vmem:[#allocation2 + $0x3bf] sm:$0xff]
  %v8377 = vld [vmem:[#allocation2 + $0x3c7] sm:$0xff]
  %v8378 = vld [vmem:[#allocation2 + $0x3cf] sm:$0xff]
  %v8379 = vld [vmem:[#allocation2 + $0x3d7] sm:$0xff]
  %v8380 = vld [vmem:[#allocation2 + $0x3df] sm:$0xff]
  %v8381 = vld [vmem:[#allocation2 + $0x3e7] sm:$0xff]
  %v8382 = vld [vmem:[#allocation2 + $0x3ef] sm:$0xff]
  %v8383 = vld [vmem:[#allocation2 + $0x3f7] sm:$0xff]
  %v8384 = vld [vmem:[#allocation2 + $0x3ff] sm:$0xff]
  %s8385 = scalar_lea.vmem %s3, 56
  %v8386 = vld [vmem:[%s8385] sm:$0xff]
  %v8388 = vsel %vm1083, %v8257, 0
  %v8391 = vsel %vm1083, %v8258, 0
  %v8394 = vsel %vm1083, %v8259, 0
  %v8397 = vsel %vm1083, %v8260, 0
  %v8400 = vsel %vm1083, %v8261, 0
  %v8403 = vsel %vm1083, %v8262, 0
  %v8406 = vsel %vm1083, %v8263, 0
  %v8409 = vsel %vm1083, %v8264, 0
  %v8412 = vsel %vm1083, %v8265, 0
  %v8415 = vsel %vm1083, %v8266, 0
  %v8418 = vsel %vm1083, %v8267, 0
  %v8421 = vsel %vm1083, %v8268, 0
  %v8424 = vsel %vm1083, %v8269, 0
  %v8427 = vsel %vm1083, %v8270, 0
  %v8430 = vsel %vm1083, %v8271, 0
  %v8433 = vsel %vm1083, %v8272, 0
  %v8436 = vsel %vm1083, %v8273, 0
  %v8439 = vsel %vm1083, %v8274, 0
  %v8442 = vsel %vm1083, %v8275, 0
  %v8445 = vsel %vm1083, %v8276, 0
  %v8448 = vsel %vm1083, %v8277, 0
  %v8451 = vsel %vm1083, %v8278, 0
  %v8454 = vsel %vm1083, %v8279, 0
  %v8457 = vsel %vm1083, %v8280, 0
  %v8460 = vsel %vm1083, %v8281, 0
  %v8463 = vsel %vm1083, %v8282, 0
  %v8466 = vsel %vm1083, %v8283, 0
  %v8469 = vsel %vm1083, %v8284, 0
  %v8472 = vsel %vm1083, %v8285, 0
  %v8475 = vsel %vm1083, %v8286, 0
  %v8478 = vsel %vm1083, %v8287, 0
  %v8481 = vsel %vm1083, %v8288, 0
  %v8484 = vsel %vm1083, %v8289, 0
  %v8487 = vsel %vm1083, %v8290, 0
  %v8490 = vsel %vm1083, %v8291, 0
  %v8493 = vsel %vm1083, %v8292, 0
  %v8496 = vsel %vm1083, %v8293, 0
  %v8499 = vsel %vm1083, %v8294, 0
  %v8502 = vsel %vm1083, %v8295, 0
  %v8505 = vsel %vm1083, %v8296, 0
  %v8508 = vsel %vm1083, %v8297, 0
  %v8511 = vsel %vm1083, %v8298, 0
  %v8514 = vsel %vm1083, %v8299, 0
  %v8517 = vsel %vm1083, %v8300, 0
  %v8520 = vsel %vm1083, %v8301, 0
  %v8523 = vsel %vm1083, %v8302, 0
  %v8526 = vsel %vm1083, %v8303, 0
  %v8529 = vsel %vm1083, %v8304, 0
  %v8532 = vsel %vm1083, %v8305, 0
  %v8535 = vsel %vm1083, %v8306, 0
  %v8538 = vsel %vm1083, %v8307, 0
  %v8541 = vsel %vm1083, %v8308, 0
  %v8544 = vsel %vm1083, %v8309, 0
  %v8547 = vsel %vm1083, %v8310, 0
  %v8550 = vsel %vm1083, %v8311, 0
  %v8553 = vsel %vm1083, %v8312, 0
  %v8556 = vsel %vm1083, %v8313, 0
  %v8559 = vsel %vm1083, %v8314, 0
  %v8562 = vsel %vm1083, %v8315, 0
  %v8565 = vsel %vm1083, %v8316, 0
  %v8568 = vsel %vm1083, %v8317, 0
  %v8571 = vsel %vm1083, %v8318, 0
  %v8574 = vsel %vm1083, %v8319, 0
  %v8577 = vsel %vm1083, %v8320, 0
  %v8580 = vsel %vm1083, %v8321, 0
  %v8583 = vsel %vm1083, %v8322, 0
  %v8586 = vsel %vm1083, %v8323, 0
  %v8589 = vsel %vm1083, %v8324, 0
  %v8592 = vsel %vm1083, %v8325, 0
  %v8595 = vsel %vm1083, %v8326, 0
  %v8598 = vsel %vm1083, %v8327, 0
  %v8601 = vsel %vm1083, %v8328, 0
  %v8604 = vsel %vm1083, %v8329, 0
  %v8607 = vsel %vm1083, %v8330, 0
  %v8610 = vsel %vm1083, %v8331, 0
  %v8613 = vsel %vm1083, %v8332, 0
  %v8616 = vsel %vm1083, %v8333, 0
  %v8619 = vsel %vm1083, %v8334, 0
  %v8622 = vsel %vm1083, %v8335, 0
  %v8625 = vsel %vm1083, %v8336, 0
  %v8628 = vsel %vm1083, %v8337, 0
  %v8631 = vsel %vm1083, %v8338, 0
  %v8634 = vsel %vm1083, %v8339, 0
  %v8637 = vsel %vm1083, %v8340, 0
  %v8640 = vsel %vm1083, %v8341, 0
  %v8643 = vsel %vm1083, %v8342, 0
  %v8646 = vsel %vm1083, %v8343, 0
  %v8649 = vsel %vm1083, %v8344, 0
  %v8652 = vsel %vm1083, %v8345, 0
  %v8655 = vsel %vm1083, %v8346, 0
  %v8658 = vsel %vm1083, %v8347, 0
  %v8661 = vsel %vm1083, %v8348, 0
  %v8664 = vsel %vm1083, %v8349, 0
  %v8667 = vsel %vm1083, %v8350, 0
  %v8670 = vsel %vm1083, %v8351, 0
  %v8673 = vsel %vm1083, %v8352, 0
  %v8676 = vsel %vm1083, %v8353, 0
  %v8679 = vsel %vm1083, %v8354, 0
  %v8682 = vsel %vm1083, %v8355, 0
  %v8685 = vsel %vm1083, %v8356, 0
  %v8688 = vsel %vm1083, %v8357, 0
  %v8691 = vsel %vm1083, %v8358, 0
  %v8694 = vsel %vm1083, %v8359, 0
  %v8697 = vsel %vm1083, %v8360, 0
  %v8700 = vsel %vm1083, %v8361, 0
  %v8703 = vsel %vm1083, %v8362, 0
  %v8706 = vsel %vm1083, %v8363, 0
  %v8709 = vsel %vm1083, %v8364, 0
  %v8712 = vsel %vm1083, %v8365, 0
  %v8715 = vsel %vm1083, %v8366, 0
  %v8718 = vsel %vm1083, %v8367, 0
  %v8721 = vsel %vm1083, %v8368, 0
  %v8724 = vsel %vm1083, %v8369, 0
  %v8727 = vsel %vm1083, %v8370, 0
  %v8730 = vsel %vm1083, %v8371, 0
  %v8733 = vsel %vm1083, %v8372, 0
  %v8736 = vsel %vm1083, %v8373, 0
  %v8739 = vsel %vm1083, %v8374, 0
  %v8742 = vsel %vm1083, %v8375, 0
  %v8745 = vsel %vm1083, %v8376, 0
  %v8748 = vsel %vm1083, %v8377, 0
  %v8751 = vsel %vm1083, %v8378, 0
  %v8754 = vsel %vm1083, %v8379, 0
  %v8757 = vsel %vm1083, %v8380, 0
  %v8760 = vsel %vm1083, %v8381, 0
  %v8763 = vsel %vm1083, %v8382, 0
  %v8766 = vsel %vm1083, %v8383, 0
  %v8769 = vsel %vm1083, %v8384, 0
  %8771 = vmatpush.msra.mxu0 0.0
  %8772 = vmatpush.msra.mxu0 0.0
  %8773 = vmatpush.msra.mxu0 0.0
  %8774 = vmatpush.msra.mxu0 0.0
  %8775 = vmatpush.msra.mxu0 0.0
  %8776 = vmatpush.msra.mxu0 0.0
  %8777 = vmatpush.msra.mxu0 0.0
  %8778 = vmatpush.msra.mxu0 0.0
  %8779 = vmatpush.msra.mxu0 0.0
  %8780 = vmatpush.msra.mxu0 0.0
  %8781 = vmatpush.msra.mxu0 0.0
  %8782 = vmatpush.msra.mxu0 0.0
  %8783 = vmatpush.msra.mxu0 0.0
  %8784 = vmatpush.msra.mxu0 0.0
  %8785 = vmatpush.msra.mxu0 0.0
  %8786 = vmatpush.msra.mxu0 %v8386
  %8787 = vmatmul.f32.gmra.mxu0 %v8388
  %v8788 = vpop.f32.mrf.mxu0
  %v8789 = vadd.f32 0.0, %v8788
  %8790 = vmatmul.f32.gmra.mxu0 %v8391
  %v8791 = vpop.f32.mrf.mxu0
  %v8792 = vadd.f32 0.0, %v8791
  %8793 = vmatmul.f32.gmra.mxu0 %v8394
  %v8794 = vpop.f32.mrf.mxu0
  %v8795 = vadd.f32 0.0, %v8794
  %8796 = vmatmul.f32.gmra.mxu0 %v8397
  %v8797 = vpop.f32.mrf.mxu0
  %v8798 = vadd.f32 0.0, %v8797
  %8799 = vmatmul.f32.gmra.mxu0 %v8400
  %v8800 = vpop.f32.mrf.mxu0
  %v8801 = vadd.f32 0.0, %v8800
  %8802 = vmatmul.f32.gmra.mxu0 %v8403
  %v8803 = vpop.f32.mrf.mxu0
  %v8804 = vadd.f32 0.0, %v8803
  %8805 = vmatmul.f32.gmra.mxu0 %v8406
  %v8806 = vpop.f32.mrf.mxu0
  %v8807 = vadd.f32 0.0, %v8806
  %8808 = vmatmul.f32.gmra.mxu0 %v8409
  %v8809 = vpop.f32.mrf.mxu0
  %v8810 = vadd.f32 0.0, %v8809
  %8811 = vmatmul.f32.gmra.mxu0 %v8412
  %v8812 = vpop.f32.mrf.mxu0
  %v8813 = vadd.f32 0.0, %v8812
  %8814 = vmatmul.f32.gmra.mxu0 %v8415
  %v8815 = vpop.f32.mrf.mxu0
  %v8816 = vadd.f32 0.0, %v8815
  %8817 = vmatmul.f32.gmra.mxu0 %v8418
  %v8818 = vpop.f32.mrf.mxu0
  %v8819 = vadd.f32 0.0, %v8818
  %8820 = vmatmul.f32.gmra.mxu0 %v8421
  %v8821 = vpop.f32.mrf.mxu0
  %v8822 = vadd.f32 0.0, %v8821
  %8823 = vmatmul.f32.gmra.mxu0 %v8424
  %v8824 = vpop.f32.mrf.mxu0
  %v8825 = vadd.f32 0.0, %v8824
  %8826 = vmatmul.f32.gmra.mxu0 %v8427
  %v8827 = vpop.f32.mrf.mxu0
  %v8828 = vadd.f32 0.0, %v8827
  %8829 = vmatmul.f32.gmra.mxu0 %v8430
  %v8830 = vpop.f32.mrf.mxu0
  %v8831 = vadd.f32 0.0, %v8830
  %8832 = vmatmul.f32.gmra.mxu0 %v8433
  %v8833 = vpop.f32.mrf.mxu0
  %v8834 = vadd.f32 0.0, %v8833
  %8835 = vmatmul.f32.gmra.mxu0 %v8436
  %v8836 = vpop.f32.mrf.mxu0
  %v8837 = vadd.f32 0.0, %v8836
  %8838 = vmatmul.f32.gmra.mxu0 %v8439
  %v8839 = vpop.f32.mrf.mxu0
  %v8840 = vadd.f32 0.0, %v8839
  %8841 = vmatmul.f32.gmra.mxu0 %v8442
  %v8842 = vpop.f32.mrf.mxu0
  %v8843 = vadd.f32 0.0, %v8842
  %8844 = vmatmul.f32.gmra.mxu0 %v8445
  %v8845 = vpop.f32.mrf.mxu0
  %v8846 = vadd.f32 0.0, %v8845
  %8847 = vmatmul.f32.gmra.mxu0 %v8448
  %v8848 = vpop.f32.mrf.mxu0
  %v8849 = vadd.f32 0.0, %v8848
  %8850 = vmatmul.f32.gmra.mxu0 %v8451
  %v8851 = vpop.f32.mrf.mxu0
  %v8852 = vadd.f32 0.0, %v8851
  %8853 = vmatmul.f32.gmra.mxu0 %v8454
  %v8854 = vpop.f32.mrf.mxu0
  %v8855 = vadd.f32 0.0, %v8854
  %8856 = vmatmul.f32.gmra.mxu0 %v8457
  %v8857 = vpop.f32.mrf.mxu0
  %v8858 = vadd.f32 0.0, %v8857
  %8859 = vmatmul.f32.gmra.mxu0 %v8460
  %v8860 = vpop.f32.mrf.mxu0
  %v8861 = vadd.f32 0.0, %v8860
  %8862 = vmatmul.f32.gmra.mxu0 %v8463
  %v8863 = vpop.f32.mrf.mxu0
  %v8864 = vadd.f32 0.0, %v8863
  %8865 = vmatmul.f32.gmra.mxu0 %v8466
  %v8866 = vpop.f32.mrf.mxu0
  %v8867 = vadd.f32 0.0, %v8866
  %8868 = vmatmul.f32.gmra.mxu0 %v8469
  %v8869 = vpop.f32.mrf.mxu0
  %v8870 = vadd.f32 0.0, %v8869
  %8871 = vmatmul.f32.gmra.mxu0 %v8472
  %v8872 = vpop.f32.mrf.mxu0
  %v8873 = vadd.f32 0.0, %v8872
  %8874 = vmatmul.f32.gmra.mxu0 %v8475
  %v8875 = vpop.f32.mrf.mxu0
  %v8876 = vadd.f32 0.0, %v8875
  %8877 = vmatmul.f32.gmra.mxu0 %v8478
  %v8878 = vpop.f32.mrf.mxu0
  %v8879 = vadd.f32 0.0, %v8878
  %8880 = vmatmul.f32.gmra.mxu0 %v8481
  %v8881 = vpop.f32.mrf.mxu0
  %v8882 = vadd.f32 0.0, %v8881
  %8883 = vmatmul.f32.gmra.mxu0 %v8484
  %v8884 = vpop.f32.mrf.mxu0
  %v8885 = vadd.f32 0.0, %v8884
  %8886 = vmatmul.f32.gmra.mxu0 %v8487
  %v8887 = vpop.f32.mrf.mxu0
  %v8888 = vadd.f32 0.0, %v8887
  %8889 = vmatmul.f32.gmra.mxu0 %v8490
  %v8890 = vpop.f32.mrf.mxu0
  %v8891 = vadd.f32 0.0, %v8890
  %8892 = vmatmul.f32.gmra.mxu0 %v8493
  %v8893 = vpop.f32.mrf.mxu0
  %v8894 = vadd.f32 0.0, %v8893
  %8895 = vmatmul.f32.gmra.mxu0 %v8496
  %v8896 = vpop.f32.mrf.mxu0
  %v8897 = vadd.f32 0.0, %v8896
  %8898 = vmatmul.f32.gmra.mxu0 %v8499
  %v8899 = vpop.f32.mrf.mxu0
  %v8900 = vadd.f32 0.0, %v8899
  %8901 = vmatmul.f32.gmra.mxu0 %v8502
  %v8902 = vpop.f32.mrf.mxu0
  %v8903 = vadd.f32 0.0, %v8902
  %8904 = vmatmul.f32.gmra.mxu0 %v8505
  %v8905 = vpop.f32.mrf.mxu0
  %v8906 = vadd.f32 0.0, %v8905
  %8907 = vmatmul.f32.gmra.mxu0 %v8508
  %v8908 = vpop.f32.mrf.mxu0
  %v8909 = vadd.f32 0.0, %v8908
  %8910 = vmatmul.f32.gmra.mxu0 %v8511
  %v8911 = vpop.f32.mrf.mxu0
  %v8912 = vadd.f32 0.0, %v8911
  %8913 = vmatmul.f32.gmra.mxu0 %v8514
  %v8914 = vpop.f32.mrf.mxu0
  %v8915 = vadd.f32 0.0, %v8914
  %8916 = vmatmul.f32.gmra.mxu0 %v8517
  %v8917 = vpop.f32.mrf.mxu0
  %v8918 = vadd.f32 0.0, %v8917
  %8919 = vmatmul.f32.gmra.mxu0 %v8520
  %v8920 = vpop.f32.mrf.mxu0
  %v8921 = vadd.f32 0.0, %v8920
  %8922 = vmatmul.f32.gmra.mxu0 %v8523
  %v8923 = vpop.f32.mrf.mxu0
  %v8924 = vadd.f32 0.0, %v8923
  %8925 = vmatmul.f32.gmra.mxu0 %v8526
  %v8926 = vpop.f32.mrf.mxu0
  %v8927 = vadd.f32 0.0, %v8926
  %8928 = vmatmul.f32.gmra.mxu0 %v8529
  %v8929 = vpop.f32.mrf.mxu0
  %v8930 = vadd.f32 0.0, %v8929
  %8931 = vmatmul.f32.gmra.mxu0 %v8532
  %v8932 = vpop.f32.mrf.mxu0
  %v8933 = vadd.f32 0.0, %v8932
  %8934 = vmatmul.f32.gmra.mxu0 %v8535
  %v8935 = vpop.f32.mrf.mxu0
  %v8936 = vadd.f32 0.0, %v8935
  %8937 = vmatmul.f32.gmra.mxu0 %v8538
  %v8938 = vpop.f32.mrf.mxu0
  %v8939 = vadd.f32 0.0, %v8938
  %8940 = vmatmul.f32.gmra.mxu0 %v8541
  %v8941 = vpop.f32.mrf.mxu0
  %v8942 = vadd.f32 0.0, %v8941
  %8943 = vmatmul.f32.gmra.mxu0 %v8544
  %v8944 = vpop.f32.mrf.mxu0
  %v8945 = vadd.f32 0.0, %v8944
  %8946 = vmatmul.f32.gmra.mxu0 %v8547
  %v8947 = vpop.f32.mrf.mxu0
  %v8948 = vadd.f32 0.0, %v8947
  %8949 = vmatmul.f32.gmra.mxu0 %v8550
  %v8950 = vpop.f32.mrf.mxu0
  %v8951 = vadd.f32 0.0, %v8950
  %8952 = vmatmul.f32.gmra.mxu0 %v8553
  %v8953 = vpop.f32.mrf.mxu0
  %v8954 = vadd.f32 0.0, %v8953
  %8955 = vmatmul.f32.gmra.mxu0 %v8556
  %v8956 = vpop.f32.mrf.mxu0
  %v8957 = vadd.f32 0.0, %v8956
  %8958 = vmatmul.f32.gmra.mxu0 %v8559
  %v8959 = vpop.f32.mrf.mxu0
  %v8960 = vadd.f32 0.0, %v8959
  %8961 = vmatmul.f32.gmra.mxu0 %v8562
  %v8962 = vpop.f32.mrf.mxu0
  %v8963 = vadd.f32 0.0, %v8962
  %8964 = vmatmul.f32.gmra.mxu0 %v8565
  %v8965 = vpop.f32.mrf.mxu0
  %v8966 = vadd.f32 0.0, %v8965
  %8967 = vmatmul.f32.gmra.mxu0 %v8568
  %v8968 = vpop.f32.mrf.mxu0
  %v8969 = vadd.f32 0.0, %v8968
  %8970 = vmatmul.f32.gmra.mxu0 %v8571
  %v8971 = vpop.f32.mrf.mxu0
  %v8972 = vadd.f32 0.0, %v8971
  %8973 = vmatmul.f32.gmra.mxu0 %v8574
  %v8974 = vpop.f32.mrf.mxu0
  %v8975 = vadd.f32 0.0, %v8974
  %8976 = vmatmul.f32.gmra.mxu0 %v8577
  %v8977 = vpop.f32.mrf.mxu0
  %v8978 = vadd.f32 0.0, %v8977
  %8979 = vmatmul.f32.gmra.mxu0 %v8580
  %v8980 = vpop.f32.mrf.mxu0
  %v8981 = vadd.f32 0.0, %v8980
  %8982 = vmatmul.f32.gmra.mxu0 %v8583
  %v8983 = vpop.f32.mrf.mxu0
  %v8984 = vadd.f32 0.0, %v8983
  %8985 = vmatmul.f32.gmra.mxu0 %v8586
  %v8986 = vpop.f32.mrf.mxu0
  %v8987 = vadd.f32 0.0, %v8986
  %8988 = vmatmul.f32.gmra.mxu0 %v8589
  %v8989 = vpop.f32.mrf.mxu0
  %v8990 = vadd.f32 0.0, %v8989
  %8991 = vmatmul.f32.gmra.mxu0 %v8592
  %v8992 = vpop.f32.mrf.mxu0
  %v8993 = vadd.f32 0.0, %v8992
  %8994 = vmatmul.f32.gmra.mxu0 %v8595
  %v8995 = vpop.f32.mrf.mxu0
  %v8996 = vadd.f32 0.0, %v8995
  %8997 = vmatmul.f32.gmra.mxu0 %v8598
  %v8998 = vpop.f32.mrf.mxu0
  %v8999 = vadd.f32 0.0, %v8998
  %9000 = vmatmul.f32.gmra.mxu0 %v8601
  %v9001 = vpop.f32.mrf.mxu0
  %v9002 = vadd.f32 0.0, %v9001
  %9003 = vmatmul.f32.gmra.mxu0 %v8604
  %v9004 = vpop.f32.mrf.mxu0
  %v9005 = vadd.f32 0.0, %v9004
  %9006 = vmatmul.f32.gmra.mxu0 %v8607
  %v9007 = vpop.f32.mrf.mxu0
  %v9008 = vadd.f32 0.0, %v9007
  %9009 = vmatmul.f32.gmra.mxu0 %v8610
  %v9010 = vpop.f32.mrf.mxu0
  %v9011 = vadd.f32 0.0, %v9010
  %9012 = vmatmul.f32.gmra.mxu0 %v8613
  %v9013 = vpop.f32.mrf.mxu0
  %v9014 = vadd.f32 0.0, %v9013
  %9015 = vmatmul.f32.gmra.mxu0 %v8616
  %v9016 = vpop.f32.mrf.mxu0
  %v9017 = vadd.f32 0.0, %v9016
  %9018 = vmatmul.f32.gmra.mxu0 %v8619
  %v9019 = vpop.f32.mrf.mxu0
  %v9020 = vadd.f32 0.0, %v9019
  %9021 = vmatmul.f32.gmra.mxu0 %v8622
  %v9022 = vpop.f32.mrf.mxu0
  %v9023 = vadd.f32 0.0, %v9022
  %9024 = vmatmul.f32.gmra.mxu0 %v8625
  %v9025 = vpop.f32.mrf.mxu0
  %v9026 = vadd.f32 0.0, %v9025
  %9027 = vmatmul.f32.gmra.mxu0 %v8628
  %v9028 = vpop.f32.mrf.mxu0
  %v9029 = vadd.f32 0.0, %v9028
  %9030 = vmatmul.f32.gmra.mxu0 %v8631
  %v9031 = vpop.f32.mrf.mxu0
  %v9032 = vadd.f32 0.0, %v9031
  %9033 = vmatmul.f32.gmra.mxu0 %v8634
  %v9034 = vpop.f32.mrf.mxu0
  %v9035 = vadd.f32 0.0, %v9034
  %9036 = vmatmul.f32.gmra.mxu0 %v8637
  %v9037 = vpop.f32.mrf.mxu0
  %v9038 = vadd.f32 0.0, %v9037
  %9039 = vmatmul.f32.gmra.mxu0 %v8640
  %v9040 = vpop.f32.mrf.mxu0
  %v9041 = vadd.f32 0.0, %v9040
  %9042 = vmatmul.f32.gmra.mxu0 %v8643
  %v9043 = vpop.f32.mrf.mxu0
  %v9044 = vadd.f32 0.0, %v9043
  %9045 = vmatmul.f32.gmra.mxu0 %v8646
  %v9046 = vpop.f32.mrf.mxu0
  %v9047 = vadd.f32 0.0, %v9046
  %9048 = vmatmul.f32.gmra.mxu0 %v8649
  %v9049 = vpop.f32.mrf.mxu0
  %v9050 = vadd.f32 0.0, %v9049
  %9051 = vmatmul.f32.gmra.mxu0 %v8652
  %v9052 = vpop.f32.mrf.mxu0
  %v9053 = vadd.f32 0.0, %v9052
  %9054 = vmatmul.f32.gmra.mxu0 %v8655
  %v9055 = vpop.f32.mrf.mxu0
  %v9056 = vadd.f32 0.0, %v9055
  %9057 = vmatmul.f32.gmra.mxu0 %v8658
  %v9058 = vpop.f32.mrf.mxu0
  %v9059 = vadd.f32 0.0, %v9058
  %9060 = vmatmul.f32.gmra.mxu0 %v8661
  %v9061 = vpop.f32.mrf.mxu0
  %v9062 = vadd.f32 0.0, %v9061
  %9063 = vmatmul.f32.gmra.mxu0 %v8664
  %v9064 = vpop.f32.mrf.mxu0
  %v9065 = vadd.f32 0.0, %v9064
  %9066 = vmatmul.f32.gmra.mxu0 %v8667
  %v9067 = vpop.f32.mrf.mxu0
  %v9068 = vadd.f32 0.0, %v9067
  %9069 = vmatmul.f32.gmra.mxu0 %v8670
  %v9070 = vpop.f32.mrf.mxu0
  %v9071 = vadd.f32 0.0, %v9070
  %9072 = vmatmul.f32.gmra.mxu0 %v8673
  %v9073 = vpop.f32.mrf.mxu0
  %v9074 = vadd.f32 0.0, %v9073
  %9075 = vmatmul.f32.gmra.mxu0 %v8676
  %v9076 = vpop.f32.mrf.mxu0
  %v9077 = vadd.f32 0.0, %v9076
  %9078 = vmatmul.f32.gmra.mxu0 %v8679
  %v9079 = vpop.f32.mrf.mxu0
  %v9080 = vadd.f32 0.0, %v9079
  %9081 = vmatmul.f32.gmra.mxu0 %v8682
  %v9082 = vpop.f32.mrf.mxu0
  %v9083 = vadd.f32 0.0, %v9082
  %9084 = vmatmul.f32.gmra.mxu0 %v8685
  %v9085 = vpop.f32.mrf.mxu0
  %v9086 = vadd.f32 0.0, %v9085
  %9087 = vmatmul.f32.gmra.mxu0 %v8688
  %v9088 = vpop.f32.mrf.mxu0
  %v9089 = vadd.f32 0.0, %v9088
  %9090 = vmatmul.f32.gmra.mxu0 %v8691
  %v9091 = vpop.f32.mrf.mxu0
  %v9092 = vadd.f32 0.0, %v9091
  %9093 = vmatmul.f32.gmra.mxu0 %v8694
  %v9094 = vpop.f32.mrf.mxu0
  %v9095 = vadd.f32 0.0, %v9094
  %9096 = vmatmul.f32.gmra.mxu0 %v8697
  %v9097 = vpop.f32.mrf.mxu0
  %v9098 = vadd.f32 0.0, %v9097
  %9099 = vmatmul.f32.gmra.mxu0 %v8700
  %v9100 = vpop.f32.mrf.mxu0
  %v9101 = vadd.f32 0.0, %v9100
  %9102 = vmatmul.f32.gmra.mxu0 %v8703
  %v9103 = vpop.f32.mrf.mxu0
  %v9104 = vadd.f32 0.0, %v9103
  %9105 = vmatmul.f32.gmra.mxu0 %v8706
  %v9106 = vpop.f32.mrf.mxu0
  %v9107 = vadd.f32 0.0, %v9106
  %9108 = vmatmul.f32.gmra.mxu0 %v8709
  %v9109 = vpop.f32.mrf.mxu0
  %v9110 = vadd.f32 0.0, %v9109
  %9111 = vmatmul.f32.gmra.mxu0 %v8712
  %v9112 = vpop.f32.mrf.mxu0
  %v9113 = vadd.f32 0.0, %v9112
  %9114 = vmatmul.f32.gmra.mxu0 %v8715
  %v9115 = vpop.f32.mrf.mxu0
  %v9116 = vadd.f32 0.0, %v9115
  %9117 = vmatmul.f32.gmra.mxu0 %v8718
  %v9118 = vpop.f32.mrf.mxu0
  %v9119 = vadd.f32 0.0, %v9118
  %9120 = vmatmul.f32.gmra.mxu0 %v8721
  %v9121 = vpop.f32.mrf.mxu0
  %v9122 = vadd.f32 0.0, %v9121
  %9123 = vmatmul.f32.gmra.mxu0 %v8724
  %v9124 = vpop.f32.mrf.mxu0
  %v9125 = vadd.f32 0.0, %v9124
  %9126 = vmatmul.f32.gmra.mxu0 %v8727
  %v9127 = vpop.f32.mrf.mxu0
  %v9128 = vadd.f32 0.0, %v9127
  %9129 = vmatmul.f32.gmra.mxu0 %v8730
  %v9130 = vpop.f32.mrf.mxu0
  %v9131 = vadd.f32 0.0, %v9130
  %9132 = vmatmul.f32.gmra.mxu0 %v8733
  %v9133 = vpop.f32.mrf.mxu0
  %v9134 = vadd.f32 0.0, %v9133
  %9135 = vmatmul.f32.gmra.mxu0 %v8736
  %v9136 = vpop.f32.mrf.mxu0
  %v9137 = vadd.f32 0.0, %v9136
  %9138 = vmatmul.f32.gmra.mxu0 %v8739
  %v9139 = vpop.f32.mrf.mxu0
  %v9140 = vadd.f32 0.0, %v9139
  %9141 = vmatmul.f32.gmra.mxu0 %v8742
  %v9142 = vpop.f32.mrf.mxu0
  %v9143 = vadd.f32 0.0, %v9142
  %9144 = vmatmul.f32.gmra.mxu0 %v8745
  %v9145 = vpop.f32.mrf.mxu0
  %v9146 = vadd.f32 0.0, %v9145
  %9147 = vmatmul.f32.gmra.mxu0 %v8748
  %v9148 = vpop.f32.mrf.mxu0
  %v9149 = vadd.f32 0.0, %v9148
  %9150 = vmatmul.f32.gmra.mxu0 %v8751
  %v9151 = vpop.f32.mrf.mxu0
  %v9152 = vadd.f32 0.0, %v9151
  %9153 = vmatmul.f32.gmra.mxu0 %v8754
  %v9154 = vpop.f32.mrf.mxu0
  %v9155 = vadd.f32 0.0, %v9154
  %9156 = vmatmul.f32.gmra.mxu0 %v8757
  %v9157 = vpop.f32.mrf.mxu0
  %v9158 = vadd.f32 0.0, %v9157
  %9159 = vmatmul.f32.gmra.mxu0 %v8760
  %v9160 = vpop.f32.mrf.mxu0
  %v9161 = vadd.f32 0.0, %v9160
  %9162 = vmatmul.f32.gmra.mxu0 %v8763
  %v9163 = vpop.f32.mrf.mxu0
  %v9164 = vadd.f32 0.0, %v9163
  %9165 = vmatmul.f32.gmra.mxu0 %v8766
  %v9166 = vpop.f32.mrf.mxu0
  %v9167 = vadd.f32 0.0, %v9166
  %9168 = vmatmul.f32.gmra.mxu0 %v8769
  %v9169 = vpop.f32.mrf.mxu0
  %v9170 = vadd.f32 0.0, %v9169
  %9171 = vdwg.mxu0
  %v9172 = vadd.f32 %v8129, %v8789
  %v9173 = vadd.f32 %v8130, %v8792
  %v9174 = vadd.f32 %v8131, %v8795
  %v9175 = vadd.f32 %v8132, %v8798
  %v9176 = vadd.f32 %v8133, %v8801
  %v9177 = vadd.f32 %v8134, %v8804
  %v9178 = vadd.f32 %v8135, %v8807
  %v9179 = vadd.f32 %v8136, %v8810
  %v9180 = vadd.f32 %v8137, %v8813
  %v9181 = vadd.f32 %v8138, %v8816
  %v9182 = vadd.f32 %v8139, %v8819
  %v9183 = vadd.f32 %v8140, %v8822
  %v9184 = vadd.f32 %v8141, %v8825
  %v9185 = vadd.f32 %v8142, %v8828
  %v9186 = vadd.f32 %v8143, %v8831
  %v9187 = vadd.f32 %v8144, %v8834
  %v9188 = vadd.f32 %v8145, %v8837
  %v9189 = vadd.f32 %v8146, %v8840
  %v9190 = vadd.f32 %v8147, %v8843
  %v9191 = vadd.f32 %v8148, %v8846
  %v9192 = vadd.f32 %v8149, %v8849
  %v9193 = vadd.f32 %v8150, %v8852
  %v9194 = vadd.f32 %v8151, %v8855
  %v9195 = vadd.f32 %v8152, %v8858
  %v9196 = vadd.f32 %v8153, %v8861
  %v9197 = vadd.f32 %v8154, %v8864
  %v9198 = vadd.f32 %v8155, %v8867
  %v9199 = vadd.f32 %v8156, %v8870
  %v9200 = vadd.f32 %v8157, %v8873
  %v9201 = vadd.f32 %v8158, %v8876
  %v9202 = vadd.f32 %v8159, %v8879
  %v9203 = vadd.f32 %v8160, %v8882
  %v9204 = vadd.f32 %v8161, %v8885
  %v9205 = vadd.f32 %v8162, %v8888
  %v9206 = vadd.f32 %v8163, %v8891
  %v9207 = vadd.f32 %v8164, %v8894
  %v9208 = vadd.f32 %v8165, %v8897
  %v9209 = vadd.f32 %v8166, %v8900
  %v9210 = vadd.f32 %v8167, %v8903
  %v9211 = vadd.f32 %v8168, %v8906
  %v9212 = vadd.f32 %v8169, %v8909
  %v9213 = vadd.f32 %v8170, %v8912
  %v9214 = vadd.f32 %v8171, %v8915
  %v9215 = vadd.f32 %v8172, %v8918
  %v9216 = vadd.f32 %v8173, %v8921
  %v9217 = vadd.f32 %v8174, %v8924
  %v9218 = vadd.f32 %v8175, %v8927
  %v9219 = vadd.f32 %v8176, %v8930
  %v9220 = vadd.f32 %v8177, %v8933
  %v9221 = vadd.f32 %v8178, %v8936
  %v9222 = vadd.f32 %v8179, %v8939
  %v9223 = vadd.f32 %v8180, %v8942
  %v9224 = vadd.f32 %v8181, %v8945
  %v9225 = vadd.f32 %v8182, %v8948
  %v9226 = vadd.f32 %v8183, %v8951
  %v9227 = vadd.f32 %v8184, %v8954
  %v9228 = vadd.f32 %v8185, %v8957
  %v9229 = vadd.f32 %v8186, %v8960
  %v9230 = vadd.f32 %v8187, %v8963
  %v9231 = vadd.f32 %v8188, %v8966
  %v9232 = vadd.f32 %v8189, %v8969
  %v9233 = vadd.f32 %v8190, %v8972
  %v9234 = vadd.f32 %v8191, %v8975
  %v9235 = vadd.f32 %v8192, %v8978
  %v9236 = vadd.f32 %v8193, %v8981
  %v9237 = vadd.f32 %v8194, %v8984
  %v9238 = vadd.f32 %v8195, %v8987
  %v9239 = vadd.f32 %v8196, %v8990
  %v9240 = vadd.f32 %v8197, %v8993
  %v9241 = vadd.f32 %v8198, %v8996
  %v9242 = vadd.f32 %v8199, %v8999
  %v9243 = vadd.f32 %v8200, %v9002
  %v9244 = vadd.f32 %v8201, %v9005
  %v9245 = vadd.f32 %v8202, %v9008
  %v9246 = vadd.f32 %v8203, %v9011
  %v9247 = vadd.f32 %v8204, %v9014
  %v9248 = vadd.f32 %v8205, %v9017
  %v9249 = vadd.f32 %v8206, %v9020
  %v9250 = vadd.f32 %v8207, %v9023
  %v9251 = vadd.f32 %v8208, %v9026
  %v9252 = vadd.f32 %v8209, %v9029
  %v9253 = vadd.f32 %v8210, %v9032
  %v9254 = vadd.f32 %v8211, %v9035
  %v9255 = vadd.f32 %v8212, %v9038
  %v9256 = vadd.f32 %v8213, %v9041
  %v9257 = vadd.f32 %v8214, %v9044
  %v9258 = vadd.f32 %v8215, %v9047
  %v9259 = vadd.f32 %v8216, %v9050
  %v9260 = vadd.f32 %v8217, %v9053
  %v9261 = vadd.f32 %v8218, %v9056
  %v9262 = vadd.f32 %v8219, %v9059
  %v9263 = vadd.f32 %v8220, %v9062
  %v9264 = vadd.f32 %v8221, %v9065
  %v9265 = vadd.f32 %v8222, %v9068
  %v9266 = vadd.f32 %v8223, %v9071
  %v9267 = vadd.f32 %v8224, %v9074
  %v9268 = vadd.f32 %v8225, %v9077
  %v9269 = vadd.f32 %v8226, %v9080
  %v9270 = vadd.f32 %v8227, %v9083
  %v9271 = vadd.f32 %v8228, %v9086
  %v9272 = vadd.f32 %v8229, %v9089
  %v9273 = vadd.f32 %v8230, %v9092
  %v9274 = vadd.f32 %v8231, %v9095
  %v9275 = vadd.f32 %v8232, %v9098
  %v9276 = vadd.f32 %v8233, %v9101
  %v9277 = vadd.f32 %v8234, %v9104
  %v9278 = vadd.f32 %v8235, %v9107
  %v9279 = vadd.f32 %v8236, %v9110
  %v9280 = vadd.f32 %v8237, %v9113
  %v9281 = vadd.f32 %v8238, %v9116
  %v9282 = vadd.f32 %v8239, %v9119
  %v9283 = vadd.f32 %v8240, %v9122
  %v9284 = vadd.f32 %v8241, %v9125
  %v9285 = vadd.f32 %v8242, %v9128
  %v9286 = vadd.f32 %v8243, %v9131
  %v9287 = vadd.f32 %v8244, %v9134
  %v9288 = vadd.f32 %v8245, %v9137
  %v9289 = vadd.f32 %v8246, %v9140
  %v9290 = vadd.f32 %v8247, %v9143
  %v9291 = vadd.f32 %v8248, %v9146
  %v9292 = vadd.f32 %v8249, %v9149
  %v9293 = vadd.f32 %v8250, %v9152
  %v9294 = vadd.f32 %v8251, %v9155
  %v9295 = vadd.f32 %v8252, %v9158
  %v9296 = vadd.f32 %v8253, %v9161
  %v9297 = vadd.f32 %v8254, %v9164
  %v9298 = vadd.f32 %v8255, %v9167
  %v9299 = vadd.f32 %v8256, %v9170
  %v9300 = vld [vmem:[%s4] sm:$0x1]
  %v9302 = vperm.slane %v9300, 0
  %v9304 = vadd.f32 %v9172, %v9302
  %v9305 = vadd.f32 %v9173, %v9302
  %v9306 = vadd.f32 %v9174, %v9302
  %v9307 = vadd.f32 %v9175, %v9302
  %v9308 = vadd.f32 %v9176, %v9302
  %v9309 = vadd.f32 %v9177, %v9302
  %v9310 = vadd.f32 %v9178, %v9302
  %v9311 = vadd.f32 %v9179, %v9302
  %v9312 = vadd.f32 %v9180, %v9302
  %v9313 = vadd.f32 %v9181, %v9302
  %v9314 = vadd.f32 %v9182, %v9302
  %v9315 = vadd.f32 %v9183, %v9302
  %v9316 = vadd.f32 %v9184, %v9302
  %v9317 = vadd.f32 %v9185, %v9302
  %v9318 = vadd.f32 %v9186, %v9302
  %v9319 = vadd.f32 %v9187, %v9302
  %v9320 = vadd.f32 %v9188, %v9302
  %v9321 = vadd.f32 %v9189, %v9302
  %v9322 = vadd.f32 %v9190, %v9302
  %v9323 = vadd.f32 %v9191, %v9302
  %v9324 = vadd.f32 %v9192, %v9302
  %v9325 = vadd.f32 %v9193, %v9302
  %v9326 = vadd.f32 %v9194, %v9302
  %v9327 = vadd.f32 %v9195, %v9302
  %v9328 = vadd.f32 %v9196, %v9302
  %v9329 = vadd.f32 %v9197, %v9302
  %v9330 = vadd.f32 %v9198, %v9302
  %v9331 = vadd.f32 %v9199, %v9302
  %v9332 = vadd.f32 %v9200, %v9302
  %v9333 = vadd.f32 %v9201, %v9302
  %v9334 = vadd.f32 %v9202, %v9302
  %v9335 = vadd.f32 %v9203, %v9302
  %v9336 = vadd.f32 %v9204, %v9302
  %v9337 = vadd.f32 %v9205, %v9302
  %v9338 = vadd.f32 %v9206, %v9302
  %v9339 = vadd.f32 %v9207, %v9302
  %v9340 = vadd.f32 %v9208, %v9302
  %v9341 = vadd.f32 %v9209, %v9302
  %v9342 = vadd.f32 %v9210, %v9302
  %v9343 = vadd.f32 %v9211, %v9302
  %v9344 = vadd.f32 %v9212, %v9302
  %v9345 = vadd.f32 %v9213, %v9302
  %v9346 = vadd.f32 %v9214, %v9302
  %v9347 = vadd.f32 %v9215, %v9302
  %v9348 = vadd.f32 %v9216, %v9302
  %v9349 = vadd.f32 %v9217, %v9302
  %v9350 = vadd.f32 %v9218, %v9302
  %v9351 = vadd.f32 %v9219, %v9302
  %v9352 = vadd.f32 %v9220, %v9302
  %v9353 = vadd.f32 %v9221, %v9302
  %v9354 = vadd.f32 %v9222, %v9302
  %v9355 = vadd.f32 %v9223, %v9302
  %v9356 = vadd.f32 %v9224, %v9302
  %v9357 = vadd.f32 %v9225, %v9302
  %v9358 = vadd.f32 %v9226, %v9302
  %v9359 = vadd.f32 %v9227, %v9302
  %v9360 = vadd.f32 %v9228, %v9302
  %v9361 = vadd.f32 %v9229, %v9302
  %v9362 = vadd.f32 %v9230, %v9302
  %v9363 = vadd.f32 %v9231, %v9302
  %v9364 = vadd.f32 %v9232, %v9302
  %v9365 = vadd.f32 %v9233, %v9302
  %v9366 = vadd.f32 %v9234, %v9302
  %v9367 = vadd.f32 %v9235, %v9302
  %v9368 = vadd.f32 %v9236, %v9302
  %v9369 = vadd.f32 %v9237, %v9302
  %v9370 = vadd.f32 %v9238, %v9302
  %v9371 = vadd.f32 %v9239, %v9302
  %v9372 = vadd.f32 %v9240, %v9302
  %v9373 = vadd.f32 %v9241, %v9302
  %v9374 = vadd.f32 %v9242, %v9302
  %v9375 = vadd.f32 %v9243, %v9302
  %v9376 = vadd.f32 %v9244, %v9302
  %v9377 = vadd.f32 %v9245, %v9302
  %v9378 = vadd.f32 %v9246, %v9302
  %v9379 = vadd.f32 %v9247, %v9302
  %v9380 = vadd.f32 %v9248, %v9302
  %v9381 = vadd.f32 %v9249, %v9302
  %v9382 = vadd.f32 %v9250, %v9302
  %v9383 = vadd.f32 %v9251, %v9302
  %v9384 = vadd.f32 %v9252, %v9302
  %v9385 = vadd.f32 %v9253, %v9302
  %v9386 = vadd.f32 %v9254, %v9302
  %v9387 = vadd.f32 %v9255, %v9302
  %v9388 = vadd.f32 %v9256, %v9302
  %v9389 = vadd.f32 %v9257, %v9302
  %v9390 = vadd.f32 %v9258, %v9302
  %v9391 = vadd.f32 %v9259, %v9302
  %v9392 = vadd.f32 %v9260, %v9302
  %v9393 = vadd.f32 %v9261, %v9302
  %v9394 = vadd.f32 %v9262, %v9302
  %v9395 = vadd.f32 %v9263, %v9302
  %v9396 = vadd.f32 %v9264, %v9302
  %v9397 = vadd.f32 %v9265, %v9302
  %v9398 = vadd.f32 %v9266, %v9302
  %v9399 = vadd.f32 %v9267, %v9302
  %v9400 = vadd.f32 %v9268, %v9302
  %v9401 = vadd.f32 %v9269, %v9302
  %v9402 = vadd.f32 %v9270, %v9302
  %v9403 = vadd.f32 %v9271, %v9302
  %v9404 = vadd.f32 %v9272, %v9302
  %v9405 = vadd.f32 %v9273, %v9302
  %v9406 = vadd.f32 %v9274, %v9302
  %v9407 = vadd.f32 %v9275, %v9302
  %v9408 = vadd.f32 %v9276, %v9302
  %v9409 = vadd.f32 %v9277, %v9302
  %v9410 = vadd.f32 %v9278, %v9302
  %v9411 = vadd.f32 %v9279, %v9302
  %v9412 = vadd.f32 %v9280, %v9302
  %v9413 = vadd.f32 %v9281, %v9302
  %v9414 = vadd.f32 %v9282, %v9302
  %v9415 = vadd.f32 %v9283, %v9302
  %v9416 = vadd.f32 %v9284, %v9302
  %v9417 = vadd.f32 %v9285, %v9302
  %v9418 = vadd.f32 %v9286, %v9302
  %v9419 = vadd.f32 %v9287, %v9302
  %v9420 = vadd.f32 %v9288, %v9302
  %v9421 = vadd.f32 %v9289, %v9302
  %v9422 = vadd.f32 %v9290, %v9302
  %v9423 = vadd.f32 %v9291, %v9302
  %v9424 = vadd.f32 %v9292, %v9302
  %v9425 = vadd.f32 %v9293, %v9302
  %v9426 = vadd.f32 %v9294, %v9302
  %v9427 = vadd.f32 %v9295, %v9302
  %v9428 = vadd.f32 %v9296, %v9302
  %v9429 = vadd.f32 %v9297, %v9302
  %v9430 = vadd.f32 %v9298, %v9302
  %v9431 = vadd.f32 %v9299, %v9302
  %v9432 = vmax.f32 %v9304, 0.0
  %v9433 = vmax.f32 %v9305, 0.0
  %v9434 = vmax.f32 %v9306, 0.0
  %v9435 = vmax.f32 %v9307, 0.0
  %v9436 = vmax.f32 %v9308, 0.0
  %v9437 = vmax.f32 %v9309, 0.0
  %v9438 = vmax.f32 %v9310, 0.0
  %v9439 = vmax.f32 %v9311, 0.0
  %v9440 = vmax.f32 %v9312, 0.0
  %v9441 = vmax.f32 %v9313, 0.0
  %v9442 = vmax.f32 %v9314, 0.0
  %v9443 = vmax.f32 %v9315, 0.0
  %v9444 = vmax.f32 %v9316, 0.0
  %v9445 = vmax.f32 %v9317, 0.0
  %v9446 = vmax.f32 %v9318, 0.0
  %v9447 = vmax.f32 %v9319, 0.0
  %v9448 = vmax.f32 %v9320, 0.0
  %v9449 = vmax.f32 %v9321, 0.0
  %v9450 = vmax.f32 %v9322, 0.0
  %v9451 = vmax.f32 %v9323, 0.0
  %v9452 = vmax.f32 %v9324, 0.0
  %v9453 = vmax.f32 %v9325, 0.0
  %v9454 = vmax.f32 %v9326, 0.0
  %v9455 = vmax.f32 %v9327, 0.0
  %v9456 = vmax.f32 %v9328, 0.0
  %v9457 = vmax.f32 %v9329, 0.0
  %v9458 = vmax.f32 %v9330, 0.0
  %v9459 = vmax.f32 %v9331, 0.0
  %v9460 = vmax.f32 %v9332, 0.0
  %v9461 = vmax.f32 %v9333, 0.0
  %v9462 = vmax.f32 %v9334, 0.0
  %v9463 = vmax.f32 %v9335, 0.0
  %v9464 = vmax.f32 %v9336, 0.0
  %v9465 = vmax.f32 %v9337, 0.0
  %v9466 = vmax.f32 %v9338, 0.0
  %v9467 = vmax.f32 %v9339, 0.0
  %v9468 = vmax.f32 %v9340, 0.0
  %v9469 = vmax.f32 %v9341, 0.0
  %v9470 = vmax.f32 %v9342, 0.0
  %v9471 = vmax.f32 %v9343, 0.0
  %v9472 = vmax.f32 %v9344, 0.0
  %v9473 = vmax.f32 %v9345, 0.0
  %v9474 = vmax.f32 %v9346, 0.0
  %v9475 = vmax.f32 %v9347, 0.0
  %v9476 = vmax.f32 %v9348, 0.0
  %v9477 = vmax.f32 %v9349, 0.0
  %v9478 = vmax.f32 %v9350, 0.0
  %v9479 = vmax.f32 %v9351, 0.0
  %v9480 = vmax.f32 %v9352, 0.0
  %v9481 = vmax.f32 %v9353, 0.0
  %v9482 = vmax.f32 %v9354, 0.0
  %v9483 = vmax.f32 %v9355, 0.0
  %v9484 = vmax.f32 %v9356, 0.0
  %v9485 = vmax.f32 %v9357, 0.0
  %v9486 = vmax.f32 %v9358, 0.0
  %v9487 = vmax.f32 %v9359, 0.0
  %v9488 = vmax.f32 %v9360, 0.0
  %v9489 = vmax.f32 %v9361, 0.0
  %v9490 = vmax.f32 %v9362, 0.0
  %v9491 = vmax.f32 %v9363, 0.0
  %v9492 = vmax.f32 %v9364, 0.0
  %v9493 = vmax.f32 %v9365, 0.0
  %v9494 = vmax.f32 %v9366, 0.0
  %v9495 = vmax.f32 %v9367, 0.0
  %v9496 = vmax.f32 %v9368, 0.0
  %v9497 = vmax.f32 %v9369, 0.0
  %v9498 = vmax.f32 %v9370, 0.0
  %v9499 = vmax.f32 %v9371, 0.0
  %v9500 = vmax.f32 %v9372, 0.0
  %v9501 = vmax.f32 %v9373, 0.0
  %v9502 = vmax.f32 %v9374, 0.0
  %v9503 = vmax.f32 %v9375, 0.0
  %v9504 = vmax.f32 %v9376, 0.0
  %v9505 = vmax.f32 %v9377, 0.0
  %v9506 = vmax.f32 %v9378, 0.0
  %v9507 = vmax.f32 %v9379, 0.0
  %v9508 = vmax.f32 %v9380, 0.0
  %v9509 = vmax.f32 %v9381, 0.0
  %v9510 = vmax.f32 %v9382, 0.0
  %v9511 = vmax.f32 %v9383, 0.0
  %v9512 = vmax.f32 %v9384, 0.0
  %v9513 = vmax.f32 %v9385, 0.0
  %v9514 = vmax.f32 %v9386, 0.0
  %v9515 = vmax.f32 %v9387, 0.0
  %v9516 = vmax.f32 %v9388, 0.0
  %v9517 = vmax.f32 %v9389, 0.0
  %v9518 = vmax.f32 %v9390, 0.0
  %v9519 = vmax.f32 %v9391, 0.0
  %v9520 = vmax.f32 %v9392, 0.0
  %v9521 = vmax.f32 %v9393, 0.0
  %v9522 = vmax.f32 %v9394, 0.0
  %v9523 = vmax.f32 %v9395, 0.0
  %v9524 = vmax.f32 %v9396, 0.0
  %v9525 = vmax.f32 %v9397, 0.0
  %v9526 = vmax.f32 %v9398, 0.0
  %v9527 = vmax.f32 %v9399, 0.0
  %v9528 = vmax.f32 %v9400, 0.0
  %v9529 = vmax.f32 %v9401, 0.0
  %v9530 = vmax.f32 %v9402, 0.0
  %v9531 = vmax.f32 %v9403, 0.0
  %v9532 = vmax.f32 %v9404, 0.0
  %v9533 = vmax.f32 %v9405, 0.0
  %v9534 = vmax.f32 %v9406, 0.0
  %v9535 = vmax.f32 %v9407, 0.0
  %v9536 = vmax.f32 %v9408, 0.0
  %v9537 = vmax.f32 %v9409, 0.0
  %v9538 = vmax.f32 %v9410, 0.0
  %v9539 = vmax.f32 %v9411, 0.0
  %v9540 = vmax.f32 %v9412, 0.0
  %v9541 = vmax.f32 %v9413, 0.0
  %v9542 = vmax.f32 %v9414, 0.0
  %v9543 = vmax.f32 %v9415, 0.0
  %v9544 = vmax.f32 %v9416, 0.0
  %v9545 = vmax.f32 %v9417, 0.0
  %v9546 = vmax.f32 %v9418, 0.0
  %v9547 = vmax.f32 %v9419, 0.0
  %v9548 = vmax.f32 %v9420, 0.0
  %v9549 = vmax.f32 %v9421, 0.0
  %v9550 = vmax.f32 %v9422, 0.0
  %v9551 = vmax.f32 %v9423, 0.0
  %v9552 = vmax.f32 %v9424, 0.0
  %v9553 = vmax.f32 %v9425, 0.0
  %v9554 = vmax.f32 %v9426, 0.0
  %v9555 = vmax.f32 %v9427, 0.0
  %v9556 = vmax.f32 %v9428, 0.0
  %v9557 = vmax.f32 %v9429, 0.0
  %v9558 = vmax.f32 %v9430, 0.0
  %v9559 = vmax.f32 %v9431, 0.0
  %9560 = vst.msk [vmem:[#allocation3] sm:$0xff] %vm1083, %v9432
  %9561 = vst.msk [vmem:[#allocation3 + $0x8] sm:$0xff] %vm1083, %v9433
  %9562 = vst.msk [vmem:[#allocation3 + $0x10] sm:$0xff] %vm1083, %v9434
  %9563 = vst.msk [vmem:[#allocation3 + $0x18] sm:$0xff] %vm1083, %v9435
  %9564 = vst.msk [vmem:[#allocation3 + $0x20] sm:$0xff] %vm1083, %v9436
  %9565 = vst.msk [vmem:[#allocation3 + $0x28] sm:$0xff] %vm1083, %v9437
  %9566 = vst.msk [vmem:[#allocation3 + $0x30] sm:$0xff] %vm1083, %v9438
  %9567 = vst.msk [vmem:[#allocation3 + $0x38] sm:$0xff] %vm1083, %v9439
  %9568 = vst.msk [vmem:[#allocation3 + $0x40] sm:$0xff] %vm1083, %v9440
  %9569 = vst.msk [vmem:[#allocation3 + $0x48] sm:$0xff] %vm1083, %v9441
  %9570 = vst.msk [vmem:[#allocation3 + $0x50] sm:$0xff] %vm1083, %v9442
  %9571 = vst.msk [vmem:[#allocation3 + $0x58] sm:$0xff] %vm1083, %v9443
  %9572 = vst.msk [vmem:[#allocation3 + $0x60] sm:$0xff] %vm1083, %v9444
  %9573 = vst.msk [vmem:[#allocation3 + $0x68] sm:$0xff] %vm1083, %v9445
  %9574 = vst.msk [vmem:[#allocation3 + $0x70] sm:$0xff] %vm1083, %v9446
  %9575 = vst.msk [vmem:[#allocation3 + $0x78] sm:$0xff] %vm1083, %v9447
  %9576 = vst.msk [vmem:[#allocation3 + $0x80] sm:$0xff] %vm1083, %v9448
  %9577 = vst.msk [vmem:[#allocation3 + $0x88] sm:$0xff] %vm1083, %v9449
  %9578 = vst.msk [vmem:[#allocation3 + $0x90] sm:$0xff] %vm1083, %v9450
  %9579 = vst.msk [vmem:[#allocation3 + $0x98] sm:$0xff] %vm1083, %v9451
  %9580 = vst.msk [vmem:[#allocation3 + $0xa0] sm:$0xff] %vm1083, %v9452
  %9581 = vst.msk [vmem:[#allocation3 + $0xa8] sm:$0xff] %vm1083, %v9453
  %9582 = vst.msk [vmem:[#allocation3 + $0xb0] sm:$0xff] %vm1083, %v9454
  %9583 = vst.msk [vmem:[#allocation3 + $0xb8] sm:$0xff] %vm1083, %v9455
  %9584 = vst.msk [vmem:[#allocation3 + $0xc0] sm:$0xff] %vm1083, %v9456
  %9585 = vst.msk [vmem:[#allocation3 + $0xc8] sm:$0xff] %vm1083, %v9457
  %9586 = vst.msk [vmem:[#allocation3 + $0xd0] sm:$0xff] %vm1083, %v9458
  %9587 = vst.msk [vmem:[#allocation3 + $0xd8] sm:$0xff] %vm1083, %v9459
  %9588 = vst.msk [vmem:[#allocation3 + $0xe0] sm:$0xff] %vm1083, %v9460
  %9589 = vst.msk [vmem:[#allocation3 + $0xe8] sm:$0xff] %vm1083, %v9461
  %9590 = vst.msk [vmem:[#allocation3 + $0xf0] sm:$0xff] %vm1083, %v9462
  %9591 = vst.msk [vmem:[#allocation3 + $0xf8] sm:$0xff] %vm1083, %v9463
  %9592 = vst.msk [vmem:[#allocation3 + $0x100] sm:$0xff] %vm1083, %v9464
  %9593 = vst.msk [vmem:[#allocation3 + $0x108] sm:$0xff] %vm1083, %v9465
  %9594 = vst.msk [vmem:[#allocation3 + $0x110] sm:$0xff] %vm1083, %v9466
  %9595 = vst.msk [vmem:[#allocation3 + $0x118] sm:$0xff] %vm1083, %v9467
  %9596 = vst.msk [vmem:[#allocation3 + $0x120] sm:$0xff] %vm1083, %v9468
  %9597 = vst.msk [vmem:[#allocation3 + $0x128] sm:$0xff] %vm1083, %v9469
  %9598 = vst.msk [vmem:[#allocation3 + $0x130] sm:$0xff] %vm1083, %v9470
  %9599 = vst.msk [vmem:[#allocation3 + $0x138] sm:$0xff] %vm1083, %v9471
  %9600 = vst.msk [vmem:[#allocation3 + $0x140] sm:$0xff] %vm1083, %v9472
  %9601 = vst.msk [vmem:[#allocation3 + $0x148] sm:$0xff] %vm1083, %v9473
  %9602 = vst.msk [vmem:[#allocation3 + $0x150] sm:$0xff] %vm1083, %v9474
  %9603 = vst.msk [vmem:[#allocation3 + $0x158] sm:$0xff] %vm1083, %v9475
  %9604 = vst.msk [vmem:[#allocation3 + $0x160] sm:$0xff] %vm1083, %v9476
  %9605 = vst.msk [vmem:[#allocation3 + $0x168] sm:$0xff] %vm1083, %v9477
  %9606 = vst.msk [vmem:[#allocation3 + $0x170] sm:$0xff] %vm1083, %v9478
  %9607 = vst.msk [vmem:[#allocation3 + $0x178] sm:$0xff] %vm1083, %v9479
  %9608 = vst.msk [vmem:[#allocation3 + $0x180] sm:$0xff] %vm1083, %v9480
  %9609 = vst.msk [vmem:[#allocation3 + $0x188] sm:$0xff] %vm1083, %v9481
  %9610 = vst.msk [vmem:[#allocation3 + $0x190] sm:$0xff] %vm1083, %v9482
  %9611 = vst.msk [vmem:[#allocation3 + $0x198] sm:$0xff] %vm1083, %v9483
  %9612 = vst.msk [vmem:[#allocation3 + $0x1a0] sm:$0xff] %vm1083, %v9484
  %9613 = vst.msk [vmem:[#allocation3 + $0x1a8] sm:$0xff] %vm1083, %v9485
  %9614 = vst.msk [vmem:[#allocation3 + $0x1b0] sm:$0xff] %vm1083, %v9486
  %9615 = vst.msk [vmem:[#allocation3 + $0x1b8] sm:$0xff] %vm1083, %v9487
  %9616 = vst.msk [vmem:[#allocation3 + $0x1c0] sm:$0xff] %vm1083, %v9488
  %9617 = vst.msk [vmem:[#allocation3 + $0x1c8] sm:$0xff] %vm1083, %v9489
  %9618 = vst.msk [vmem:[#allocation3 + $0x1d0] sm:$0xff] %vm1083, %v9490
  %9619 = vst.msk [vmem:[#allocation3 + $0x1d8] sm:$0xff] %vm1083, %v9491
  %9620 = vst.msk [vmem:[#allocation3 + $0x1e0] sm:$0xff] %vm1083, %v9492
  %9621 = vst.msk [vmem:[#allocation3 + $0x1e8] sm:$0xff] %vm1083, %v9493
  %9622 = vst.msk [vmem:[#allocation3 + $0x1f0] sm:$0xff] %vm1083, %v9494
  %9623 = vst.msk [vmem:[#allocation3 + $0x1f8] sm:$0xff] %vm1083, %v9495
  %9624 = vst.msk [vmem:[#allocation3 + $0x200] sm:$0xff] %vm1083, %v9496
  %9625 = vst.msk [vmem:[#allocation3 + $0x208] sm:$0xff] %vm1083, %v9497
  %9626 = vst.msk [vmem:[#allocation3 + $0x210] sm:$0xff] %vm1083, %v9498
  %9627 = vst.msk [vmem:[#allocation3 + $0x218] sm:$0xff] %vm1083, %v9499
  %9628 = vst.msk [vmem:[#allocation3 + $0x220] sm:$0xff] %vm1083, %v9500
  %9629 = vst.msk [vmem:[#allocation3 + $0x228] sm:$0xff] %vm1083, %v9501
  %9630 = vst.msk [vmem:[#allocation3 + $0x230] sm:$0xff] %vm1083, %v9502
  %9631 = vst.msk [vmem:[#allocation3 + $0x238] sm:$0xff] %vm1083, %v9503
  %9632 = vst.msk [vmem:[#allocation3 + $0x240] sm:$0xff] %vm1083, %v9504
  %9633 = vst.msk [vmem:[#allocation3 + $0x248] sm:$0xff] %vm1083, %v9505
  %9634 = vst.msk [vmem:[#allocation3 + $0x250] sm:$0xff] %vm1083, %v9506
  %9635 = vst.msk [vmem:[#allocation3 + $0x258] sm:$0xff] %vm1083, %v9507
  %9636 = vst.msk [vmem:[#allocation3 + $0x260] sm:$0xff] %vm1083, %v9508
  %9637 = vst.msk [vmem:[#allocation3 + $0x268] sm:$0xff] %vm1083, %v9509
  %9638 = vst.msk [vmem:[#allocation3 + $0x270] sm:$0xff] %vm1083, %v9510
  %9639 = vst.msk [vmem:[#allocation3 + $0x278] sm:$0xff] %vm1083, %v9511
  %9640 = vst.msk [vmem:[#allocation3 + $0x280] sm:$0xff] %vm1083, %v9512
  %9641 = vst.msk [vmem:[#allocation3 + $0x288] sm:$0xff] %vm1083, %v9513
  %9642 = vst.msk [vmem:[#allocation3 + $0x290] sm:$0xff] %vm1083, %v9514
  %9643 = vst.msk [vmem:[#allocation3 + $0x298] sm:$0xff] %vm1083, %v9515
  %9644 = vst.msk [vmem:[#allocation3 + $0x2a0] sm:$0xff] %vm1083, %v9516
  %9645 = vst.msk [vmem:[#allocation3 + $0x2a8] sm:$0xff] %vm1083, %v9517
  %9646 = vst.msk [vmem:[#allocation3 + $0x2b0] sm:$0xff] %vm1083, %v9518
  %9647 = vst.msk [vmem:[#allocation3 + $0x2b8] sm:$0xff] %vm1083, %v9519
  %9648 = vst.msk [vmem:[#allocation3 + $0x2c0] sm:$0xff] %vm1083, %v9520
  %9649 = vst.msk [vmem:[#allocation3 + $0x2c8] sm:$0xff] %vm1083, %v9521
  %9650 = vst.msk [vmem:[#allocation3 + $0x2d0] sm:$0xff] %vm1083, %v9522
  %9651 = vst.msk [vmem:[#allocation3 + $0x2d8] sm:$0xff] %vm1083, %v9523
  %9652 = vst.msk [vmem:[#allocation3 + $0x2e0] sm:$0xff] %vm1083, %v9524
  %9653 = vst.msk [vmem:[#allocation3 + $0x2e8] sm:$0xff] %vm1083, %v9525
  %9654 = vst.msk [vmem:[#allocation3 + $0x2f0] sm:$0xff] %vm1083, %v9526
  %9655 = vst.msk [vmem:[#allocation3 + $0x2f8] sm:$0xff] %vm1083, %v9527
  %9656 = vst.msk [vmem:[#allocation3 + $0x300] sm:$0xff] %vm1083, %v9528
  %9657 = vst.msk [vmem:[#allocation3 + $0x308] sm:$0xff] %vm1083, %v9529
  %9658 = vst.msk [vmem:[#allocation3 + $0x310] sm:$0xff] %vm1083, %v9530
  %9659 = vst.msk [vmem:[#allocation3 + $0x318] sm:$0xff] %vm1083, %v9531
  %9660 = vst.msk [vmem:[#allocation3 + $0x320] sm:$0xff] %vm1083, %v9532
  %9661 = vst.msk [vmem:[#allocation3 + $0x328] sm:$0xff] %vm1083, %v9533
  %9662 = vst.msk [vmem:[#allocation3 + $0x330] sm:$0xff] %vm1083, %v9534
  %9663 = vst.msk [vmem:[#allocation3 + $0x338] sm:$0xff] %vm1083, %v9535
  %9664 = vst.msk [vmem:[#allocation3 + $0x340] sm:$0xff] %vm1083, %v9536
  %9665 = vst.msk [vmem:[#allocation3 + $0x348] sm:$0xff] %vm1083, %v9537
  %9666 = vst.msk [vmem:[#allocation3 + $0x350] sm:$0xff] %vm1083, %v9538
  %9667 = vst.msk [vmem:[#allocation3 + $0x358] sm:$0xff] %vm1083, %v9539
  %9668 = vst.msk [vmem:[#allocation3 + $0x360] sm:$0xff] %vm1083, %v9540
  %9669 = vst.msk [vmem:[#allocation3 + $0x368] sm:$0xff] %vm1083, %v9541
  %9670 = vst.msk [vmem:[#allocation3 + $0x370] sm:$0xff] %vm1083, %v9542
  %9671 = vst.msk [vmem:[#allocation3 + $0x378] sm:$0xff] %vm1083, %v9543
  %9672 = vst.msk [vmem:[#allocation3 + $0x380] sm:$0xff] %vm1083, %v9544
  %9673 = vst.msk [vmem:[#allocation3 + $0x388] sm:$0xff] %vm1083, %v9545
  %9674 = vst.msk [vmem:[#allocation3 + $0x390] sm:$0xff] %vm1083, %v9546
  %9675 = vst.msk [vmem:[#allocation3 + $0x398] sm:$0xff] %vm1083, %v9547
  %9676 = vst.msk [vmem:[#allocation3 + $0x3a0] sm:$0xff] %vm1083, %v9548
  %9677 = vst.msk [vmem:[#allocation3 + $0x3a8] sm:$0xff] %vm1083, %v9549
  %9678 = vst.msk [vmem:[#allocation3 + $0x3b0] sm:$0xff] %vm1083, %v9550
  %9679 = vst.msk [vmem:[#allocation3 + $0x3b8] sm:$0xff] %vm1083, %v9551
  %9680 = vst.msk [vmem:[#allocation3 + $0x3c0] sm:$0xff] %vm1083, %v9552
  %9681 = vst.msk [vmem:[#allocation3 + $0x3c8] sm:$0xff] %vm1083, %v9553
  %9682 = vst.msk [vmem:[#allocation3 + $0x3d0] sm:$0xff] %vm1083, %v9554
  %9683 = vst.msk [vmem:[#allocation3 + $0x3d8] sm:$0xff] %vm1083, %v9555
  %9684 = vst.msk [vmem:[#allocation3 + $0x3e0] sm:$0xff] %vm1083, %v9556
  %9685 = vst.msk [vmem:[#allocation3 + $0x3e8] sm:$0xff] %vm1083, %v9557
  %9686 = vst.msk [vmem:[#allocation3 + $0x3f0] sm:$0xff] %vm1083, %v9558
  %9687 = vst.msk [vmem:[#allocation3 + $0x3f8] sm:$0xff] %vm1083, %v9559
  %v9688 = vld [vmem:[#allocation3] ss:$4 sm:$0xff]
  %s9689 = scalar_lea.vmem [#allocation3], 32
  %v9690 = vld [vmem:[%s9689] ss:$4 sm:$0xff]
  %s9691 = scalar_lea.vmem [#allocation3], 64
  %v9692 = vld [vmem:[%s9691] ss:$4 sm:$0xff]
  %s9693 = scalar_lea.vmem [#allocation3], 96
  %v9694 = vld [vmem:[%s9693] ss:$4 sm:$0xff]
  %s9695 = scalar_lea.vmem [#allocation3], 128
  %v9696 = vld [vmem:[%s9695] ss:$4 sm:$0xff]
  %s9697 = scalar_lea.vmem [#allocation3], 160
  %v9698 = vld [vmem:[%s9697] ss:$4 sm:$0xff]
  %s9699 = scalar_lea.vmem [#allocation3], 192
  %v9700 = vld [vmem:[%s9699] ss:$4 sm:$0xff]
  %s9701 = scalar_lea.vmem [#allocation3], 224
  %v9702 = vld [vmem:[%s9701] ss:$4 sm:$0xff]
  %s9703 = scalar_lea.vmem [#allocation3], 256
  %v9704 = vld [vmem:[%s9703] ss:$4 sm:$0xff]
  %s9705 = scalar_lea.vmem [#allocation3], 288
  %v9706 = vld [vmem:[%s9705] ss:$4 sm:$0xff]
  %s9707 = scalar_lea.vmem [#allocation3], 320
  %v9708 = vld [vmem:[%s9707] ss:$4 sm:$0xff]
  %s9709 = scalar_lea.vmem [#allocation3], 352
  %v9710 = vld [vmem:[%s9709] ss:$4 sm:$0xff]
  %s9711 = scalar_lea.vmem [#allocation3], 384
  %v9712 = vld [vmem:[%s9711] ss:$4 sm:$0xff]
  %s9713 = scalar_lea.vmem [#allocation3], 416
  %v9714 = vld [vmem:[%s9713] ss:$4 sm:$0xff]
  %s9715 = scalar_lea.vmem [#allocation3], 448
  %v9716 = vld [vmem:[%s9715] ss:$4 sm:$0xff]
  %s9717 = scalar_lea.vmem [#allocation3], 480
  %v9718 = vld [vmem:[%s9717] ss:$4 sm:$0xff]
  %s9719 = scalar_lea.vmem [#allocation3], 512
  %v9720 = vld [vmem:[%s9719] ss:$4 sm:$0xff]
  %s9721 = scalar_lea.vmem [#allocation3], 544
  %v9722 = vld [vmem:[%s9721] ss:$4 sm:$0xff]
  %s9723 = scalar_lea.vmem [#allocation3], 576
  %v9724 = vld [vmem:[%s9723] ss:$4 sm:$0xff]
  %s9725 = scalar_lea.vmem [#allocation3], 608
  %v9726 = vld [vmem:[%s9725] ss:$4 sm:$0xff]
  %s9727 = scalar_lea.vmem [#allocation3], 640
  %v9728 = vld [vmem:[%s9727] ss:$4 sm:$0xff]
  %s9729 = scalar_lea.vmem [#allocation3], 672
  %v9730 = vld [vmem:[%s9729] ss:$4 sm:$0xff]
  %s9731 = scalar_lea.vmem [#allocation3], 704
  %v9732 = vld [vmem:[%s9731] ss:$4 sm:$0xff]
  %s9733 = scalar_lea.vmem [#allocation3], 736
  %v9734 = vld [vmem:[%s9733] ss:$4 sm:$0xff]
  %s9735 = scalar_lea.vmem [#allocation3], 768
  %v9736 = vld [vmem:[%s9735] ss:$4 sm:$0xff]
  %s9737 = scalar_lea.vmem [#allocation3], 800
  %v9738 = vld [vmem:[%s9737] ss:$4 sm:$0xff]
  %s9739 = scalar_lea.vmem [#allocation3], 832
  %v9740 = vld [vmem:[%s9739] ss:$4 sm:$0xff]
  %s9741 = scalar_lea.vmem [#allocation3], 864
  %v9742 = vld [vmem:[%s9741] ss:$4 sm:$0xff]
  %s9743 = scalar_lea.vmem [#allocation3], 896
  %v9744 = vld [vmem:[%s9743] ss:$4 sm:$0xff]
  %s9745 = scalar_lea.vmem [#allocation3], 928
  %v9746 = vld [vmem:[%s9745] ss:$4 sm:$0xff]
  %s9747 = scalar_lea.vmem [#allocation3], 960
  %v9748 = vld [vmem:[%s9747] ss:$4 sm:$0xff]
  %s9749 = scalar_lea.vmem [#allocation3], 992
  %v9750 = vld [vmem:[%s9749] ss:$4 sm:$0xff]
  %s9751 = scalar_lea.vmem [#allocation3], 1
  %v9752 = vld [vmem:[%s9751] ss:$4 sm:$0xff]
  %s9753 = scalar_lea.vmem [#allocation3], 33
  %v9754 = vld [vmem:[%s9753] ss:$4 sm:$0xff]
  %s9755 = scalar_lea.vmem [#allocation3], 65
  %v9756 = vld [vmem:[%s9755] ss:$4 sm:$0xff]
  %s9757 = scalar_lea.vmem [#allocation3], 97
  %v9758 = vld [vmem:[%s9757] ss:$4 sm:$0xff]
  %s9759 = scalar_lea.vmem [#allocation3], 129
  %v9760 = vld [vmem:[%s9759] ss:$4 sm:$0xff]
  %s9761 = scalar_lea.vmem [#allocation3], 161
  %v9762 = vld [vmem:[%s9761] ss:$4 sm:$0xff]
  %s9763 = scalar_lea.vmem [#allocation3], 193
  %v9764 = vld [vmem:[%s9763] ss:$4 sm:$0xff]
  %s9765 = scalar_lea.vmem [#allocation3], 225
  %v9766 = vld [vmem:[%s9765] ss:$4 sm:$0xff]
  %s9767 = scalar_lea.vmem [#allocation3], 257
  %v9768 = vld [vmem:[%s9767] ss:$4 sm:$0xff]
  %s9769 = scalar_lea.vmem [#allocation3], 289
  %v9770 = vld [vmem:[%s9769] ss:$4 sm:$0xff]
  %s9771 = scalar_lea.vmem [#allocation3], 321
  %v9772 = vld [vmem:[%s9771] ss:$4 sm:$0xff]
  %s9773 = scalar_lea.vmem [#allocation3], 353
  %v9774 = vld [vmem:[%s9773] ss:$4 sm:$0xff]
  %s9775 = scalar_lea.vmem [#allocation3], 385
  %v9776 = vld [vmem:[%s9775] ss:$4 sm:$0xff]
  %s9777 = scalar_lea.vmem [#allocation3], 417
  %v9778 = vld [vmem:[%s9777] ss:$4 sm:$0xff]
  %s9779 = scalar_lea.vmem [#allocation3], 449
  %v9780 = vld [vmem:[%s9779] ss:$4 sm:$0xff]
  %s9781 = scalar_lea.vmem [#allocation3], 481
  %v9782 = vld [vmem:[%s9781] ss:$4 sm:$0xff]
  %s9783 = scalar_lea.vmem [#allocation3], 513
  %v9784 = vld [vmem:[%s9783] ss:$4 sm:$0xff]
  %s9785 = scalar_lea.vmem [#allocation3], 545
  %v9786 = vld [vmem:[%s9785] ss:$4 sm:$0xff]
  %s9787 = scalar_lea.vmem [#allocation3], 577
  %v9788 = vld [vmem:[%s9787] ss:$4 sm:$0xff]
  %s9789 = scalar_lea.vmem [#allocation3], 609
  %v9790 = vld [vmem:[%s9789] ss:$4 sm:$0xff]
  %s9791 = scalar_lea.vmem [#allocation3], 641
  %v9792 = vld [vmem:[%s9791] ss:$4 sm:$0xff]
  %s9793 = scalar_lea.vmem [#allocation3], 673
  %v9794 = vld [vmem:[%s9793] ss:$4 sm:$0xff]
  %s9795 = scalar_lea.vmem [#allocation3], 705
  %v9796 = vld [vmem:[%s9795] ss:$4 sm:$0xff]
  %s9797 = scalar_lea.vmem [#allocation3], 737
  %v9798 = vld [vmem:[%s9797] ss:$4 sm:$0xff]
  %s9799 = scalar_lea.vmem [#allocation3], 769
  %v9800 = vld [vmem:[%s9799] ss:$4 sm:$0xff]
  %s9801 = scalar_lea.vmem [#allocation3], 801
  %v9802 = vld [vmem:[%s9801] ss:$4 sm:$0xff]
  %s9803 = scalar_lea.vmem [#allocation3], 833
  %v9804 = vld [vmem:[%s9803] ss:$4 sm:$0xff]
  %s9805 = scalar_lea.vmem [#allocation3], 865
  %v9806 = vld [vmem:[%s9805] ss:$4 sm:$0xff]
  %s9807 = scalar_lea.vmem [#allocation3], 897
  %v9808 = vld [vmem:[%s9807] ss:$4 sm:$0xff]
  %s9809 = scalar_lea.vmem [#allocation3], 929
  %v9810 = vld [vmem:[%s9809] ss:$4 sm:$0xff]
  %s9811 = scalar_lea.vmem [#allocation3], 961
  %v9812 = vld [vmem:[%s9811] ss:$4 sm:$0xff]
  %s9813 = scalar_lea.vmem [#allocation3], 993
  %v9814 = vld [vmem:[%s9813] ss:$4 sm:$0xff]
  %v9815 = vmax.f32 %v9688, %v9752
  %v9816 = vmax.f32 %v9690, %v9754
  %v9817 = vmax.f32 %v9692, %v9756
  %v9818 = vmax.f32 %v9694, %v9758
  %v9819 = vmax.f32 %v9696, %v9760
  %v9820 = vmax.f32 %v9698, %v9762
  %v9821 = vmax.f32 %v9700, %v9764
  %v9822 = vmax.f32 %v9702, %v9766
  %v9823 = vmax.f32 %v9704, %v9768
  %v9824 = vmax.f32 %v9706, %v9770
  %v9825 = vmax.f32 %v9708, %v9772
  %v9826 = vmax.f32 %v9710, %v9774
  %v9827 = vmax.f32 %v9712, %v9776
  %v9828 = vmax.f32 %v9714, %v9778
  %v9829 = vmax.f32 %v9716, %v9780
  %v9830 = vmax.f32 %v9718, %v9782
  %v9831 = vmax.f32 %v9720, %v9784
  %v9832 = vmax.f32 %v9722, %v9786
  %v9833 = vmax.f32 %v9724, %v9788
  %v9834 = vmax.f32 %v9726, %v9790
  %v9835 = vmax.f32 %v9728, %v9792
  %v9836 = vmax.f32 %v9730, %v9794
  %v9837 = vmax.f32 %v9732, %v9796
  %v9838 = vmax.f32 %v9734, %v9798
  %v9839 = vmax.f32 %v9736, %v9800
  %v9840 = vmax.f32 %v9738, %v9802
  %v9841 = vmax.f32 %v9740, %v9804
  %v9842 = vmax.f32 %v9742, %v9806
  %v9843 = vmax.f32 %v9744, %v9808
  %v9844 = vmax.f32 %v9746, %v9810
  %v9845 = vmax.f32 %v9748, %v9812
  %v9846 = vmax.f32 %v9750, %v9814
  %s9847 = scalar_lea.vmem [#allocation3], 2
  %v9848 = vld [vmem:[%s9847] ss:$4 sm:$0xff]
  %s9849 = scalar_lea.vmem [#allocation3], 34
  %v9850 = vld [vmem:[%s9849] ss:$4 sm:$0xff]
  %s9851 = scalar_lea.vmem [#allocation3], 66
  %v9852 = vld [vmem:[%s9851] ss:$4 sm:$0xff]
  %s9853 = scalar_lea.vmem [#allocation3], 98
  %v9854 = vld [vmem:[%s9853] ss:$4 sm:$0xff]
  %s9855 = scalar_lea.vmem [#allocation3], 130
  %v9856 = vld [vmem:[%s9855] ss:$4 sm:$0xff]
  %s9857 = scalar_lea.vmem [#allocation3], 162
  %v9858 = vld [vmem:[%s9857] ss:$4 sm:$0xff]
  %s9859 = scalar_lea.vmem [#allocation3], 194
  %v9860 = vld [vmem:[%s9859] ss:$4 sm:$0xff]
  %s9861 = scalar_lea.vmem [#allocation3], 226
  %v9862 = vld [vmem:[%s9861] ss:$4 sm:$0xff]
  %s9863 = scalar_lea.vmem [#allocation3], 258
  %v9864 = vld [vmem:[%s9863] ss:$4 sm:$0xff]
  %s9865 = scalar_lea.vmem [#allocation3], 290
  %v9866 = vld [vmem:[%s9865] ss:$4 sm:$0xff]
  %s9867 = scalar_lea.vmem [#allocation3], 322
  %v9868 = vld [vmem:[%s9867] ss:$4 sm:$0xff]
  %s9869 = scalar_lea.vmem [#allocation3], 354
  %v9870 = vld [vmem:[%s9869] ss:$4 sm:$0xff]
  %s9871 = scalar_lea.vmem [#allocation3], 386
  %v9872 = vld [vmem:[%s9871] ss:$4 sm:$0xff]
  %s9873 = scalar_lea.vmem [#allocation3], 418
  %v9874 = vld [vmem:[%s9873] ss:$4 sm:$0xff]
  %s9875 = scalar_lea.vmem [#allocation3], 450
  %v9876 = vld [vmem:[%s9875] ss:$4 sm:$0xff]
  %s9877 = scalar_lea.vmem [#allocation3], 482
  %v9878 = vld [vmem:[%s9877] ss:$4 sm:$0xff]
  %s9879 = scalar_lea.vmem [#allocation3], 514
  %v9880 = vld [vmem:[%s9879] ss:$4 sm:$0xff]
  %s9881 = scalar_lea.vmem [#allocation3], 546
  %v9882 = vld [vmem:[%s9881] ss:$4 sm:$0xff]
  %s9883 = scalar_lea.vmem [#allocation3], 578
  %v9884 = vld [vmem:[%s9883] ss:$4 sm:$0xff]
  %s9885 = scalar_lea.vmem [#allocation3], 610
  %v9886 = vld [vmem:[%s9885] ss:$4 sm:$0xff]
  %s9887 = scalar_lea.vmem [#allocation3], 642
  %v9888 = vld [vmem:[%s9887] ss:$4 sm:$0xff]
  %s9889 = scalar_lea.vmem [#allocation3], 674
  %v9890 = vld [vmem:[%s9889] ss:$4 sm:$0xff]
  %s9891 = scalar_lea.vmem [#allocation3], 706
  %v9892 = vld [vmem:[%s9891] ss:$4 sm:$0xff]
  %s9893 = scalar_lea.vmem [#allocation3], 738
  %v9894 = vld [vmem:[%s9893] ss:$4 sm:$0xff]
  %s9895 = scalar_lea.vmem [#allocation3], 770
  %v9896 = vld [vmem:[%s9895] ss:$4 sm:$0xff]
  %s9897 = scalar_lea.vmem [#allocation3], 802
  %v9898 = vld [vmem:[%s9897] ss:$4 sm:$0xff]
  %s9899 = scalar_lea.vmem [#allocation3], 834
  %v9900 = vld [vmem:[%s9899] ss:$4 sm:$0xff]
  %s9901 = scalar_lea.vmem [#allocation3], 866
  %v9902 = vld [vmem:[%s9901] ss:$4 sm:$0xff]
  %s9903 = scalar_lea.vmem [#allocation3], 898
  %v9904 = vld [vmem:[%s9903] ss:$4 sm:$0xff]
  %s9905 = scalar_lea.vmem [#allocation3], 930
  %v9906 = vld [vmem:[%s9905] ss:$4 sm:$0xff]
  %s9907 = scalar_lea.vmem [#allocation3], 962
  %v9908 = vld [vmem:[%s9907] ss:$4 sm:$0xff]
  %s9909 = scalar_lea.vmem [#allocation3], 994
  %v9910 = vld [vmem:[%s9909] ss:$4 sm:$0xff]
  %v9911 = vmax.f32 %v9815, %v9848
  %v9912 = vmax.f32 %v9816, %v9850
  %v9913 = vmax.f32 %v9817, %v9852
  %v9914 = vmax.f32 %v9818, %v9854
  %v9915 = vmax.f32 %v9819, %v9856
  %v9916 = vmax.f32 %v9820, %v9858
  %v9917 = vmax.f32 %v9821, %v9860
  %v9918 = vmax.f32 %v9822, %v9862
  %v9919 = vmax.f32 %v9823, %v9864
  %v9920 = vmax.f32 %v9824, %v9866
  %v9921 = vmax.f32 %v9825, %v9868
  %v9922 = vmax.f32 %v9826, %v9870
  %v9923 = vmax.f32 %v9827, %v9872
  %v9924 = vmax.f32 %v9828, %v9874
  %v9925 = vmax.f32 %v9829, %v9876
  %v9926 = vmax.f32 %v9830, %v9878
  %v9927 = vmax.f32 %v9831, %v9880
  %v9928 = vmax.f32 %v9832, %v9882
  %v9929 = vmax.f32 %v9833, %v9884
  %v9930 = vmax.f32 %v9834, %v9886
  %v9931 = vmax.f32 %v9835, %v9888
  %v9932 = vmax.f32 %v9836, %v9890
  %v9933 = vmax.f32 %v9837, %v9892
  %v9934 = vmax.f32 %v9838, %v9894
  %v9935 = vmax.f32 %v9839, %v9896
  %v9936 = vmax.f32 %v9840, %v9898
  %v9937 = vmax.f32 %v9841, %v9900
  %v9938 = vmax.f32 %v9842, %v9902
  %v9939 = vmax.f32 %v9843, %v9904
  %v9940 = vmax.f32 %v9844, %v9906
  %v9941 = vmax.f32 %v9845, %v9908
  %v9942 = vmax.f32 %v9846, %v9910
  %s9943 = scalar_lea.vmem [#allocation3], 3
  %v9944 = vld [vmem:[%s9943] ss:$4 sm:$0xff]
  %s9945 = scalar_lea.vmem [#allocation3], 35
  %v9946 = vld [vmem:[%s9945] ss:$4 sm:$0xff]
  %s9947 = scalar_lea.vmem [#allocation3], 67
  %v9948 = vld [vmem:[%s9947] ss:$4 sm:$0xff]
  %s9949 = scalar_lea.vmem [#allocation3], 99
  %v9950 = vld [vmem:[%s9949] ss:$4 sm:$0xff]
  %s9951 = scalar_lea.vmem [#allocation3], 131
  %v9952 = vld [vmem:[%s9951] ss:$4 sm:$0xff]
  %s9953 = scalar_lea.vmem [#allocation3], 163
  %v9954 = vld [vmem:[%s9953] ss:$4 sm:$0xff]
  %s9955 = scalar_lea.vmem [#allocation3], 195
  %v9956 = vld [vmem:[%s9955] ss:$4 sm:$0xff]
  %s9957 = scalar_lea.vmem [#allocation3], 227
  %v9958 = vld [vmem:[%s9957] ss:$4 sm:$0xff]
  %s9959 = scalar_lea.vmem [#allocation3], 259
  %v9960 = vld [vmem:[%s9959] ss:$4 sm:$0xff]
  %s9961 = scalar_lea.vmem [#allocation3], 291
  %v9962 = vld [vmem:[%s9961] ss:$4 sm:$0xff]
  %s9963 = scalar_lea.vmem [#allocation3], 323
  %v9964 = vld [vmem:[%s9963] ss:$4 sm:$0xff]
  %s9965 = scalar_lea.vmem [#allocation3], 355
  %v9966 = vld [vmem:[%s9965] ss:$4 sm:$0xff]
  %s9967 = scalar_lea.vmem [#allocation3], 387
  %v9968 = vld [vmem:[%s9967] ss:$4 sm:$0xff]
  %s9969 = scalar_lea.vmem [#allocation3], 419
  %v9970 = vld [vmem:[%s9969] ss:$4 sm:$0xff]
  %s9971 = scalar_lea.vmem [#allocation3], 451
  %v9972 = vld [vmem:[%s9971] ss:$4 sm:$0xff]
  %s9973 = scalar_lea.vmem [#allocation3], 483
  %v9974 = vld [vmem:[%s9973] ss:$4 sm:$0xff]
  %s9975 = scalar_lea.vmem [#allocation3], 515
  %v9976 = vld [vmem:[%s9975] ss:$4 sm:$0xff]
  %s9977 = scalar_lea.vmem [#allocation3], 547
  %v9978 = vld [vmem:[%s9977] ss:$4 sm:$0xff]
  %s9979 = scalar_lea.vmem [#allocation3], 579
  %v9980 = vld [vmem:[%s9979] ss:$4 sm:$0xff]
  %s9981 = scalar_lea.vmem [#allocation3], 611
  %v9982 = vld [vmem:[%s9981] ss:$4 sm:$0xff]
  %s9983 = scalar_lea.vmem [#allocation3], 643
  %v9984 = vld [vmem:[%s9983] ss:$4 sm:$0xff]
  %s9985 = scalar_lea.vmem [#allocation3], 675
  %v9986 = vld [vmem:[%s9985] ss:$4 sm:$0xff]
  %s9987 = scalar_lea.vmem [#allocation3], 707
  %v9988 = vld [vmem:[%s9987] ss:$4 sm:$0xff]
  %s9989 = scalar_lea.vmem [#allocation3], 739
  %v9990 = vld [vmem:[%s9989] ss:$4 sm:$0xff]
  %s9991 = scalar_lea.vmem [#allocation3], 771
  %v9992 = vld [vmem:[%s9991] ss:$4 sm:$0xff]
  %s9993 = scalar_lea.vmem [#allocation3], 803
  %v9994 = vld [vmem:[%s9993] ss:$4 sm:$0xff]
  %s9995 = scalar_lea.vmem [#allocation3], 835
  %v9996 = vld [vmem:[%s9995] ss:$4 sm:$0xff]
  %s9997 = scalar_lea.vmem [#allocation3], 867
  %v9998 = vld [vmem:[%s9997] ss:$4 sm:$0xff]
  %s9999 = scalar_lea.vmem [#allocation3], 899
  %v10000 = vld [vmem:[%s9999] ss:$4 sm:$0xff]
  %s10001 = scalar_lea.vmem [#allocation3], 931
  %v10002 = vld [vmem:[%s10001] ss:$4 sm:$0xff]
  %s10003 = scalar_lea.vmem [#allocation3], 963
  %v10004 = vld [vmem:[%s10003] ss:$4 sm:$0xff]
  %s10005 = scalar_lea.vmem [#allocation3], 995
  %v10006 = vld [vmem:[%s10005] ss:$4 sm:$0xff]
  %v10007 = vmax.f32 %v9911, %v9944
  %v10008 = vmax.f32 %v9912, %v9946
  %v10009 = vmax.f32 %v9913, %v9948
  %v10010 = vmax.f32 %v9914, %v9950
  %v10011 = vmax.f32 %v9915, %v9952
  %v10012 = vmax.f32 %v9916, %v9954
  %v10013 = vmax.f32 %v9917, %v9956
  %v10014 = vmax.f32 %v9918, %v9958
  %v10015 = vmax.f32 %v9919, %v9960
  %v10016 = vmax.f32 %v9920, %v9962
  %v10017 = vmax.f32 %v9921, %v9964
  %v10018 = vmax.f32 %v9922, %v9966
  %v10019 = vmax.f32 %v9923, %v9968
  %v10020 = vmax.f32 %v9924, %v9970
  %v10021 = vmax.f32 %v9925, %v9972
  %v10022 = vmax.f32 %v9926, %v9974
  %v10023 = vmax.f32 %v9927, %v9976
  %v10024 = vmax.f32 %v9928, %v9978
  %v10025 = vmax.f32 %v9929, %v9980
  %v10026 = vmax.f32 %v9930, %v9982
  %v10027 = vmax.f32 %v9931, %v9984
  %v10028 = vmax.f32 %v9932, %v9986
  %v10029 = vmax.f32 %v9933, %v9988
  %v10030 = vmax.f32 %v9934, %v9990
  %v10031 = vmax.f32 %v9935, %v9992
  %v10032 = vmax.f32 %v9936, %v9994
  %v10033 = vmax.f32 %v9937, %v9996
  %v10034 = vmax.f32 %v9938, %v9998
  %v10035 = vmax.f32 %v9939, %v10000
  %v10036 = vmax.f32 %v9940, %v10002
  %v10037 = vmax.f32 %v9941, %v10004
  %v10038 = vmax.f32 %v9942, %v10006
  %10039 = vst.msk [vmem:[#allocation4] sm:$0xff] %vm1083, %v10007
  %10040 = vst.msk [vmem:[#allocation4 + $0x8] sm:$0xff] %vm1083, %v10008
  %10041 = vst.msk [vmem:[#allocation4 + $0x10] sm:$0xff] %vm1083, %v10009
  %10042 = vst.msk [vmem:[#allocation4 + $0x18] sm:$0xff] %vm1083, %v10010
  %10043 = vst.msk [vmem:[#allocation4 + $0x20] sm:$0xff] %vm1083, %v10011
  %10044 = vst.msk [vmem:[#allocation4 + $0x28] sm:$0xff] %vm1083, %v10012
  %10045 = vst.msk [vmem:[#allocation4 + $0x30] sm:$0xff] %vm1083, %v10013
  %10046 = vst.msk [vmem:[#allocation4 + $0x38] sm:$0xff] %vm1083, %v10014
  %10047 = vst.msk [vmem:[#allocation4 + $0x40] sm:$0xff] %vm1083, %v10015
  %10048 = vst.msk [vmem:[#allocation4 + $0x48] sm:$0xff] %vm1083, %v10016
  %10049 = vst.msk [vmem:[#allocation4 + $0x50] sm:$0xff] %vm1083, %v10017
  %10050 = vst.msk [vmem:[#allocation4 + $0x58] sm:$0xff] %vm1083, %v10018
  %10051 = vst.msk [vmem:[#allocation4 + $0x60] sm:$0xff] %vm1083, %v10019
  %10052 = vst.msk [vmem:[#allocation4 + $0x68] sm:$0xff] %vm1083, %v10020
  %10053 = vst.msk [vmem:[#allocation4 + $0x70] sm:$0xff] %vm1083, %v10021
  %10054 = vst.msk [vmem:[#allocation4 + $0x78] sm:$0xff] %vm1083, %v10022
  %10055 = vst.msk [vmem:[#allocation4 + $0x80] sm:$0xff] %vm1083, %v10023
  %10056 = vst.msk [vmem:[#allocation4 + $0x88] sm:$0xff] %vm1083, %v10024
  %10057 = vst.msk [vmem:[#allocation4 + $0x90] sm:$0xff] %vm1083, %v10025
  %10058 = vst.msk [vmem:[#allocation4 + $0x98] sm:$0xff] %vm1083, %v10026
  %10059 = vst.msk [vmem:[#allocation4 + $0xa0] sm:$0xff] %vm1083, %v10027
  %10060 = vst.msk [vmem:[#allocation4 + $0xa8] sm:$0xff] %vm1083, %v10028
  %10061 = vst.msk [vmem:[#allocation4 + $0xb0] sm:$0xff] %vm1083, %v10029
  %10062 = vst.msk [vmem:[#allocation4 + $0xb8] sm:$0xff] %vm1083, %v10030
  %10063 = vst.msk [vmem:[#allocation4 + $0xc0] sm:$0xff] %vm1083, %v10031
  %10064 = vst.msk [vmem:[#allocation4 + $0xc8] sm:$0xff] %vm1083, %v10032
  %10065 = vst.msk [vmem:[#allocation4 + $0xd0] sm:$0xff] %vm1083, %v10033
  %10066 = vst.msk [vmem:[#allocation4 + $0xd8] sm:$0xff] %vm1083, %v10034
  %10067 = vst.msk [vmem:[#allocation4 + $0xe0] sm:$0xff] %vm1083, %v10035
  %10068 = vst.msk [vmem:[#allocation4 + $0xe8] sm:$0xff] %vm1083, %v10036
  %10069 = vst.msk [vmem:[#allocation4 + $0xf0] sm:$0xff] %vm1083, %v10037
  %10070 = vst.msk [vmem:[#allocation4 + $0xf8] sm:$0xff] %vm1083, %v10038
  %v10071 = vld [vmem:[#allocation4] ss:$16 sm:$0x3]
  %v10072 = vld [vmem:[#allocation4] ss:$16 sm:$0xc]
  %v10073 = vor.u32 %v10071, %v10072
  %v10074 = vld [vmem:[#allocation4] ss:$16 sm:$0x30]
  %v10075 = vor.u32 %v10073, %v10074
  %v10076 = vld [vmem:[#allocation4] ss:$16 sm:$0xc0]
  %v10077 = vor.u32 %v10075, %v10076
  %s10078 = scalar_lea.vmem [#allocation4], 128
  %v10079 = vld [vmem:[%s10078] ss:$16 sm:$0x3]
  %v10080 = vld [vmem:[%s10078] ss:$16 sm:$0xc]
  %v10081 = vor.u32 %v10079, %v10080
  %v10082 = vld [vmem:[%s10078] ss:$16 sm:$0x30]
  %v10083 = vor.u32 %v10081, %v10082
  %v10084 = vld [vmem:[%s10078] ss:$16 sm:$0xc0]
  %v10085 = vor.u32 %v10083, %v10084
  %v10086 = vld [vmem:[%s5] sm:$0xff]
  %s10087 = scalar_lea.vmem [#allocation4], 1
  %v10088 = vld [vmem:[%s10087] ss:$16 sm:$0x3]
  %v10089 = vld [vmem:[%s10087] ss:$16 sm:$0xc]
  %v10090 = vor.u32 %v10088, %v10089
  %v10091 = vld [vmem:[%s10087] ss:$16 sm:$0x30]
  %v10092 = vor.u32 %v10090, %v10091
  %v10093 = vld [vmem:[%s10087] ss:$16 sm:$0xc0]
  %v10094 = vor.u32 %v10092, %v10093
  %s10095 = scalar_lea.vmem [#allocation4], 129
  %v10096 = vld [vmem:[%s10095] ss:$16 sm:$0x3]
  %v10097 = vld [vmem:[%s10095] ss:$16 sm:$0xc]
  %v10098 = vor.u32 %v10096, %v10097
  %v10099 = vld [vmem:[%s10095] ss:$16 sm:$0x30]
  %v10100 = vor.u32 %v10098, %v10099
  %v10101 = vld [vmem:[%s10095] ss:$16 sm:$0xc0]
  %v10102 = vor.u32 %v10100, %v10101
  %s10103 = scalar_lea.vmem %s5, 8
  %v10104 = vld [vmem:[%s10103] sm:$0xff]
  %v10106 = vsel %vm1083, %v10094, 0
  %v10109 = vsel %vm1083, %v10102, 0
  %10111 = vmatpush.msra.mxu0 0.0
  %10112 = vmatpush.msra.mxu0 0.0
  %10113 = vmatpush.msra.mxu0 0.0
  %10114 = vmatpush.msra.mxu0 0.0
  %10115 = vmatpush.msra.mxu0 0.0
  %10116 = vmatpush.msra.mxu0 0.0
  %10117 = vmatpush.msra.mxu0 0.0
  %10118 = vmatpush.msra.mxu0 0.0
  %10119 = vmatpush.msra.mxu0 0.0
  %10120 = vmatpush.msra.mxu0 0.0
  %10121 = vmatpush.msra.mxu0 0.0
  %10122 = vmatpush.msra.mxu0 0.0
  %10123 = vmatpush.msra.mxu0 0.0
  %10124 = vmatpush.msra.mxu0 0.0
  %10125 = vmatpush.msra.mxu0 0.0
  %10126 = vmatpush.msra.mxu0 %v10104
  %10127 = vmatmul.f32.gmra.mxu0 %v10106
  %v10128 = vpop.f32.mrf.mxu0
  %v10129 = vadd.f32 0.0, %v10128
  %10130 = vmatmul.f32.gmra.mxu0 %v10109
  %v10131 = vpop.f32.mrf.mxu0
  %v10132 = vadd.f32 0.0, %v10131
  %10133 = vdwg.mxu0
  %v10135 = vsel %vm1083, %v10077, 0
  %v10138 = vsel %vm1083, %v10085, 0
  %10140 = vmatpush.msra.mxu0 0.0
  %10141 = vmatpush.msra.mxu0 0.0
  %10142 = vmatpush.msra.mxu0 0.0
  %10143 = vmatpush.msra.mxu0 0.0
  %10144 = vmatpush.msra.mxu0 0.0
  %10145 = vmatpush.msra.mxu0 0.0
  %10146 = vmatpush.msra.mxu0 0.0
  %10147 = vmatpush.msra.mxu0 0.0
  %10148 = vmatpush.msra.mxu0 0.0
  %10149 = vmatpush.msra.mxu0 0.0
  %10150 = vmatpush.msra.mxu0 0.0
  %10151 = vmatpush.msra.mxu0 0.0
  %10152 = vmatpush.msra.mxu0 0.0
  %10153 = vmatpush.msra.mxu0 0.0
  %10154 = vmatpush.msra.mxu0 0.0
  %10155 = vmatpush.msra.mxu0 %v10086
  %10156 = vmatmul.f32.gmra.mxu0 %v10135
  %v10157 = vpop.f32.mrf.mxu0
  %v10158 = vadd.f32 %v10129, %v10157
  %10159 = vmatmul.f32.gmra.mxu0 %v10138
  %v10160 = vpop.f32.mrf.mxu0
  %v10161 = vadd.f32 %v10132, %v10160
  %10162 = vdwg.mxu0
  %s10163 = scalar_lea.vmem [#allocation4], 2
  %v10164 = vld [vmem:[%s10163] ss:$16 sm:$0x3]
  %v10165 = vld [vmem:[%s10163] ss:$16 sm:$0xc]
  %v10166 = vor.u32 %v10164, %v10165
  %v10167 = vld [vmem:[%s10163] ss:$16 sm:$0x30]
  %v10168 = vor.u32 %v10166, %v10167
  %v10169 = vld [vmem:[%s10163] ss:$16 sm:$0xc0]
  %v10170 = vor.u32 %v10168, %v10169
  %s10171 = scalar_lea.vmem [#allocation4], 130
  %v10172 = vld [vmem:[%s10171] ss:$16 sm:$0x3]
  %v10173 = vld [vmem:[%s10171] ss:$16 sm:$0xc]
  %v10174 = vor.u32 %v10172, %v10173
  %v10175 = vld [vmem:[%s10171] ss:$16 sm:$0x30]
  %v10176 = vor.u32 %v10174, %v10175
  %v10177 = vld [vmem:[%s10171] ss:$16 sm:$0xc0]
  %v10178 = vor.u32 %v10176, %v10177
  %s10179 = scalar_lea.vmem %s5, 16
  %v10180 = vld [vmem:[%s10179] sm:$0xff]
  %v10182 = vsel %vm1083, %v10170, 0
  %v10185 = vsel %vm1083, %v10178, 0
  %10187 = vmatpush.msra.mxu0 0.0
  %10188 = vmatpush.msra.mxu0 0.0
  %10189 = vmatpush.msra.mxu0 0.0
  %10190 = vmatpush.msra.mxu0 0.0
  %10191 = vmatpush.msra.mxu0 0.0
  %10192 = vmatpush.msra.mxu0 0.0
  %10193 = vmatpush.msra.mxu0 0.0
  %10194 = vmatpush.msra.mxu0 0.0
  %10195 = vmatpush.msra.mxu0 0.0
  %10196 = vmatpush.msra.mxu0 0.0
  %10197 = vmatpush.msra.mxu0 0.0
  %10198 = vmatpush.msra.mxu0 0.0
  %10199 = vmatpush.msra.mxu0 0.0
  %10200 = vmatpush.msra.mxu0 0.0
  %10201 = vmatpush.msra.mxu0 0.0
  %10202 = vmatpush.msra.mxu0 %v10180
  %10203 = vmatmul.f32.gmra.mxu0 %v10182
  %v10204 = vpop.f32.mrf.mxu0
  %v10205 = vadd.f32 0.0, %v10204
  %10206 = vmatmul.f32.gmra.mxu0 %v10185
  %v10207 = vpop.f32.mrf.mxu0
  %v10208 = vadd.f32 0.0, %v10207
  %10209 = vdwg.mxu0
  %v10210 = vadd.f32 %v10158, %v10205
  %v10211 = vadd.f32 %v10161, %v10208
  %s10212 = scalar_lea.vmem [#allocation4], 3
  %v10213 = vld [vmem:[%s10212] ss:$16 sm:$0x3]
  %v10214 = vld [vmem:[%s10212] ss:$16 sm:$0xc]
  %v10215 = vor.u32 %v10213, %v10214
  %v10216 = vld [vmem:[%s10212] ss:$16 sm:$0x30]
  %v10217 = vor.u32 %v10215, %v10216
  %v10218 = vld [vmem:[%s10212] ss:$16 sm:$0xc0]
  %v10219 = vor.u32 %v10217, %v10218
  %s10220 = scalar_lea.vmem [#allocation4], 131
  %v10221 = vld [vmem:[%s10220] ss:$16 sm:$0x3]
  %v10222 = vld [vmem:[%s10220] ss:$16 sm:$0xc]
  %v10223 = vor.u32 %v10221, %v10222
  %v10224 = vld [vmem:[%s10220] ss:$16 sm:$0x30]
  %v10225 = vor.u32 %v10223, %v10224
  %v10226 = vld [vmem:[%s10220] ss:$16 sm:$0xc0]
  %v10227 = vor.u32 %v10225, %v10226
  %s10228 = scalar_lea.vmem %s5, 24
  %v10229 = vld [vmem:[%s10228] sm:$0xff]
  %v10231 = vsel %vm1083, %v10219, 0
  %v10234 = vsel %vm1083, %v10227, 0
  %10236 = vmatpush.msra.mxu0 0.0
  %10237 = vmatpush.msra.mxu0 0.0
  %10238 = vmatpush.msra.mxu0 0.0
  %10239 = vmatpush.msra.mxu0 0.0
  %10240 = vmatpush.msra.mxu0 0.0
  %10241 = vmatpush.msra.mxu0 0.0
  %10242 = vmatpush.msra.mxu0 0.0
  %10243 = vmatpush.msra.mxu0 0.0
  %10244 = vmatpush.msra.mxu0 0.0
  %10245 = vmatpush.msra.mxu0 0.0
  %10246 = vmatpush.msra.mxu0 0.0
  %10247 = vmatpush.msra.mxu0 0.0
  %10248 = vmatpush.msra.mxu0 0.0
  %10249 = vmatpush.msra.mxu0 0.0
  %10250 = vmatpush.msra.mxu0 0.0
  %10251 = vmatpush.msra.mxu0 %v10229
  %10252 = vmatmul.f32.gmra.mxu0 %v10231
  %v10253 = vpop.f32.mrf.mxu0
  %v10254 = vadd.f32 0.0, %v10253
  %10255 = vmatmul.f32.gmra.mxu0 %v10234
  %v10256 = vpop.f32.mrf.mxu0
  %v10257 = vadd.f32 0.0, %v10256
  %10258 = vdwg.mxu0
  %v10259 = vadd.f32 %v10210, %v10254
  %v10260 = vadd.f32 %v10211, %v10257
  %s10261 = scalar_lea.vmem [#allocation4], 4
  %v10262 = vld [vmem:[%s10261] ss:$16 sm:$0x3]
  %v10263 = vld [vmem:[%s10261] ss:$16 sm:$0xc]
  %v10264 = vor.u32 %v10262, %v10263
  %v10265 = vld [vmem:[%s10261] ss:$16 sm:$0x30]
  %v10266 = vor.u32 %v10264, %v10265
  %v10267 = vld [vmem:[%s10261] ss:$16 sm:$0xc0]
  %v10268 = vor.u32 %v10266, %v10267
  %s10269 = scalar_lea.vmem [#allocation4], 132
  %v10270 = vld [vmem:[%s10269] ss:$16 sm:$0x3]
  %v10271 = vld [vmem:[%s10269] ss:$16 sm:$0xc]
  %v10272 = vor.u32 %v10270, %v10271
  %v10273 = vld [vmem:[%s10269] ss:$16 sm:$0x30]
  %v10274 = vor.u32 %v10272, %v10273
  %v10275 = vld [vmem:[%s10269] ss:$16 sm:$0xc0]
  %v10276 = vor.u32 %v10274, %v10275
  %s10277 = scalar_lea.vmem %s5, 32
  %v10278 = vld [vmem:[%s10277] sm:$0xff]
  %v10280 = vsel %vm1083, %v10268, 0
  %v10283 = vsel %vm1083, %v10276, 0
  %10285 = vmatpush.msra.mxu0 0.0
  %10286 = vmatpush.msra.mxu0 0.0
  %10287 = vmatpush.msra.mxu0 0.0
  %10288 = vmatpush.msra.mxu0 0.0
  %10289 = vmatpush.msra.mxu0 0.0
  %10290 = vmatpush.msra.mxu0 0.0
  %10291 = vmatpush.msra.mxu0 0.0
  %10292 = vmatpush.msra.mxu0 0.0
  %10293 = vmatpush.msra.mxu0 0.0
  %10294 = vmatpush.msra.mxu0 0.0
  %10295 = vmatpush.msra.mxu0 0.0
  %10296 = vmatpush.msra.mxu0 0.0
  %10297 = vmatpush.msra.mxu0 0.0
  %10298 = vmatpush.msra.mxu0 0.0
  %10299 = vmatpush.msra.mxu0 0.0
  %10300 = vmatpush.msra.mxu0 %v10278
  %10301 = vmatmul.f32.gmra.mxu0 %v10280
  %v10302 = vpop.f32.mrf.mxu0
  %v10303 = vadd.f32 0.0, %v10302
  %10304 = vmatmul.f32.gmra.mxu0 %v10283
  %v10305 = vpop.f32.mrf.mxu0
  %v10306 = vadd.f32 0.0, %v10305
  %10307 = vdwg.mxu0
  %v10308 = vadd.f32 %v10259, %v10303
  %v10309 = vadd.f32 %v10260, %v10306
  %s10310 = scalar_lea.vmem [#allocation4], 5
  %v10311 = vld [vmem:[%s10310] ss:$16 sm:$0x3]
  %v10312 = vld [vmem:[%s10310] ss:$16 sm:$0xc]
  %v10313 = vor.u32 %v10311, %v10312
  %v10314 = vld [vmem:[%s10310] ss:$16 sm:$0x30]
  %v10315 = vor.u32 %v10313, %v10314
  %v10316 = vld [vmem:[%s10310] ss:$16 sm:$0xc0]
  %v10317 = vor.u32 %v10315, %v10316
  %s10318 = scalar_lea.vmem [#allocation4], 133
  %v10319 = vld [vmem:[%s10318] ss:$16 sm:$0x3]
  %v10320 = vld [vmem:[%s10318] ss:$16 sm:$0xc]
  %v10321 = vor.u32 %v10319, %v10320
  %v10322 = vld [vmem:[%s10318] ss:$16 sm:$0x30]
  %v10323 = vor.u32 %v10321, %v10322
  %v10324 = vld [vmem:[%s10318] ss:$16 sm:$0xc0]
  %v10325 = vor.u32 %v10323, %v10324
  %s10326 = scalar_lea.vmem %s5, 40
  %v10327 = vld [vmem:[%s10326] sm:$0xff]
  %v10329 = vsel %vm1083, %v10317, 0
  %v10332 = vsel %vm1083, %v10325, 0
  %10334 = vmatpush.msra.mxu0 0.0
  %10335 = vmatpush.msra.mxu0 0.0
  %10336 = vmatpush.msra.mxu0 0.0
  %10337 = vmatpush.msra.mxu0 0.0
  %10338 = vmatpush.msra.mxu0 0.0
  %10339 = vmatpush.msra.mxu0 0.0
  %10340 = vmatpush.msra.mxu0 0.0
  %10341 = vmatpush.msra.mxu0 0.0
  %10342 = vmatpush.msra.mxu0 0.0
  %10343 = vmatpush.msra.mxu0 0.0
  %10344 = vmatpush.msra.mxu0 0.0
  %10345 = vmatpush.msra.mxu0 0.0
  %10346 = vmatpush.msra.mxu0 0.0
  %10347 = vmatpush.msra.mxu0 0.0
  %10348 = vmatpush.msra.mxu0 0.0
  %10349 = vmatpush.msra.mxu0 %v10327
  %10350 = vmatmul.f32.gmra.mxu0 %v10329
  %v10351 = vpop.f32.mrf.mxu0
  %v10352 = vadd.f32 0.0, %v10351
  %10353 = vmatmul.f32.gmra.mxu0 %v10332
  %v10354 = vpop.f32.mrf.mxu0
  %v10355 = vadd.f32 0.0, %v10354
  %10356 = vdwg.mxu0
  %v10357 = vadd.f32 %v10308, %v10352
  %v10358 = vadd.f32 %v10309, %v10355
  %s10359 = scalar_lea.vmem [#allocation4], 6
  %v10360 = vld [vmem:[%s10359] ss:$16 sm:$0x3]
  %v10361 = vld [vmem:[%s10359] ss:$16 sm:$0xc]
  %v10362 = vor.u32 %v10360, %v10361
  %v10363 = vld [vmem:[%s10359] ss:$16 sm:$0x30]
  %v10364 = vor.u32 %v10362, %v10363
  %v10365 = vld [vmem:[%s10359] ss:$16 sm:$0xc0]
  %v10366 = vor.u32 %v10364, %v10365
  %s10367 = scalar_lea.vmem [#allocation4], 134
  %v10368 = vld [vmem:[%s10367] ss:$16 sm:$0x3]
  %v10369 = vld [vmem:[%s10367] ss:$16 sm:$0xc]
  %v10370 = vor.u32 %v10368, %v10369
  %v10371 = vld [vmem:[%s10367] ss:$16 sm:$0x30]
  %v10372 = vor.u32 %v10370, %v10371
  %v10373 = vld [vmem:[%s10367] ss:$16 sm:$0xc0]
  %v10374 = vor.u32 %v10372, %v10373
  %s10375 = scalar_lea.vmem %s5, 48
  %v10376 = vld [vmem:[%s10375] sm:$0xff]
  %v10378 = vsel %vm1083, %v10366, 0
  %v10381 = vsel %vm1083, %v10374, 0
  %10383 = vmatpush.msra.mxu0 0.0
  %10384 = vmatpush.msra.mxu0 0.0
  %10385 = vmatpush.msra.mxu0 0.0
  %10386 = vmatpush.msra.mxu0 0.0
  %10387 = vmatpush.msra.mxu0 0.0
  %10388 = vmatpush.msra.mxu0 0.0
  %10389 = vmatpush.msra.mxu0 0.0
  %10390 = vmatpush.msra.mxu0 0.0
  %10391 = vmatpush.msra.mxu0 0.0
  %10392 = vmatpush.msra.mxu0 0.0
  %10393 = vmatpush.msra.mxu0 0.0
  %10394 = vmatpush.msra.mxu0 0.0
  %10395 = vmatpush.msra.mxu0 0.0
  %10396 = vmatpush.msra.mxu0 0.0
  %10397 = vmatpush.msra.mxu0 0.0
  %10398 = vmatpush.msra.mxu0 %v10376
  %10399 = vmatmul.f32.gmra.mxu0 %v10378
  %v10400 = vpop.f32.mrf.mxu0
  %v10401 = vadd.f32 0.0, %v10400
  %10402 = vmatmul.f32.gmra.mxu0 %v10381
  %v10403 = vpop.f32.mrf.mxu0
  %v10404 = vadd.f32 0.0, %v10403
  %10405 = vdwg.mxu0
  %v10406 = vadd.f32 %v10357, %v10401
  %v10407 = vadd.f32 %v10358, %v10404
  %s10408 = scalar_lea.vmem [#allocation4], 7
  %v10409 = vld [vmem:[%s10408] ss:$16 sm:$0x3]
  %v10410 = vld [vmem:[%s10408] ss:$16 sm:$0xc]
  %v10411 = vor.u32 %v10409, %v10410
  %v10412 = vld [vmem:[%s10408] ss:$16 sm:$0x30]
  %v10413 = vor.u32 %v10411, %v10412
  %v10414 = vld [vmem:[%s10408] ss:$16 sm:$0xc0]
  %v10415 = vor.u32 %v10413, %v10414
  %s10416 = scalar_lea.vmem [#allocation4], 135
  %v10417 = vld [vmem:[%s10416] ss:$16 sm:$0x3]
  %v10418 = vld [vmem:[%s10416] ss:$16 sm:$0xc]
  %v10419 = vor.u32 %v10417, %v10418
  %v10420 = vld [vmem:[%s10416] ss:$16 sm:$0x30]
  %v10421 = vor.u32 %v10419, %v10420
  %v10422 = vld [vmem:[%s10416] ss:$16 sm:$0xc0]
  %v10423 = vor.u32 %v10421, %v10422
  %s10424 = scalar_lea.vmem %s5, 56
  %v10425 = vld [vmem:[%s10424] sm:$0xff]
  %v10427 = vsel %vm1083, %v10415, 0
  %v10430 = vsel %vm1083, %v10423, 0
  %10432 = vmatpush.msra.mxu0 0.0
  %10433 = vmatpush.msra.mxu0 0.0
  %10434 = vmatpush.msra.mxu0 0.0
  %10435 = vmatpush.msra.mxu0 0.0
  %10436 = vmatpush.msra.mxu0 0.0
  %10437 = vmatpush.msra.mxu0 0.0
  %10438 = vmatpush.msra.mxu0 0.0
  %10439 = vmatpush.msra.mxu0 0.0
  %10440 = vmatpush.msra.mxu0 0.0
  %10441 = vmatpush.msra.mxu0 0.0
  %10442 = vmatpush.msra.mxu0 0.0
  %10443 = vmatpush.msra.mxu0 0.0
  %10444 = vmatpush.msra.mxu0 0.0
  %10445 = vmatpush.msra.mxu0 0.0
  %10446 = vmatpush.msra.mxu0 0.0
  %10447 = vmatpush.msra.mxu0 %v10425
  %10448 = vmatmul.f32.gmra.mxu0 %v10427
  %v10449 = vpop.f32.mrf.mxu0
  %v10450 = vadd.f32 0.0, %v10449
  %10451 = vmatmul.f32.gmra.mxu0 %v10430
  %v10452 = vpop.f32.mrf.mxu0
  %v10453 = vadd.f32 0.0, %v10452
  %10454 = vdwg.mxu0
  %v10455 = vadd.f32 %v10406, %v10450
  %v10456 = vadd.f32 %v10407, %v10453
  %s10457 = scalar_lea.vmem [#allocation4], 8
  %v10458 = vld [vmem:[%s10457] ss:$16 sm:$0x3]
  %v10459 = vld [vmem:[%s10457] ss:$16 sm:$0xc]
  %v10460 = vor.u32 %v10458, %v10459
  %v10461 = vld [vmem:[%s10457] ss:$16 sm:$0x30]
  %v10462 = vor.u32 %v10460, %v10461
  %v10463 = vld [vmem:[%s10457] ss:$16 sm:$0xc0]
  %v10464 = vor.u32 %v10462, %v10463
  %s10465 = scalar_lea.vmem [#allocation4], 136
  %v10466 = vld [vmem:[%s10465] ss:$16 sm:$0x3]
  %v10467 = vld [vmem:[%s10465] ss:$16 sm:$0xc]
  %v10468 = vor.u32 %v10466, %v10467
  %v10469 = vld [vmem:[%s10465] ss:$16 sm:$0x30]
  %v10470 = vor.u32 %v10468, %v10469
  %v10471 = vld [vmem:[%s10465] ss:$16 sm:$0xc0]
  %v10472 = vor.u32 %v10470, %v10471
  %s10473 = scalar_lea.vmem %s5, 64
  %v10474 = vld [vmem:[%s10473] sm:$0xff]
  %v10476 = vsel %vm1083, %v10464, 0
  %v10479 = vsel %vm1083, %v10472, 0
  %10481 = vmatpush.msra.mxu0 0.0
  %10482 = vmatpush.msra.mxu0 0.0
  %10483 = vmatpush.msra.mxu0 0.0
  %10484 = vmatpush.msra.mxu0 0.0
  %10485 = vmatpush.msra.mxu0 0.0
  %10486 = vmatpush.msra.mxu0 0.0
  %10487 = vmatpush.msra.mxu0 0.0
  %10488 = vmatpush.msra.mxu0 0.0
  %10489 = vmatpush.msra.mxu0 0.0
  %10490 = vmatpush.msra.mxu0 0.0
  %10491 = vmatpush.msra.mxu0 0.0
  %10492 = vmatpush.msra.mxu0 0.0
  %10493 = vmatpush.msra.mxu0 0.0
  %10494 = vmatpush.msra.mxu0 0.0
  %10495 = vmatpush.msra.mxu0 0.0
  %10496 = vmatpush.msra.mxu0 %v10474
  %10497 = vmatmul.f32.gmra.mxu0 %v10476
  %v10498 = vpop.f32.mrf.mxu0
  %v10499 = vadd.f32 0.0, %v10498
  %10500 = vmatmul.f32.gmra.mxu0 %v10479
  %v10501 = vpop.f32.mrf.mxu0
  %v10502 = vadd.f32 0.0, %v10501
  %10503 = vdwg.mxu0
  %v10504 = vadd.f32 %v10455, %v10499
  %v10505 = vadd.f32 %v10456, %v10502
  %s10506 = scalar_lea.vmem [#allocation4], 9
  %v10507 = vld [vmem:[%s10506] ss:$16 sm:$0x3]
  %v10508 = vld [vmem:[%s10506] ss:$16 sm:$0xc]
  %v10509 = vor.u32 %v10507, %v10508
  %v10510 = vld [vmem:[%s10506] ss:$16 sm:$0x30]
  %v10511 = vor.u32 %v10509, %v10510
  %v10512 = vld [vmem:[%s10506] ss:$16 sm:$0xc0]
  %v10513 = vor.u32 %v10511, %v10512
  %s10514 = scalar_lea.vmem [#allocation4], 137
  %v10515 = vld [vmem:[%s10514] ss:$16 sm:$0x3]
  %v10516 = vld [vmem:[%s10514] ss:$16 sm:$0xc]
  %v10517 = vor.u32 %v10515, %v10516
  %v10518 = vld [vmem:[%s10514] ss:$16 sm:$0x30]
  %v10519 = vor.u32 %v10517, %v10518
  %v10520 = vld [vmem:[%s10514] ss:$16 sm:$0xc0]
  %v10521 = vor.u32 %v10519, %v10520
  %s10522 = scalar_lea.vmem %s5, 72
  %v10523 = vld [vmem:[%s10522] sm:$0xff]
  %v10525 = vsel %vm1083, %v10513, 0
  %v10528 = vsel %vm1083, %v10521, 0
  %10530 = vmatpush.msra.mxu0 0.0
  %10531 = vmatpush.msra.mxu0 0.0
  %10532 = vmatpush.msra.mxu0 0.0
  %10533 = vmatpush.msra.mxu0 0.0
  %10534 = vmatpush.msra.mxu0 0.0
  %10535 = vmatpush.msra.mxu0 0.0
  %10536 = vmatpush.msra.mxu0 0.0
  %10537 = vmatpush.msra.mxu0 0.0
  %10538 = vmatpush.msra.mxu0 0.0
  %10539 = vmatpush.msra.mxu0 0.0
  %10540 = vmatpush.msra.mxu0 0.0
  %10541 = vmatpush.msra.mxu0 0.0
  %10542 = vmatpush.msra.mxu0 0.0
  %10543 = vmatpush.msra.mxu0 0.0
  %10544 = vmatpush.msra.mxu0 0.0
  %10545 = vmatpush.msra.mxu0 %v10523
  %10546 = vmatmul.f32.gmra.mxu0 %v10525
  %v10547 = vpop.f32.mrf.mxu0
  %v10548 = vadd.f32 0.0, %v10547
  %10549 = vmatmul.f32.gmra.mxu0 %v10528
  %v10550 = vpop.f32.mrf.mxu0
  %v10551 = vadd.f32 0.0, %v10550
  %10552 = vdwg.mxu0
  %v10553 = vadd.f32 %v10504, %v10548
  %v10554 = vadd.f32 %v10505, %v10551
  %s10555 = scalar_lea.vmem [#allocation4], 10
  %v10556 = vld [vmem:[%s10555] ss:$16 sm:$0x3]
  %v10557 = vld [vmem:[%s10555] ss:$16 sm:$0xc]
  %v10558 = vor.u32 %v10556, %v10557
  %v10559 = vld [vmem:[%s10555] ss:$16 sm:$0x30]
  %v10560 = vor.u32 %v10558, %v10559
  %v10561 = vld [vmem:[%s10555] ss:$16 sm:$0xc0]
  %v10562 = vor.u32 %v10560, %v10561
  %s10563 = scalar_lea.vmem [#allocation4], 138
  %v10564 = vld [vmem:[%s10563] ss:$16 sm:$0x3]
  %v10565 = vld [vmem:[%s10563] ss:$16 sm:$0xc]
  %v10566 = vor.u32 %v10564, %v10565
  %v10567 = vld [vmem:[%s10563] ss:$16 sm:$0x30]
  %v10568 = vor.u32 %v10566, %v10567
  %v10569 = vld [vmem:[%s10563] ss:$16 sm:$0xc0]
  %v10570 = vor.u32 %v10568, %v10569
  %s10571 = scalar_lea.vmem %s5, 80
  %v10572 = vld [vmem:[%s10571] sm:$0xff]
  %v10574 = vsel %vm1083, %v10562, 0
  %v10577 = vsel %vm1083, %v10570, 0
  %10579 = vmatpush.msra.mxu0 0.0
  %10580 = vmatpush.msra.mxu0 0.0
  %10581 = vmatpush.msra.mxu0 0.0
  %10582 = vmatpush.msra.mxu0 0.0
  %10583 = vmatpush.msra.mxu0 0.0
  %10584 = vmatpush.msra.mxu0 0.0
  %10585 = vmatpush.msra.mxu0 0.0
  %10586 = vmatpush.msra.mxu0 0.0
  %10587 = vmatpush.msra.mxu0 0.0
  %10588 = vmatpush.msra.mxu0 0.0
  %10589 = vmatpush.msra.mxu0 0.0
  %10590 = vmatpush.msra.mxu0 0.0
  %10591 = vmatpush.msra.mxu0 0.0
  %10592 = vmatpush.msra.mxu0 0.0
  %10593 = vmatpush.msra.mxu0 0.0
  %10594 = vmatpush.msra.mxu0 %v10572
  %10595 = vmatmul.f32.gmra.mxu0 %v10574
  %v10596 = vpop.f32.mrf.mxu0
  %v10597 = vadd.f32 0.0, %v10596
  %10598 = vmatmul.f32.gmra.mxu0 %v10577
  %v10599 = vpop.f32.mrf.mxu0
  %v10600 = vadd.f32 0.0, %v10599
  %10601 = vdwg.mxu0
  %v10602 = vadd.f32 %v10553, %v10597
  %v10603 = vadd.f32 %v10554, %v10600
  %s10604 = scalar_lea.vmem [#allocation4], 11
  %v10605 = vld [vmem:[%s10604] ss:$16 sm:$0x3]
  %v10606 = vld [vmem:[%s10604] ss:$16 sm:$0xc]
  %v10607 = vor.u32 %v10605, %v10606
  %v10608 = vld [vmem:[%s10604] ss:$16 sm:$0x30]
  %v10609 = vor.u32 %v10607, %v10608
  %v10610 = vld [vmem:[%s10604] ss:$16 sm:$0xc0]
  %v10611 = vor.u32 %v10609, %v10610
  %s10612 = scalar_lea.vmem [#allocation4], 139
  %v10613 = vld [vmem:[%s10612] ss:$16 sm:$0x3]
  %v10614 = vld [vmem:[%s10612] ss:$16 sm:$0xc]
  %v10615 = vor.u32 %v10613, %v10614
  %v10616 = vld [vmem:[%s10612] ss:$16 sm:$0x30]
  %v10617 = vor.u32 %v10615, %v10616
  %v10618 = vld [vmem:[%s10612] ss:$16 sm:$0xc0]
  %v10619 = vor.u32 %v10617, %v10618
  %s10620 = scalar_lea.vmem %s5, 88
  %v10621 = vld [vmem:[%s10620] sm:$0xff]
  %v10623 = vsel %vm1083, %v10611, 0
  %v10626 = vsel %vm1083, %v10619, 0
  %10628 = vmatpush.msra.mxu0 0.0
  %10629 = vmatpush.msra.mxu0 0.0
  %10630 = vmatpush.msra.mxu0 0.0
  %10631 = vmatpush.msra.mxu0 0.0
  %10632 = vmatpush.msra.mxu0 0.0
  %10633 = vmatpush.msra.mxu0 0.0
  %10634 = vmatpush.msra.mxu0 0.0
  %10635 = vmatpush.msra.mxu0 0.0
  %10636 = vmatpush.msra.mxu0 0.0
  %10637 = vmatpush.msra.mxu0 0.0
  %10638 = vmatpush.msra.mxu0 0.0
  %10639 = vmatpush.msra.mxu0 0.0
  %10640 = vmatpush.msra.mxu0 0.0
  %10641 = vmatpush.msra.mxu0 0.0
  %10642 = vmatpush.msra.mxu0 0.0
  %10643 = vmatpush.msra.mxu0 %v10621
  %10644 = vmatmul.f32.gmra.mxu0 %v10623
  %v10645 = vpop.f32.mrf.mxu0
  %v10646 = vadd.f32 0.0, %v10645
  %10647 = vmatmul.f32.gmra.mxu0 %v10626
  %v10648 = vpop.f32.mrf.mxu0
  %v10649 = vadd.f32 0.0, %v10648
  %10650 = vdwg.mxu0
  %v10651 = vadd.f32 %v10602, %v10646
  %v10652 = vadd.f32 %v10603, %v10649
  %s10653 = scalar_lea.vmem [#allocation4], 12
  %v10654 = vld [vmem:[%s10653] ss:$16 sm:$0x3]
  %v10655 = vld [vmem:[%s10653] ss:$16 sm:$0xc]
  %v10656 = vor.u32 %v10654, %v10655
  %v10657 = vld [vmem:[%s10653] ss:$16 sm:$0x30]
  %v10658 = vor.u32 %v10656, %v10657
  %v10659 = vld [vmem:[%s10653] ss:$16 sm:$0xc0]
  %v10660 = vor.u32 %v10658, %v10659
  %s10661 = scalar_lea.vmem [#allocation4], 140
  %v10662 = vld [vmem:[%s10661] ss:$16 sm:$0x3]
  %v10663 = vld [vmem:[%s10661] ss:$16 sm:$0xc]
  %v10664 = vor.u32 %v10662, %v10663
  %v10665 = vld [vmem:[%s10661] ss:$16 sm:$0x30]
  %v10666 = vor.u32 %v10664, %v10665
  %v10667 = vld [vmem:[%s10661] ss:$16 sm:$0xc0]
  %v10668 = vor.u32 %v10666, %v10667
  %s10669 = scalar_lea.vmem %s5, 96
  %v10670 = vld [vmem:[%s10669] sm:$0xff]
  %v10672 = vsel %vm1083, %v10660, 0
  %v10675 = vsel %vm1083, %v10668, 0
  %10677 = vmatpush.msra.mxu0 0.0
  %10678 = vmatpush.msra.mxu0 0.0
  %10679 = vmatpush.msra.mxu0 0.0
  %10680 = vmatpush.msra.mxu0 0.0
  %10681 = vmatpush.msra.mxu0 0.0
  %10682 = vmatpush.msra.mxu0 0.0
  %10683 = vmatpush.msra.mxu0 0.0
  %10684 = vmatpush.msra.mxu0 0.0
  %10685 = vmatpush.msra.mxu0 0.0
  %10686 = vmatpush.msra.mxu0 0.0
  %10687 = vmatpush.msra.mxu0 0.0
  %10688 = vmatpush.msra.mxu0 0.0
  %10689 = vmatpush.msra.mxu0 0.0
  %10690 = vmatpush.msra.mxu0 0.0
  %10691 = vmatpush.msra.mxu0 0.0
  %10692 = vmatpush.msra.mxu0 %v10670
  %10693 = vmatmul.f32.gmra.mxu0 %v10672
  %v10694 = vpop.f32.mrf.mxu0
  %v10695 = vadd.f32 0.0, %v10694
  %10696 = vmatmul.f32.gmra.mxu0 %v10675
  %v10697 = vpop.f32.mrf.mxu0
  %v10698 = vadd.f32 0.0, %v10697
  %10699 = vdwg.mxu0
  %v10700 = vadd.f32 %v10651, %v10695
  %v10701 = vadd.f32 %v10652, %v10698
  %s10702 = scalar_lea.vmem [#allocation4], 13
  %v10703 = vld [vmem:[%s10702] ss:$16 sm:$0x3]
  %v10704 = vld [vmem:[%s10702] ss:$16 sm:$0xc]
  %v10705 = vor.u32 %v10703, %v10704
  %v10706 = vld [vmem:[%s10702] ss:$16 sm:$0x30]
  %v10707 = vor.u32 %v10705, %v10706
  %v10708 = vld [vmem:[%s10702] ss:$16 sm:$0xc0]
  %v10709 = vor.u32 %v10707, %v10708
  %s10710 = scalar_lea.vmem [#allocation4], 141
  %v10711 = vld [vmem:[%s10710] ss:$16 sm:$0x3]
  %v10712 = vld [vmem:[%s10710] ss:$16 sm:$0xc]
  %v10713 = vor.u32 %v10711, %v10712
  %v10714 = vld [vmem:[%s10710] ss:$16 sm:$0x30]
  %v10715 = vor.u32 %v10713, %v10714
  %v10716 = vld [vmem:[%s10710] ss:$16 sm:$0xc0]
  %v10717 = vor.u32 %v10715, %v10716
  %s10718 = scalar_lea.vmem %s5, 104
  %v10719 = vld [vmem:[%s10718] sm:$0xff]
  %v10721 = vsel %vm1083, %v10709, 0
  %v10724 = vsel %vm1083, %v10717, 0
  %10726 = vmatpush.msra.mxu0 0.0
  %10727 = vmatpush.msra.mxu0 0.0
  %10728 = vmatpush.msra.mxu0 0.0
  %10729 = vmatpush.msra.mxu0 0.0
  %10730 = vmatpush.msra.mxu0 0.0
  %10731 = vmatpush.msra.mxu0 0.0
  %10732 = vmatpush.msra.mxu0 0.0
  %10733 = vmatpush.msra.mxu0 0.0
  %10734 = vmatpush.msra.mxu0 0.0
  %10735 = vmatpush.msra.mxu0 0.0
  %10736 = vmatpush.msra.mxu0 0.0
  %10737 = vmatpush.msra.mxu0 0.0
  %10738 = vmatpush.msra.mxu0 0.0
  %10739 = vmatpush.msra.mxu0 0.0
  %10740 = vmatpush.msra.mxu0 0.0
  %10741 = vmatpush.msra.mxu0 %v10719
  %10742 = vmatmul.f32.gmra.mxu0 %v10721
  %v10743 = vpop.f32.mrf.mxu0
  %v10744 = vadd.f32 0.0, %v10743
  %10745 = vmatmul.f32.gmra.mxu0 %v10724
  %v10746 = vpop.f32.mrf.mxu0
  %v10747 = vadd.f32 0.0, %v10746
  %10748 = vdwg.mxu0
  %v10749 = vadd.f32 %v10700, %v10744
  %v10750 = vadd.f32 %v10701, %v10747
  %v10751 = vld [vmem:[%s6] sm:$0x1]
  %v10753 = vperm.slane %v10751, 0
  %v10755 = vadd.f32 %v10749, %v10753
  %v10756 = vadd.f32 %v10750, %v10753
  %v10757 = vld [vmem:[%s7] sm:$0xff]
  %v10758 = vld [vmem:[%s7 + $0x8] sm:$0xff]
  %v10759 = vld [vmem:[%s7 + $0x10] sm:$0xff]
  %v10760 = vld [vmem:[%s7 + $0x18] sm:$0xff]
  %v10761 = vld [vmem:[%s7 + $0x20] sm:$0xff]
  %v10762 = vld [vmem:[%s7 + $0x28] sm:$0xff]
  %v10763 = vld [vmem:[%s7 + $0x30] sm:$0xff]
  %v10764 = vld [vmem:[%s7 + $0x38] sm:$0xff]
  %v10765 = vld [vmem:[%s7 + $0x40] sm:$0xff]
  %v10766 = vld [vmem:[%s7 + $0x48] sm:$0xff]
  %v10767 = vld [vmem:[%s7 + $0x50] sm:$0xff]
  %v10768 = vld [vmem:[%s7 + $0x58] sm:$0xff]
  %v10769 = vld [vmem:[%s7 + $0x60] sm:$0xf]
  %v10770 = vld [vmem:[%s8] sm:$0x1]
  %v10772 = vperm.slane %v10770, 0
  %vm10774 = vcmask 818176
  %v10776 = vsel %vm10774, %v10755, 0
  %v10779 = vsel %vm10774, %v10756, 0
  %v10782 = vsel %vm550, %v10769, 0
  %10784 = vmatpush.msra.mxu0 0.0
  %10785 = vmatpush.msra.mxu0 0.0
  %10786 = vmatpush.msra.mxu0 0.0
  %10787 = vmatpush.msra.mxu0 %v10782
  %10788 = vmatpush.msra.mxu0 %v10768
  %10789 = vmatpush.msra.mxu0 %v10767
  %10790 = vmatpush.msra.mxu0 %v10766
  %10791 = vmatpush.msra.mxu0 %v10765
  %10792 = vmatpush.msra.mxu0 %v10764
  %10793 = vmatpush.msra.mxu0 %v10763
  %10794 = vmatpush.msra.mxu0 %v10762
  %10795 = vmatpush.msra.mxu0 %v10761
  %10796 = vmatpush.msra.mxu0 %v10760
  %10797 = vmatpush.msra.mxu0 %v10759
  %10798 = vmatpush.msra.mxu0 %v10758
  %10799 = vmatpush.msra.mxu0 %v10757
  %10800 = vmatmul.f32.gmra.mxu0 %v10776
  %v10801 = vpop.f32.mrf.mxu0
  %v10802 = vadd.f32 %v10772, %v10801
  %10803 = vmatmul.f32.gmra.mxu0 %v10779
  %v10804 = vpop.f32.mrf.mxu0
  %v10805 = vadd.f32 %v10772, %v10804
  %10806 = vdwg.mxu0
  %vm10807 = vcmask 39936
  %10808 = vst.msk [vmem:[%s9] sm:$0xff] %vm10807, %v10802
  %10809 = vst.msk [vmem:[%s9 + $0x8] sm:$0xff] %vm10807, %v10805
  // Predicated region
  $region38: #{ssl_linear_forward.1} parent=0 // pred_check
    _
  $region39: #{ssl_linear_forward.1} parent=0 // pred_check_branch
    %10811 = sbr.rel (0) target = $region41
  $region40: #{ssl_linear_forward.1} parent=0 // pred_region
    _
  $region41: #{ssl_linear_forward.1} parent=0 // pred_fallthru
    _
  // Predicated region
  $region42: #{ssl_linear_forward.1} parent=0 // pred_check
    _
  $region43: #{ssl_linear_forward.1} parent=0 // pred_check_branch
    %10813 = sbr.rel (0) target = $region45
  $region44: #{ssl_linear_forward.1} parent=0 // pred_region
    _
  $region45: #{ssl_linear_forward.1} parent=0 // pred_fallthru
    _

</llo_original>
